<compile_context>
chip_gen: v7x
topology: tpu7x:2x2x1
jax: 0.10.0
libtpu: 0.0.40
codegen_flags: <defaults>
</compile_context>

<pallas_src>
from functools import partial

import jax
import jax.numpy as jnp
from jax.experimental import pallas as pl
from jax.experimental.pallas import tpu as pltpu

D_FEAT = 2560      # backbone feature dim
D_BOT = 128        # bottleneck_dim
N_CLS = 100        # real classifier output dim
N_PAD = 128        # classifier columns padded to a lane-dense multiple of 128


def _adapter_kernel(x_ref, w1_ref, b1_ref, w2_ref, b2_ref, wc_ref, bc_ref,
                    out_ref):
    # x: (TM, 2560) f32 | w*: bf16 | b*: f32 | out: (TM, 128) f32
    x = x_ref[...].astype(jnp.bfloat16)

    # adapter: Linear(2560 -> 128) + ReLU   (Dropout = identity in eval)
    h = jnp.dot(x, w1_ref[...], preferred_element_type=jnp.float32)
    h = jnp.maximum(h + b1_ref[...], 0.0)

    # adapter: Linear(128 -> 2560) + ReLU   (Dropout = identity in eval)
    a = jnp.dot(h.astype(jnp.bfloat16), w2_ref[...],
                preferred_element_type=jnp.float32)
    a = jnp.maximum(a + b2_ref[...], 0.0)

    # classifier: Linear(2560 -> 128 padded); real logits live in columns [:100]
    o = jnp.dot(a.astype(jnp.bfloat16), wc_ref[...],
                preferred_element_type=jnp.float32)
    out_ref[...] = (o + bc_ref[...]).astype(out_ref.dtype)


def _call(x_pad, w1, b1, w2, b2, wc, bc, tile_m):
    b_pad = x_pad.shape[0]
    const = lambda i: (0, 0)   # weight/bias blocks never change across the grid
    return pl.pallas_call(
        _adapter_kernel,
        out_shape=jax.ShapeDtypeStruct((b_pad, N_PAD), jnp.float32),
        grid_spec=pltpu.PrefetchScalarGridSpec(
            num_scalar_prefetch=0,
            grid=(b_pad // tile_m,),
            in_specs=[
                pl.BlockSpec((tile_m, D_FEAT), lambda i: (i, 0)),   # features
                pl.BlockSpec((D_FEAT, D_BOT), const),               # w1 (bf16)
                pl.BlockSpec((1, D_BOT), const),                    # b1 (f32)
                pl.BlockSpec((D_BOT, D_FEAT), const),               # w2 (bf16)
                pl.BlockSpec((1, D_FEAT), const),                   # b2 (f32)
                pl.BlockSpec((D_FEAT, N_PAD), const),               # wc padded (bf16)
                pl.BlockSpec((1, N_PAD), const),                    # bc padded (f32)
            ],
            out_specs=pl.BlockSpec((tile_m, N_PAD), lambda i: (i, 0)),
        ),
        compiler_params=pltpu.CompilerParams(
            dimension_semantics=("parallel",),   # batch shards across TCs (v7x)
        ),
    )(x_pad, w1, b1, w2, b2, wc, bc)


@partial(jax.jit, static_argnames=("tile_m",))
def baseline_adapter_forward(features, params, *, tile_m=128):
    """features: [B, 2560] float32 -> logits [B, 100] float32."""
    w1, b1, w2, b2, wc, bc = params
    B, D = features.shape
    assert D == D_FEAT

    # bf16 weights: halve resident footprint + HBM traffic, native MXU dtype.
    w1b = w1.astype(jnp.bfloat16)
    w2b = w2.astype(jnp.bfloat16)
    # Pad the classifier to 128 lane-dense output columns.
    wcb = jnp.zeros((D_FEAT, N_PAD), jnp.bfloat16).at[:, :N_CLS].set(
        wc.astype(jnp.bfloat16))
    bcb = jnp.zeros((1, N_PAD), jnp.float32).at[:, :N_CLS].set(bc)

    # Pad batch rows to a multiple of tile_m (padded rows are discarded below).
    b_pad = ((B + tile_m - 1) // tile_m) * tile_m
    x_pad = features if b_pad == B else jnp.pad(features,
                                                ((0, b_pad - B), (0, 0)))

    out = _call(x_pad, w1b, b1, w2b, b2, wcb, bcb, tile_m)
    return out[:B, :N_CLS]


def init_params(key):
    """Deterministic init mimicking nn.Linear (uniform +- 1/sqrt(fan_in)), f32."""
    ks = jax.random.split(key, 6)

    def lin(kw, kb, fan_in, fan_out):
        bound = 1.0 / jnp.sqrt(fan_in)
        w = jax.random.uniform(kw, (fan_in, fan_out), jnp.float32, -bound, bound)
        b = jax.random.uniform(kb, (1, fan_out), jnp.float32, -bound, bound)
        return w, b

    w1, b1 = lin(ks[0], ks[1], D_FEAT, D_BOT)   # adapter.0
    w2, b2 = lin(ks[2], ks[3], D_BOT, D_FEAT)   # adapter.3
    wc, bc = lin(ks[4], ks[5], D_FEAT, N_CLS)   # classifier
    return (w1, b1, w2, b2, wc, bc)


def reference_forward(features, params):
    """Plain-XLA reference with the same bf16-operand / f32-accumulate numerics."""
    w1, b1, w2, b2, wc, bc = params
    bf = jnp.bfloat16
    h = jnp.dot(features.astype(bf), w1.astype(bf),
                preferred_element_type=jnp.float32) + b1
    h = jnp.maximum(h, 0.0)
    a = jnp.dot(h.astype(bf), w2.astype(bf),
                preferred_element_type=jnp.float32) + b2
    a = jnp.maximum(a, 0.0)
    return jnp.dot(a.astype(bf), wc.astype(bf),
                   preferred_element_type=jnp.float32) + bc


if __name__ == "__main__":
    key = jax.random.PRNGKey(0)
    k_params, k_x = jax.random.split(key)

    params = init_params(k_params)

    # B deliberately NOT a multiple of tile_m: exercises batch padding and
    # yields 2 grid steps (both v7x TensorCores get work).
    B = 200
    features = jax.random.normal(k_x, (B, D_FEAT), jnp.float32)

    logits = baseline_adapter_forward(features, params, tile_m=128)
    logits = jax.block_until_ready(logits)

    ref = reference_forward(features, params)
    assert logits.shape == (B, N_CLS)
    max_err = float(jnp.max(jnp.abs(logits - ref)))
    assert jnp.allclose(logits, ref, atol=1e-2, rtol=1e-2), (
        f"mismatch vs reference (max abs err {max_err})")

    print("KERNEL_OK")
</pallas_src>

<mosaic_0001>
module attributes {stable_mosaic.version = 11 : i64} {
  func.func @_adapter_kernel(%arg0: i32, %arg1: memref<128x2560xf32, #tpu.memory_space<vmem>>, %arg2: memref<2560x128xbf16, #tpu.memory_space<vmem>>, %arg3: memref<1x128xf32, #tpu.memory_space<vmem>>, %arg4: memref<128x2560xbf16, #tpu.memory_space<vmem>>, %arg5: memref<1x2560xf32, #tpu.memory_space<vmem>>, %arg6: memref<2560x128xbf16, #tpu.memory_space<vmem>>, %arg7: memref<1x128xf32, #tpu.memory_space<vmem>>, %arg8: memref<128x128xf32, #tpu.memory_space<vmem>>) attributes {dimension_semantics = [#tpu.dimension_semantics<parallel>], iteration_bounds = array<i64: 2>, scalar_prefetch = 0 : i64, scratch_operands = 0 : i64, tpu.core_type = #tpu.core_type<tc>, window_params = [{transform_indices = @transform_0, window_bounds = array<i64: 128, 2560>}, {pipeline_mode = #tpu.pipeline_mode<synchronous>, transform_indices = @transform_1, window_bounds = array<i64: 2560, 128>}, {pipeline_mode = #tpu.pipeline_mode<synchronous>, transform_indices = @transform_2, window_bounds = array<i64: 1, 128>}, {pipeline_mode = #tpu.pipeline_mode<synchronous>, transform_indices = @transform_3, window_bounds = array<i64: 128, 2560>}, {pipeline_mode = #tpu.pipeline_mode<synchronous>, transform_indices = @transform_4, window_bounds = array<i64: 1, 2560>}, {pipeline_mode = #tpu.pipeline_mode<synchronous>, transform_indices = @transform_5, window_bounds = array<i64: 2560, 128>}, {pipeline_mode = #tpu.pipeline_mode<synchronous>, transform_indices = @transform_6, window_bounds = array<i64: 1, 128>}, {transform_indices = @transform_7, window_bounds = array<i64: 128, 128>}]} {
    %c0 = arith.constant 0 : index
    %c0_0 = arith.constant 0 : index
    %0 = vector.load %arg1[%c0, %c0_0] : memref<128x2560xf32, #tpu.memory_space<vmem>>, vector<128x2560xf32>
    %1 = arith.truncf %0 : vector<128x2560xf32> to vector<128x2560xbf16>
    %c0_1 = arith.constant 0 : index
    %c0_2 = arith.constant 0 : index
    %2 = vector.load %arg2[%c0_1, %c0_2] : memref<2560x128xbf16, #tpu.memory_space<vmem>>, vector<2560x128xbf16>
    %cst = arith.constant dense<0.000000e+00> : vector<128x128xf32>
    %3 = tpu.matmul %1, %2, %cst {dimension_numbers = #tpu.dot_dimension_numbers<[1], [0], [0], [1], [0, 0, 1, 1], [], []>} : vector<128x2560xbf16>, vector<2560x128xbf16>, vector<128x128xf32> -> vector<128x128xf32>
    %c0_3 = arith.constant 0 : index
    %c0_4 = arith.constant 0 : index
    %4 = vector.load %arg3[%c0_3, %c0_4] : memref<1x128xf32, #tpu.memory_space<vmem>>, vector<1x128xf32>
    %5 = vector.broadcast %4 : vector<1x128xf32> to vector<128x128xf32>
    %6 = arith.addf %3, %5 : vector<128x128xf32>
    %cst_5 = arith.constant 0.000000e+00 : f32
    %7 = vector.broadcast %cst_5 : f32 to vector<128x128xf32>
    %8 = arith.maximumf %6, %7 : vector<128x128xf32>
    %9 = arith.truncf %8 : vector<128x128xf32> to vector<128x128xbf16>
    %c0_6 = arith.constant 0 : index
    %c0_7 = arith.constant 0 : index
    %10 = vector.load %arg4[%c0_6, %c0_7] : memref<128x2560xbf16, #tpu.memory_space<vmem>>, vector<128x2560xbf16>
    %cst_8 = arith.constant dense<0.000000e+00> : vector<128x2560xf32>
    %11 = tpu.matmul %9, %10, %cst_8 {dimension_numbers = #tpu.dot_dimension_numbers<[1], [0], [0], [1], [0, 0, 1, 1], [], []>} : vector<128x128xbf16>, vector<128x2560xbf16>, vector<128x2560xf32> -> vector<128x2560xf32>
    %c0_9 = arith.constant 0 : index
    %c0_10 = arith.constant 0 : index
    %12 = vector.load %arg5[%c0_9, %c0_10] : memref<1x2560xf32, #tpu.memory_space<vmem>>, vector<1x2560xf32>
    %13 = vector.broadcast %12 : vector<1x2560xf32> to vector<128x2560xf32>
    %14 = arith.addf %11, %13 : vector<128x2560xf32>
    %cst_11 = arith.constant 0.000000e+00 : f32
    %15 = vector.broadcast %cst_11 : f32 to vector<128x2560xf32>
    %16 = arith.maximumf %14, %15 : vector<128x2560xf32>
    %17 = arith.truncf %16 : vector<128x2560xf32> to vector<128x2560xbf16>
    %c0_12 = arith.constant 0 : index
    %c0_13 = arith.constant 0 : index
    %18 = vector.load %arg6[%c0_12, %c0_13] : memref<2560x128xbf16, #tpu.memory_space<vmem>>, vector<2560x128xbf16>
    %cst_14 = arith.constant dense<0.000000e+00> : vector<128x128xf32>
    %19 = tpu.matmul %17, %18, %cst_14 {dimension_numbers = #tpu.dot_dimension_numbers<[1], [0], [0], [1], [0, 0, 1, 1], [], []>} : vector<128x2560xbf16>, vector<2560x128xbf16>, vector<128x128xf32> -> vector<128x128xf32>
    %c0_15 = arith.constant 0 : index
    %c0_16 = arith.constant 0 : index
    %20 = vector.load %arg7[%c0_15, %c0_16] : memref<1x128xf32, #tpu.memory_space<vmem>>, vector<1x128xf32>
    %21 = vector.broadcast %20 : vector<1x128xf32> to vector<128x128xf32>
    %22 = arith.addf %19, %21 : vector<128x128xf32>
    %c0_17 = arith.constant 0 : index
    %c0_18 = arith.constant 0 : index
    %23 = vector.load %arg8[%c0_17, %c0_18] : memref<128x128xf32, #tpu.memory_space<vmem>>, vector<128x128xf32>
    tpu.vector_store %arg8[%c0_17, %c0_18], %22 {strides = array<i32>} : memref<128x128xf32, #tpu.memory_space<vmem>>, vector<128x128xf32>,
    return
  }
  func.func @transform_0(%arg0: i32) -> (i32, i32) {
    %c0_i32 = arith.constant 0 : i32
    %c0_i32_0 = arith.constant 0 : i32
    return %arg0, %c0_i32 : i32, i32
  }
  func.func @transform_1(%arg0: i32) -> (i32, i32) {
    %c0_i32 = arith.constant 0 : i32
    %c0_i32_0 = arith.constant 0 : i32
    %c0_i32_1 = arith.constant 0 : i32
    return %c0_i32, %c0_i32_0 : i32, i32
  }
  func.func @transform_2(%arg0: i32) -> (i32, i32) {
    %c0_i32 = arith.constant 0 : i32
    %c0_i32_0 = arith.constant 0 : i32
    %c0_i32_1 = arith.constant 0 : i32
    return %c0_i32, %c0_i32_0 : i32, i32
  }
  func.func @transform_3(%arg0: i32) -> (i32, i32) {
    %c0_i32 = arith.constant 0 : i32
    %c0_i32_0 = arith.constant 0 : i32
    %c0_i32_1 = arith.constant 0 : i32
    return %c0_i32, %c0_i32_0 : i32, i32
  }
  func.func @transform_4(%arg0: i32) -> (i32, i32) {
    %c0_i32 = arith.constant 0 : i32
    %c0_i32_0 = arith.constant 0 : i32
    %c0_i32_1 = arith.constant 0 : i32
    return %c0_i32, %c0_i32_0 : i32, i32
  }
  func.func @transform_5(%arg0: i32) -> (i32, i32) {
    %c0_i32 = arith.constant 0 : i32
    %c0_i32_0 = arith.constant 0 : i32
    %c0_i32_1 = arith.constant 0 : i32
    return %c0_i32, %c0_i32_0 : i32, i32
  }
  func.func @transform_6(%arg0: i32) -> (i32, i32) {
    %c0_i32 = arith.constant 0 : i32
    %c0_i32_0 = arith.constant 0 : i32
    %c0_i32_1 = arith.constant 0 : i32
    return %c0_i32, %c0_i32_0 : i32, i32
  }
  func.func @transform_7(%arg0: i32) -> (i32, i32) {
    %c0_i32 = arith.constant 0 : i32
    %c0_i32_0 = arith.constant 0 : i32
    return %arg0, %c0_i32 : i32, i32
  }
}

</mosaic_0001>

<llo_original>
// kernel: baseline_adapter_forward.1
$region0: #{baseline_adapter_forward.1}
  #allocation0 [shape = 'u32[]', space=smem, size = 0x4, offset = 0x4, fixed_abs, tag = 'smem constant byte address 0x4 - core index']
  #allocation1 [shape = 'u32[144,128]{1,0:T(1,128)}', space=vmem, size = 0x12000, scoped, tag = 'internal scratch']
  %s0 = inlined_call_operand.vmem [shape: f32[256,2560], index: 0, kind: input, shape index: {}]
  %s1 = inlined_call_operand.vmem [shape: bf16[2560,128], index: 1, kind: input, shape index: {}]
  %s2 = inlined_call_operand.vmem [shape: f32[1,128], index: 2, kind: input, shape index: {}]
  %s3 = inlined_call_operand.vmem [shape: bf16[128,2560], index: 3, kind: input, shape index: {}]
  %s4 = inlined_call_operand.vmem [shape: f32[1,2560], index: 4, kind: input, shape index: {}]
  %s5 = inlined_call_operand.vmem [shape: bf16[2560,128], index: 5, kind: input, shape index: {}]
  %s6 = inlined_call_operand.vmem [shape: f32[1,128], index: 6, kind: input, shape index: {}]
  %s7 = inlined_call_operand.vmem [shape: f32[256,128], index: 7, kind: output, shape index: {}]
  %s8 = sld [smem:[#allocation0]]
  $region61: #{baseline_adapter_forward.1} parent=0
    _
  %s10 = ssub.s32 1, %s8
  %s11 = scalar_select 0, %s10, %s8
  loop: start=0, step=1, limit=4
  $region2: #{baseline_adapter_forward.1} parent=0 // loop_pre_header
    _
  $region3: #{baseline_adapter_forward.1} parent=0 // loop_header
    %s13 = sphi 0, %s17
    %p14 = scmp.ge.s32.totalorder %s13, 4
    %s23 = sphi 0, %s25
    %s26 = sphi 0, %s23
    %s27 = sphi 0, %s26
    %s43 = sphi 0, %s27
    %s47 = sphi 0, %s47
    %s49 = sphi 0, %s47
    %s50 = sphi 0, %s49
    %s64 = sphi 0, %s50
    %s68 = sphi 0, %s68
    %s70 = sphi 0, %s68
    %s71 = sphi 0, %s70
    %s85 = sphi 0, %s71
    %s89 = sphi 0, %s89
    %s91 = sphi 0, %s89
    %s92 = sphi 0, %s91
    %s106 = sphi 0, %s92
    %s110 = sphi 0, %s110
    %s112 = sphi 0, %s110
    %s113 = sphi 0, %s112
    %s127 = sphi 0, %s113
    %s131 = sphi 0, %s131
    %s133 = sphi 0, %s131
    %s134 = sphi 0, %s133
    %s148 = sphi 0, %s134
    %s152 = sphi 0, %s152
    %s154 = sphi 0, %s152
    %s155 = sphi 0, %s154
    %s169 = sphi 0, %s155
    %s175 = sphi 0, %s177
    %s178 = sphi 0, %s175
    %s179 = sphi 0, %s178
    %s195 = sphi 0, %s179
  $region4: #{baseline_adapter_forward.1} parent=0 // loop_header_branch
    %16 = sbr.rel (%p14) target = $region8
  $region5: #{baseline_adapter_forward.1} parent=0 // loop_body
    %s18 = ssub.s32 %s13, 1
    %s19 = ssub.s32 %s13, 2
    %s20 = sadd.s32 %s13, 1
    %s21 = ssub.s32 %s13, %s20
    %p22 = scmp.eq.s32.totalorder %s21, 0
    %s24 = sadd.s32 %s23, 1
    %s25 = scalar_select %p22, %s23, %s24
    %p28 = pneg %p22
    %p29 = scmp.eq.s32.totalorder %s13, 1
    %p30 = por %p28, %p29
    %p31 = scmp.ne.s32.totalorder %s23, %s26
    %p32 = scmp.eq.s32.totalorder %s13, 0
    %p33 = por %p31, %p32
    %p34 = scmp.ne.s32.totalorder %s23, %s26
    %p35 = scmp.eq.s32.totalorder %s18, 1
    %p36 = por %p34, %p35
    %p37 = scmp.ne.s32.totalorder %s26, %s27
    %p38 = scmp.eq.s32.totalorder %s18, 0
    %p39 = por %p37, %p38
    %p40 = scmp.ne.s32.totalorder %s26, %s27
    %p41 = scmp.eq.s32.totalorder %s19, 1
    %p42 = por %p40, %p41
    %p44 = scmp.ne.s32.totalorder %s27, %s43
    %p45 = scmp.eq.s32.totalorder %s19, 0
    %p46 = por %p44, %p45
    %s48 = sadd.s32 %s47, 1
    %p51 = scmp.eq.s32.totalorder %s13, 1
    %p52 = scmp.ne.s32.totalorder %s47, %s49
    %p53 = scmp.eq.s32.totalorder %s13, 0
    %p54 = por %p52, %p53
    %p55 = scmp.ne.s32.totalorder %s47, %s49
    %p56 = scmp.eq.s32.totalorder %s18, 1
    %p57 = por %p55, %p56
    %p58 = scmp.ne.s32.totalorder %s49, %s50
    %p59 = scmp.eq.s32.totalorder %s18, 0
    %p60 = por %p58, %p59
    %p61 = scmp.ne.s32.totalorder %s49, %s50
    %p62 = scmp.eq.s32.totalorder %s19, 1
    %p63 = por %p61, %p62
    %p65 = scmp.ne.s32.totalorder %s50, %s64
    %p66 = scmp.eq.s32.totalorder %s19, 0
    %p67 = por %p65, %p66
    %s69 = sadd.s32 %s68, 1
    %p72 = scmp.eq.s32.totalorder %s13, 1
    %p73 = scmp.ne.s32.totalorder %s68, %s70
    %p74 = scmp.eq.s32.totalorder %s13, 0
    %p75 = por %p73, %p74
    %p76 = scmp.ne.s32.totalorder %s68, %s70
    %p77 = scmp.eq.s32.totalorder %s18, 1
    %p78 = por %p76, %p77
    %p79 = scmp.ne.s32.totalorder %s70, %s71
    %p80 = scmp.eq.s32.totalorder %s18, 0
    %p81 = por %p79, %p80
    %p82 = scmp.ne.s32.totalorder %s70, %s71
    %p83 = scmp.eq.s32.totalorder %s19, 1
    %p84 = por %p82, %p83
    %p86 = scmp.ne.s32.totalorder %s71, %s85
    %p87 = scmp.eq.s32.totalorder %s19, 0
    %p88 = por %p86, %p87
    %s90 = sadd.s32 %s89, 1
    %p93 = scmp.eq.s32.totalorder %s13, 1
    %p94 = scmp.ne.s32.totalorder %s89, %s91
    %p95 = scmp.eq.s32.totalorder %s13, 0
    %p96 = por %p94, %p95
    %p97 = scmp.ne.s32.totalorder %s89, %s91
    %p98 = scmp.eq.s32.totalorder %s18, 1
    %p99 = por %p97, %p98
    %p100 = scmp.ne.s32.totalorder %s91, %s92
    %p101 = scmp.eq.s32.totalorder %s18, 0
    %p102 = por %p100, %p101
    %p103 = scmp.ne.s32.totalorder %s91, %s92
    %p104 = scmp.eq.s32.totalorder %s19, 1
    %p105 = por %p103, %p104
    %p107 = scmp.ne.s32.totalorder %s92, %s106
    %p108 = scmp.eq.s32.totalorder %s19, 0
    %p109 = por %p107, %p108
    %s111 = sadd.s32 %s110, 1
    %p114 = scmp.eq.s32.totalorder %s13, 1
    %p115 = scmp.ne.s32.totalorder %s110, %s112
    %p116 = scmp.eq.s32.totalorder %s13, 0
    %p117 = por %p115, %p116
    %p118 = scmp.ne.s32.totalorder %s110, %s112
    %p119 = scmp.eq.s32.totalorder %s18, 1
    %p120 = por %p118, %p119
    %p121 = scmp.ne.s32.totalorder %s112, %s113
    %p122 = scmp.eq.s32.totalorder %s18, 0
    %p123 = por %p121, %p122
    %p124 = scmp.ne.s32.totalorder %s112, %s113
    %p125 = scmp.eq.s32.totalorder %s19, 1
    %p126 = por %p124, %p125
    %p128 = scmp.ne.s32.totalorder %s113, %s127
    %p129 = scmp.eq.s32.totalorder %s19, 0
    %p130 = por %p128, %p129
    %s132 = sadd.s32 %s131, 1
    %p135 = scmp.eq.s32.totalorder %s13, 1
    %p136 = scmp.ne.s32.totalorder %s131, %s133
    %p137 = scmp.eq.s32.totalorder %s13, 0
    %p138 = por %p136, %p137
    %p139 = scmp.ne.s32.totalorder %s131, %s133
    %p140 = scmp.eq.s32.totalorder %s18, 1
    %p141 = por %p139, %p140
    %p142 = scmp.ne.s32.totalorder %s133, %s134
    %p143 = scmp.eq.s32.totalorder %s18, 0
    %p144 = por %p142, %p143
    %p145 = scmp.ne.s32.totalorder %s133, %s134
    %p146 = scmp.eq.s32.totalorder %s19, 1
    %p147 = por %p145, %p146
    %p149 = scmp.ne.s32.totalorder %s134, %s148
    %p150 = scmp.eq.s32.totalorder %s19, 0
    %p151 = por %p149, %p150
    %s153 = sadd.s32 %s152, 1
    %p156 = scmp.eq.s32.totalorder %s13, 1
    %p157 = scmp.ne.s32.totalorder %s152, %s154
    %p158 = scmp.eq.s32.totalorder %s13, 0
    %p159 = por %p157, %p158
    %p160 = scmp.ne.s32.totalorder %s152, %s154
    %p161 = scmp.eq.s32.totalorder %s18, 1
    %p162 = por %p160, %p161
    %p163 = scmp.ne.s32.totalorder %s154, %s155
    %p164 = scmp.eq.s32.totalorder %s18, 0
    %p165 = por %p163, %p164
    %p166 = scmp.ne.s32.totalorder %s154, %s155
    %p167 = scmp.eq.s32.totalorder %s19, 1
    %p168 = por %p166, %p167
    %p170 = scmp.ne.s32.totalorder %s155, %s169
    %p171 = scmp.eq.s32.totalorder %s19, 0
    %p172 = por %p170, %p171
    %s173 = ssub.s32 %s13, %s20
    %p174 = scmp.eq.s32.totalorder %s173, 0
    %s176 = sadd.s32 %s175, 1
    %s177 = scalar_select %p174, %s175, %s176
    %p180 = pneg %p174
    %p181 = scmp.eq.s32.totalorder %s13, 1
    %p182 = por %p180, %p181
    %p183 = scmp.ne.s32.totalorder %s175, %s178
    %p184 = scmp.eq.s32.totalorder %s13, 0
    %p185 = por %p183, %p184
    %p186 = scmp.ne.s32.totalorder %s175, %s178
    %p187 = scmp.eq.s32.totalorder %s18, 1
    %p188 = por %p186, %p187
    %p189 = scmp.ne.s32.totalorder %s178, %s179
    %p190 = scmp.eq.s32.totalorder %s18, 0
    %p191 = por %p189, %p190
    %p192 = scmp.ne.s32.totalorder %s178, %s179
    %p193 = scmp.eq.s32.totalorder %s19, 1
    %p194 = por %p192, %p193
    %p196 = scmp.ne.s32.totalorder %s179, %s195
    %p197 = scmp.eq.s32.totalorder %s19, 0
    %p198 = por %p196, %p197
    %p199 = scmp.le.s32.totalorder 1, %s13
    %p200 = scmp.lt.s32.totalorder %s13, 3
    %p201 = pnand %p199, %p200
    %p202 = pneg %p201
    // Predicated region
    $region9: #{baseline_adapter_forward.1} parent=5 // pred_check
      _
    $region10: #{baseline_adapter_forward.1} parent=5 // pred_check_branch
      %204 = sbr.rel (%p201) target = $region12
    $region11: #{baseline_adapter_forward.1} parent=5 // pred_region
      %s205 = ssub.s32 %s13, 1
      // Predicated region
      $region13: #{baseline_adapter_forward.1} parent=11 // pred_check
        %p206 = pneg %p60
      $region14: #{baseline_adapter_forward.1} parent=11 // pred_check_branch
        %208 = sbr.rel (%p206) target = $region16
      $region15: #{baseline_adapter_forward.1} parent=11 // pred_region
        _
      $region16: #{baseline_adapter_forward.1} parent=11 // pred_fallthru
        _
      // Predicated region
      $region17: #{baseline_adapter_forward.1} parent=11 // pred_check
        %p209 = pneg %p81
      $region18: #{baseline_adapter_forward.1} parent=11 // pred_check_branch
        %211 = sbr.rel (%p209) target = $region20
      $region19: #{baseline_adapter_forward.1} parent=11 // pred_region
        _
      $region20: #{baseline_adapter_forward.1} parent=11 // pred_fallthru
        _
      // Predicated region
      $region21: #{baseline_adapter_forward.1} parent=11 // pred_check
        %p212 = pneg %p102
      $region22: #{baseline_adapter_forward.1} parent=11 // pred_check_branch
        %214 = sbr.rel (%p212) target = $region24
      $region23: #{baseline_adapter_forward.1} parent=11 // pred_region
        _
      $region24: #{baseline_adapter_forward.1} parent=11 // pred_fallthru
        _
      // Predicated region
      $region25: #{baseline_adapter_forward.1} parent=11 // pred_check
        %p215 = pneg %p123
      $region26: #{baseline_adapter_forward.1} parent=11 // pred_check_branch
        %217 = sbr.rel (%p215) target = $region28
      $region27: #{baseline_adapter_forward.1} parent=11 // pred_region
        _
      $region28: #{baseline_adapter_forward.1} parent=11 // pred_fallthru
        _
      // Predicated region
      $region29: #{baseline_adapter_forward.1} parent=11 // pred_check
        %p218 = pneg %p144
      $region30: #{baseline_adapter_forward.1} parent=11 // pred_check_branch
        %220 = sbr.rel (%p218) target = $region32
      $region31: #{baseline_adapter_forward.1} parent=11 // pred_region
        _
      $region32: #{baseline_adapter_forward.1} parent=11 // pred_fallthru
        _
      // Predicated region
      $region33: #{baseline_adapter_forward.1} parent=11 // pred_check
        %p221 = pneg %p165
      $region34: #{baseline_adapter_forward.1} parent=11 // pred_check_branch
        %223 = sbr.rel (%p221) target = $region36
      $region35: #{baseline_adapter_forward.1} parent=11 // pred_region
        _
      $region36: #{baseline_adapter_forward.1} parent=11 // pred_fallthru
        _
    $region12: #{baseline_adapter_forward.1} parent=5 // pred_fallthru
      _
    %p224 = scmp.lt.s32.totalorder %s13, 2
    // Predicated region
    $region37: #{baseline_adapter_forward.1} parent=5 // pred_check
      %p225 = pneg %p224
    $region38: #{baseline_adapter_forward.1} parent=5 // pred_check_branch
      %227 = sbr.rel (%p225) target = $region40
    $region39: #{baseline_adapter_forward.1} parent=5 // pred_region
      // Predicated region
      $region41: #{baseline_adapter_forward.1} parent=39 // pred_check
        %p228 = pneg %p33
      $region42: #{baseline_adapter_forward.1} parent=39 // pred_check_branch
        %230 = sbr.rel (%p228) target = $region44
      $region43: #{baseline_adapter_forward.1} parent=39 // pred_region
        %s231 = smul.u32 16, %s13
        %p232 = scmp.lt.s32.totalorder %s231, 31
        %s233 = scalar_select %p232, %s231, 31
        %s234 = smul.addr %s233, 20
        %s235 = smul.addr %s234, 8
        %s236 = scalar_lea.vmem %s0, %s235
        %s237 = smul.u32 16, %s13
      $region44: #{baseline_adapter_forward.1} parent=39 // pred_fallthru
        _
    $region40: #{baseline_adapter_forward.1} parent=5 // pred_fallthru
      _
    %p238 = scmp.le.s32.totalorder 1, %s13
    %p239 = scmp.lt.s32.totalorder %s13, 3
    %p240 = pnand %p238, %p239
    %p241 = pneg %p240
    // Predicated region
    $region45: #{baseline_adapter_forward.1} parent=5 // pred_check
      _
    $region46: #{baseline_adapter_forward.1} parent=5 // pred_check_branch
      %243 = sbr.rel (%p240) target = $region48
    $region47: #{baseline_adapter_forward.1} parent=5 // pred_region
      %s244 = ssub.s32 %s13, 1
      %s245 = smul.u32 16, %s18
      %p246 = scmp.lt.s32.totalorder %s245, 31
      %s247 = scalar_select %p246, %s245, 31
      %s248 = smul.addr %s247, 20
      %s249 = smul.addr %s248, 8
      %s250 = scalar_lea.vmem %s0, %s249
      %p251 = pneg %p39
      %p252 = pneg %p36
      %p253 = pneg %p60
      %p254 = pneg %p57
      %p255 = pneg %p81
      %p256 = pneg %p78
      %p257 = pneg %p102
      %p258 = pneg %p99
      %p259 = pneg %p123
      %p260 = pneg %p120
      %p261 = pneg %p144
      %p262 = pneg %p141
      %p263 = pneg %p165
      %p264 = pneg %p162
      %p265 = pneg %p191
      %p266 = pneg %p188
      %s267 = smul.u32 16, %s18
      %p268 = scmp.lt.s32.totalorder %s267, 31
      %s269 = scalar_select %p268, %s267, 31
      %s270 = smul.addr %s269, 8
      %s271 = scalar_lea.vmem %s7, %s270
      %s272 = smul.u32 16, %s18
      %p273 = scmp.lt.s32.totalorder %s272, 31
      %s274 = scalar_select %p273, %s272, 31
      %s275 = smul.addr %s274, 20
      %s276 = smul.addr %s275, 8
      %s277 = scalar_lea.vmem %s0, %s276
      %s278 = smul.u32 16, %s18
      %s279 = smul.u32 16, %s18
      %p280 = scmp.lt.s32.totalorder %s279, 31
      %s281 = scalar_select %p280, %s279, 31
      %s282 = smul.addr %s281, 8
      %s283 = scalar_lea.vmem %s7, %s282
      %s284 = smul.u32 16, %s18
      %v286 = vld [vmem:[%s277] sm:$0xff]
      %v287 = vld [vmem:[%s277 + $0x8] sm:$0xff]
      %v288 = vld [vmem:[%s277 + $0x10] sm:$0xff]
      %v289 = vld [vmem:[%s277 + $0x18] sm:$0xff]
      %v290 = vld [vmem:[%s277 + $0x20] sm:$0xff]
      %v291 = vld [vmem:[%s277 + $0x28] sm:$0xff]
      %v292 = vld [vmem:[%s277 + $0x30] sm:$0xff]
      %v293 = vld [vmem:[%s277 + $0x38] sm:$0xff]
      %v294 = vld [vmem:[%s277 + $0x40] sm:$0xff]
      %v295 = vld [vmem:[%s277 + $0x48] sm:$0xff]
      %v296 = vld [vmem:[%s277 + $0x50] sm:$0xff]
      %v297 = vld [vmem:[%s277 + $0x58] sm:$0xff]
      %v298 = vld [vmem:[%s277 + $0x60] sm:$0xff]
      %v299 = vld [vmem:[%s277 + $0x68] sm:$0xff]
      %v300 = vld [vmem:[%s277 + $0x70] sm:$0xff]
      %v301 = vld [vmem:[%s277 + $0x78] sm:$0xff]
      %v302 = vld [vmem:[%s277 + $0x80] sm:$0xff]
      %v303 = vld [vmem:[%s277 + $0x88] sm:$0xff]
      %v304 = vld [vmem:[%s277 + $0x90] sm:$0xff]
      %v305 = vld [vmem:[%s277 + $0x98] sm:$0xff]
      %v306 = vld [vmem:[%s277 + $0xa0] sm:$0xff]
      %v307 = vld [vmem:[%s277 + $0xa8] sm:$0xff]
      %v308 = vld [vmem:[%s277 + $0xb0] sm:$0xff]
      %v309 = vld [vmem:[%s277 + $0xb8] sm:$0xff]
      %v310 = vld [vmem:[%s277 + $0xc0] sm:$0xff]
      %v311 = vld [vmem:[%s277 + $0xc8] sm:$0xff]
      %v312 = vld [vmem:[%s277 + $0xd0] sm:$0xff]
      %v313 = vld [vmem:[%s277 + $0xd8] sm:$0xff]
      %v314 = vld [vmem:[%s277 + $0xe0] sm:$0xff]
      %v315 = vld [vmem:[%s277 + $0xe8] sm:$0xff]
      %v316 = vld [vmem:[%s277 + $0xf0] sm:$0xff]
      %v317 = vld [vmem:[%s277 + $0xf8] sm:$0xff]
      %v318 = vld [vmem:[%s277 + $0x100] sm:$0xff]
      %v319 = vld [vmem:[%s277 + $0x108] sm:$0xff]
      %v320 = vld [vmem:[%s277 + $0x110] sm:$0xff]
      %v321 = vld [vmem:[%s277 + $0x118] sm:$0xff]
      %v322 = vld [vmem:[%s277 + $0x120] sm:$0xff]
      %v323 = vld [vmem:[%s277 + $0x128] sm:$0xff]
      %v324 = vld [vmem:[%s277 + $0x130] sm:$0xff]
      %v325 = vld [vmem:[%s277 + $0x138] sm:$0xff]
      %v326 = vld [vmem:[%s277 + $0x140] sm:$0xff]
      %v327 = vld [vmem:[%s277 + $0x148] sm:$0xff]
      %v328 = vld [vmem:[%s277 + $0x150] sm:$0xff]
      %v329 = vld [vmem:[%s277 + $0x158] sm:$0xff]
      %v330 = vld [vmem:[%s277 + $0x160] sm:$0xff]
      %v331 = vld [vmem:[%s277 + $0x168] sm:$0xff]
      %v332 = vld [vmem:[%s277 + $0x170] sm:$0xff]
      %v333 = vld [vmem:[%s277 + $0x178] sm:$0xff]
      %v334 = vld [vmem:[%s277 + $0x180] sm:$0xff]
      %v335 = vld [vmem:[%s277 + $0x188] sm:$0xff]
      %v336 = vld [vmem:[%s277 + $0x190] sm:$0xff]
      %v337 = vld [vmem:[%s277 + $0x198] sm:$0xff]
      %v338 = vld [vmem:[%s277 + $0x1a0] sm:$0xff]
      %v339 = vld [vmem:[%s277 + $0x1a8] sm:$0xff]
      %v340 = vld [vmem:[%s277 + $0x1b0] sm:$0xff]
      %v341 = vld [vmem:[%s277 + $0x1b8] sm:$0xff]
      %v342 = vld [vmem:[%s277 + $0x1c0] sm:$0xff]
      %v343 = vld [vmem:[%s277 + $0x1c8] sm:$0xff]
      %v344 = vld [vmem:[%s277 + $0x1d0] sm:$0xff]
      %v345 = vld [vmem:[%s277 + $0x1d8] sm:$0xff]
      %v346 = vld [vmem:[%s277 + $0x1e0] sm:$0xff]
      %v347 = vld [vmem:[%s277 + $0x1e8] sm:$0xff]
      %v348 = vld [vmem:[%s277 + $0x1f0] sm:$0xff]
      %v349 = vld [vmem:[%s277 + $0x1f8] sm:$0xff]
      %v350 = vld [vmem:[%s277 + $0x200] sm:$0xff]
      %v351 = vld [vmem:[%s277 + $0x208] sm:$0xff]
      %v352 = vld [vmem:[%s277 + $0x210] sm:$0xff]
      %v353 = vld [vmem:[%s277 + $0x218] sm:$0xff]
      %v354 = vld [vmem:[%s277 + $0x220] sm:$0xff]
      %v355 = vld [vmem:[%s277 + $0x228] sm:$0xff]
      %v356 = vld [vmem:[%s277 + $0x230] sm:$0xff]
      %v357 = vld [vmem:[%s277 + $0x238] sm:$0xff]
      %v358 = vld [vmem:[%s277 + $0x240] sm:$0xff]
      %v359 = vld [vmem:[%s277 + $0x248] sm:$0xff]
      %v360 = vld [vmem:[%s277 + $0x250] sm:$0xff]
      %v361 = vld [vmem:[%s277 + $0x258] sm:$0xff]
      %v362 = vld [vmem:[%s277 + $0x260] sm:$0xff]
      %v363 = vld [vmem:[%s277 + $0x268] sm:$0xff]
      %v364 = vld [vmem:[%s277 + $0x270] sm:$0xff]
      %v365 = vld [vmem:[%s277 + $0x278] sm:$0xff]
      %v366 = vld [vmem:[%s277 + $0x280] sm:$0xff]
      %v367 = vld [vmem:[%s277 + $0x288] sm:$0xff]
      %v368 = vld [vmem:[%s277 + $0x290] sm:$0xff]
      %v369 = vld [vmem:[%s277 + $0x298] sm:$0xff]
      %v370 = vld [vmem:[%s277 + $0x2a0] sm:$0xff]
      %v371 = vld [vmem:[%s277 + $0x2a8] sm:$0xff]
      %v372 = vld [vmem:[%s277 + $0x2b0] sm:$0xff]
      %v373 = vld [vmem:[%s277 + $0x2b8] sm:$0xff]
      %v374 = vld [vmem:[%s277 + $0x2c0] sm:$0xff]
      %v375 = vld [vmem:[%s277 + $0x2c8] sm:$0xff]
      %v376 = vld [vmem:[%s277 + $0x2d0] sm:$0xff]
      %v377 = vld [vmem:[%s277 + $0x2d8] sm:$0xff]
      %v378 = vld [vmem:[%s277 + $0x2e0] sm:$0xff]
      %v379 = vld [vmem:[%s277 + $0x2e8] sm:$0xff]
      %v380 = vld [vmem:[%s277 + $0x2f0] sm:$0xff]
      %v381 = vld [vmem:[%s277 + $0x2f8] sm:$0xff]
      %v382 = vld [vmem:[%s277 + $0x300] sm:$0xff]
      %v383 = vld [vmem:[%s277 + $0x308] sm:$0xff]
      %v384 = vld [vmem:[%s277 + $0x310] sm:$0xff]
      %v385 = vld [vmem:[%s277 + $0x318] sm:$0xff]
      %v386 = vld [vmem:[%s277 + $0x320] sm:$0xff]
      %v387 = vld [vmem:[%s277 + $0x328] sm:$0xff]
      %v388 = vld [vmem:[%s277 + $0x330] sm:$0xff]
      %v389 = vld [vmem:[%s277 + $0x338] sm:$0xff]
      %v390 = vld [vmem:[%s277 + $0x340] sm:$0xff]
      %v391 = vld [vmem:[%s277 + $0x348] sm:$0xff]
      %v392 = vld [vmem:[%s277 + $0x350] sm:$0xff]
      %v393 = vld [vmem:[%s277 + $0x358] sm:$0xff]
      %v394 = vld [vmem:[%s277 + $0x360] sm:$0xff]
      %v395 = vld [vmem:[%s277 + $0x368] sm:$0xff]
      %v396 = vld [vmem:[%s277 + $0x370] sm:$0xff]
      %v397 = vld [vmem:[%s277 + $0x378] sm:$0xff]
      %v398 = vld [vmem:[%s277 + $0x380] sm:$0xff]
      %v399 = vld [vmem:[%s277 + $0x388] sm:$0xff]
      %v400 = vld [vmem:[%s277 + $0x390] sm:$0xff]
      %v401 = vld [vmem:[%s277 + $0x398] sm:$0xff]
      %v402 = vld [vmem:[%s277 + $0x3a0] sm:$0xff]
      %v403 = vld [vmem:[%s277 + $0x3a8] sm:$0xff]
      %v404 = vld [vmem:[%s277 + $0x3b0] sm:$0xff]
      %v405 = vld [vmem:[%s277 + $0x3b8] sm:$0xff]
      %v406 = vld [vmem:[%s277 + $0x3c0] sm:$0xff]
      %v407 = vld [vmem:[%s277 + $0x3c8] sm:$0xff]
      %v408 = vld [vmem:[%s277 + $0x3d0] sm:$0xff]
      %v409 = vld [vmem:[%s277 + $0x3d8] sm:$0xff]
      %v410 = vld [vmem:[%s277 + $0x3e0] sm:$0xff]
      %v411 = vld [vmem:[%s277 + $0x3e8] sm:$0xff]
      %v412 = vld [vmem:[%s277 + $0x3f0] sm:$0xff]
      %v413 = vld [vmem:[%s277 + $0x3f8] sm:$0xff]
      %v414 = vld [vmem:[%s277 + $0x400] sm:$0xff]
      %v415 = vld [vmem:[%s277 + $0x408] sm:$0xff]
      %v416 = vld [vmem:[%s277 + $0x410] sm:$0xff]
      %v417 = vld [vmem:[%s277 + $0x418] sm:$0xff]
      %v418 = vld [vmem:[%s277 + $0x420] sm:$0xff]
      %v419 = vld [vmem:[%s277 + $0x428] sm:$0xff]
      %v420 = vld [vmem:[%s277 + $0x430] sm:$0xff]
      %v421 = vld [vmem:[%s277 + $0x438] sm:$0xff]
      %v422 = vld [vmem:[%s277 + $0x440] sm:$0xff]
      %v423 = vld [vmem:[%s277 + $0x448] sm:$0xff]
      %v424 = vld [vmem:[%s277 + $0x450] sm:$0xff]
      %v425 = vld [vmem:[%s277 + $0x458] sm:$0xff]
      %v426 = vld [vmem:[%s277 + $0x460] sm:$0xff]
      %v427 = vld [vmem:[%s277 + $0x468] sm:$0xff]
      %v428 = vld [vmem:[%s277 + $0x470] sm:$0xff]
      %v429 = vld [vmem:[%s277 + $0x478] sm:$0xff]
      %v430 = vld [vmem:[%s277 + $0x480] sm:$0xff]
      %v431 = vld [vmem:[%s277 + $0x488] sm:$0xff]
      %v432 = vld [vmem:[%s277 + $0x490] sm:$0xff]
      %v433 = vld [vmem:[%s277 + $0x498] sm:$0xff]
      %v434 = vld [vmem:[%s277 + $0x4a0] sm:$0xff]
      %v435 = vld [vmem:[%s277 + $0x4a8] sm:$0xff]
      %v436 = vld [vmem:[%s277 + $0x4b0] sm:$0xff]
      %v437 = vld [vmem:[%s277 + $0x4b8] sm:$0xff]
      %v438 = vld [vmem:[%s277 + $0x4c0] sm:$0xff]
      %v439 = vld [vmem:[%s277 + $0x4c8] sm:$0xff]
      %v440 = vld [vmem:[%s277 + $0x4d0] sm:$0xff]
      %v441 = vld [vmem:[%s277 + $0x4d8] sm:$0xff]
      %v442 = vld [vmem:[%s277 + $0x4e0] sm:$0xff]
      %v443 = vld [vmem:[%s277 + $0x4e8] sm:$0xff]
      %v444 = vld [vmem:[%s277 + $0x4f0] sm:$0xff]
      %v445 = vld [vmem:[%s277 + $0x4f8] sm:$0xff]
      %v446 = vld [vmem:[%s277 + $0x500] sm:$0xff]
      %v447 = vld [vmem:[%s277 + $0x508] sm:$0xff]
      %v448 = vld [vmem:[%s277 + $0x510] sm:$0xff]
      %v449 = vld [vmem:[%s277 + $0x518] sm:$0xff]
      %v450 = vld [vmem:[%s277 + $0x520] sm:$0xff]
      %v451 = vld [vmem:[%s277 + $0x528] sm:$0xff]
      %v452 = vld [vmem:[%s277 + $0x530] sm:$0xff]
      %v453 = vld [vmem:[%s277 + $0x538] sm:$0xff]
      %v454 = vld [vmem:[%s277 + $0x540] sm:$0xff]
      %v455 = vld [vmem:[%s277 + $0x548] sm:$0xff]
      %v456 = vld [vmem:[%s277 + $0x550] sm:$0xff]
      %v457 = vld [vmem:[%s277 + $0x558] sm:$0xff]
      %v458 = vld [vmem:[%s277 + $0x560] sm:$0xff]
      %v459 = vld [vmem:[%s277 + $0x568] sm:$0xff]
      %v460 = vld [vmem:[%s277 + $0x570] sm:$0xff]
      %v461 = vld [vmem:[%s277 + $0x578] sm:$0xff]
      %v462 = vld [vmem:[%s277 + $0x580] sm:$0xff]
      %v463 = vld [vmem:[%s277 + $0x588] sm:$0xff]
      %v464 = vld [vmem:[%s277 + $0x590] sm:$0xff]
      %v465 = vld [vmem:[%s277 + $0x598] sm:$0xff]
      %v466 = vld [vmem:[%s277 + $0x5a0] sm:$0xff]
      %v467 = vld [vmem:[%s277 + $0x5a8] sm:$0xff]
      %v468 = vld [vmem:[%s277 + $0x5b0] sm:$0xff]
      %v469 = vld [vmem:[%s277 + $0x5b8] sm:$0xff]
      %v470 = vld [vmem:[%s277 + $0x5c0] sm:$0xff]
      %v471 = vld [vmem:[%s277 + $0x5c8] sm:$0xff]
      %v472 = vld [vmem:[%s277 + $0x5d0] sm:$0xff]
      %v473 = vld [vmem:[%s277 + $0x5d8] sm:$0xff]
      %v474 = vld [vmem:[%s277 + $0x5e0] sm:$0xff]
      %v475 = vld [vmem:[%s277 + $0x5e8] sm:$0xff]
      %v476 = vld [vmem:[%s277 + $0x5f0] sm:$0xff]
      %v477 = vld [vmem:[%s277 + $0x5f8] sm:$0xff]
      %v478 = vld [vmem:[%s277 + $0x600] sm:$0xff]
      %v479 = vld [vmem:[%s277 + $0x608] sm:$0xff]
      %v480 = vld [vmem:[%s277 + $0x610] sm:$0xff]
      %v481 = vld [vmem:[%s277 + $0x618] sm:$0xff]
      %v482 = vld [vmem:[%s277 + $0x620] sm:$0xff]
      %v483 = vld [vmem:[%s277 + $0x628] sm:$0xff]
      %v484 = vld [vmem:[%s277 + $0x630] sm:$0xff]
      %v485 = vld [vmem:[%s277 + $0x638] sm:$0xff]
      %v486 = vld [vmem:[%s277 + $0x640] sm:$0xff]
      %v487 = vld [vmem:[%s277 + $0x648] sm:$0xff]
      %v488 = vld [vmem:[%s277 + $0x650] sm:$0xff]
      %v489 = vld [vmem:[%s277 + $0x658] sm:$0xff]
      %v490 = vld [vmem:[%s277 + $0x660] sm:$0xff]
      %v491 = vld [vmem:[%s277 + $0x668] sm:$0xff]
      %v492 = vld [vmem:[%s277 + $0x670] sm:$0xff]
      %v493 = vld [vmem:[%s277 + $0x678] sm:$0xff]
      %v494 = vld [vmem:[%s277 + $0x680] sm:$0xff]
      %v495 = vld [vmem:[%s277 + $0x688] sm:$0xff]
      %v496 = vld [vmem:[%s277 + $0x690] sm:$0xff]
      %v497 = vld [vmem:[%s277 + $0x698] sm:$0xff]
      %v498 = vld [vmem:[%s277 + $0x6a0] sm:$0xff]
      %v499 = vld [vmem:[%s277 + $0x6a8] sm:$0xff]
      %v500 = vld [vmem:[%s277 + $0x6b0] sm:$0xff]
      %v501 = vld [vmem:[%s277 + $0x6b8] sm:$0xff]
      %v502 = vld [vmem:[%s277 + $0x6c0] sm:$0xff]
      %v503 = vld [vmem:[%s277 + $0x6c8] sm:$0xff]
      %v504 = vld [vmem:[%s277 + $0x6d0] sm:$0xff]
      %v505 = vld [vmem:[%s277 + $0x6d8] sm:$0xff]
      %v506 = vld [vmem:[%s277 + $0x6e0] sm:$0xff]
      %v507 = vld [vmem:[%s277 + $0x6e8] sm:$0xff]
      %v508 = vld [vmem:[%s277 + $0x6f0] sm:$0xff]
      %v509 = vld [vmem:[%s277 + $0x6f8] sm:$0xff]
      %v510 = vld [vmem:[%s277 + $0x700] sm:$0xff]
      %v511 = vld [vmem:[%s277 + $0x708] sm:$0xff]
      %v512 = vld [vmem:[%s277 + $0x710] sm:$0xff]
      %v513 = vld [vmem:[%s277 + $0x718] sm:$0xff]
      %v514 = vld [vmem:[%s277 + $0x720] sm:$0xff]
      %v515 = vld [vmem:[%s277 + $0x728] sm:$0xff]
      %v516 = vld [vmem:[%s277 + $0x730] sm:$0xff]
      %v517 = vld [vmem:[%s277 + $0x738] sm:$0xff]
      %v518 = vld [vmem:[%s277 + $0x740] sm:$0xff]
      %v519 = vld [vmem:[%s277 + $0x748] sm:$0xff]
      %v520 = vld [vmem:[%s277 + $0x750] sm:$0xff]
      %v521 = vld [vmem:[%s277 + $0x758] sm:$0xff]
      %v522 = vld [vmem:[%s277 + $0x760] sm:$0xff]
      %v523 = vld [vmem:[%s277 + $0x768] sm:$0xff]
      %v524 = vld [vmem:[%s277 + $0x770] sm:$0xff]
      %v525 = vld [vmem:[%s277 + $0x778] sm:$0xff]
      %v526 = vld [vmem:[%s277 + $0x780] sm:$0xff]
      %v527 = vld [vmem:[%s277 + $0x788] sm:$0xff]
      %v528 = vld [vmem:[%s277 + $0x790] sm:$0xff]
      %v529 = vld [vmem:[%s277 + $0x798] sm:$0xff]
      %v530 = vld [vmem:[%s277 + $0x7a0] sm:$0xff]
      %v531 = vld [vmem:[%s277 + $0x7a8] sm:$0xff]
      %v532 = vld [vmem:[%s277 + $0x7b0] sm:$0xff]
      %v533 = vld [vmem:[%s277 + $0x7b8] sm:$0xff]
      %v534 = vld [vmem:[%s277 + $0x7c0] sm:$0xff]
      %v535 = vld [vmem:[%s277 + $0x7c8] sm:$0xff]
      %v536 = vld [vmem:[%s277 + $0x7d0] sm:$0xff]
      %v537 = vld [vmem:[%s277 + $0x7d8] sm:$0xff]
      %v538 = vld [vmem:[%s277 + $0x7e0] sm:$0xff]
      %v539 = vld [vmem:[%s277 + $0x7e8] sm:$0xff]
      %v540 = vld [vmem:[%s277 + $0x7f0] sm:$0xff]
      %v541 = vld [vmem:[%s277 + $0x7f8] sm:$0xff]
      %v542 = vld [vmem:[%s277 + $0x800] sm:$0xff]
      %v543 = vld [vmem:[%s277 + $0x808] sm:$0xff]
      %v544 = vld [vmem:[%s277 + $0x810] sm:$0xff]
      %v545 = vld [vmem:[%s277 + $0x818] sm:$0xff]
      %v546 = vld [vmem:[%s277 + $0x820] sm:$0xff]
      %v547 = vld [vmem:[%s277 + $0x828] sm:$0xff]
      %v548 = vld [vmem:[%s277 + $0x830] sm:$0xff]
      %v549 = vld [vmem:[%s277 + $0x838] sm:$0xff]
      %v550 = vld [vmem:[%s277 + $0x840] sm:$0xff]
      %v551 = vld [vmem:[%s277 + $0x848] sm:$0xff]
      %v552 = vld [vmem:[%s277 + $0x850] sm:$0xff]
      %v553 = vld [vmem:[%s277 + $0x858] sm:$0xff]
      %v554 = vld [vmem:[%s277 + $0x860] sm:$0xff]
      %v555 = vld [vmem:[%s277 + $0x868] sm:$0xff]
      %v556 = vld [vmem:[%s277 + $0x870] sm:$0xff]
      %v557 = vld [vmem:[%s277 + $0x878] sm:$0xff]
      %v558 = vld [vmem:[%s277 + $0x880] sm:$0xff]
      %v559 = vld [vmem:[%s277 + $0x888] sm:$0xff]
      %v560 = vld [vmem:[%s277 + $0x890] sm:$0xff]
      %v561 = vld [vmem:[%s277 + $0x898] sm:$0xff]
      %v562 = vld [vmem:[%s277 + $0x8a0] sm:$0xff]
      %v563 = vld [vmem:[%s277 + $0x8a8] sm:$0xff]
      %v564 = vld [vmem:[%s277 + $0x8b0] sm:$0xff]
      %v565 = vld [vmem:[%s277 + $0x8b8] sm:$0xff]
      %v566 = vld [vmem:[%s277 + $0x8c0] sm:$0xff]
      %v567 = vld [vmem:[%s277 + $0x8c8] sm:$0xff]
      %v568 = vld [vmem:[%s277 + $0x8d0] sm:$0xff]
      %v569 = vld [vmem:[%s277 + $0x8d8] sm:$0xff]
      %v570 = vld [vmem:[%s277 + $0x8e0] sm:$0xff]
      %v571 = vld [vmem:[%s277 + $0x8e8] sm:$0xff]
      %v572 = vld [vmem:[%s277 + $0x8f0] sm:$0xff]
      %v573 = vld [vmem:[%s277 + $0x8f8] sm:$0xff]
      %v574 = vld [vmem:[%s277 + $0x900] sm:$0xff]
      %v575 = vld [vmem:[%s277 + $0x908] sm:$0xff]
      %v576 = vld [vmem:[%s277 + $0x910] sm:$0xff]
      %v577 = vld [vmem:[%s277 + $0x918] sm:$0xff]
      %v578 = vld [vmem:[%s277 + $0x920] sm:$0xff]
      %v579 = vld [vmem:[%s277 + $0x928] sm:$0xff]
      %v580 = vld [vmem:[%s277 + $0x930] sm:$0xff]
      %v581 = vld [vmem:[%s277 + $0x938] sm:$0xff]
      %v582 = vld [vmem:[%s277 + $0x940] sm:$0xff]
      %v583 = vld [vmem:[%s277 + $0x948] sm:$0xff]
      %v584 = vld [vmem:[%s277 + $0x950] sm:$0xff]
      %v585 = vld [vmem:[%s277 + $0x958] sm:$0xff]
      %v586 = vld [vmem:[%s277 + $0x960] sm:$0xff]
      %v587 = vld [vmem:[%s277 + $0x968] sm:$0xff]
      %v588 = vld [vmem:[%s277 + $0x970] sm:$0xff]
      %v589 = vld [vmem:[%s277 + $0x978] sm:$0xff]
      %v590 = vld [vmem:[%s277 + $0x980] sm:$0xff]
      %v591 = vld [vmem:[%s277 + $0x988] sm:$0xff]
      %v592 = vld [vmem:[%s277 + $0x990] sm:$0xff]
      %v593 = vld [vmem:[%s277 + $0x998] sm:$0xff]
      %v594 = vld [vmem:[%s277 + $0x9a0] sm:$0xff]
      %v595 = vld [vmem:[%s277 + $0x9a8] sm:$0xff]
      %v596 = vld [vmem:[%s277 + $0x9b0] sm:$0xff]
      %v597 = vld [vmem:[%s277 + $0x9b8] sm:$0xff]
      %v598 = vld [vmem:[%s277 + $0x9c0] sm:$0xff]
      %v599 = vld [vmem:[%s277 + $0x9c8] sm:$0xff]
      %v600 = vld [vmem:[%s277 + $0x9d0] sm:$0xff]
      %v601 = vld [vmem:[%s277 + $0x9d8] sm:$0xff]
      %v602 = vld [vmem:[%s277 + $0x9e0] sm:$0xff]
      %v603 = vld [vmem:[%s277 + $0x9e8] sm:$0xff]
      %v604 = vld [vmem:[%s277 + $0x9f0] sm:$0xff]
      %v605 = vld [vmem:[%s277 + $0x9f8] sm:$0xff]
      %v606 = vpack.c.bf16 %v306, %v286
      %v607 = vpack.c.bf16 %v307, %v287
      %v608 = vpack.c.bf16 %v308, %v288
      %v609 = vpack.c.bf16 %v309, %v289
      %v610 = vpack.c.bf16 %v310, %v290
      %v611 = vpack.c.bf16 %v311, %v291
      %v612 = vpack.c.bf16 %v312, %v292
      %v613 = vpack.c.bf16 %v313, %v293
      %v614 = vpack.c.bf16 %v314, %v294
      %v615 = vpack.c.bf16 %v315, %v295
      %v616 = vpack.c.bf16 %v316, %v296
      %v617 = vpack.c.bf16 %v317, %v297
      %v618 = vpack.c.bf16 %v318, %v298
      %v619 = vpack.c.bf16 %v319, %v299
      %v620 = vpack.c.bf16 %v320, %v300
      %v621 = vpack.c.bf16 %v321, %v301
      %v622 = vpack.c.bf16 %v322, %v302
      %v623 = vpack.c.bf16 %v323, %v303
      %v624 = vpack.c.bf16 %v324, %v304
      %v625 = vpack.c.bf16 %v325, %v305
      %v626 = vpack.c.bf16 %v346, %v326
      %v627 = vpack.c.bf16 %v347, %v327
      %v628 = vpack.c.bf16 %v348, %v328
      %v629 = vpack.c.bf16 %v349, %v329
      %v630 = vpack.c.bf16 %v350, %v330
      %v631 = vpack.c.bf16 %v351, %v331
      %v632 = vpack.c.bf16 %v352, %v332
      %v633 = vpack.c.bf16 %v353, %v333
      %v634 = vpack.c.bf16 %v354, %v334
      %v635 = vpack.c.bf16 %v355, %v335
      %v636 = vpack.c.bf16 %v356, %v336
      %v637 = vpack.c.bf16 %v357, %v337
      %v638 = vpack.c.bf16 %v358, %v338
      %v639 = vpack.c.bf16 %v359, %v339
      %v640 = vpack.c.bf16 %v360, %v340
      %v641 = vpack.c.bf16 %v361, %v341
      %v642 = vpack.c.bf16 %v362, %v342
      %v643 = vpack.c.bf16 %v363, %v343
      %v644 = vpack.c.bf16 %v364, %v344
      %v645 = vpack.c.bf16 %v365, %v345
      %v646 = vpack.c.bf16 %v386, %v366
      %v647 = vpack.c.bf16 %v387, %v367
      %v648 = vpack.c.bf16 %v388, %v368
      %v649 = vpack.c.bf16 %v389, %v369
      %v650 = vpack.c.bf16 %v390, %v370
      %v651 = vpack.c.bf16 %v391, %v371
      %v652 = vpack.c.bf16 %v392, %v372
      %v653 = vpack.c.bf16 %v393, %v373
      %v654 = vpack.c.bf16 %v394, %v374
      %v655 = vpack.c.bf16 %v395, %v375
      %v656 = vpack.c.bf16 %v396, %v376
      %v657 = vpack.c.bf16 %v397, %v377
      %v658 = vpack.c.bf16 %v398, %v378
      %v659 = vpack.c.bf16 %v399, %v379
      %v660 = vpack.c.bf16 %v400, %v380
      %v661 = vpack.c.bf16 %v401, %v381
      %v662 = vpack.c.bf16 %v402, %v382
      %v663 = vpack.c.bf16 %v403, %v383
      %v664 = vpack.c.bf16 %v404, %v384
      %v665 = vpack.c.bf16 %v405, %v385
      %v666 = vpack.c.bf16 %v426, %v406
      %v667 = vpack.c.bf16 %v427, %v407
      %v668 = vpack.c.bf16 %v428, %v408
      %v669 = vpack.c.bf16 %v429, %v409
      %v670 = vpack.c.bf16 %v430, %v410
      %v671 = vpack.c.bf16 %v431, %v411
      %v672 = vpack.c.bf16 %v432, %v412
      %v673 = vpack.c.bf16 %v433, %v413
      %v674 = vpack.c.bf16 %v434, %v414
      %v675 = vpack.c.bf16 %v435, %v415
      %v676 = vpack.c.bf16 %v436, %v416
      %v677 = vpack.c.bf16 %v437, %v417
      %v678 = vpack.c.bf16 %v438, %v418
      %v679 = vpack.c.bf16 %v439, %v419
      %v680 = vpack.c.bf16 %v440, %v420
      %v681 = vpack.c.bf16 %v441, %v421
      %v682 = vpack.c.bf16 %v442, %v422
      %v683 = vpack.c.bf16 %v443, %v423
      %v684 = vpack.c.bf16 %v444, %v424
      %v685 = vpack.c.bf16 %v445, %v425
      %v686 = vpack.c.bf16 %v466, %v446
      %v687 = vpack.c.bf16 %v467, %v447
      %v688 = vpack.c.bf16 %v468, %v448
      %v689 = vpack.c.bf16 %v469, %v449
      %v690 = vpack.c.bf16 %v470, %v450
      %v691 = vpack.c.bf16 %v471, %v451
      %v692 = vpack.c.bf16 %v472, %v452
      %v693 = vpack.c.bf16 %v473, %v453
      %v694 = vpack.c.bf16 %v474, %v454
      %v695 = vpack.c.bf16 %v475, %v455
      %v696 = vpack.c.bf16 %v476, %v456
      %v697 = vpack.c.bf16 %v477, %v457
      %v698 = vpack.c.bf16 %v478, %v458
      %v699 = vpack.c.bf16 %v479, %v459
      %v700 = vpack.c.bf16 %v480, %v460
      %v701 = vpack.c.bf16 %v481, %v461
      %v702 = vpack.c.bf16 %v482, %v462
      %v703 = vpack.c.bf16 %v483, %v463
      %v704 = vpack.c.bf16 %v484, %v464
      %v705 = vpack.c.bf16 %v485, %v465
      %v706 = vpack.c.bf16 %v506, %v486
      %v707 = vpack.c.bf16 %v507, %v487
      %v708 = vpack.c.bf16 %v508, %v488
      %v709 = vpack.c.bf16 %v509, %v489
      %v710 = vpack.c.bf16 %v510, %v490
      %v711 = vpack.c.bf16 %v511, %v491
      %v712 = vpack.c.bf16 %v512, %v492
      %v713 = vpack.c.bf16 %v513, %v493
      %v714 = vpack.c.bf16 %v514, %v494
      %v715 = vpack.c.bf16 %v515, %v495
      %v716 = vpack.c.bf16 %v516, %v496
      %v717 = vpack.c.bf16 %v517, %v497
      %v718 = vpack.c.bf16 %v518, %v498
      %v719 = vpack.c.bf16 %v519, %v499
      %v720 = vpack.c.bf16 %v520, %v500
      %v721 = vpack.c.bf16 %v521, %v501
      %v722 = vpack.c.bf16 %v522, %v502
      %v723 = vpack.c.bf16 %v523, %v503
      %v724 = vpack.c.bf16 %v524, %v504
      %v725 = vpack.c.bf16 %v525, %v505
      %v726 = vpack.c.bf16 %v546, %v526
      %v727 = vpack.c.bf16 %v547, %v527
      %v728 = vpack.c.bf16 %v548, %v528
      %v729 = vpack.c.bf16 %v549, %v529
      %v730 = vpack.c.bf16 %v550, %v530
      %v731 = vpack.c.bf16 %v551, %v531
      %v732 = vpack.c.bf16 %v552, %v532
      %v733 = vpack.c.bf16 %v553, %v533
      %v734 = vpack.c.bf16 %v554, %v534
      %v735 = vpack.c.bf16 %v555, %v535
      %v736 = vpack.c.bf16 %v556, %v536
      %v737 = vpack.c.bf16 %v557, %v537
      %v738 = vpack.c.bf16 %v558, %v538
      %v739 = vpack.c.bf16 %v559, %v539
      %v740 = vpack.c.bf16 %v560, %v540
      %v741 = vpack.c.bf16 %v561, %v541
      %v742 = vpack.c.bf16 %v562, %v542
      %v743 = vpack.c.bf16 %v563, %v543
      %v744 = vpack.c.bf16 %v564, %v544
      %v745 = vpack.c.bf16 %v565, %v545
      %v746 = vpack.c.bf16 %v586, %v566
      %v747 = vpack.c.bf16 %v587, %v567
      %v748 = vpack.c.bf16 %v588, %v568
      %v749 = vpack.c.bf16 %v589, %v569
      %v750 = vpack.c.bf16 %v590, %v570
      %v751 = vpack.c.bf16 %v591, %v571
      %v752 = vpack.c.bf16 %v592, %v572
      %v753 = vpack.c.bf16 %v593, %v573
      %v754 = vpack.c.bf16 %v594, %v574
      %v755 = vpack.c.bf16 %v595, %v575
      %v756 = vpack.c.bf16 %v596, %v576
      %v757 = vpack.c.bf16 %v597, %v577
      %v758 = vpack.c.bf16 %v598, %v578
      %v759 = vpack.c.bf16 %v599, %v579
      %v760 = vpack.c.bf16 %v600, %v580
      %v761 = vpack.c.bf16 %v601, %v581
      %v762 = vpack.c.bf16 %v602, %v582
      %v763 = vpack.c.bf16 %v603, %v583
      %v764 = vpack.c.bf16 %v604, %v584
      %v765 = vpack.c.bf16 %v605, %v585
      %v766 = vld [vmem:[%s1] sm:$0xf]
      %v767 = vld [vmem:[%s1 + $0x4] sm:$0xf]
      %v768 = vld [vmem:[%s1 + $0x8] sm:$0xf]
      %v769 = vld [vmem:[%s1 + $0xc] sm:$0xf]
      %v770 = vld [vmem:[%s1 + $0x10] sm:$0xf]
      %v771 = vld [vmem:[%s1 + $0x14] sm:$0xf]
      %v772 = vld [vmem:[%s1 + $0x18] sm:$0xf]
      %v773 = vld [vmem:[%s1 + $0x1c] sm:$0xf]
      %v774 = vld [vmem:[%s1 + $0x20] sm:$0xf]
      %v775 = vld [vmem:[%s1 + $0x24] sm:$0xf]
      %v776 = vld [vmem:[%s1 + $0x28] sm:$0xf]
      %v777 = vld [vmem:[%s1 + $0x2c] sm:$0xf]
      %v778 = vld [vmem:[%s1 + $0x30] sm:$0xf]
      %v779 = vld [vmem:[%s1 + $0x34] sm:$0xf]
      %v780 = vld [vmem:[%s1 + $0x38] sm:$0xf]
      %v781 = vld [vmem:[%s1 + $0x3c] sm:$0xf]
      %v782 = vld [vmem:[%s1 + $0x40] sm:$0xf]
      %v783 = vld [vmem:[%s1 + $0x44] sm:$0xf]
      %v784 = vld [vmem:[%s1 + $0x48] sm:$0xf]
      %v785 = vld [vmem:[%s1 + $0x4c] sm:$0xf]
      %v786 = vld [vmem:[%s1 + $0x50] sm:$0xf]
      %v787 = vld [vmem:[%s1 + $0x54] sm:$0xf]
      %v788 = vld [vmem:[%s1 + $0x58] sm:$0xf]
      %v789 = vld [vmem:[%s1 + $0x5c] sm:$0xf]
      %v790 = vld [vmem:[%s1 + $0x60] sm:$0xf]
      %v791 = vld [vmem:[%s1 + $0x64] sm:$0xf]
      %v792 = vld [vmem:[%s1 + $0x68] sm:$0xf]
      %v793 = vld [vmem:[%s1 + $0x6c] sm:$0xf]
      %v794 = vld [vmem:[%s1 + $0x70] sm:$0xf]
      %v795 = vld [vmem:[%s1 + $0x74] sm:$0xf]
      %v796 = vld [vmem:[%s1 + $0x78] sm:$0xf]
      %v797 = vld [vmem:[%s1 + $0x7c] sm:$0xf]
      %v798 = vld [vmem:[%s1 + $0x80] sm:$0xf]
      %v799 = vld [vmem:[%s1 + $0x84] sm:$0xf]
      %v800 = vld [vmem:[%s1 + $0x88] sm:$0xf]
      %v801 = vld [vmem:[%s1 + $0x8c] sm:$0xf]
      %v802 = vld [vmem:[%s1 + $0x90] sm:$0xf]
      %v803 = vld [vmem:[%s1 + $0x94] sm:$0xf]
      %v804 = vld [vmem:[%s1 + $0x98] sm:$0xf]
      %v805 = vld [vmem:[%s1 + $0x9c] sm:$0xf]
      %v806 = vld [vmem:[%s1 + $0xa0] sm:$0xf]
      %v807 = vld [vmem:[%s1 + $0xa4] sm:$0xf]
      %v808 = vld [vmem:[%s1 + $0xa8] sm:$0xf]
      %v809 = vld [vmem:[%s1 + $0xac] sm:$0xf]
      %v810 = vld [vmem:[%s1 + $0xb0] sm:$0xf]
      %v811 = vld [vmem:[%s1 + $0xb4] sm:$0xf]
      %v812 = vld [vmem:[%s1 + $0xb8] sm:$0xf]
      %v813 = vld [vmem:[%s1 + $0xbc] sm:$0xf]
      %v814 = vld [vmem:[%s1 + $0xc0] sm:$0xf]
      %v815 = vld [vmem:[%s1 + $0xc4] sm:$0xf]
      %v816 = vld [vmem:[%s1 + $0xc8] sm:$0xf]
      %v817 = vld [vmem:[%s1 + $0xcc] sm:$0xf]
      %v818 = vld [vmem:[%s1 + $0xd0] sm:$0xf]
      %v819 = vld [vmem:[%s1 + $0xd4] sm:$0xf]
      %v820 = vld [vmem:[%s1 + $0xd8] sm:$0xf]
      %v821 = vld [vmem:[%s1 + $0xdc] sm:$0xf]
      %v822 = vld [vmem:[%s1 + $0xe0] sm:$0xf]
      %v823 = vld [vmem:[%s1 + $0xe4] sm:$0xf]
      %v824 = vld [vmem:[%s1 + $0xe8] sm:$0xf]
      %v825 = vld [vmem:[%s1 + $0xec] sm:$0xf]
      %v826 = vld [vmem:[%s1 + $0xf0] sm:$0xf]
      %v827 = vld [vmem:[%s1 + $0xf4] sm:$0xf]
      %v828 = vld [vmem:[%s1 + $0xf8] sm:$0xf]
      %v829 = vld [vmem:[%s1 + $0xfc] sm:$0xf]
      %v830 = vld [vmem:[%s1 + $0x100] sm:$0xf]
      %v831 = vld [vmem:[%s1 + $0x104] sm:$0xf]
      %v832 = vld [vmem:[%s1 + $0x108] sm:$0xf]
      %v833 = vld [vmem:[%s1 + $0x10c] sm:$0xf]
      %v834 = vld [vmem:[%s1 + $0x110] sm:$0xf]
      %v835 = vld [vmem:[%s1 + $0x114] sm:$0xf]
      %v836 = vld [vmem:[%s1 + $0x118] sm:$0xf]
      %v837 = vld [vmem:[%s1 + $0x11c] sm:$0xf]
      %v838 = vld [vmem:[%s1 + $0x120] sm:$0xf]
      %v839 = vld [vmem:[%s1 + $0x124] sm:$0xf]
      %v840 = vld [vmem:[%s1 + $0x128] sm:$0xf]
      %v841 = vld [vmem:[%s1 + $0x12c] sm:$0xf]
      %v842 = vld [vmem:[%s1 + $0x130] sm:$0xf]
      %v843 = vld [vmem:[%s1 + $0x134] sm:$0xf]
      %v844 = vld [vmem:[%s1 + $0x138] sm:$0xf]
      %v845 = vld [vmem:[%s1 + $0x13c] sm:$0xf]
      %v846 = vld [vmem:[%s1 + $0x140] sm:$0xf]
      %v847 = vld [vmem:[%s1 + $0x144] sm:$0xf]
      %v848 = vld [vmem:[%s1 + $0x148] sm:$0xf]
      %v849 = vld [vmem:[%s1 + $0x14c] sm:$0xf]
      %v850 = vld [vmem:[%s1 + $0x150] sm:$0xf]
      %v851 = vld [vmem:[%s1 + $0x154] sm:$0xf]
      %v852 = vld [vmem:[%s1 + $0x158] sm:$0xf]
      %v853 = vld [vmem:[%s1 + $0x15c] sm:$0xf]
      %v854 = vld [vmem:[%s1 + $0x160] sm:$0xf]
      %v855 = vld [vmem:[%s1 + $0x164] sm:$0xf]
      %v856 = vld [vmem:[%s1 + $0x168] sm:$0xf]
      %v857 = vld [vmem:[%s1 + $0x16c] sm:$0xf]
      %v858 = vld [vmem:[%s1 + $0x170] sm:$0xf]
      %v859 = vld [vmem:[%s1 + $0x174] sm:$0xf]
      %v860 = vld [vmem:[%s1 + $0x178] sm:$0xf]
      %v861 = vld [vmem:[%s1 + $0x17c] sm:$0xf]
      %v862 = vld [vmem:[%s1 + $0x180] sm:$0xf]
      %v863 = vld [vmem:[%s1 + $0x184] sm:$0xf]
      %v864 = vld [vmem:[%s1 + $0x188] sm:$0xf]
      %v865 = vld [vmem:[%s1 + $0x18c] sm:$0xf]
      %v866 = vld [vmem:[%s1 + $0x190] sm:$0xf]
      %v867 = vld [vmem:[%s1 + $0x194] sm:$0xf]
      %v868 = vld [vmem:[%s1 + $0x198] sm:$0xf]
      %v869 = vld [vmem:[%s1 + $0x19c] sm:$0xf]
      %v870 = vld [vmem:[%s1 + $0x1a0] sm:$0xf]
      %v871 = vld [vmem:[%s1 + $0x1a4] sm:$0xf]
      %v872 = vld [vmem:[%s1 + $0x1a8] sm:$0xf]
      %v873 = vld [vmem:[%s1 + $0x1ac] sm:$0xf]
      %v874 = vld [vmem:[%s1 + $0x1b0] sm:$0xf]
      %v875 = vld [vmem:[%s1 + $0x1b4] sm:$0xf]
      %v876 = vld [vmem:[%s1 + $0x1b8] sm:$0xf]
      %v877 = vld [vmem:[%s1 + $0x1bc] sm:$0xf]
      %v878 = vld [vmem:[%s1 + $0x1c0] sm:$0xf]
      %v879 = vld [vmem:[%s1 + $0x1c4] sm:$0xf]
      %v880 = vld [vmem:[%s1 + $0x1c8] sm:$0xf]
      %v881 = vld [vmem:[%s1 + $0x1cc] sm:$0xf]
      %v882 = vld [vmem:[%s1 + $0x1d0] sm:$0xf]
      %v883 = vld [vmem:[%s1 + $0x1d4] sm:$0xf]
      %v884 = vld [vmem:[%s1 + $0x1d8] sm:$0xf]
      %v885 = vld [vmem:[%s1 + $0x1dc] sm:$0xf]
      %v886 = vld [vmem:[%s1 + $0x1e0] sm:$0xf]
      %v887 = vld [vmem:[%s1 + $0x1e4] sm:$0xf]
      %v888 = vld [vmem:[%s1 + $0x1e8] sm:$0xf]
      %v889 = vld [vmem:[%s1 + $0x1ec] sm:$0xf]
      %v890 = vld [vmem:[%s1 + $0x1f0] sm:$0xf]
      %v891 = vld [vmem:[%s1 + $0x1f4] sm:$0xf]
      %v892 = vld [vmem:[%s1 + $0x1f8] sm:$0xf]
      %v893 = vld [vmem:[%s1 + $0x1fc] sm:$0xf]
      %v894 = vld [vmem:[%s1 + $0x200] sm:$0xf]
      %v895 = vld [vmem:[%s1 + $0x204] sm:$0xf]
      %v896 = vld [vmem:[%s1 + $0x208] sm:$0xf]
      %v897 = vld [vmem:[%s1 + $0x20c] sm:$0xf]
      %v898 = vld [vmem:[%s1 + $0x210] sm:$0xf]
      %v899 = vld [vmem:[%s1 + $0x214] sm:$0xf]
      %v900 = vld [vmem:[%s1 + $0x218] sm:$0xf]
      %v901 = vld [vmem:[%s1 + $0x21c] sm:$0xf]
      %v902 = vld [vmem:[%s1 + $0x220] sm:$0xf]
      %v903 = vld [vmem:[%s1 + $0x224] sm:$0xf]
      %v904 = vld [vmem:[%s1 + $0x228] sm:$0xf]
      %v905 = vld [vmem:[%s1 + $0x22c] sm:$0xf]
      %v906 = vld [vmem:[%s1 + $0x230] sm:$0xf]
      %v907 = vld [vmem:[%s1 + $0x234] sm:$0xf]
      %v908 = vld [vmem:[%s1 + $0x238] sm:$0xf]
      %v909 = vld [vmem:[%s1 + $0x23c] sm:$0xf]
      %v910 = vld [vmem:[%s1 + $0x240] sm:$0xf]
      %v911 = vld [vmem:[%s1 + $0x244] sm:$0xf]
      %v912 = vld [vmem:[%s1 + $0x248] sm:$0xf]
      %v913 = vld [vmem:[%s1 + $0x24c] sm:$0xf]
      %v914 = vld [vmem:[%s1 + $0x250] sm:$0xf]
      %v915 = vld [vmem:[%s1 + $0x254] sm:$0xf]
      %v916 = vld [vmem:[%s1 + $0x258] sm:$0xf]
      %v917 = vld [vmem:[%s1 + $0x25c] sm:$0xf]
      %v918 = vld [vmem:[%s1 + $0x260] sm:$0xf]
      %v919 = vld [vmem:[%s1 + $0x264] sm:$0xf]
      %v920 = vld [vmem:[%s1 + $0x268] sm:$0xf]
      %v921 = vld [vmem:[%s1 + $0x26c] sm:$0xf]
      %v922 = vld [vmem:[%s1 + $0x270] sm:$0xf]
      %v923 = vld [vmem:[%s1 + $0x274] sm:$0xf]
      %v924 = vld [vmem:[%s1 + $0x278] sm:$0xf]
      %v925 = vld [vmem:[%s1 + $0x27c] sm:$0xf]
      %v926 = vld [vmem:[%s1 + $0x280] sm:$0xf]
      %v927 = vld [vmem:[%s1 + $0x284] sm:$0xf]
      %v928 = vld [vmem:[%s1 + $0x288] sm:$0xf]
      %v929 = vld [vmem:[%s1 + $0x28c] sm:$0xf]
      %v930 = vld [vmem:[%s1 + $0x290] sm:$0xf]
      %v931 = vld [vmem:[%s1 + $0x294] sm:$0xf]
      %v932 = vld [vmem:[%s1 + $0x298] sm:$0xf]
      %v933 = vld [vmem:[%s1 + $0x29c] sm:$0xf]
      %v934 = vld [vmem:[%s1 + $0x2a0] sm:$0xf]
      %v935 = vld [vmem:[%s1 + $0x2a4] sm:$0xf]
      %v936 = vld [vmem:[%s1 + $0x2a8] sm:$0xf]
      %v937 = vld [vmem:[%s1 + $0x2ac] sm:$0xf]
      %v938 = vld [vmem:[%s1 + $0x2b0] sm:$0xf]
      %v939 = vld [vmem:[%s1 + $0x2b4] sm:$0xf]
      %v940 = vld [vmem:[%s1 + $0x2b8] sm:$0xf]
      %v941 = vld [vmem:[%s1 + $0x2bc] sm:$0xf]
      %v942 = vld [vmem:[%s1 + $0x2c0] sm:$0xf]
      %v943 = vld [vmem:[%s1 + $0x2c4] sm:$0xf]
      %v944 = vld [vmem:[%s1 + $0x2c8] sm:$0xf]
      %v945 = vld [vmem:[%s1 + $0x2cc] sm:$0xf]
      %v946 = vld [vmem:[%s1 + $0x2d0] sm:$0xf]
      %v947 = vld [vmem:[%s1 + $0x2d4] sm:$0xf]
      %v948 = vld [vmem:[%s1 + $0x2d8] sm:$0xf]
      %v949 = vld [vmem:[%s1 + $0x2dc] sm:$0xf]
      %v950 = vld [vmem:[%s1 + $0x2e0] sm:$0xf]
      %v951 = vld [vmem:[%s1 + $0x2e4] sm:$0xf]
      %v952 = vld [vmem:[%s1 + $0x2e8] sm:$0xf]
      %v953 = vld [vmem:[%s1 + $0x2ec] sm:$0xf]
      %v954 = vld [vmem:[%s1 + $0x2f0] sm:$0xf]
      %v955 = vld [vmem:[%s1 + $0x2f4] sm:$0xf]
      %v956 = vld [vmem:[%s1 + $0x2f8] sm:$0xf]
      %v957 = vld [vmem:[%s1 + $0x2fc] sm:$0xf]
      %v958 = vld [vmem:[%s1 + $0x300] sm:$0xf]
      %v959 = vld [vmem:[%s1 + $0x304] sm:$0xf]
      %v960 = vld [vmem:[%s1 + $0x308] sm:$0xf]
      %v961 = vld [vmem:[%s1 + $0x30c] sm:$0xf]
      %v962 = vld [vmem:[%s1 + $0x310] sm:$0xf]
      %v963 = vld [vmem:[%s1 + $0x314] sm:$0xf]
      %v964 = vld [vmem:[%s1 + $0x318] sm:$0xf]
      %v965 = vld [vmem:[%s1 + $0x31c] sm:$0xf]
      %v966 = vld [vmem:[%s1 + $0x320] sm:$0xf]
      %v967 = vld [vmem:[%s1 + $0x324] sm:$0xf]
      %v968 = vld [vmem:[%s1 + $0x328] sm:$0xf]
      %v969 = vld [vmem:[%s1 + $0x32c] sm:$0xf]
      %v970 = vld [vmem:[%s1 + $0x330] sm:$0xf]
      %v971 = vld [vmem:[%s1 + $0x334] sm:$0xf]
      %v972 = vld [vmem:[%s1 + $0x338] sm:$0xf]
      %v973 = vld [vmem:[%s1 + $0x33c] sm:$0xf]
      %v974 = vld [vmem:[%s1 + $0x340] sm:$0xf]
      %v975 = vld [vmem:[%s1 + $0x344] sm:$0xf]
      %v976 = vld [vmem:[%s1 + $0x348] sm:$0xf]
      %v977 = vld [vmem:[%s1 + $0x34c] sm:$0xf]
      %v978 = vld [vmem:[%s1 + $0x350] sm:$0xf]
      %v979 = vld [vmem:[%s1 + $0x354] sm:$0xf]
      %v980 = vld [vmem:[%s1 + $0x358] sm:$0xf]
      %v981 = vld [vmem:[%s1 + $0x35c] sm:$0xf]
      %v982 = vld [vmem:[%s1 + $0x360] sm:$0xf]
      %v983 = vld [vmem:[%s1 + $0x364] sm:$0xf]
      %v984 = vld [vmem:[%s1 + $0x368] sm:$0xf]
      %v985 = vld [vmem:[%s1 + $0x36c] sm:$0xf]
      %v986 = vld [vmem:[%s1 + $0x370] sm:$0xf]
      %v987 = vld [vmem:[%s1 + $0x374] sm:$0xf]
      %v988 = vld [vmem:[%s1 + $0x378] sm:$0xf]
      %v989 = vld [vmem:[%s1 + $0x37c] sm:$0xf]
      %v990 = vld [vmem:[%s1 + $0x380] sm:$0xf]
      %v991 = vld [vmem:[%s1 + $0x384] sm:$0xf]
      %v992 = vld [vmem:[%s1 + $0x388] sm:$0xf]
      %v993 = vld [vmem:[%s1 + $0x38c] sm:$0xf]
      %v994 = vld [vmem:[%s1 + $0x390] sm:$0xf]
      %v995 = vld [vmem:[%s1 + $0x394] sm:$0xf]
      %v996 = vld [vmem:[%s1 + $0x398] sm:$0xf]
      %v997 = vld [vmem:[%s1 + $0x39c] sm:$0xf]
      %v998 = vld [vmem:[%s1 + $0x3a0] sm:$0xf]
      %v999 = vld [vmem:[%s1 + $0x3a4] sm:$0xf]
      %v1000 = vld [vmem:[%s1 + $0x3a8] sm:$0xf]
      %v1001 = vld [vmem:[%s1 + $0x3ac] sm:$0xf]
      %v1002 = vld [vmem:[%s1 + $0x3b0] sm:$0xf]
      %v1003 = vld [vmem:[%s1 + $0x3b4] sm:$0xf]
      %v1004 = vld [vmem:[%s1 + $0x3b8] sm:$0xf]
      %v1005 = vld [vmem:[%s1 + $0x3bc] sm:$0xf]
      %v1006 = vld [vmem:[%s1 + $0x3c0] sm:$0xf]
      %v1007 = vld [vmem:[%s1 + $0x3c4] sm:$0xf]
      %v1008 = vld [vmem:[%s1 + $0x3c8] sm:$0xf]
      %v1009 = vld [vmem:[%s1 + $0x3cc] sm:$0xf]
      %v1010 = vld [vmem:[%s1 + $0x3d0] sm:$0xf]
      %v1011 = vld [vmem:[%s1 + $0x3d4] sm:$0xf]
      %v1012 = vld [vmem:[%s1 + $0x3d8] sm:$0xf]
      %v1013 = vld [vmem:[%s1 + $0x3dc] sm:$0xf]
      %v1014 = vld [vmem:[%s1 + $0x3e0] sm:$0xf]
      %v1015 = vld [vmem:[%s1 + $0x3e4] sm:$0xf]
      %v1016 = vld [vmem:[%s1 + $0x3e8] sm:$0xf]
      %v1017 = vld [vmem:[%s1 + $0x3ec] sm:$0xf]
      %v1018 = vld [vmem:[%s1 + $0x3f0] sm:$0xf]
      %v1019 = vld [vmem:[%s1 + $0x3f4] sm:$0xf]
      %v1020 = vld [vmem:[%s1 + $0x3f8] sm:$0xf]
      %v1021 = vld [vmem:[%s1 + $0x3fc] sm:$0xf]
      %v1022 = vld [vmem:[%s1 + $0x400] sm:$0xf]
      %v1023 = vld [vmem:[%s1 + $0x404] sm:$0xf]
      %v1024 = vld [vmem:[%s1 + $0x408] sm:$0xf]
      %v1025 = vld [vmem:[%s1 + $0x40c] sm:$0xf]
      %v1026 = vld [vmem:[%s1 + $0x410] sm:$0xf]
      %v1027 = vld [vmem:[%s1 + $0x414] sm:$0xf]
      %v1028 = vld [vmem:[%s1 + $0x418] sm:$0xf]
      %v1029 = vld [vmem:[%s1 + $0x41c] sm:$0xf]
      %v1030 = vld [vmem:[%s1 + $0x420] sm:$0xf]
      %v1031 = vld [vmem:[%s1 + $0x424] sm:$0xf]
      %v1032 = vld [vmem:[%s1 + $0x428] sm:$0xf]
      %v1033 = vld [vmem:[%s1 + $0x42c] sm:$0xf]
      %v1034 = vld [vmem:[%s1 + $0x430] sm:$0xf]
      %v1035 = vld [vmem:[%s1 + $0x434] sm:$0xf]
      %v1036 = vld [vmem:[%s1 + $0x438] sm:$0xf]
      %v1037 = vld [vmem:[%s1 + $0x43c] sm:$0xf]
      %v1038 = vld [vmem:[%s1 + $0x440] sm:$0xf]
      %v1039 = vld [vmem:[%s1 + $0x444] sm:$0xf]
      %v1040 = vld [vmem:[%s1 + $0x448] sm:$0xf]
      %v1041 = vld [vmem:[%s1 + $0x44c] sm:$0xf]
      %v1042 = vld [vmem:[%s1 + $0x450] sm:$0xf]
      %v1043 = vld [vmem:[%s1 + $0x454] sm:$0xf]
      %v1044 = vld [vmem:[%s1 + $0x458] sm:$0xf]
      %v1045 = vld [vmem:[%s1 + $0x45c] sm:$0xf]
      %v1046 = vld [vmem:[%s1 + $0x460] sm:$0xf]
      %v1047 = vld [vmem:[%s1 + $0x464] sm:$0xf]
      %v1048 = vld [vmem:[%s1 + $0x468] sm:$0xf]
      %v1049 = vld [vmem:[%s1 + $0x46c] sm:$0xf]
      %v1050 = vld [vmem:[%s1 + $0x470] sm:$0xf]
      %v1051 = vld [vmem:[%s1 + $0x474] sm:$0xf]
      %v1052 = vld [vmem:[%s1 + $0x478] sm:$0xf]
      %v1053 = vld [vmem:[%s1 + $0x47c] sm:$0xf]
      %v1054 = vld [vmem:[%s1 + $0x480] sm:$0xf]
      %v1055 = vld [vmem:[%s1 + $0x484] sm:$0xf]
      %v1056 = vld [vmem:[%s1 + $0x488] sm:$0xf]
      %v1057 = vld [vmem:[%s1 + $0x48c] sm:$0xf]
      %v1058 = vld [vmem:[%s1 + $0x490] sm:$0xf]
      %v1059 = vld [vmem:[%s1 + $0x494] sm:$0xf]
      %v1060 = vld [vmem:[%s1 + $0x498] sm:$0xf]
      %v1061 = vld [vmem:[%s1 + $0x49c] sm:$0xf]
      %v1062 = vld [vmem:[%s1 + $0x4a0] sm:$0xf]
      %v1063 = vld [vmem:[%s1 + $0x4a4] sm:$0xf]
      %v1064 = vld [vmem:[%s1 + $0x4a8] sm:$0xf]
      %v1065 = vld [vmem:[%s1 + $0x4ac] sm:$0xf]
      %v1066 = vld [vmem:[%s1 + $0x4b0] sm:$0xf]
      %v1067 = vld [vmem:[%s1 + $0x4b4] sm:$0xf]
      %v1068 = vld [vmem:[%s1 + $0x4b8] sm:$0xf]
      %v1069 = vld [vmem:[%s1 + $0x4bc] sm:$0xf]
      %v1070 = vld [vmem:[%s1 + $0x4c0] sm:$0xf]
      %v1071 = vld [vmem:[%s1 + $0x4c4] sm:$0xf]
      %v1072 = vld [vmem:[%s1 + $0x4c8] sm:$0xf]
      %v1073 = vld [vmem:[%s1 + $0x4cc] sm:$0xf]
      %v1074 = vld [vmem:[%s1 + $0x4d0] sm:$0xf]
      %v1075 = vld [vmem:[%s1 + $0x4d4] sm:$0xf]
      %v1076 = vld [vmem:[%s1 + $0x4d8] sm:$0xf]
      %v1077 = vld [vmem:[%s1 + $0x4dc] sm:$0xf]
      %v1078 = vld [vmem:[%s1 + $0x4e0] sm:$0xf]
      %v1079 = vld [vmem:[%s1 + $0x4e4] sm:$0xf]
      %v1080 = vld [vmem:[%s1 + $0x4e8] sm:$0xf]
      %v1081 = vld [vmem:[%s1 + $0x4ec] sm:$0xf]
      %v1082 = vld [vmem:[%s1 + $0x4f0] sm:$0xf]
      %v1083 = vld [vmem:[%s1 + $0x4f4] sm:$0xf]
      %v1084 = vld [vmem:[%s1 + $0x4f8] sm:$0xf]
      %v1085 = vld [vmem:[%s1 + $0x4fc] sm:$0xf]
      %v1086 = vld [vmem:[%s2] sm:$0x1]
      %v1088 = vlaneseq
      %v1089 = vshrl.u32 %v1088, 7
      %v1090 = vsub.s32 0, %v1089
      %v1091 = vrot.slane %v1086, %v1090
      %v1413 = vunpack.c.l.b16 %v766
      %v1414 = vunpack.c.l.b16 %v767
      %v1415 = vunpack.c.l.b16 %v768
      %v1416 = vunpack.c.l.b16 %v769
      %v1417 = vunpack.c.l.b16 %v770
      %v1418 = vunpack.c.l.b16 %v771
      %v1419 = vunpack.c.l.b16 %v772
      %v1420 = vunpack.c.l.b16 %v773
      %v1421 = vunpack.c.l.b16 %v774
      %v1422 = vunpack.c.l.b16 %v775
      %v1423 = vunpack.c.l.b16 %v776
      %v1424 = vunpack.c.l.b16 %v777
      %v1425 = vunpack.c.l.b16 %v778
      %v1426 = vunpack.c.l.b16 %v779
      %v1427 = vunpack.c.l.b16 %v780
      %v1428 = vunpack.c.l.b16 %v781
      %v1429 = vunpack.c.l.b16 %v782
      %v1430 = vunpack.c.l.b16 %v783
      %v1431 = vunpack.c.l.b16 %v784
      %v1432 = vunpack.c.l.b16 %v785
      %v1433 = vunpack.c.l.b16 %v786
      %v1434 = vunpack.c.l.b16 %v787
      %v1435 = vunpack.c.l.b16 %v788
      %v1436 = vunpack.c.l.b16 %v789
      %v1437 = vunpack.c.l.b16 %v790
      %v1438 = vunpack.c.l.b16 %v791
      %v1439 = vunpack.c.l.b16 %v792
      %v1440 = vunpack.c.l.b16 %v793
      %v1441 = vunpack.c.l.b16 %v794
      %v1442 = vunpack.c.l.b16 %v795
      %v1443 = vunpack.c.l.b16 %v796
      %v1444 = vunpack.c.l.b16 %v797
      %v1445 = vunpack.c.l.b16 %v798
      %v1446 = vunpack.c.l.b16 %v799
      %v1447 = vunpack.c.l.b16 %v800
      %v1448 = vunpack.c.l.b16 %v801
      %v1449 = vunpack.c.l.b16 %v802
      %v1450 = vunpack.c.l.b16 %v803
      %v1451 = vunpack.c.l.b16 %v804
      %v1452 = vunpack.c.l.b16 %v805
      %v1453 = vunpack.c.l.b16 %v806
      %v1454 = vunpack.c.l.b16 %v807
      %v1455 = vunpack.c.l.b16 %v808
      %v1456 = vunpack.c.l.b16 %v809
      %v1457 = vunpack.c.l.b16 %v810
      %v1458 = vunpack.c.l.b16 %v811
      %v1459 = vunpack.c.l.b16 %v812
      %v1460 = vunpack.c.l.b16 %v813
      %v1461 = vunpack.c.l.b16 %v814
      %v1462 = vunpack.c.l.b16 %v815
      %v1463 = vunpack.c.l.b16 %v816
      %v1464 = vunpack.c.l.b16 %v817
      %v1465 = vunpack.c.l.b16 %v818
      %v1466 = vunpack.c.l.b16 %v819
      %v1467 = vunpack.c.l.b16 %v820
      %v1468 = vunpack.c.l.b16 %v821
      %v1469 = vunpack.c.l.b16 %v822
      %v1470 = vunpack.c.l.b16 %v823
      %v1471 = vunpack.c.l.b16 %v824
      %v1472 = vunpack.c.l.b16 %v825
      %v1473 = vunpack.c.l.b16 %v826
      %v1474 = vunpack.c.l.b16 %v827
      %v1475 = vunpack.c.l.b16 %v828
      %v1476 = vunpack.c.l.b16 %v829
      %v1477 = vunpack.c.l.b16 %v830
      %v1478 = vunpack.c.l.b16 %v831
      %v1479 = vunpack.c.l.b16 %v832
      %v1480 = vunpack.c.l.b16 %v833
      %v1481 = vunpack.c.l.b16 %v834
      %v1482 = vunpack.c.l.b16 %v835
      %v1483 = vunpack.c.l.b16 %v836
      %v1484 = vunpack.c.l.b16 %v837
      %v1485 = vunpack.c.l.b16 %v838
      %v1486 = vunpack.c.l.b16 %v839
      %v1487 = vunpack.c.l.b16 %v840
      %v1488 = vunpack.c.l.b16 %v841
      %v1489 = vunpack.c.l.b16 %v842
      %v1490 = vunpack.c.l.b16 %v843
      %v1491 = vunpack.c.l.b16 %v844
      %v1492 = vunpack.c.l.b16 %v845
      %v1493 = vunpack.c.l.b16 %v846
      %v1494 = vunpack.c.l.b16 %v847
      %v1495 = vunpack.c.l.b16 %v848
      %v1496 = vunpack.c.l.b16 %v849
      %v1497 = vunpack.c.l.b16 %v850
      %v1498 = vunpack.c.l.b16 %v851
      %v1499 = vunpack.c.l.b16 %v852
      %v1500 = vunpack.c.l.b16 %v853
      %v1501 = vunpack.c.l.b16 %v854
      %v1502 = vunpack.c.l.b16 %v855
      %v1503 = vunpack.c.l.b16 %v856
      %v1504 = vunpack.c.l.b16 %v857
      %v1505 = vunpack.c.l.b16 %v858
      %v1506 = vunpack.c.l.b16 %v859
      %v1507 = vunpack.c.l.b16 %v860
      %v1508 = vunpack.c.l.b16 %v861
      %v1509 = vunpack.c.l.b16 %v862
      %v1510 = vunpack.c.l.b16 %v863
      %v1511 = vunpack.c.l.b16 %v864
      %v1512 = vunpack.c.l.b16 %v865
      %v1513 = vunpack.c.l.b16 %v866
      %v1514 = vunpack.c.l.b16 %v867
      %v1515 = vunpack.c.l.b16 %v868
      %v1516 = vunpack.c.l.b16 %v869
      %v1517 = vunpack.c.l.b16 %v870
      %v1518 = vunpack.c.l.b16 %v871
      %v1519 = vunpack.c.l.b16 %v872
      %v1520 = vunpack.c.l.b16 %v873
      %v1521 = vunpack.c.l.b16 %v874
      %v1522 = vunpack.c.l.b16 %v875
      %v1523 = vunpack.c.l.b16 %v876
      %v1524 = vunpack.c.l.b16 %v877
      %v1525 = vunpack.c.l.b16 %v878
      %v1526 = vunpack.c.l.b16 %v879
      %v1527 = vunpack.c.l.b16 %v880
      %v1528 = vunpack.c.l.b16 %v881
      %v1529 = vunpack.c.l.b16 %v882
      %v1530 = vunpack.c.l.b16 %v883
      %v1531 = vunpack.c.l.b16 %v884
      %v1532 = vunpack.c.l.b16 %v885
      %v1533 = vunpack.c.l.b16 %v886
      %v1534 = vunpack.c.l.b16 %v887
      %v1535 = vunpack.c.l.b16 %v888
      %v1536 = vunpack.c.l.b16 %v889
      %v1537 = vunpack.c.l.b16 %v890
      %v1538 = vunpack.c.l.b16 %v891
      %v1539 = vunpack.c.l.b16 %v892
      %v1540 = vunpack.c.l.b16 %v893
      %v1541 = vunpack.c.l.b16 %v894
      %v1542 = vunpack.c.l.b16 %v895
      %v1543 = vunpack.c.l.b16 %v896
      %v1544 = vunpack.c.l.b16 %v897
      %v1545 = vunpack.c.l.b16 %v898
      %v1546 = vunpack.c.l.b16 %v899
      %v1547 = vunpack.c.l.b16 %v900
      %v1548 = vunpack.c.l.b16 %v901
      %v1549 = vunpack.c.l.b16 %v902
      %v1550 = vunpack.c.l.b16 %v903
      %v1551 = vunpack.c.l.b16 %v904
      %v1552 = vunpack.c.l.b16 %v905
      %v1553 = vunpack.c.l.b16 %v906
      %v1554 = vunpack.c.l.b16 %v907
      %v1555 = vunpack.c.l.b16 %v908
      %v1556 = vunpack.c.l.b16 %v909
      %v1557 = vunpack.c.l.b16 %v910
      %v1558 = vunpack.c.l.b16 %v911
      %v1559 = vunpack.c.l.b16 %v912
      %v1560 = vunpack.c.l.b16 %v913
      %v1561 = vunpack.c.l.b16 %v914
      %v1562 = vunpack.c.l.b16 %v915
      %v1563 = vunpack.c.l.b16 %v916
      %v1564 = vunpack.c.l.b16 %v917
      %v1565 = vunpack.c.l.b16 %v918
      %v1566 = vunpack.c.l.b16 %v919
      %v1567 = vunpack.c.l.b16 %v920
      %v1568 = vunpack.c.l.b16 %v921
      %v1569 = vunpack.c.l.b16 %v922
      %v1570 = vunpack.c.l.b16 %v923
      %v1571 = vunpack.c.l.b16 %v924
      %v1572 = vunpack.c.l.b16 %v925
      %v1573 = vunpack.c.l.b16 %v926
      %v1574 = vunpack.c.l.b16 %v927
      %v1575 = vunpack.c.l.b16 %v928
      %v1576 = vunpack.c.l.b16 %v929
      %v1577 = vunpack.c.l.b16 %v930
      %v1578 = vunpack.c.l.b16 %v931
      %v1579 = vunpack.c.l.b16 %v932
      %v1580 = vunpack.c.l.b16 %v933
      %v1581 = vunpack.c.l.b16 %v934
      %v1582 = vunpack.c.l.b16 %v935
      %v1583 = vunpack.c.l.b16 %v936
      %v1584 = vunpack.c.l.b16 %v937
      %v1585 = vunpack.c.l.b16 %v938
      %v1586 = vunpack.c.l.b16 %v939
      %v1587 = vunpack.c.l.b16 %v940
      %v1588 = vunpack.c.l.b16 %v941
      %v1589 = vunpack.c.l.b16 %v942
      %v1590 = vunpack.c.l.b16 %v943
      %v1591 = vunpack.c.l.b16 %v944
      %v1592 = vunpack.c.l.b16 %v945
      %v1593 = vunpack.c.l.b16 %v946
      %v1594 = vunpack.c.l.b16 %v947
      %v1595 = vunpack.c.l.b16 %v948
      %v1596 = vunpack.c.l.b16 %v949
      %v1597 = vunpack.c.l.b16 %v950
      %v1598 = vunpack.c.l.b16 %v951
      %v1599 = vunpack.c.l.b16 %v952
      %v1600 = vunpack.c.l.b16 %v953
      %v1601 = vunpack.c.l.b16 %v954
      %v1602 = vunpack.c.l.b16 %v955
      %v1603 = vunpack.c.l.b16 %v956
      %v1604 = vunpack.c.l.b16 %v957
      %v1605 = vunpack.c.l.b16 %v958
      %v1606 = vunpack.c.l.b16 %v959
      %v1607 = vunpack.c.l.b16 %v960
      %v1608 = vunpack.c.l.b16 %v961
      %v1609 = vunpack.c.l.b16 %v962
      %v1610 = vunpack.c.l.b16 %v963
      %v1611 = vunpack.c.l.b16 %v964
      %v1612 = vunpack.c.l.b16 %v965
      %v1613 = vunpack.c.l.b16 %v966
      %v1614 = vunpack.c.l.b16 %v967
      %v1615 = vunpack.c.l.b16 %v968
      %v1616 = vunpack.c.l.b16 %v969
      %v1617 = vunpack.c.l.b16 %v970
      %v1618 = vunpack.c.l.b16 %v971
      %v1619 = vunpack.c.l.b16 %v972
      %v1620 = vunpack.c.l.b16 %v973
      %v1621 = vunpack.c.l.b16 %v974
      %v1622 = vunpack.c.l.b16 %v975
      %v1623 = vunpack.c.l.b16 %v976
      %v1624 = vunpack.c.l.b16 %v977
      %v1625 = vunpack.c.l.b16 %v978
      %v1626 = vunpack.c.l.b16 %v979
      %v1627 = vunpack.c.l.b16 %v980
      %v1628 = vunpack.c.l.b16 %v981
      %v1629 = vunpack.c.l.b16 %v982
      %v1630 = vunpack.c.l.b16 %v983
      %v1631 = vunpack.c.l.b16 %v984
      %v1632 = vunpack.c.l.b16 %v985
      %v1633 = vunpack.c.l.b16 %v986
      %v1634 = vunpack.c.l.b16 %v987
      %v1635 = vunpack.c.l.b16 %v988
      %v1636 = vunpack.c.l.b16 %v989
      %v1637 = vunpack.c.l.b16 %v990
      %v1638 = vunpack.c.l.b16 %v991
      %v1639 = vunpack.c.l.b16 %v992
      %v1640 = vunpack.c.l.b16 %v993
      %v1641 = vunpack.c.l.b16 %v994
      %v1642 = vunpack.c.l.b16 %v995
      %v1643 = vunpack.c.l.b16 %v996
      %v1644 = vunpack.c.l.b16 %v997
      %v1645 = vunpack.c.l.b16 %v998
      %v1646 = vunpack.c.l.b16 %v999
      %v1647 = vunpack.c.l.b16 %v1000
      %v1648 = vunpack.c.l.b16 %v1001
      %v1649 = vunpack.c.l.b16 %v1002
      %v1650 = vunpack.c.l.b16 %v1003
      %v1651 = vunpack.c.l.b16 %v1004
      %v1652 = vunpack.c.l.b16 %v1005
      %v1653 = vunpack.c.l.b16 %v1006
      %v1654 = vunpack.c.l.b16 %v1007
      %v1655 = vunpack.c.l.b16 %v1008
      %v1656 = vunpack.c.l.b16 %v1009
      %v1657 = vunpack.c.l.b16 %v1010
      %v1658 = vunpack.c.l.b16 %v1011
      %v1659 = vunpack.c.l.b16 %v1012
      %v1660 = vunpack.c.l.b16 %v1013
      %v1661 = vunpack.c.l.b16 %v1014
      %v1662 = vunpack.c.l.b16 %v1015
      %v1663 = vunpack.c.l.b16 %v1016
      %v1664 = vunpack.c.l.b16 %v1017
      %v1665 = vunpack.c.l.b16 %v1018
      %v1666 = vunpack.c.l.b16 %v1019
      %v1667 = vunpack.c.l.b16 %v1020
      %v1668 = vunpack.c.l.b16 %v1021
      %v1669 = vunpack.c.l.b16 %v1022
      %v1670 = vunpack.c.l.b16 %v1023
      %v1671 = vunpack.c.l.b16 %v1024
      %v1672 = vunpack.c.l.b16 %v1025
      %v1673 = vunpack.c.l.b16 %v1026
      %v1674 = vunpack.c.l.b16 %v1027
      %v1675 = vunpack.c.l.b16 %v1028
      %v1676 = vunpack.c.l.b16 %v1029
      %v1677 = vunpack.c.l.b16 %v1030
      %v1678 = vunpack.c.l.b16 %v1031
      %v1679 = vunpack.c.l.b16 %v1032
      %v1680 = vunpack.c.l.b16 %v1033
      %v1681 = vunpack.c.l.b16 %v1034
      %v1682 = vunpack.c.l.b16 %v1035
      %v1683 = vunpack.c.l.b16 %v1036
      %v1684 = vunpack.c.l.b16 %v1037
      %v1685 = vunpack.c.l.b16 %v1038
      %v1686 = vunpack.c.l.b16 %v1039
      %v1687 = vunpack.c.l.b16 %v1040
      %v1688 = vunpack.c.l.b16 %v1041
      %v1689 = vunpack.c.l.b16 %v1042
      %v1690 = vunpack.c.l.b16 %v1043
      %v1691 = vunpack.c.l.b16 %v1044
      %v1692 = vunpack.c.l.b16 %v1045
      %v1693 = vunpack.c.l.b16 %v1046
      %v1694 = vunpack.c.l.b16 %v1047
      %v1695 = vunpack.c.l.b16 %v1048
      %v1696 = vunpack.c.l.b16 %v1049
      %v1697 = vunpack.c.l.b16 %v1050
      %v1698 = vunpack.c.l.b16 %v1051
      %v1699 = vunpack.c.l.b16 %v1052
      %v1700 = vunpack.c.l.b16 %v1053
      %v1701 = vunpack.c.l.b16 %v1054
      %v1702 = vunpack.c.l.b16 %v1055
      %v1703 = vunpack.c.l.b16 %v1056
      %v1704 = vunpack.c.l.b16 %v1057
      %v1705 = vunpack.c.l.b16 %v1058
      %v1706 = vunpack.c.l.b16 %v1059
      %v1707 = vunpack.c.l.b16 %v1060
      %v1708 = vunpack.c.l.b16 %v1061
      %v1709 = vunpack.c.l.b16 %v1062
      %v1710 = vunpack.c.l.b16 %v1063
      %v1711 = vunpack.c.l.b16 %v1064
      %v1712 = vunpack.c.l.b16 %v1065
      %v1713 = vunpack.c.l.b16 %v1066
      %v1714 = vunpack.c.l.b16 %v1067
      %v1715 = vunpack.c.l.b16 %v1068
      %v1716 = vunpack.c.l.b16 %v1069
      %v1717 = vunpack.c.l.b16 %v1070
      %v1718 = vunpack.c.l.b16 %v1071
      %v1719 = vunpack.c.l.b16 %v1072
      %v1720 = vunpack.c.l.b16 %v1073
      %v1721 = vunpack.c.l.b16 %v1074
      %v1722 = vunpack.c.l.b16 %v1075
      %v1723 = vunpack.c.l.b16 %v1076
      %v1724 = vunpack.c.l.b16 %v1077
      %v1725 = vunpack.c.l.b16 %v1078
      %v1726 = vunpack.c.l.b16 %v1079
      %v1727 = vunpack.c.l.b16 %v1080
      %v1728 = vunpack.c.l.b16 %v1081
      %v1729 = vunpack.c.l.b16 %v1082
      %v1730 = vunpack.c.l.b16 %v1083
      %v1731 = vunpack.c.l.b16 %v1084
      %v1732 = vunpack.c.l.b16 %v1085
      %v1733 = vpack.c.b16 %v1414, %v1413
      %v1734 = vpack.c.b16 %v1416, %v1415
      %v1735 = vpack.c.b16 %v1418, %v1417
      %v1736 = vpack.c.b16 %v1420, %v1419
      %v1737 = vpack.c.b16 %v1422, %v1421
      %v1738 = vpack.c.b16 %v1424, %v1423
      %v1739 = vpack.c.b16 %v1426, %v1425
      %v1740 = vpack.c.b16 %v1428, %v1427
      %v1741 = vpack.c.b16 %v1430, %v1429
      %v1742 = vpack.c.b16 %v1432, %v1431
      %v1743 = vpack.c.b16 %v1434, %v1433
      %v1744 = vpack.c.b16 %v1436, %v1435
      %v1745 = vpack.c.b16 %v1438, %v1437
      %v1746 = vpack.c.b16 %v1440, %v1439
      %v1747 = vpack.c.b16 %v1442, %v1441
      %v1748 = vpack.c.b16 %v1444, %v1443
      %v1749 = vpack.c.b16 %v1446, %v1445
      %v1750 = vpack.c.b16 %v1448, %v1447
      %v1751 = vpack.c.b16 %v1450, %v1449
      %v1752 = vpack.c.b16 %v1452, %v1451
      %v1753 = vpack.c.b16 %v1454, %v1453
      %v1754 = vpack.c.b16 %v1456, %v1455
      %v1755 = vpack.c.b16 %v1458, %v1457
      %v1756 = vpack.c.b16 %v1460, %v1459
      %v1757 = vpack.c.b16 %v1462, %v1461
      %v1758 = vpack.c.b16 %v1464, %v1463
      %v1759 = vpack.c.b16 %v1466, %v1465
      %v1760 = vpack.c.b16 %v1468, %v1467
      %v1761 = vpack.c.b16 %v1470, %v1469
      %v1762 = vpack.c.b16 %v1472, %v1471
      %v1763 = vpack.c.b16 %v1474, %v1473
      %v1764 = vpack.c.b16 %v1476, %v1475
      %v1765 = vpack.c.b16 %v1478, %v1477
      %v1766 = vpack.c.b16 %v1480, %v1479
      %v1767 = vpack.c.b16 %v1482, %v1481
      %v1768 = vpack.c.b16 %v1484, %v1483
      %v1769 = vpack.c.b16 %v1486, %v1485
      %v1770 = vpack.c.b16 %v1488, %v1487
      %v1771 = vpack.c.b16 %v1490, %v1489
      %v1772 = vpack.c.b16 %v1492, %v1491
      %v1773 = vpack.c.b16 %v1494, %v1493
      %v1774 = vpack.c.b16 %v1496, %v1495
      %v1775 = vpack.c.b16 %v1498, %v1497
      %v1776 = vpack.c.b16 %v1500, %v1499
      %v1777 = vpack.c.b16 %v1502, %v1501
      %v1778 = vpack.c.b16 %v1504, %v1503
      %v1779 = vpack.c.b16 %v1506, %v1505
      %v1780 = vpack.c.b16 %v1508, %v1507
      %v1781 = vpack.c.b16 %v1510, %v1509
      %v1782 = vpack.c.b16 %v1512, %v1511
      %v1783 = vpack.c.b16 %v1514, %v1513
      %v1784 = vpack.c.b16 %v1516, %v1515
      %v1785 = vpack.c.b16 %v1518, %v1517
      %v1786 = vpack.c.b16 %v1520, %v1519
      %v1787 = vpack.c.b16 %v1522, %v1521
      %v1788 = vpack.c.b16 %v1524, %v1523
      %v1789 = vpack.c.b16 %v1526, %v1525
      %v1790 = vpack.c.b16 %v1528, %v1527
      %v1791 = vpack.c.b16 %v1530, %v1529
      %v1792 = vpack.c.b16 %v1532, %v1531
      %v1793 = vpack.c.b16 %v1534, %v1533
      %v1794 = vpack.c.b16 %v1536, %v1535
      %v1795 = vpack.c.b16 %v1538, %v1537
      %v1796 = vpack.c.b16 %v1540, %v1539
      %v1797 = vpack.c.b16 %v1542, %v1541
      %v1798 = vpack.c.b16 %v1544, %v1543
      %v1799 = vpack.c.b16 %v1546, %v1545
      %v1800 = vpack.c.b16 %v1548, %v1547
      %v1801 = vpack.c.b16 %v1550, %v1549
      %v1802 = vpack.c.b16 %v1552, %v1551
      %v1803 = vpack.c.b16 %v1554, %v1553
      %v1804 = vpack.c.b16 %v1556, %v1555
      %v1805 = vpack.c.b16 %v1558, %v1557
      %v1806 = vpack.c.b16 %v1560, %v1559
      %v1807 = vpack.c.b16 %v1562, %v1561
      %v1808 = vpack.c.b16 %v1564, %v1563
      %v1809 = vpack.c.b16 %v1566, %v1565
      %v1810 = vpack.c.b16 %v1568, %v1567
      %v1811 = vpack.c.b16 %v1570, %v1569
      %v1812 = vpack.c.b16 %v1572, %v1571
      %v1813 = vpack.c.b16 %v1574, %v1573
      %v1814 = vpack.c.b16 %v1576, %v1575
      %v1815 = vpack.c.b16 %v1578, %v1577
      %v1816 = vpack.c.b16 %v1580, %v1579
      %v1817 = vpack.c.b16 %v1582, %v1581
      %v1818 = vpack.c.b16 %v1584, %v1583
      %v1819 = vpack.c.b16 %v1586, %v1585
      %v1820 = vpack.c.b16 %v1588, %v1587
      %v1821 = vpack.c.b16 %v1590, %v1589
      %v1822 = vpack.c.b16 %v1592, %v1591
      %v1823 = vpack.c.b16 %v1594, %v1593
      %v1824 = vpack.c.b16 %v1596, %v1595
      %v1825 = vpack.c.b16 %v1598, %v1597
      %v1826 = vpack.c.b16 %v1600, %v1599
      %v1827 = vpack.c.b16 %v1602, %v1601
      %v1828 = vpack.c.b16 %v1604, %v1603
      %v1829 = vpack.c.b16 %v1606, %v1605
      %v1830 = vpack.c.b16 %v1608, %v1607
      %v1831 = vpack.c.b16 %v1610, %v1609
      %v1832 = vpack.c.b16 %v1612, %v1611
      %v1833 = vpack.c.b16 %v1614, %v1613
      %v1834 = vpack.c.b16 %v1616, %v1615
      %v1835 = vpack.c.b16 %v1618, %v1617
      %v1836 = vpack.c.b16 %v1620, %v1619
      %v1837 = vpack.c.b16 %v1622, %v1621
      %v1838 = vpack.c.b16 %v1624, %v1623
      %v1839 = vpack.c.b16 %v1626, %v1625
      %v1840 = vpack.c.b16 %v1628, %v1627
      %v1841 = vpack.c.b16 %v1630, %v1629
      %v1842 = vpack.c.b16 %v1632, %v1631
      %v1843 = vpack.c.b16 %v1634, %v1633
      %v1844 = vpack.c.b16 %v1636, %v1635
      %v1845 = vpack.c.b16 %v1638, %v1637
      %v1846 = vpack.c.b16 %v1640, %v1639
      %v1847 = vpack.c.b16 %v1642, %v1641
      %v1848 = vpack.c.b16 %v1644, %v1643
      %v1849 = vpack.c.b16 %v1646, %v1645
      %v1850 = vpack.c.b16 %v1648, %v1647
      %v1851 = vpack.c.b16 %v1650, %v1649
      %v1852 = vpack.c.b16 %v1652, %v1651
      %v1853 = vpack.c.b16 %v1654, %v1653
      %v1854 = vpack.c.b16 %v1656, %v1655
      %v1855 = vpack.c.b16 %v1658, %v1657
      %v1856 = vpack.c.b16 %v1660, %v1659
      %v1857 = vpack.c.b16 %v1662, %v1661
      %v1858 = vpack.c.b16 %v1664, %v1663
      %v1859 = vpack.c.b16 %v1666, %v1665
      %v1860 = vpack.c.b16 %v1668, %v1667
      %v1861 = vpack.c.b16 %v1670, %v1669
      %v1862 = vpack.c.b16 %v1672, %v1671
      %v1863 = vpack.c.b16 %v1674, %v1673
      %v1864 = vpack.c.b16 %v1676, %v1675
      %v1865 = vpack.c.b16 %v1678, %v1677
      %v1866 = vpack.c.b16 %v1680, %v1679
      %v1867 = vpack.c.b16 %v1682, %v1681
      %v1868 = vpack.c.b16 %v1684, %v1683
      %v1869 = vpack.c.b16 %v1686, %v1685
      %v1870 = vpack.c.b16 %v1688, %v1687
      %v1871 = vpack.c.b16 %v1690, %v1689
      %v1872 = vpack.c.b16 %v1692, %v1691
      %v1873 = vpack.c.b16 %v1694, %v1693
      %v1874 = vpack.c.b16 %v1696, %v1695
      %v1875 = vpack.c.b16 %v1698, %v1697
      %v1876 = vpack.c.b16 %v1700, %v1699
      %v1877 = vpack.c.b16 %v1702, %v1701
      %v1878 = vpack.c.b16 %v1704, %v1703
      %v1879 = vpack.c.b16 %v1706, %v1705
      %v1880 = vpack.c.b16 %v1708, %v1707
      %v1881 = vpack.c.b16 %v1710, %v1709
      %v1882 = vpack.c.b16 %v1712, %v1711
      %v1883 = vpack.c.b16 %v1714, %v1713
      %v1884 = vpack.c.b16 %v1716, %v1715
      %v1885 = vpack.c.b16 %v1718, %v1717
      %v1886 = vpack.c.b16 %v1720, %v1719
      %v1887 = vpack.c.b16 %v1722, %v1721
      %v1888 = vpack.c.b16 %v1724, %v1723
      %v1889 = vpack.c.b16 %v1726, %v1725
      %v1890 = vpack.c.b16 %v1728, %v1727
      %v1891 = vpack.c.b16 %v1730, %v1729
      %v1892 = vpack.c.b16 %v1732, %v1731
      %2053 = vmatprep.subr.bf16.mxu0 0
      %2054 = vmatpush1.bf16.msra.mxu0 %v1733
      %2055 = vmatprep.subr.bf16.mxu0 0
      %2056 = vmatpush1.bf16.msra.mxu0 %v1734
      %2057 = vmatprep.subr.bf16.mxu0 0
      %2058 = vmatpush1.bf16.msra.mxu0 %v1735
      %2059 = vmatprep.subr.bf16.mxu0 0
      %2060 = vmatpush1.bf16.msra.mxu0 %v1736
      %2061 = vmatprep.subr.bf16.mxu0 0
      %2062 = vmatpush1.bf16.msra.mxu0 %v1737
      %2063 = vmatprep.subr.bf16.mxu0 0
      %2064 = vmatpush1.bf16.msra.mxu0 %v1738
      %2065 = vmatprep.subr.bf16.mxu0 0
      %2066 = vmatpush1.bf16.msra.mxu0 %v1739
      %2067 = vmatprep.subr.bf16.mxu0 0
      %2068 = vmatpush1.bf16.msra.mxu0 %v1740
      %2069 = vmatprep.subr.bf16.mxu0 0
      %2070 = vmatpush1.bf16.msra.mxu0 %v1741
      %2071 = vmatprep.subr.bf16.mxu0 0
      %2072 = vmatpush1.bf16.msra.mxu0 %v1742
      %2073 = vmatprep.subr.bf16.mxu0 0
      %2074 = vmatpush1.bf16.msra.mxu0 %v1743
      %2075 = vmatprep.subr.bf16.mxu0 0
      %2076 = vmatpush1.bf16.msra.mxu0 %v1744
      %2077 = vmatprep.subr.bf16.mxu0 0
      %2078 = vmatpush1.bf16.msra.mxu0 %v1745
      %2079 = vmatprep.subr.bf16.mxu0 0
      %2080 = vmatpush1.bf16.msra.mxu0 %v1746
      %2081 = vmatprep.subr.bf16.mxu0 0
      %2082 = vmatpush1.bf16.msra.mxu0 %v1747
      %2083 = vmatprep.subr.bf16.mxu0 0
      %2084 = vmatpush1.bf16.msra.mxu0 %v1748
      %2085 = vmatprep.mubr.bf16.mxu0 %v607
      %2086 = vmatmul.mubr.bf16.gmra.mrb[0].mxu0 %v606
      %v2087 = vpop.f32.mrb[0].mxu0
      %v2088 = vadd.f32 %v1091, %v2087
      %v2089 = vpop.f32.mrb[0].mxu0
      %v2090 = vpop.f32.mrb[0].mxu0
      %v2091 = vadd.f32 %v1091, %v2090
      %v2092 = vpop.f32.mrb[0].mxu0
      %2093 = vmatprep.mubr.bf16.mxu0 %v627
      %2094 = vmatmul.mubr.bf16.gmra.mrb[0].mxu0 %v626
      %v2095 = vpop.f32.mrb[0].mxu0
      %v2096 = vadd.f32 %v1091, %v2095
      %v2097 = vpop.f32.mrb[0].mxu0
      %v2098 = vpop.f32.mrb[0].mxu0
      %v2099 = vadd.f32 %v1091, %v2098
      %v2100 = vpop.f32.mrb[0].mxu0
      %2101 = vmatprep.mubr.bf16.mxu0 %v647
      %2102 = vmatmul.mubr.bf16.gmra.mrb[0].mxu0 %v646
      %v2103 = vpop.f32.mrb[0].mxu0
      %v2104 = vadd.f32 %v1091, %v2103
      %v2105 = vpop.f32.mrb[0].mxu0
      %v2106 = vpop.f32.mrb[0].mxu0
      %v2107 = vadd.f32 %v1091, %v2106
      %v2108 = vpop.f32.mrb[0].mxu0
      %2109 = vmatprep.mubr.bf16.mxu0 %v667
      %2110 = vmatmul.mubr.bf16.gmra.mrb[0].mxu0 %v666
      %v2111 = vpop.f32.mrb[0].mxu0
      %v2112 = vadd.f32 %v1091, %v2111
      %v2113 = vpop.f32.mrb[0].mxu0
      %v2114 = vpop.f32.mrb[0].mxu0
      %v2115 = vadd.f32 %v1091, %v2114
      %v2116 = vpop.f32.mrb[0].mxu0
      %2117 = vmatprep.mubr.bf16.mxu0 %v687
      %2118 = vmatmul.mubr.bf16.gmra.mrb[0].mxu0 %v686
      %v2119 = vpop.f32.mrb[0].mxu0
      %v2120 = vadd.f32 %v1091, %v2119
      %v2121 = vpop.f32.mrb[0].mxu0
      %v2122 = vpop.f32.mrb[0].mxu0
      %v2123 = vadd.f32 %v1091, %v2122
      %v2124 = vpop.f32.mrb[0].mxu0
      %2125 = vmatprep.mubr.bf16.mxu0 %v707
      %2126 = vmatmul.mubr.bf16.gmra.mrb[0].mxu0 %v706
      %v2127 = vpop.f32.mrb[0].mxu0
      %v2128 = vadd.f32 %v1091, %v2127
      %v2129 = vpop.f32.mrb[0].mxu0
      %v2130 = vpop.f32.mrb[0].mxu0
      %v2131 = vadd.f32 %v1091, %v2130
      %v2132 = vpop.f32.mrb[0].mxu0
      %2133 = vmatprep.mubr.bf16.mxu0 %v727
      %2134 = vmatmul.mubr.bf16.gmra.mrb[0].mxu0 %v726
      %v2135 = vpop.f32.mrb[0].mxu0
      %v2136 = vadd.f32 %v1091, %v2135
      %v2137 = vpop.f32.mrb[0].mxu0
      %v2138 = vpop.f32.mrb[0].mxu0
      %v2139 = vadd.f32 %v1091, %v2138
      %v2140 = vpop.f32.mrb[0].mxu0
      %2141 = vmatprep.mubr.bf16.mxu0 %v747
      %2142 = vmatmul.mubr.bf16.gmra.mrb[0].mxu0 %v746
      %v2143 = vpop.f32.mrb[0].mxu0
      %v2144 = vadd.f32 %v1091, %v2143
      %v2145 = vpop.f32.mrb[0].mxu0
      %v2146 = vpop.f32.mrb[0].mxu0
      %v2147 = vadd.f32 %v1091, %v2146
      %v2148 = vpop.f32.mrb[0].mxu0
      %2149 = vdwg.mxu0
      %2150 = vmatprep.subr.bf16.mxu0 0
      %2151 = vmatpush1.bf16.msra.mxu0 %v1749
      %2152 = vmatprep.subr.bf16.mxu0 0
      %2153 = vmatpush1.bf16.msra.mxu0 %v1750
      %2154 = vmatprep.subr.bf16.mxu0 0
      %2155 = vmatpush1.bf16.msra.mxu0 %v1751
      %2156 = vmatprep.subr.bf16.mxu0 0
      %2157 = vmatpush1.bf16.msra.mxu0 %v1752
      %2158 = vmatprep.subr.bf16.mxu0 0
      %2159 = vmatpush1.bf16.msra.mxu0 %v1753
      %2160 = vmatprep.subr.bf16.mxu0 0
      %2161 = vmatpush1.bf16.msra.mxu0 %v1754
      %2162 = vmatprep.subr.bf16.mxu0 0
      %2163 = vmatpush1.bf16.msra.mxu0 %v1755
      %2164 = vmatprep.subr.bf16.mxu0 0
      %2165 = vmatpush1.bf16.msra.mxu0 %v1756
      %2166 = vmatprep.subr.bf16.mxu0 0
      %2167 = vmatpush1.bf16.msra.mxu0 %v1757
      %2168 = vmatprep.subr.bf16.mxu0 0
      %2169 = vmatpush1.bf16.msra.mxu0 %v1758
      %2170 = vmatprep.subr.bf16.mxu0 0
      %2171 = vmatpush1.bf16.msra.mxu0 %v1759
      %2172 = vmatprep.subr.bf16.mxu0 0
      %2173 = vmatpush1.bf16.msra.mxu0 %v1760
      %2174 = vmatprep.subr.bf16.mxu0 0
      %2175 = vmatpush1.bf16.msra.mxu0 %v1761
      %2176 = vmatprep.subr.bf16.mxu0 0
      %2177 = vmatpush1.bf16.msra.mxu0 %v1762
      %2178 = vmatprep.subr.bf16.mxu0 0
      %2179 = vmatpush1.bf16.msra.mxu0 %v1763
      %2180 = vmatprep.subr.bf16.mxu0 0
      %2181 = vmatpush1.bf16.msra.mxu0 %v1764
      %2182 = vmatprep.mubr.bf16.mxu0 %v609
      %2183 = vmatmul.mubr.bf16.gmra.mrb[0].mxu0 %v608
      %v2184 = vpop.f32.mrb[0].mxu0
      %v2185 = vadd.f32 %v2088, %v2184
      %v2186 = vpop.f32.mrb[0].mxu0
      %v2187 = vpop.f32.mrb[0].mxu0
      %v2188 = vadd.f32 %v2091, %v2187
      %v2189 = vpop.f32.mrb[0].mxu0
      %2190 = vmatprep.mubr.bf16.mxu0 %v629
      %2191 = vmatmul.mubr.bf16.gmra.mrb[0].mxu0 %v628
      %v2192 = vpop.f32.mrb[0].mxu0
      %v2193 = vadd.f32 %v2096, %v2192
      %v2194 = vpop.f32.mrb[0].mxu0
      %v2195 = vpop.f32.mrb[0].mxu0
      %v2196 = vadd.f32 %v2099, %v2195
      %v2197 = vpop.f32.mrb[0].mxu0
      %2198 = vmatprep.mubr.bf16.mxu0 %v649
      %2199 = vmatmul.mubr.bf16.gmra.mrb[0].mxu0 %v648
      %v2200 = vpop.f32.mrb[0].mxu0
      %v2201 = vadd.f32 %v2104, %v2200
      %v2202 = vpop.f32.mrb[0].mxu0
      %v2203 = vpop.f32.mrb[0].mxu0
      %v2204 = vadd.f32 %v2107, %v2203
      %v2205 = vpop.f32.mrb[0].mxu0
      %2206 = vmatprep.mubr.bf16.mxu0 %v669
      %2207 = vmatmul.mubr.bf16.gmra.mrb[0].mxu0 %v668
      %v2208 = vpop.f32.mrb[0].mxu0
      %v2209 = vadd.f32 %v2112, %v2208
      %v2210 = vpop.f32.mrb[0].mxu0
      %v2211 = vpop.f32.mrb[0].mxu0
      %v2212 = vadd.f32 %v2115, %v2211
      %v2213 = vpop.f32.mrb[0].mxu0
      %2214 = vmatprep.mubr.bf16.mxu0 %v689
      %2215 = vmatmul.mubr.bf16.gmra.mrb[0].mxu0 %v688
      %v2216 = vpop.f32.mrb[0].mxu0
      %v2217 = vadd.f32 %v2120, %v2216
      %v2218 = vpop.f32.mrb[0].mxu0
      %v2219 = vpop.f32.mrb[0].mxu0
      %v2220 = vadd.f32 %v2123, %v2219
      %v2221 = vpop.f32.mrb[0].mxu0
      %2222 = vmatprep.mubr.bf16.mxu0 %v709
      %2223 = vmatmul.mubr.bf16.gmra.mrb[0].mxu0 %v708
      %v2224 = vpop.f32.mrb[0].mxu0
      %v2225 = vadd.f32 %v2128, %v2224
      %v2226 = vpop.f32.mrb[0].mxu0
      %v2227 = vpop.f32.mrb[0].mxu0
      %v2228 = vadd.f32 %v2131, %v2227
      %v2229 = vpop.f32.mrb[0].mxu0
      %2230 = vmatprep.mubr.bf16.mxu0 %v729
      %2231 = vmatmul.mubr.bf16.gmra.mrb[0].mxu0 %v728
      %v2232 = vpop.f32.mrb[0].mxu0
      %v2233 = vadd.f32 %v2136, %v2232
      %v2234 = vpop.f32.mrb[0].mxu0
      %v2235 = vpop.f32.mrb[0].mxu0
      %v2236 = vadd.f32 %v2139, %v2235
      %v2237 = vpop.f32.mrb[0].mxu0
      %2238 = vmatprep.mubr.bf16.mxu0 %v749
      %2239 = vmatmul.mubr.bf16.gmra.mrb[0].mxu0 %v748
      %v2240 = vpop.f32.mrb[0].mxu0
      %v2241 = vadd.f32 %v2144, %v2240
      %v2242 = vpop.f32.mrb[0].mxu0
      %v2243 = vpop.f32.mrb[0].mxu0
      %v2244 = vadd.f32 %v2147, %v2243
      %v2245 = vpop.f32.mrb[0].mxu0
      %2246 = vdwg.mxu0
      %2247 = vmatprep.subr.bf16.mxu0 0
      %2248 = vmatpush1.bf16.msra.mxu0 %v1765
      %2249 = vmatprep.subr.bf16.mxu0 0
      %2250 = vmatpush1.bf16.msra.mxu0 %v1766
      %2251 = vmatprep.subr.bf16.mxu0 0
      %2252 = vmatpush1.bf16.msra.mxu0 %v1767
      %2253 = vmatprep.subr.bf16.mxu0 0
      %2254 = vmatpush1.bf16.msra.mxu0 %v1768
      %2255 = vmatprep.subr.bf16.mxu0 0
      %2256 = vmatpush1.bf16.msra.mxu0 %v1769
      %2257 = vmatprep.subr.bf16.mxu0 0
      %2258 = vmatpush1.bf16.msra.mxu0 %v1770
      %2259 = vmatprep.subr.bf16.mxu0 0
      %2260 = vmatpush1.bf16.msra.mxu0 %v1771
      %2261 = vmatprep.subr.bf16.mxu0 0
      %2262 = vmatpush1.bf16.msra.mxu0 %v1772
      %2263 = vmatprep.subr.bf16.mxu0 0
      %2264 = vmatpush1.bf16.msra.mxu0 %v1773
      %2265 = vmatprep.subr.bf16.mxu0 0
      %2266 = vmatpush1.bf16.msra.mxu0 %v1774
      %2267 = vmatprep.subr.bf16.mxu0 0
      %2268 = vmatpush1.bf16.msra.mxu0 %v1775
      %2269 = vmatprep.subr.bf16.mxu0 0
      %2270 = vmatpush1.bf16.msra.mxu0 %v1776
      %2271 = vmatprep.subr.bf16.mxu0 0
      %2272 = vmatpush1.bf16.msra.mxu0 %v1777
      %2273 = vmatprep.subr.bf16.mxu0 0
      %2274 = vmatpush1.bf16.msra.mxu0 %v1778
      %2275 = vmatprep.subr.bf16.mxu0 0
      %2276 = vmatpush1.bf16.msra.mxu0 %v1779
      %2277 = vmatprep.subr.bf16.mxu0 0
      %2278 = vmatpush1.bf16.msra.mxu0 %v1780
      %2279 = vmatprep.mubr.bf16.mxu0 %v611
      %2280 = vmatmul.mubr.bf16.gmra.mrb[0].mxu0 %v610
      %v2281 = vpop.f32.mrb[0].mxu0
      %v2282 = vadd.f32 %v2185, %v2281
      %v2283 = vpop.f32.mrb[0].mxu0
      %v2284 = vpop.f32.mrb[0].mxu0
      %v2285 = vadd.f32 %v2188, %v2284
      %v2286 = vpop.f32.mrb[0].mxu0
      %2287 = vmatprep.mubr.bf16.mxu0 %v631
      %2288 = vmatmul.mubr.bf16.gmra.mrb[0].mxu0 %v630
      %v2289 = vpop.f32.mrb[0].mxu0
      %v2290 = vadd.f32 %v2193, %v2289
      %v2291 = vpop.f32.mrb[0].mxu0
      %v2292 = vpop.f32.mrb[0].mxu0
      %v2293 = vadd.f32 %v2196, %v2292
      %v2294 = vpop.f32.mrb[0].mxu0
      %2295 = vmatprep.mubr.bf16.mxu0 %v651
      %2296 = vmatmul.mubr.bf16.gmra.mrb[0].mxu0 %v650
      %v2297 = vpop.f32.mrb[0].mxu0
      %v2298 = vadd.f32 %v2201, %v2297
      %v2299 = vpop.f32.mrb[0].mxu0
      %v2300 = vpop.f32.mrb[0].mxu0
      %v2301 = vadd.f32 %v2204, %v2300
      %v2302 = vpop.f32.mrb[0].mxu0
      %2303 = vmatprep.mubr.bf16.mxu0 %v671
      %2304 = vmatmul.mubr.bf16.gmra.mrb[0].mxu0 %v670
      %v2305 = vpop.f32.mrb[0].mxu0
      %v2306 = vadd.f32 %v2209, %v2305
      %v2307 = vpop.f32.mrb[0].mxu0
      %v2308 = vpop.f32.mrb[0].mxu0
      %v2309 = vadd.f32 %v2212, %v2308
      %v2310 = vpop.f32.mrb[0].mxu0
      %2311 = vmatprep.mubr.bf16.mxu0 %v691
      %2312 = vmatmul.mubr.bf16.gmra.mrb[0].mxu0 %v690
      %v2313 = vpop.f32.mrb[0].mxu0
      %v2314 = vadd.f32 %v2217, %v2313
      %v2315 = vpop.f32.mrb[0].mxu0
      %v2316 = vpop.f32.mrb[0].mxu0
      %v2317 = vadd.f32 %v2220, %v2316
      %v2318 = vpop.f32.mrb[0].mxu0
      %2319 = vmatprep.mubr.bf16.mxu0 %v711
      %2320 = vmatmul.mubr.bf16.gmra.mrb[0].mxu0 %v710
      %v2321 = vpop.f32.mrb[0].mxu0
      %v2322 = vadd.f32 %v2225, %v2321
      %v2323 = vpop.f32.mrb[0].mxu0
      %v2324 = vpop.f32.mrb[0].mxu0
      %v2325 = vadd.f32 %v2228, %v2324
      %v2326 = vpop.f32.mrb[0].mxu0
      %2327 = vmatprep.mubr.bf16.mxu0 %v731
      %2328 = vmatmul.mubr.bf16.gmra.mrb[0].mxu0 %v730
      %v2329 = vpop.f32.mrb[0].mxu0
      %v2330 = vadd.f32 %v2233, %v2329
      %v2331 = vpop.f32.mrb[0].mxu0
      %v2332 = vpop.f32.mrb[0].mxu0
      %v2333 = vadd.f32 %v2236, %v2332
      %v2334 = vpop.f32.mrb[0].mxu0
      %2335 = vmatprep.mubr.bf16.mxu0 %v751
      %2336 = vmatmul.mubr.bf16.gmra.mrb[0].mxu0 %v750
      %v2337 = vpop.f32.mrb[0].mxu0
      %v2338 = vadd.f32 %v2241, %v2337
      %v2339 = vpop.f32.mrb[0].mxu0
      %v2340 = vpop.f32.mrb[0].mxu0
      %v2341 = vadd.f32 %v2244, %v2340
      %v2342 = vpop.f32.mrb[0].mxu0
      %2343 = vdwg.mxu0
      %2344 = vmatprep.subr.bf16.mxu0 0
      %2345 = vmatpush1.bf16.msra.mxu0 %v1781
      %2346 = vmatprep.subr.bf16.mxu0 0
      %2347 = vmatpush1.bf16.msra.mxu0 %v1782
      %2348 = vmatprep.subr.bf16.mxu0 0
      %2349 = vmatpush1.bf16.msra.mxu0 %v1783
      %2350 = vmatprep.subr.bf16.mxu0 0
      %2351 = vmatpush1.bf16.msra.mxu0 %v1784
      %2352 = vmatprep.subr.bf16.mxu0 0
      %2353 = vmatpush1.bf16.msra.mxu0 %v1785
      %2354 = vmatprep.subr.bf16.mxu0 0
      %2355 = vmatpush1.bf16.msra.mxu0 %v1786
      %2356 = vmatprep.subr.bf16.mxu0 0
      %2357 = vmatpush1.bf16.msra.mxu0 %v1787
      %2358 = vmatprep.subr.bf16.mxu0 0
      %2359 = vmatpush1.bf16.msra.mxu0 %v1788
      %2360 = vmatprep.subr.bf16.mxu0 0
      %2361 = vmatpush1.bf16.msra.mxu0 %v1789
      %2362 = vmatprep.subr.bf16.mxu0 0
      %2363 = vmatpush1.bf16.msra.mxu0 %v1790
      %2364 = vmatprep.subr.bf16.mxu0 0
      %2365 = vmatpush1.bf16.msra.mxu0 %v1791
      %2366 = vmatprep.subr.bf16.mxu0 0
      %2367 = vmatpush1.bf16.msra.mxu0 %v1792
      %2368 = vmatprep.subr.bf16.mxu0 0
      %2369 = vmatpush1.bf16.msra.mxu0 %v1793
      %2370 = vmatprep.subr.bf16.mxu0 0
      %2371 = vmatpush1.bf16.msra.mxu0 %v1794
      %2372 = vmatprep.subr.bf16.mxu0 0
      %2373 = vmatpush1.bf16.msra.mxu0 %v1795
      %2374 = vmatprep.subr.bf16.mxu0 0
      %2375 = vmatpush1.bf16.msra.mxu0 %v1796
      %2376 = vmatprep.mubr.bf16.mxu0 %v613
      %2377 = vmatmul.mubr.bf16.gmra.mrb[0].mxu0 %v612
      %v2378 = vpop.f32.mrb[0].mxu0
      %v2379 = vadd.f32 %v2282, %v2378
      %v2380 = vpop.f32.mrb[0].mxu0
      %v2381 = vpop.f32.mrb[0].mxu0
      %v2382 = vadd.f32 %v2285, %v2381
      %v2383 = vpop.f32.mrb[0].mxu0
      %2384 = vmatprep.mubr.bf16.mxu0 %v633
      %2385 = vmatmul.mubr.bf16.gmra.mrb[0].mxu0 %v632
      %v2386 = vpop.f32.mrb[0].mxu0
      %v2387 = vadd.f32 %v2290, %v2386
      %v2388 = vpop.f32.mrb[0].mxu0
      %v2389 = vpop.f32.mrb[0].mxu0
      %v2390 = vadd.f32 %v2293, %v2389
      %v2391 = vpop.f32.mrb[0].mxu0
      %2392 = vmatprep.mubr.bf16.mxu0 %v653
      %2393 = vmatmul.mubr.bf16.gmra.mrb[0].mxu0 %v652
      %v2394 = vpop.f32.mrb[0].mxu0
      %v2395 = vadd.f32 %v2298, %v2394
      %v2396 = vpop.f32.mrb[0].mxu0
      %v2397 = vpop.f32.mrb[0].mxu0
      %v2398 = vadd.f32 %v2301, %v2397
      %v2399 = vpop.f32.mrb[0].mxu0
      %2400 = vmatprep.mubr.bf16.mxu0 %v673
      %2401 = vmatmul.mubr.bf16.gmra.mrb[0].mxu0 %v672
      %v2402 = vpop.f32.mrb[0].mxu0
      %v2403 = vadd.f32 %v2306, %v2402
      %v2404 = vpop.f32.mrb[0].mxu0
      %v2405 = vpop.f32.mrb[0].mxu0
      %v2406 = vadd.f32 %v2309, %v2405
      %v2407 = vpop.f32.mrb[0].mxu0
      %2408 = vmatprep.mubr.bf16.mxu0 %v693
      %2409 = vmatmul.mubr.bf16.gmra.mrb[0].mxu0 %v692
      %v2410 = vpop.f32.mrb[0].mxu0
      %v2411 = vadd.f32 %v2314, %v2410
      %v2412 = vpop.f32.mrb[0].mxu0
      %v2413 = vpop.f32.mrb[0].mxu0
      %v2414 = vadd.f32 %v2317, %v2413
      %v2415 = vpop.f32.mrb[0].mxu0
      %2416 = vmatprep.mubr.bf16.mxu0 %v713
      %2417 = vmatmul.mubr.bf16.gmra.mrb[0].mxu0 %v712
      %v2418 = vpop.f32.mrb[0].mxu0
      %v2419 = vadd.f32 %v2322, %v2418
      %v2420 = vpop.f32.mrb[0].mxu0
      %v2421 = vpop.f32.mrb[0].mxu0
      %v2422 = vadd.f32 %v2325, %v2421
      %v2423 = vpop.f32.mrb[0].mxu0
      %2424 = vmatprep.mubr.bf16.mxu0 %v733
      %2425 = vmatmul.mubr.bf16.gmra.mrb[0].mxu0 %v732
      %v2426 = vpop.f32.mrb[0].mxu0
      %v2427 = vadd.f32 %v2330, %v2426
      %v2428 = vpop.f32.mrb[0].mxu0
      %v2429 = vpop.f32.mrb[0].mxu0
      %v2430 = vadd.f32 %v2333, %v2429
      %v2431 = vpop.f32.mrb[0].mxu0
      %2432 = vmatprep.mubr.bf16.mxu0 %v753
      %2433 = vmatmul.mubr.bf16.gmra.mrb[0].mxu0 %v752
      %v2434 = vpop.f32.mrb[0].mxu0
      %v2435 = vadd.f32 %v2338, %v2434
      %v2436 = vpop.f32.mrb[0].mxu0
      %v2437 = vpop.f32.mrb[0].mxu0
      %v2438 = vadd.f32 %v2341, %v2437
      %v2439 = vpop.f32.mrb[0].mxu0
      %2440 = vdwg.mxu0
      %2441 = vmatprep.subr.bf16.mxu0 0
      %2442 = vmatpush1.bf16.msra.mxu0 %v1797
      %2443 = vmatprep.subr.bf16.mxu0 0
      %2444 = vmatpush1.bf16.msra.mxu0 %v1798
      %2445 = vmatprep.subr.bf16.mxu0 0
      %2446 = vmatpush1.bf16.msra.mxu0 %v1799
      %2447 = vmatprep.subr.bf16.mxu0 0
      %2448 = vmatpush1.bf16.msra.mxu0 %v1800
      %2449 = vmatprep.subr.bf16.mxu0 0
      %2450 = vmatpush1.bf16.msra.mxu0 %v1801
      %2451 = vmatprep.subr.bf16.mxu0 0
      %2452 = vmatpush1.bf16.msra.mxu0 %v1802
      %2453 = vmatprep.subr.bf16.mxu0 0
      %2454 = vmatpush1.bf16.msra.mxu0 %v1803
      %2455 = vmatprep.subr.bf16.mxu0 0
      %2456 = vmatpush1.bf16.msra.mxu0 %v1804
      %2457 = vmatprep.subr.bf16.mxu0 0
      %2458 = vmatpush1.bf16.msra.mxu0 %v1805
      %2459 = vmatprep.subr.bf16.mxu0 0
      %2460 = vmatpush1.bf16.msra.mxu0 %v1806
      %2461 = vmatprep.subr.bf16.mxu0 0
      %2462 = vmatpush1.bf16.msra.mxu0 %v1807
      %2463 = vmatprep.subr.bf16.mxu0 0
      %2464 = vmatpush1.bf16.msra.mxu0 %v1808
      %2465 = vmatprep.subr.bf16.mxu0 0
      %2466 = vmatpush1.bf16.msra.mxu0 %v1809
      %2467 = vmatprep.subr.bf16.mxu0 0
      %2468 = vmatpush1.bf16.msra.mxu0 %v1810
      %2469 = vmatprep.subr.bf16.mxu0 0
      %2470 = vmatpush1.bf16.msra.mxu0 %v1811
      %2471 = vmatprep.subr.bf16.mxu0 0
      %2472 = vmatpush1.bf16.msra.mxu0 %v1812
      %2473 = vmatprep.mubr.bf16.mxu0 %v615
      %2474 = vmatmul.mubr.bf16.gmra.mrb[0].mxu0 %v614
      %v2475 = vpop.f32.mrb[0].mxu0
      %v2476 = vadd.f32 %v2379, %v2475
      %v2477 = vpop.f32.mrb[0].mxu0
      %v2478 = vpop.f32.mrb[0].mxu0
      %v2479 = vadd.f32 %v2382, %v2478
      %v2480 = vpop.f32.mrb[0].mxu0
      %2481 = vmatprep.mubr.bf16.mxu0 %v635
      %2482 = vmatmul.mubr.bf16.gmra.mrb[0].mxu0 %v634
      %v2483 = vpop.f32.mrb[0].mxu0
      %v2484 = vadd.f32 %v2387, %v2483
      %v2485 = vpop.f32.mrb[0].mxu0
      %v2486 = vpop.f32.mrb[0].mxu0
      %v2487 = vadd.f32 %v2390, %v2486
      %v2488 = vpop.f32.mrb[0].mxu0
      %2489 = vmatprep.mubr.bf16.mxu0 %v655
      %2490 = vmatmul.mubr.bf16.gmra.mrb[0].mxu0 %v654
      %v2491 = vpop.f32.mrb[0].mxu0
      %v2492 = vadd.f32 %v2395, %v2491
      %v2493 = vpop.f32.mrb[0].mxu0
      %v2494 = vpop.f32.mrb[0].mxu0
      %v2495 = vadd.f32 %v2398, %v2494
      %v2496 = vpop.f32.mrb[0].mxu0
      %2497 = vmatprep.mubr.bf16.mxu0 %v675
      %2498 = vmatmul.mubr.bf16.gmra.mrb[0].mxu0 %v674
      %v2499 = vpop.f32.mrb[0].mxu0
      %v2500 = vadd.f32 %v2403, %v2499
      %v2501 = vpop.f32.mrb[0].mxu0
      %v2502 = vpop.f32.mrb[0].mxu0
      %v2503 = vadd.f32 %v2406, %v2502
      %v2504 = vpop.f32.mrb[0].mxu0
      %2505 = vmatprep.mubr.bf16.mxu0 %v695
      %2506 = vmatmul.mubr.bf16.gmra.mrb[0].mxu0 %v694
      %v2507 = vpop.f32.mrb[0].mxu0
      %v2508 = vadd.f32 %v2411, %v2507
      %v2509 = vpop.f32.mrb[0].mxu0
      %v2510 = vpop.f32.mrb[0].mxu0
      %v2511 = vadd.f32 %v2414, %v2510
      %v2512 = vpop.f32.mrb[0].mxu0
      %2513 = vmatprep.mubr.bf16.mxu0 %v715
      %2514 = vmatmul.mubr.bf16.gmra.mrb[0].mxu0 %v714
      %v2515 = vpop.f32.mrb[0].mxu0
      %v2516 = vadd.f32 %v2419, %v2515
      %v2517 = vpop.f32.mrb[0].mxu0
      %v2518 = vpop.f32.mrb[0].mxu0
      %v2519 = vadd.f32 %v2422, %v2518
      %v2520 = vpop.f32.mrb[0].mxu0
      %2521 = vmatprep.mubr.bf16.mxu0 %v735
      %2522 = vmatmul.mubr.bf16.gmra.mrb[0].mxu0 %v734
      %v2523 = vpop.f32.mrb[0].mxu0
      %v2524 = vadd.f32 %v2427, %v2523
      %v2525 = vpop.f32.mrb[0].mxu0
      %v2526 = vpop.f32.mrb[0].mxu0
      %v2527 = vadd.f32 %v2430, %v2526
      %v2528 = vpop.f32.mrb[0].mxu0
      %2529 = vmatprep.mubr.bf16.mxu0 %v755
      %2530 = vmatmul.mubr.bf16.gmra.mrb[0].mxu0 %v754
      %v2531 = vpop.f32.mrb[0].mxu0
      %v2532 = vadd.f32 %v2435, %v2531
      %v2533 = vpop.f32.mrb[0].mxu0
      %v2534 = vpop.f32.mrb[0].mxu0
      %v2535 = vadd.f32 %v2438, %v2534
      %v2536 = vpop.f32.mrb[0].mxu0
      %2537 = vdwg.mxu0
      %2538 = vmatprep.subr.bf16.mxu0 0
      %2539 = vmatpush1.bf16.msra.mxu0 %v1813
      %2540 = vmatprep.subr.bf16.mxu0 0
      %2541 = vmatpush1.bf16.msra.mxu0 %v1814
      %2542 = vmatprep.subr.bf16.mxu0 0
      %2543 = vmatpush1.bf16.msra.mxu0 %v1815
      %2544 = vmatprep.subr.bf16.mxu0 0
      %2545 = vmatpush1.bf16.msra.mxu0 %v1816
      %2546 = vmatprep.subr.bf16.mxu0 0
      %2547 = vmatpush1.bf16.msra.mxu0 %v1817
      %2548 = vmatprep.subr.bf16.mxu0 0
      %2549 = vmatpush1.bf16.msra.mxu0 %v1818
      %2550 = vmatprep.subr.bf16.mxu0 0
      %2551 = vmatpush1.bf16.msra.mxu0 %v1819
      %2552 = vmatprep.subr.bf16.mxu0 0
      %2553 = vmatpush1.bf16.msra.mxu0 %v1820
      %2554 = vmatprep.subr.bf16.mxu0 0
      %2555 = vmatpush1.bf16.msra.mxu0 %v1821
      %2556 = vmatprep.subr.bf16.mxu0 0
      %2557 = vmatpush1.bf16.msra.mxu0 %v1822
      %2558 = vmatprep.subr.bf16.mxu0 0
      %2559 = vmatpush1.bf16.msra.mxu0 %v1823
      %2560 = vmatprep.subr.bf16.mxu0 0
      %2561 = vmatpush1.bf16.msra.mxu0 %v1824
      %2562 = vmatprep.subr.bf16.mxu0 0
      %2563 = vmatpush1.bf16.msra.mxu0 %v1825
      %2564 = vmatprep.subr.bf16.mxu0 0
      %2565 = vmatpush1.bf16.msra.mxu0 %v1826
      %2566 = vmatprep.subr.bf16.mxu0 0
      %2567 = vmatpush1.bf16.msra.mxu0 %v1827
      %2568 = vmatprep.subr.bf16.mxu0 0
      %2569 = vmatpush1.bf16.msra.mxu0 %v1828
      %2570 = vmatprep.mubr.bf16.mxu0 %v617
      %2571 = vmatmul.mubr.bf16.gmra.mrb[0].mxu0 %v616
      %v2572 = vpop.f32.mrb[0].mxu0
      %v2573 = vadd.f32 %v2476, %v2572
      %v2574 = vpop.f32.mrb[0].mxu0
      %v2575 = vpop.f32.mrb[0].mxu0
      %v2576 = vadd.f32 %v2479, %v2575
      %v2577 = vpop.f32.mrb[0].mxu0
      %2578 = vmatprep.mubr.bf16.mxu0 %v637
      %2579 = vmatmul.mubr.bf16.gmra.mrb[0].mxu0 %v636
      %v2580 = vpop.f32.mrb[0].mxu0
      %v2581 = vadd.f32 %v2484, %v2580
      %v2582 = vpop.f32.mrb[0].mxu0
      %v2583 = vpop.f32.mrb[0].mxu0
      %v2584 = vadd.f32 %v2487, %v2583
      %v2585 = vpop.f32.mrb[0].mxu0
      %2586 = vmatprep.mubr.bf16.mxu0 %v657
      %2587 = vmatmul.mubr.bf16.gmra.mrb[0].mxu0 %v656
      %v2588 = vpop.f32.mrb[0].mxu0
      %v2589 = vadd.f32 %v2492, %v2588
      %v2590 = vpop.f32.mrb[0].mxu0
      %v2591 = vpop.f32.mrb[0].mxu0
      %v2592 = vadd.f32 %v2495, %v2591
      %v2593 = vpop.f32.mrb[0].mxu0
      %2594 = vmatprep.mubr.bf16.mxu0 %v677
      %2595 = vmatmul.mubr.bf16.gmra.mrb[0].mxu0 %v676
      %v2596 = vpop.f32.mrb[0].mxu0
      %v2597 = vadd.f32 %v2500, %v2596
      %v2598 = vpop.f32.mrb[0].mxu0
      %v2599 = vpop.f32.mrb[0].mxu0
      %v2600 = vadd.f32 %v2503, %v2599
      %v2601 = vpop.f32.mrb[0].mxu0
      %2602 = vmatprep.mubr.bf16.mxu0 %v697
      %2603 = vmatmul.mubr.bf16.gmra.mrb[0].mxu0 %v696
      %v2604 = vpop.f32.mrb[0].mxu0
      %v2605 = vadd.f32 %v2508, %v2604
      %v2606 = vpop.f32.mrb[0].mxu0
      %v2607 = vpop.f32.mrb[0].mxu0
      %v2608 = vadd.f32 %v2511, %v2607
      %v2609 = vpop.f32.mrb[0].mxu0
      %2610 = vmatprep.mubr.bf16.mxu0 %v717
      %2611 = vmatmul.mubr.bf16.gmra.mrb[0].mxu0 %v716
      %v2612 = vpop.f32.mrb[0].mxu0
      %v2613 = vadd.f32 %v2516, %v2612
      %v2614 = vpop.f32.mrb[0].mxu0
      %v2615 = vpop.f32.mrb[0].mxu0
      %v2616 = vadd.f32 %v2519, %v2615
      %v2617 = vpop.f32.mrb[0].mxu0
      %2618 = vmatprep.mubr.bf16.mxu0 %v737
      %2619 = vmatmul.mubr.bf16.gmra.mrb[0].mxu0 %v736
      %v2620 = vpop.f32.mrb[0].mxu0
      %v2621 = vadd.f32 %v2524, %v2620
      %v2622 = vpop.f32.mrb[0].mxu0
      %v2623 = vpop.f32.mrb[0].mxu0
      %v2624 = vadd.f32 %v2527, %v2623
      %v2625 = vpop.f32.mrb[0].mxu0
      %2626 = vmatprep.mubr.bf16.mxu0 %v757
      %2627 = vmatmul.mubr.bf16.gmra.mrb[0].mxu0 %v756
      %v2628 = vpop.f32.mrb[0].mxu0
      %v2629 = vadd.f32 %v2532, %v2628
      %v2630 = vpop.f32.mrb[0].mxu0
      %v2631 = vpop.f32.mrb[0].mxu0
      %v2632 = vadd.f32 %v2535, %v2631
      %v2633 = vpop.f32.mrb[0].mxu0
      %2634 = vdwg.mxu0
      %2635 = vmatprep.subr.bf16.mxu0 0
      %2636 = vmatpush1.bf16.msra.mxu0 %v1829
      %2637 = vmatprep.subr.bf16.mxu0 0
      %2638 = vmatpush1.bf16.msra.mxu0 %v1830
      %2639 = vmatprep.subr.bf16.mxu0 0
      %2640 = vmatpush1.bf16.msra.mxu0 %v1831
      %2641 = vmatprep.subr.bf16.mxu0 0
      %2642 = vmatpush1.bf16.msra.mxu0 %v1832
      %2643 = vmatprep.subr.bf16.mxu0 0
      %2644 = vmatpush1.bf16.msra.mxu0 %v1833
      %2645 = vmatprep.subr.bf16.mxu0 0
      %2646 = vmatpush1.bf16.msra.mxu0 %v1834
      %2647 = vmatprep.subr.bf16.mxu0 0
      %2648 = vmatpush1.bf16.msra.mxu0 %v1835
      %2649 = vmatprep.subr.bf16.mxu0 0
      %2650 = vmatpush1.bf16.msra.mxu0 %v1836
      %2651 = vmatprep.subr.bf16.mxu0 0
      %2652 = vmatpush1.bf16.msra.mxu0 %v1837
      %2653 = vmatprep.subr.bf16.mxu0 0
      %2654 = vmatpush1.bf16.msra.mxu0 %v1838
      %2655 = vmatprep.subr.bf16.mxu0 0
      %2656 = vmatpush1.bf16.msra.mxu0 %v1839
      %2657 = vmatprep.subr.bf16.mxu0 0
      %2658 = vmatpush1.bf16.msra.mxu0 %v1840
      %2659 = vmatprep.subr.bf16.mxu0 0
      %2660 = vmatpush1.bf16.msra.mxu0 %v1841
      %2661 = vmatprep.subr.bf16.mxu0 0
      %2662 = vmatpush1.bf16.msra.mxu0 %v1842
      %2663 = vmatprep.subr.bf16.mxu0 0
      %2664 = vmatpush1.bf16.msra.mxu0 %v1843
      %2665 = vmatprep.subr.bf16.mxu0 0
      %2666 = vmatpush1.bf16.msra.mxu0 %v1844
      %2667 = vmatprep.mubr.bf16.mxu0 %v619
      %2668 = vmatmul.mubr.bf16.gmra.mrb[0].mxu0 %v618
      %v2669 = vpop.f32.mrb[0].mxu0
      %v2670 = vadd.f32 %v2573, %v2669
      %v2671 = vpop.f32.mrb[0].mxu0
      %v2672 = vpop.f32.mrb[0].mxu0
      %v2673 = vadd.f32 %v2576, %v2672
      %v2674 = vpop.f32.mrb[0].mxu0
      %2675 = vmatprep.mubr.bf16.mxu0 %v639
      %2676 = vmatmul.mubr.bf16.gmra.mrb[0].mxu0 %v638
      %v2677 = vpop.f32.mrb[0].mxu0
      %v2678 = vadd.f32 %v2581, %v2677
      %v2679 = vpop.f32.mrb[0].mxu0
      %v2680 = vpop.f32.mrb[0].mxu0
      %v2681 = vadd.f32 %v2584, %v2680
      %v2682 = vpop.f32.mrb[0].mxu0
      %2683 = vmatprep.mubr.bf16.mxu0 %v659
      %2684 = vmatmul.mubr.bf16.gmra.mrb[0].mxu0 %v658
      %v2685 = vpop.f32.mrb[0].mxu0
      %v2686 = vadd.f32 %v2589, %v2685
      %v2687 = vpop.f32.mrb[0].mxu0
      %v2688 = vpop.f32.mrb[0].mxu0
      %v2689 = vadd.f32 %v2592, %v2688
      %v2690 = vpop.f32.mrb[0].mxu0
      %2691 = vmatprep.mubr.bf16.mxu0 %v679
      %2692 = vmatmul.mubr.bf16.gmra.mrb[0].mxu0 %v678
      %v2693 = vpop.f32.mrb[0].mxu0
      %v2694 = vadd.f32 %v2597, %v2693
      %v2695 = vpop.f32.mrb[0].mxu0
      %v2696 = vpop.f32.mrb[0].mxu0
      %v2697 = vadd.f32 %v2600, %v2696
      %v2698 = vpop.f32.mrb[0].mxu0
      %2699 = vmatprep.mubr.bf16.mxu0 %v699
      %2700 = vmatmul.mubr.bf16.gmra.mrb[0].mxu0 %v698
      %v2701 = vpop.f32.mrb[0].mxu0
      %v2702 = vadd.f32 %v2605, %v2701
      %v2703 = vpop.f32.mrb[0].mxu0
      %v2704 = vpop.f32.mrb[0].mxu0
      %v2705 = vadd.f32 %v2608, %v2704
      %v2706 = vpop.f32.mrb[0].mxu0
      %2707 = vmatprep.mubr.bf16.mxu0 %v719
      %2708 = vmatmul.mubr.bf16.gmra.mrb[0].mxu0 %v718
      %v2709 = vpop.f32.mrb[0].mxu0
      %v2710 = vadd.f32 %v2613, %v2709
      %v2711 = vpop.f32.mrb[0].mxu0
      %v2712 = vpop.f32.mrb[0].mxu0
      %v2713 = vadd.f32 %v2616, %v2712
      %v2714 = vpop.f32.mrb[0].mxu0
      %2715 = vmatprep.mubr.bf16.mxu0 %v739
      %2716 = vmatmul.mubr.bf16.gmra.mrb[0].mxu0 %v738
      %v2717 = vpop.f32.mrb[0].mxu0
      %v2718 = vadd.f32 %v2621, %v2717
      %v2719 = vpop.f32.mrb[0].mxu0
      %v2720 = vpop.f32.mrb[0].mxu0
      %v2721 = vadd.f32 %v2624, %v2720
      %v2722 = vpop.f32.mrb[0].mxu0
      %2723 = vmatprep.mubr.bf16.mxu0 %v759
      %2724 = vmatmul.mubr.bf16.gmra.mrb[0].mxu0 %v758
      %v2725 = vpop.f32.mrb[0].mxu0
      %v2726 = vadd.f32 %v2629, %v2725
      %v2727 = vpop.f32.mrb[0].mxu0
      %v2728 = vpop.f32.mrb[0].mxu0
      %v2729 = vadd.f32 %v2632, %v2728
      %v2730 = vpop.f32.mrb[0].mxu0
      %2731 = vdwg.mxu0
      %2732 = vmatprep.subr.bf16.mxu0 0
      %2733 = vmatpush1.bf16.msra.mxu0 %v1845
      %2734 = vmatprep.subr.bf16.mxu0 0
      %2735 = vmatpush1.bf16.msra.mxu0 %v1846
      %2736 = vmatprep.subr.bf16.mxu0 0
      %2737 = vmatpush1.bf16.msra.mxu0 %v1847
      %2738 = vmatprep.subr.bf16.mxu0 0
      %2739 = vmatpush1.bf16.msra.mxu0 %v1848
      %2740 = vmatprep.subr.bf16.mxu0 0
      %2741 = vmatpush1.bf16.msra.mxu0 %v1849
      %2742 = vmatprep.subr.bf16.mxu0 0
      %2743 = vmatpush1.bf16.msra.mxu0 %v1850
      %2744 = vmatprep.subr.bf16.mxu0 0
      %2745 = vmatpush1.bf16.msra.mxu0 %v1851
      %2746 = vmatprep.subr.bf16.mxu0 0
      %2747 = vmatpush1.bf16.msra.mxu0 %v1852
      %2748 = vmatprep.subr.bf16.mxu0 0
      %2749 = vmatpush1.bf16.msra.mxu0 %v1853
      %2750 = vmatprep.subr.bf16.mxu0 0
      %2751 = vmatpush1.bf16.msra.mxu0 %v1854
      %2752 = vmatprep.subr.bf16.mxu0 0
      %2753 = vmatpush1.bf16.msra.mxu0 %v1855
      %2754 = vmatprep.subr.bf16.mxu0 0
      %2755 = vmatpush1.bf16.msra.mxu0 %v1856
      %2756 = vmatprep.subr.bf16.mxu0 0
      %2757 = vmatpush1.bf16.msra.mxu0 %v1857
      %2758 = vmatprep.subr.bf16.mxu0 0
      %2759 = vmatpush1.bf16.msra.mxu0 %v1858
      %2760 = vmatprep.subr.bf16.mxu0 0
      %2761 = vmatpush1.bf16.msra.mxu0 %v1859
      %2762 = vmatprep.subr.bf16.mxu0 0
      %2763 = vmatpush1.bf16.msra.mxu0 %v1860
      %2764 = vmatprep.mubr.bf16.mxu0 %v621
      %2765 = vmatmul.mubr.bf16.gmra.mrb[0].mxu0 %v620
      %v2766 = vpop.f32.mrb[0].mxu0
      %v2767 = vadd.f32 %v2670, %v2766
      %v2768 = vpop.f32.mrb[0].mxu0
      %v2769 = vpop.f32.mrb[0].mxu0
      %v2770 = vadd.f32 %v2673, %v2769
      %v2771 = vpop.f32.mrb[0].mxu0
      %2772 = vmatprep.mubr.bf16.mxu0 %v641
      %2773 = vmatmul.mubr.bf16.gmra.mrb[0].mxu0 %v640
      %v2774 = vpop.f32.mrb[0].mxu0
      %v2775 = vadd.f32 %v2678, %v2774
      %v2776 = vpop.f32.mrb[0].mxu0
      %v2777 = vpop.f32.mrb[0].mxu0
      %v2778 = vadd.f32 %v2681, %v2777
      %v2779 = vpop.f32.mrb[0].mxu0
      %2780 = vmatprep.mubr.bf16.mxu0 %v661
      %2781 = vmatmul.mubr.bf16.gmra.mrb[0].mxu0 %v660
      %v2782 = vpop.f32.mrb[0].mxu0
      %v2783 = vadd.f32 %v2686, %v2782
      %v2784 = vpop.f32.mrb[0].mxu0
      %v2785 = vpop.f32.mrb[0].mxu0
      %v2786 = vadd.f32 %v2689, %v2785
      %v2787 = vpop.f32.mrb[0].mxu0
      %2788 = vmatprep.mubr.bf16.mxu0 %v681
      %2789 = vmatmul.mubr.bf16.gmra.mrb[0].mxu0 %v680
      %v2790 = vpop.f32.mrb[0].mxu0
      %v2791 = vadd.f32 %v2694, %v2790
      %v2792 = vpop.f32.mrb[0].mxu0
      %v2793 = vpop.f32.mrb[0].mxu0
      %v2794 = vadd.f32 %v2697, %v2793
      %v2795 = vpop.f32.mrb[0].mxu0
      %2796 = vmatprep.mubr.bf16.mxu0 %v701
      %2797 = vmatmul.mubr.bf16.gmra.mrb[0].mxu0 %v700
      %v2798 = vpop.f32.mrb[0].mxu0
      %v2799 = vadd.f32 %v2702, %v2798
      %v2800 = vpop.f32.mrb[0].mxu0
      %v2801 = vpop.f32.mrb[0].mxu0
      %v2802 = vadd.f32 %v2705, %v2801
      %v2803 = vpop.f32.mrb[0].mxu0
      %2804 = vmatprep.mubr.bf16.mxu0 %v721
      %2805 = vmatmul.mubr.bf16.gmra.mrb[0].mxu0 %v720
      %v2806 = vpop.f32.mrb[0].mxu0
      %v2807 = vadd.f32 %v2710, %v2806
      %v2808 = vpop.f32.mrb[0].mxu0
      %v2809 = vpop.f32.mrb[0].mxu0
      %v2810 = vadd.f32 %v2713, %v2809
      %v2811 = vpop.f32.mrb[0].mxu0
      %2812 = vmatprep.mubr.bf16.mxu0 %v741
      %2813 = vmatmul.mubr.bf16.gmra.mrb[0].mxu0 %v740
      %v2814 = vpop.f32.mrb[0].mxu0
      %v2815 = vadd.f32 %v2718, %v2814
      %v2816 = vpop.f32.mrb[0].mxu0
      %v2817 = vpop.f32.mrb[0].mxu0
      %v2818 = vadd.f32 %v2721, %v2817
      %v2819 = vpop.f32.mrb[0].mxu0
      %2820 = vmatprep.mubr.bf16.mxu0 %v761
      %2821 = vmatmul.mubr.bf16.gmra.mrb[0].mxu0 %v760
      %v2822 = vpop.f32.mrb[0].mxu0
      %v2823 = vadd.f32 %v2726, %v2822
      %v2824 = vpop.f32.mrb[0].mxu0
      %v2825 = vpop.f32.mrb[0].mxu0
      %v2826 = vadd.f32 %v2729, %v2825
      %v2827 = vpop.f32.mrb[0].mxu0
      %2828 = vdwg.mxu0
      %2829 = vmatprep.subr.bf16.mxu0 0
      %2830 = vmatpush1.bf16.msra.mxu0 %v1861
      %2831 = vmatprep.subr.bf16.mxu0 0
      %2832 = vmatpush1.bf16.msra.mxu0 %v1862
      %2833 = vmatprep.subr.bf16.mxu0 0
      %2834 = vmatpush1.bf16.msra.mxu0 %v1863
      %2835 = vmatprep.subr.bf16.mxu0 0
      %2836 = vmatpush1.bf16.msra.mxu0 %v1864
      %2837 = vmatprep.subr.bf16.mxu0 0
      %2838 = vmatpush1.bf16.msra.mxu0 %v1865
      %2839 = vmatprep.subr.bf16.mxu0 0
      %2840 = vmatpush1.bf16.msra.mxu0 %v1866
      %2841 = vmatprep.subr.bf16.mxu0 0
      %2842 = vmatpush1.bf16.msra.mxu0 %v1867
      %2843 = vmatprep.subr.bf16.mxu0 0
      %2844 = vmatpush1.bf16.msra.mxu0 %v1868
      %2845 = vmatprep.subr.bf16.mxu0 0
      %2846 = vmatpush1.bf16.msra.mxu0 %v1869
      %2847 = vmatprep.subr.bf16.mxu0 0
      %2848 = vmatpush1.bf16.msra.mxu0 %v1870
      %2849 = vmatprep.subr.bf16.mxu0 0
      %2850 = vmatpush1.bf16.msra.mxu0 %v1871
      %2851 = vmatprep.subr.bf16.mxu0 0
      %2852 = vmatpush1.bf16.msra.mxu0 %v1872
      %2853 = vmatprep.subr.bf16.mxu0 0
      %2854 = vmatpush1.bf16.msra.mxu0 %v1873
      %2855 = vmatprep.subr.bf16.mxu0 0
      %2856 = vmatpush1.bf16.msra.mxu0 %v1874
      %2857 = vmatprep.subr.bf16.mxu0 0
      %2858 = vmatpush1.bf16.msra.mxu0 %v1875
      %2859 = vmatprep.subr.bf16.mxu0 0
      %2860 = vmatpush1.bf16.msra.mxu0 %v1876
      %2861 = vmatprep.mubr.bf16.mxu0 %v623
      %2862 = vmatmul.mubr.bf16.gmra.mrb[0].mxu0 %v622
      %v2863 = vpop.f32.mrb[0].mxu0
      %v2864 = vadd.f32 %v2767, %v2863
      %v2865 = vpop.f32.mrb[0].mxu0
      %v2866 = vpop.f32.mrb[0].mxu0
      %v2867 = vadd.f32 %v2770, %v2866
      %v2868 = vpop.f32.mrb[0].mxu0
      %2869 = vmatprep.mubr.bf16.mxu0 %v643
      %2870 = vmatmul.mubr.bf16.gmra.mrb[0].mxu0 %v642
      %v2871 = vpop.f32.mrb[0].mxu0
      %v2872 = vadd.f32 %v2775, %v2871
      %v2873 = vpop.f32.mrb[0].mxu0
      %v2874 = vpop.f32.mrb[0].mxu0
      %v2875 = vadd.f32 %v2778, %v2874
      %v2876 = vpop.f32.mrb[0].mxu0
      %2877 = vmatprep.mubr.bf16.mxu0 %v663
      %2878 = vmatmul.mubr.bf16.gmra.mrb[0].mxu0 %v662
      %v2879 = vpop.f32.mrb[0].mxu0
      %v2880 = vadd.f32 %v2783, %v2879
      %v2881 = vpop.f32.mrb[0].mxu0
      %v2882 = vpop.f32.mrb[0].mxu0
      %v2883 = vadd.f32 %v2786, %v2882
      %v2884 = vpop.f32.mrb[0].mxu0
      %2885 = vmatprep.mubr.bf16.mxu0 %v683
      %2886 = vmatmul.mubr.bf16.gmra.mrb[0].mxu0 %v682
      %v2887 = vpop.f32.mrb[0].mxu0
      %v2888 = vadd.f32 %v2791, %v2887
      %v2889 = vpop.f32.mrb[0].mxu0
      %v2890 = vpop.f32.mrb[0].mxu0
      %v2891 = vadd.f32 %v2794, %v2890
      %v2892 = vpop.f32.mrb[0].mxu0
      %2893 = vmatprep.mubr.bf16.mxu0 %v703
      %2894 = vmatmul.mubr.bf16.gmra.mrb[0].mxu0 %v702
      %v2895 = vpop.f32.mrb[0].mxu0
      %v2896 = vadd.f32 %v2799, %v2895
      %v2897 = vpop.f32.mrb[0].mxu0
      %v2898 = vpop.f32.mrb[0].mxu0
      %v2899 = vadd.f32 %v2802, %v2898
      %v2900 = vpop.f32.mrb[0].mxu0
      %2901 = vmatprep.mubr.bf16.mxu0 %v723
      %2902 = vmatmul.mubr.bf16.gmra.mrb[0].mxu0 %v722
      %v2903 = vpop.f32.mrb[0].mxu0
      %v2904 = vadd.f32 %v2807, %v2903
      %v2905 = vpop.f32.mrb[0].mxu0
      %v2906 = vpop.f32.mrb[0].mxu0
      %v2907 = vadd.f32 %v2810, %v2906
      %v2908 = vpop.f32.mrb[0].mxu0
      %2909 = vmatprep.mubr.bf16.mxu0 %v743
      %2910 = vmatmul.mubr.bf16.gmra.mrb[0].mxu0 %v742
      %v2911 = vpop.f32.mrb[0].mxu0
      %v2912 = vadd.f32 %v2815, %v2911
      %v2913 = vpop.f32.mrb[0].mxu0
      %v2914 = vpop.f32.mrb[0].mxu0
      %v2915 = vadd.f32 %v2818, %v2914
      %v2916 = vpop.f32.mrb[0].mxu0
      %2917 = vmatprep.mubr.bf16.mxu0 %v763
      %2918 = vmatmul.mubr.bf16.gmra.mrb[0].mxu0 %v762
      %v2919 = vpop.f32.mrb[0].mxu0
      %v2920 = vadd.f32 %v2823, %v2919
      %v2921 = vpop.f32.mrb[0].mxu0
      %v2922 = vpop.f32.mrb[0].mxu0
      %v2923 = vadd.f32 %v2826, %v2922
      %v2924 = vpop.f32.mrb[0].mxu0
      %2925 = vdwg.mxu0
      %2926 = vmatprep.subr.bf16.mxu0 0
      %2927 = vmatpush1.bf16.msra.mxu0 %v1877
      %2928 = vmatprep.subr.bf16.mxu0 0
      %2929 = vmatpush1.bf16.msra.mxu0 %v1878
      %2930 = vmatprep.subr.bf16.mxu0 0
      %2931 = vmatpush1.bf16.msra.mxu0 %v1879
      %2932 = vmatprep.subr.bf16.mxu0 0
      %2933 = vmatpush1.bf16.msra.mxu0 %v1880
      %2934 = vmatprep.subr.bf16.mxu0 0
      %2935 = vmatpush1.bf16.msra.mxu0 %v1881
      %2936 = vmatprep.subr.bf16.mxu0 0
      %2937 = vmatpush1.bf16.msra.mxu0 %v1882
      %2938 = vmatprep.subr.bf16.mxu0 0
      %2939 = vmatpush1.bf16.msra.mxu0 %v1883
      %2940 = vmatprep.subr.bf16.mxu0 0
      %2941 = vmatpush1.bf16.msra.mxu0 %v1884
      %2942 = vmatprep.subr.bf16.mxu0 0
      %2943 = vmatpush1.bf16.msra.mxu0 %v1885
      %2944 = vmatprep.subr.bf16.mxu0 0
      %2945 = vmatpush1.bf16.msra.mxu0 %v1886
      %2946 = vmatprep.subr.bf16.mxu0 0
      %2947 = vmatpush1.bf16.msra.mxu0 %v1887
      %2948 = vmatprep.subr.bf16.mxu0 0
      %2949 = vmatpush1.bf16.msra.mxu0 %v1888
      %2950 = vmatprep.subr.bf16.mxu0 0
      %2951 = vmatpush1.bf16.msra.mxu0 %v1889
      %2952 = vmatprep.subr.bf16.mxu0 0
      %2953 = vmatpush1.bf16.msra.mxu0 %v1890
      %2954 = vmatprep.subr.bf16.mxu0 0
      %2955 = vmatpush1.bf16.msra.mxu0 %v1891
      %2956 = vmatprep.subr.bf16.mxu0 0
      %2957 = vmatpush1.bf16.msra.mxu0 %v1892
      %2958 = vmatprep.mubr.bf16.mxu0 %v625
      %2959 = vmatmul.mubr.bf16.gmra.mrb[0].mxu0 %v624
      %v2960 = vpop.f32.mrb[0].mxu0
      %v2961 = vadd.f32 %v2864, %v2960
      %v2962 = vpop.f32.mrb[0].mxu0
      %v2963 = vpop.f32.mrb[0].mxu0
      %v2964 = vadd.f32 %v2867, %v2963
      %v2965 = vpop.f32.mrb[0].mxu0
      %2966 = vmatprep.mubr.bf16.mxu0 %v645
      %2967 = vmatmul.mubr.bf16.gmra.mrb[0].mxu0 %v644
      %v2968 = vpop.f32.mrb[0].mxu0
      %v2969 = vadd.f32 %v2872, %v2968
      %v2970 = vpop.f32.mrb[0].mxu0
      %v2971 = vpop.f32.mrb[0].mxu0
      %v2972 = vadd.f32 %v2875, %v2971
      %v2973 = vpop.f32.mrb[0].mxu0
      %2974 = vmatprep.mubr.bf16.mxu0 %v665
      %2975 = vmatmul.mubr.bf16.gmra.mrb[0].mxu0 %v664
      %v2976 = vpop.f32.mrb[0].mxu0
      %v2977 = vadd.f32 %v2880, %v2976
      %v2978 = vpop.f32.mrb[0].mxu0
      %v2979 = vpop.f32.mrb[0].mxu0
      %v2980 = vadd.f32 %v2883, %v2979
      %v2981 = vpop.f32.mrb[0].mxu0
      %2982 = vmatprep.mubr.bf16.mxu0 %v685
      %2983 = vmatmul.mubr.bf16.gmra.mrb[0].mxu0 %v684
      %v2984 = vpop.f32.mrb[0].mxu0
      %v2985 = vadd.f32 %v2888, %v2984
      %v2986 = vpop.f32.mrb[0].mxu0
      %v2987 = vpop.f32.mrb[0].mxu0
      %v2988 = vadd.f32 %v2891, %v2987
      %v2989 = vpop.f32.mrb[0].mxu0
      %2990 = vmatprep.mubr.bf16.mxu0 %v705
      %2991 = vmatmul.mubr.bf16.gmra.mrb[0].mxu0 %v704
      %v2992 = vpop.f32.mrb[0].mxu0
      %v2993 = vadd.f32 %v2896, %v2992
      %v2994 = vpop.f32.mrb[0].mxu0
      %v2995 = vpop.f32.mrb[0].mxu0
      %v2996 = vadd.f32 %v2899, %v2995
      %v2997 = vpop.f32.mrb[0].mxu0
      %2998 = vmatprep.mubr.bf16.mxu0 %v725
      %2999 = vmatmul.mubr.bf16.gmra.mrb[0].mxu0 %v724
      %v3000 = vpop.f32.mrb[0].mxu0
      %v3001 = vadd.f32 %v2904, %v3000
      %v3002 = vpop.f32.mrb[0].mxu0
      %v3003 = vpop.f32.mrb[0].mxu0
      %v3004 = vadd.f32 %v2907, %v3003
      %v3005 = vpop.f32.mrb[0].mxu0
      %3006 = vmatprep.mubr.bf16.mxu0 %v745
      %3007 = vmatmul.mubr.bf16.gmra.mrb[0].mxu0 %v744
      %v3008 = vpop.f32.mrb[0].mxu0
      %v3009 = vadd.f32 %v2912, %v3008
      %v3010 = vpop.f32.mrb[0].mxu0
      %v3011 = vpop.f32.mrb[0].mxu0
      %v3012 = vadd.f32 %v2915, %v3011
      %v3013 = vpop.f32.mrb[0].mxu0
      %3014 = vmatprep.mubr.bf16.mxu0 %v765
      %3015 = vmatmul.mubr.bf16.gmra.mrb[0].mxu0 %v764
      %v3016 = vpop.f32.mrb[0].mxu0
      %v3017 = vadd.f32 %v2920, %v3016
      %v3018 = vpop.f32.mrb[0].mxu0
      %v3019 = vpop.f32.mrb[0].mxu0
      %v3020 = vadd.f32 %v2923, %v3019
      %v3021 = vpop.f32.mrb[0].mxu0
      %3022 = vdwg.mxu0
      %v3023 = vmax.f32 %v2961, 0.0
      %v3024 = vmax.f32 %v2964, 0.0
      %v3025 = vmax.f32 %v2969, 0.0
      %v3026 = vmax.f32 %v2972, 0.0
      %v3027 = vmax.f32 %v2977, 0.0
      %v3028 = vmax.f32 %v2980, 0.0
      %v3029 = vmax.f32 %v2985, 0.0
      %v3030 = vmax.f32 %v2988, 0.0
      %v3031 = vmax.f32 %v2993, 0.0
      %v3032 = vmax.f32 %v2996, 0.0
      %v3033 = vmax.f32 %v3001, 0.0
      %v3034 = vmax.f32 %v3004, 0.0
      %v3035 = vmax.f32 %v3009, 0.0
      %v3036 = vmax.f32 %v3012, 0.0
      %v3037 = vmax.f32 %v3017, 0.0
      %v3038 = vmax.f32 %v3020, 0.0
      %v3039 = vpack.c.bf16 %v3024, %v3023
      %v3040 = vpack.c.bf16 %v3026, %v3025
      %v3041 = vpack.c.bf16 %v3028, %v3027
      %v3042 = vpack.c.bf16 %v3030, %v3029
      %v3043 = vpack.c.bf16 %v3032, %v3031
      %v3044 = vpack.c.bf16 %v3034, %v3033
      %v3045 = vpack.c.bf16 %v3036, %v3035
      %v3046 = vpack.c.bf16 %v3038, %v3037
      %v3047 = vld [vmem:[%s3] sm:$0xff]
      %v3048 = vld [vmem:[%s3 + $0x8] sm:$0xff]
      %v3049 = vld [vmem:[%s3 + $0x10] sm:$0xff]
      %v3050 = vld [vmem:[%s3 + $0x18] sm:$0xff]
      %v3051 = vld [vmem:[%s3 + $0x20] sm:$0xff]
      %v3052 = vld [vmem:[%s3 + $0x28] sm:$0xff]
      %v3053 = vld [vmem:[%s3 + $0x30] sm:$0xff]
      %v3054 = vld [vmem:[%s3 + $0x38] sm:$0xff]
      %v3055 = vld [vmem:[%s3 + $0x40] sm:$0xff]
      %v3056 = vld [vmem:[%s3 + $0x48] sm:$0xff]
      %v3057 = vld [vmem:[%s3 + $0x50] sm:$0xff]
      %v3058 = vld [vmem:[%s3 + $0x58] sm:$0xff]
      %v3059 = vld [vmem:[%s3 + $0x60] sm:$0xff]
      %v3060 = vld [vmem:[%s3 + $0x68] sm:$0xff]
      %v3061 = vld [vmem:[%s3 + $0x70] sm:$0xff]
      %v3062 = vld [vmem:[%s3 + $0x78] sm:$0xff]
      %v3063 = vld [vmem:[%s3 + $0x80] sm:$0xff]
      %v3064 = vld [vmem:[%s3 + $0x88] sm:$0xff]
      %v3065 = vld [vmem:[%s3 + $0x90] sm:$0xff]
      %v3066 = vld [vmem:[%s3 + $0x98] sm:$0xff]
      %v3067 = vld [vmem:[%s3 + $0xa0] sm:$0xff]
      %v3068 = vld [vmem:[%s3 + $0xa8] sm:$0xff]
      %v3069 = vld [vmem:[%s3 + $0xb0] sm:$0xff]
      %v3070 = vld [vmem:[%s3 + $0xb8] sm:$0xff]
      %v3071 = vld [vmem:[%s3 + $0xc0] sm:$0xff]
      %v3072 = vld [vmem:[%s3 + $0xc8] sm:$0xff]
      %v3073 = vld [vmem:[%s3 + $0xd0] sm:$0xff]
      %v3074 = vld [vmem:[%s3 + $0xd8] sm:$0xff]
      %v3075 = vld [vmem:[%s3 + $0xe0] sm:$0xff]
      %v3076 = vld [vmem:[%s3 + $0xe8] sm:$0xff]
      %v3077 = vld [vmem:[%s3 + $0xf0] sm:$0xff]
      %v3078 = vld [vmem:[%s3 + $0xf8] sm:$0xff]
      %v3079 = vld [vmem:[%s3 + $0x100] sm:$0xff]
      %v3080 = vld [vmem:[%s3 + $0x108] sm:$0xff]
      %v3081 = vld [vmem:[%s3 + $0x110] sm:$0xff]
      %v3082 = vld [vmem:[%s3 + $0x118] sm:$0xff]
      %v3083 = vld [vmem:[%s3 + $0x120] sm:$0xff]
      %v3084 = vld [vmem:[%s3 + $0x128] sm:$0xff]
      %v3085 = vld [vmem:[%s3 + $0x130] sm:$0xff]
      %v3086 = vld [vmem:[%s3 + $0x138] sm:$0xff]
      %v3087 = vld [vmem:[%s3 + $0x140] sm:$0xff]
      %v3088 = vld [vmem:[%s3 + $0x148] sm:$0xff]
      %v3089 = vld [vmem:[%s3 + $0x150] sm:$0xff]
      %v3090 = vld [vmem:[%s3 + $0x158] sm:$0xff]
      %v3091 = vld [vmem:[%s3 + $0x160] sm:$0xff]
      %v3092 = vld [vmem:[%s3 + $0x168] sm:$0xff]
      %v3093 = vld [vmem:[%s3 + $0x170] sm:$0xff]
      %v3094 = vld [vmem:[%s3 + $0x178] sm:$0xff]
      %v3095 = vld [vmem:[%s3 + $0x180] sm:$0xff]
      %v3096 = vld [vmem:[%s3 + $0x188] sm:$0xff]
      %v3097 = vld [vmem:[%s3 + $0x190] sm:$0xff]
      %v3098 = vld [vmem:[%s3 + $0x198] sm:$0xff]
      %v3099 = vld [vmem:[%s3 + $0x1a0] sm:$0xff]
      %v3100 = vld [vmem:[%s3 + $0x1a8] sm:$0xff]
      %v3101 = vld [vmem:[%s3 + $0x1b0] sm:$0xff]
      %v3102 = vld [vmem:[%s3 + $0x1b8] sm:$0xff]
      %v3103 = vld [vmem:[%s3 + $0x1c0] sm:$0xff]
      %v3104 = vld [vmem:[%s3 + $0x1c8] sm:$0xff]
      %v3105 = vld [vmem:[%s3 + $0x1d0] sm:$0xff]
      %v3106 = vld [vmem:[%s3 + $0x1d8] sm:$0xff]
      %v3107 = vld [vmem:[%s3 + $0x1e0] sm:$0xff]
      %v3108 = vld [vmem:[%s3 + $0x1e8] sm:$0xff]
      %v3109 = vld [vmem:[%s3 + $0x1f0] sm:$0xff]
      %v3110 = vld [vmem:[%s3 + $0x1f8] sm:$0xff]
      %v3111 = vld [vmem:[%s3 + $0x200] sm:$0xff]
      %v3112 = vld [vmem:[%s3 + $0x208] sm:$0xff]
      %v3113 = vld [vmem:[%s3 + $0x210] sm:$0xff]
      %v3114 = vld [vmem:[%s3 + $0x218] sm:$0xff]
      %v3115 = vld [vmem:[%s3 + $0x220] sm:$0xff]
      %v3116 = vld [vmem:[%s3 + $0x228] sm:$0xff]
      %v3117 = vld [vmem:[%s3 + $0x230] sm:$0xff]
      %v3118 = vld [vmem:[%s3 + $0x238] sm:$0xff]
      %v3119 = vld [vmem:[%s3 + $0x240] sm:$0xff]
      %v3120 = vld [vmem:[%s3 + $0x248] sm:$0xff]
      %v3121 = vld [vmem:[%s3 + $0x250] sm:$0xff]
      %v3122 = vld [vmem:[%s3 + $0x258] sm:$0xff]
      %v3123 = vld [vmem:[%s3 + $0x260] sm:$0xff]
      %v3124 = vld [vmem:[%s3 + $0x268] sm:$0xff]
      %v3125 = vld [vmem:[%s3 + $0x270] sm:$0xff]
      %v3126 = vld [vmem:[%s3 + $0x278] sm:$0xff]
      %v3127 = vld [vmem:[%s3 + $0x280] sm:$0xff]
      %v3128 = vld [vmem:[%s3 + $0x288] sm:$0xff]
      %v3129 = vld [vmem:[%s3 + $0x290] sm:$0xff]
      %v3130 = vld [vmem:[%s3 + $0x298] sm:$0xff]
      %v3131 = vld [vmem:[%s3 + $0x2a0] sm:$0xff]
      %v3132 = vld [vmem:[%s3 + $0x2a8] sm:$0xff]
      %v3133 = vld [vmem:[%s3 + $0x2b0] sm:$0xff]
      %v3134 = vld [vmem:[%s3 + $0x2b8] sm:$0xff]
      %v3135 = vld [vmem:[%s3 + $0x2c0] sm:$0xff]
      %v3136 = vld [vmem:[%s3 + $0x2c8] sm:$0xff]
      %v3137 = vld [vmem:[%s3 + $0x2d0] sm:$0xff]
      %v3138 = vld [vmem:[%s3 + $0x2d8] sm:$0xff]
      %v3139 = vld [vmem:[%s3 + $0x2e0] sm:$0xff]
      %v3140 = vld [vmem:[%s3 + $0x2e8] sm:$0xff]
      %v3141 = vld [vmem:[%s3 + $0x2f0] sm:$0xff]
      %v3142 = vld [vmem:[%s3 + $0x2f8] sm:$0xff]
      %v3143 = vld [vmem:[%s3 + $0x300] sm:$0xff]
      %v3144 = vld [vmem:[%s3 + $0x308] sm:$0xff]
      %v3145 = vld [vmem:[%s3 + $0x310] sm:$0xff]
      %v3146 = vld [vmem:[%s3 + $0x318] sm:$0xff]
      %v3147 = vld [vmem:[%s3 + $0x320] sm:$0xff]
      %v3148 = vld [vmem:[%s3 + $0x328] sm:$0xff]
      %v3149 = vld [vmem:[%s3 + $0x330] sm:$0xff]
      %v3150 = vld [vmem:[%s3 + $0x338] sm:$0xff]
      %v3151 = vld [vmem:[%s3 + $0x340] sm:$0xff]
      %v3152 = vld [vmem:[%s3 + $0x348] sm:$0xff]
      %v3153 = vld [vmem:[%s3 + $0x350] sm:$0xff]
      %v3154 = vld [vmem:[%s3 + $0x358] sm:$0xff]
      %v3155 = vld [vmem:[%s3 + $0x360] sm:$0xff]
      %v3156 = vld [vmem:[%s3 + $0x368] sm:$0xff]
      %v3157 = vld [vmem:[%s3 + $0x370] sm:$0xff]
      %v3158 = vld [vmem:[%s3 + $0x378] sm:$0xff]
      %v3159 = vld [vmem:[%s3 + $0x380] sm:$0xff]
      %v3160 = vld [vmem:[%s3 + $0x388] sm:$0xff]
      %v3161 = vld [vmem:[%s3 + $0x390] sm:$0xff]
      %v3162 = vld [vmem:[%s3 + $0x398] sm:$0xff]
      %v3163 = vld [vmem:[%s3 + $0x3a0] sm:$0xff]
      %v3164 = vld [vmem:[%s3 + $0x3a8] sm:$0xff]
      %v3165 = vld [vmem:[%s3 + $0x3b0] sm:$0xff]
      %v3166 = vld [vmem:[%s3 + $0x3b8] sm:$0xff]
      %v3167 = vld [vmem:[%s3 + $0x3c0] sm:$0xff]
      %v3168 = vld [vmem:[%s3 + $0x3c8] sm:$0xff]
      %v3169 = vld [vmem:[%s3 + $0x3d0] sm:$0xff]
      %v3170 = vld [vmem:[%s3 + $0x3d8] sm:$0xff]
      %v3171 = vld [vmem:[%s3 + $0x3e0] sm:$0xff]
      %v3172 = vld [vmem:[%s3 + $0x3e8] sm:$0xff]
      %v3173 = vld [vmem:[%s3 + $0x3f0] sm:$0xff]
      %v3174 = vld [vmem:[%s3 + $0x3f8] sm:$0xff]
      %v3175 = vld [vmem:[%s3 + $0x400] sm:$0xff]
      %v3176 = vld [vmem:[%s3 + $0x408] sm:$0xff]
      %v3177 = vld [vmem:[%s3 + $0x410] sm:$0xff]
      %v3178 = vld [vmem:[%s3 + $0x418] sm:$0xff]
      %v3179 = vld [vmem:[%s3 + $0x420] sm:$0xff]
      %v3180 = vld [vmem:[%s3 + $0x428] sm:$0xff]
      %v3181 = vld [vmem:[%s3 + $0x430] sm:$0xff]
      %v3182 = vld [vmem:[%s3 + $0x438] sm:$0xff]
      %v3183 = vld [vmem:[%s3 + $0x440] sm:$0xff]
      %v3184 = vld [vmem:[%s3 + $0x448] sm:$0xff]
      %v3185 = vld [vmem:[%s3 + $0x450] sm:$0xff]
      %v3186 = vld [vmem:[%s3 + $0x458] sm:$0xff]
      %v3187 = vld [vmem:[%s3 + $0x460] sm:$0xff]
      %v3188 = vld [vmem:[%s3 + $0x468] sm:$0xff]
      %v3189 = vld [vmem:[%s3 + $0x470] sm:$0xff]
      %v3190 = vld [vmem:[%s3 + $0x478] sm:$0xff]
      %v3191 = vld [vmem:[%s3 + $0x480] sm:$0xff]
      %v3192 = vld [vmem:[%s3 + $0x488] sm:$0xff]
      %v3193 = vld [vmem:[%s3 + $0x490] sm:$0xff]
      %v3194 = vld [vmem:[%s3 + $0x498] sm:$0xff]
      %v3195 = vld [vmem:[%s3 + $0x4a0] sm:$0xff]
      %v3196 = vld [vmem:[%s3 + $0x4a8] sm:$0xff]
      %v3197 = vld [vmem:[%s3 + $0x4b0] sm:$0xff]
      %v3198 = vld [vmem:[%s3 + $0x4b8] sm:$0xff]
      %v3199 = vld [vmem:[%s3 + $0x4c0] sm:$0xff]
      %v3200 = vld [vmem:[%s3 + $0x4c8] sm:$0xff]
      %v3201 = vld [vmem:[%s3 + $0x4d0] sm:$0xff]
      %v3202 = vld [vmem:[%s3 + $0x4d8] sm:$0xff]
      %v3203 = vld [vmem:[%s3 + $0x4e0] sm:$0xff]
      %v3204 = vld [vmem:[%s3 + $0x4e8] sm:$0xff]
      %v3205 = vld [vmem:[%s3 + $0x4f0] sm:$0xff]
      %v3206 = vld [vmem:[%s3 + $0x4f8] sm:$0xff]
      %v3207 = vld [vmem:[%s4] sm:$0xff]
      %v3208 = vld [vmem:[%s4 + $0x8] sm:$0xff]
      %v3209 = vld [vmem:[%s4 + $0x10] sm:$0xf]
      %v3213 = vlaneseq
      %v3214 = vshrl.u32 %v3213, 7
      %v3215 = vsub.s32 0, %v3214
      %v3216 = vrot.slane %v3207, %v3215
      %v3217 = vlaneseq
      %v3218 = vshrl.u32 %v3217, 7
      %v3219 = vsub.s32 1, %v3218
      %v3220 = vrot.slane %v3207, %v3219
      %v3221 = vlaneseq
      %v3222 = vshrl.u32 %v3221, 7
      %v3223 = vsub.s32 2, %v3222
      %v3224 = vrot.slane %v3207, %v3223
      %v3225 = vlaneseq
      %v3226 = vshrl.u32 %v3225, 7
      %v3227 = vsub.s32 3, %v3226
      %v3228 = vrot.slane %v3207, %v3227
      %v3229 = vlaneseq
      %v3230 = vshrl.u32 %v3229, 7
      %v3231 = vsub.s32 4, %v3230
      %v3232 = vrot.slane %v3207, %v3231
      %v3233 = vlaneseq
      %v3234 = vshrl.u32 %v3233, 7
      %v3235 = vsub.s32 5, %v3234
      %v3236 = vrot.slane %v3207, %v3235
      %v3237 = vlaneseq
      %v3238 = vshrl.u32 %v3237, 7
      %v3239 = vsub.s32 6, %v3238
      %v3240 = vrot.slane %v3207, %v3239
      %v3241 = vlaneseq
      %v3242 = vshrl.u32 %v3241, 7
      %v3243 = vsub.s32 7, %v3242
      %v3244 = vrot.slane %v3207, %v3243
      %v3245 = vlaneseq
      %v3246 = vshrl.u32 %v3245, 7
      %v3247 = vsub.s32 0, %v3246
      %v3248 = vrot.slane %v3208, %v3247
      %v3249 = vlaneseq
      %v3250 = vshrl.u32 %v3249, 7
      %v3251 = vsub.s32 1, %v3250
      %v3252 = vrot.slane %v3208, %v3251
      %v3253 = vlaneseq
      %v3254 = vshrl.u32 %v3253, 7
      %v3255 = vsub.s32 2, %v3254
      %v3256 = vrot.slane %v3208, %v3255
      %v3257 = vlaneseq
      %v3258 = vshrl.u32 %v3257, 7
      %v3259 = vsub.s32 3, %v3258
      %v3260 = vrot.slane %v3208, %v3259
      %v3261 = vlaneseq
      %v3262 = vshrl.u32 %v3261, 7
      %v3263 = vsub.s32 4, %v3262
      %v3264 = vrot.slane %v3208, %v3263
      %v3265 = vlaneseq
      %v3266 = vshrl.u32 %v3265, 7
      %v3267 = vsub.s32 5, %v3266
      %v3268 = vrot.slane %v3208, %v3267
      %v3269 = vlaneseq
      %v3270 = vshrl.u32 %v3269, 7
      %v3271 = vsub.s32 6, %v3270
      %v3272 = vrot.slane %v3208, %v3271
      %v3273 = vlaneseq
      %v3274 = vshrl.u32 %v3273, 7
      %v3275 = vsub.s32 7, %v3274
      %v3276 = vrot.slane %v3208, %v3275
      %v3277 = vlaneseq
      %v3278 = vshrl.u32 %v3277, 7
      %v3279 = vsub.s32 0, %v3278
      %v3280 = vrot.slane %v3209, %v3279
      %v3281 = vlaneseq
      %v3282 = vshrl.u32 %v3281, 7
      %v3283 = vsub.s32 1, %v3282
      %v3284 = vrot.slane %v3209, %v3283
      %v3285 = vlaneseq
      %v3286 = vshrl.u32 %v3285, 7
      %v3287 = vsub.s32 2, %v3286
      %v3288 = vrot.slane %v3209, %v3287
      %v3289 = vlaneseq
      %v3290 = vshrl.u32 %v3289, 7
      %v3291 = vsub.s32 3, %v3290
      %v3292 = vrot.slane %v3209, %v3291
      %v3473 = vunpack.c.l.b16 %v3047
      %v3474 = vunpack.c.h.b16 %v3047
      %v3475 = vunpack.c.l.b16 %v3048
      %v3476 = vunpack.c.h.b16 %v3048
      %v3477 = vunpack.c.l.b16 %v3049
      %v3478 = vunpack.c.h.b16 %v3049
      %v3479 = vunpack.c.l.b16 %v3050
      %v3480 = vunpack.c.h.b16 %v3050
      %v3481 = vunpack.c.l.b16 %v3051
      %v3482 = vunpack.c.h.b16 %v3051
      %v3483 = vunpack.c.l.b16 %v3052
      %v3484 = vunpack.c.h.b16 %v3052
      %v3485 = vunpack.c.l.b16 %v3053
      %v3486 = vunpack.c.h.b16 %v3053
      %v3487 = vunpack.c.l.b16 %v3054
      %v3488 = vunpack.c.h.b16 %v3054
      %v3489 = vunpack.c.l.b16 %v3055
      %v3490 = vunpack.c.h.b16 %v3055
      %v3491 = vunpack.c.l.b16 %v3056
      %v3492 = vunpack.c.h.b16 %v3056
      %v3493 = vunpack.c.l.b16 %v3057
      %v3494 = vunpack.c.h.b16 %v3057
      %v3495 = vunpack.c.l.b16 %v3058
      %v3496 = vunpack.c.h.b16 %v3058
      %v3497 = vunpack.c.l.b16 %v3059
      %v3498 = vunpack.c.h.b16 %v3059
      %v3499 = vunpack.c.l.b16 %v3060
      %v3500 = vunpack.c.h.b16 %v3060
      %v3501 = vunpack.c.l.b16 %v3061
      %v3502 = vunpack.c.h.b16 %v3061
      %v3503 = vunpack.c.l.b16 %v3062
      %v3504 = vunpack.c.h.b16 %v3062
      %v3505 = vunpack.c.l.b16 %v3063
      %v3506 = vunpack.c.h.b16 %v3063
      %v3507 = vunpack.c.l.b16 %v3064
      %v3508 = vunpack.c.h.b16 %v3064
      %v3509 = vunpack.c.l.b16 %v3065
      %v3510 = vunpack.c.h.b16 %v3065
      %v3511 = vunpack.c.l.b16 %v3066
      %v3512 = vunpack.c.h.b16 %v3066
      %v3513 = vunpack.c.l.b16 %v3067
      %v3514 = vunpack.c.h.b16 %v3067
      %v3515 = vunpack.c.l.b16 %v3068
      %v3516 = vunpack.c.h.b16 %v3068
      %v3517 = vunpack.c.l.b16 %v3069
      %v3518 = vunpack.c.h.b16 %v3069
      %v3519 = vunpack.c.l.b16 %v3070
      %v3520 = vunpack.c.h.b16 %v3070
      %v3521 = vunpack.c.l.b16 %v3071
      %v3522 = vunpack.c.h.b16 %v3071
      %v3523 = vunpack.c.l.b16 %v3072
      %v3524 = vunpack.c.h.b16 %v3072
      %v3525 = vunpack.c.l.b16 %v3073
      %v3526 = vunpack.c.h.b16 %v3073
      %v3527 = vunpack.c.l.b16 %v3074
      %v3528 = vunpack.c.h.b16 %v3074
      %v3529 = vunpack.c.l.b16 %v3075
      %v3530 = vunpack.c.h.b16 %v3075
      %v3531 = vunpack.c.l.b16 %v3076
      %v3532 = vunpack.c.h.b16 %v3076
      %v3533 = vunpack.c.l.b16 %v3077
      %v3534 = vunpack.c.h.b16 %v3077
      %v3535 = vunpack.c.l.b16 %v3078
      %v3536 = vunpack.c.h.b16 %v3078
      %v3537 = vunpack.c.l.b16 %v3079
      %v3538 = vunpack.c.h.b16 %v3079
      %v3539 = vunpack.c.l.b16 %v3080
      %v3540 = vunpack.c.h.b16 %v3080
      %v3541 = vunpack.c.l.b16 %v3081
      %v3542 = vunpack.c.h.b16 %v3081
      %v3543 = vunpack.c.l.b16 %v3082
      %v3544 = vunpack.c.h.b16 %v3082
      %v3545 = vunpack.c.l.b16 %v3083
      %v3546 = vunpack.c.h.b16 %v3083
      %v3547 = vunpack.c.l.b16 %v3084
      %v3548 = vunpack.c.h.b16 %v3084
      %v3549 = vunpack.c.l.b16 %v3085
      %v3550 = vunpack.c.h.b16 %v3085
      %v3551 = vunpack.c.l.b16 %v3086
      %v3552 = vunpack.c.h.b16 %v3086
      %v3553 = vunpack.c.l.b16 %v3087
      %v3554 = vunpack.c.h.b16 %v3087
      %v3555 = vunpack.c.l.b16 %v3088
      %v3556 = vunpack.c.h.b16 %v3088
      %v3557 = vunpack.c.l.b16 %v3089
      %v3558 = vunpack.c.h.b16 %v3089
      %v3559 = vunpack.c.l.b16 %v3090
      %v3560 = vunpack.c.h.b16 %v3090
      %v3561 = vunpack.c.l.b16 %v3091
      %v3562 = vunpack.c.h.b16 %v3091
      %v3563 = vunpack.c.l.b16 %v3092
      %v3564 = vunpack.c.h.b16 %v3092
      %v3565 = vunpack.c.l.b16 %v3093
      %v3566 = vunpack.c.h.b16 %v3093
      %v3567 = vunpack.c.l.b16 %v3094
      %v3568 = vunpack.c.h.b16 %v3094
      %v3569 = vunpack.c.l.b16 %v3095
      %v3570 = vunpack.c.h.b16 %v3095
      %v3571 = vunpack.c.l.b16 %v3096
      %v3572 = vunpack.c.h.b16 %v3096
      %v3573 = vunpack.c.l.b16 %v3097
      %v3574 = vunpack.c.h.b16 %v3097
      %v3575 = vunpack.c.l.b16 %v3098
      %v3576 = vunpack.c.h.b16 %v3098
      %v3577 = vunpack.c.l.b16 %v3099
      %v3578 = vunpack.c.h.b16 %v3099
      %v3579 = vunpack.c.l.b16 %v3100
      %v3580 = vunpack.c.h.b16 %v3100
      %v3581 = vunpack.c.l.b16 %v3101
      %v3582 = vunpack.c.h.b16 %v3101
      %v3583 = vunpack.c.l.b16 %v3102
      %v3584 = vunpack.c.h.b16 %v3102
      %v3585 = vunpack.c.l.b16 %v3103
      %v3586 = vunpack.c.h.b16 %v3103
      %v3587 = vunpack.c.l.b16 %v3104
      %v3588 = vunpack.c.h.b16 %v3104
      %v3589 = vunpack.c.l.b16 %v3105
      %v3590 = vunpack.c.h.b16 %v3105
      %v3591 = vunpack.c.l.b16 %v3106
      %v3592 = vunpack.c.h.b16 %v3106
      %v3593 = vunpack.c.l.b16 %v3107
      %v3594 = vunpack.c.h.b16 %v3107
      %v3595 = vunpack.c.l.b16 %v3108
      %v3596 = vunpack.c.h.b16 %v3108
      %v3597 = vunpack.c.l.b16 %v3109
      %v3598 = vunpack.c.h.b16 %v3109
      %v3599 = vunpack.c.l.b16 %v3110
      %v3600 = vunpack.c.h.b16 %v3110
      %v3601 = vunpack.c.l.b16 %v3111
      %v3602 = vunpack.c.h.b16 %v3111
      %v3603 = vunpack.c.l.b16 %v3112
      %v3604 = vunpack.c.h.b16 %v3112
      %v3605 = vunpack.c.l.b16 %v3113
      %v3606 = vunpack.c.h.b16 %v3113
      %v3607 = vunpack.c.l.b16 %v3114
      %v3608 = vunpack.c.h.b16 %v3114
      %v3609 = vunpack.c.l.b16 %v3115
      %v3610 = vunpack.c.h.b16 %v3115
      %v3611 = vunpack.c.l.b16 %v3116
      %v3612 = vunpack.c.h.b16 %v3116
      %v3613 = vunpack.c.l.b16 %v3117
      %v3614 = vunpack.c.h.b16 %v3117
      %v3615 = vunpack.c.l.b16 %v3118
      %v3616 = vunpack.c.h.b16 %v3118
      %v3617 = vunpack.c.l.b16 %v3119
      %v3618 = vunpack.c.h.b16 %v3119
      %v3619 = vunpack.c.l.b16 %v3120
      %v3620 = vunpack.c.h.b16 %v3120
      %v3621 = vunpack.c.l.b16 %v3121
      %v3622 = vunpack.c.h.b16 %v3121
      %v3623 = vunpack.c.l.b16 %v3122
      %v3624 = vunpack.c.h.b16 %v3122
      %v3625 = vunpack.c.l.b16 %v3123
      %v3626 = vunpack.c.h.b16 %v3123
      %v3627 = vunpack.c.l.b16 %v3124
      %v3628 = vunpack.c.h.b16 %v3124
      %v3629 = vunpack.c.l.b16 %v3125
      %v3630 = vunpack.c.h.b16 %v3125
      %v3631 = vunpack.c.l.b16 %v3126
      %v3632 = vunpack.c.h.b16 %v3126
      %v3633 = vunpack.c.l.b16 %v3127
      %v3634 = vunpack.c.h.b16 %v3127
      %v3635 = vunpack.c.l.b16 %v3128
      %v3636 = vunpack.c.h.b16 %v3128
      %v3637 = vunpack.c.l.b16 %v3129
      %v3638 = vunpack.c.h.b16 %v3129
      %v3639 = vunpack.c.l.b16 %v3130
      %v3640 = vunpack.c.h.b16 %v3130
      %v3641 = vunpack.c.l.b16 %v3131
      %v3642 = vunpack.c.h.b16 %v3131
      %v3643 = vunpack.c.l.b16 %v3132
      %v3644 = vunpack.c.h.b16 %v3132
      %v3645 = vunpack.c.l.b16 %v3133
      %v3646 = vunpack.c.h.b16 %v3133
      %v3647 = vunpack.c.l.b16 %v3134
      %v3648 = vunpack.c.h.b16 %v3134
      %v3649 = vunpack.c.l.b16 %v3135
      %v3650 = vunpack.c.h.b16 %v3135
      %v3651 = vunpack.c.l.b16 %v3136
      %v3652 = vunpack.c.h.b16 %v3136
      %v3653 = vunpack.c.l.b16 %v3137
      %v3654 = vunpack.c.h.b16 %v3137
      %v3655 = vunpack.c.l.b16 %v3138
      %v3656 = vunpack.c.h.b16 %v3138
      %v3657 = vunpack.c.l.b16 %v3139
      %v3658 = vunpack.c.h.b16 %v3139
      %v3659 = vunpack.c.l.b16 %v3140
      %v3660 = vunpack.c.h.b16 %v3140
      %v3661 = vunpack.c.l.b16 %v3141
      %v3662 = vunpack.c.h.b16 %v3141
      %v3663 = vunpack.c.l.b16 %v3142
      %v3664 = vunpack.c.h.b16 %v3142
      %v3665 = vunpack.c.l.b16 %v3143
      %v3666 = vunpack.c.h.b16 %v3143
      %v3667 = vunpack.c.l.b16 %v3144
      %v3668 = vunpack.c.h.b16 %v3144
      %v3669 = vunpack.c.l.b16 %v3145
      %v3670 = vunpack.c.h.b16 %v3145
      %v3671 = vunpack.c.l.b16 %v3146
      %v3672 = vunpack.c.h.b16 %v3146
      %v3673 = vunpack.c.l.b16 %v3147
      %v3674 = vunpack.c.h.b16 %v3147
      %v3675 = vunpack.c.l.b16 %v3148
      %v3676 = vunpack.c.h.b16 %v3148
      %v3677 = vunpack.c.l.b16 %v3149
      %v3678 = vunpack.c.h.b16 %v3149
      %v3679 = vunpack.c.l.b16 %v3150
      %v3680 = vunpack.c.h.b16 %v3150
      %v3681 = vunpack.c.l.b16 %v3151
      %v3682 = vunpack.c.h.b16 %v3151
      %v3683 = vunpack.c.l.b16 %v3152
      %v3684 = vunpack.c.h.b16 %v3152
      %v3685 = vunpack.c.l.b16 %v3153
      %v3686 = vunpack.c.h.b16 %v3153
      %v3687 = vunpack.c.l.b16 %v3154
      %v3688 = vunpack.c.h.b16 %v3154
      %v3689 = vunpack.c.l.b16 %v3155
      %v3690 = vunpack.c.h.b16 %v3155
      %v3691 = vunpack.c.l.b16 %v3156
      %v3692 = vunpack.c.h.b16 %v3156
      %v3693 = vunpack.c.l.b16 %v3157
      %v3694 = vunpack.c.h.b16 %v3157
      %v3695 = vunpack.c.l.b16 %v3158
      %v3696 = vunpack.c.h.b16 %v3158
      %v3697 = vunpack.c.l.b16 %v3159
      %v3698 = vunpack.c.h.b16 %v3159
      %v3699 = vunpack.c.l.b16 %v3160
      %v3700 = vunpack.c.h.b16 %v3160
      %v3701 = vunpack.c.l.b16 %v3161
      %v3702 = vunpack.c.h.b16 %v3161
      %v3703 = vunpack.c.l.b16 %v3162
      %v3704 = vunpack.c.h.b16 %v3162
      %v3705 = vunpack.c.l.b16 %v3163
      %v3706 = vunpack.c.h.b16 %v3163
      %v3707 = vunpack.c.l.b16 %v3164
      %v3708 = vunpack.c.h.b16 %v3164
      %v3709 = vunpack.c.l.b16 %v3165
      %v3710 = vunpack.c.h.b16 %v3165
      %v3711 = vunpack.c.l.b16 %v3166
      %v3712 = vunpack.c.h.b16 %v3166
      %v3713 = vunpack.c.l.b16 %v3167
      %v3714 = vunpack.c.h.b16 %v3167
      %v3715 = vunpack.c.l.b16 %v3168
      %v3716 = vunpack.c.h.b16 %v3168
      %v3717 = vunpack.c.l.b16 %v3169
      %v3718 = vunpack.c.h.b16 %v3169
      %v3719 = vunpack.c.l.b16 %v3170
      %v3720 = vunpack.c.h.b16 %v3170
      %v3721 = vunpack.c.l.b16 %v3171
      %v3722 = vunpack.c.h.b16 %v3171
      %v3723 = vunpack.c.l.b16 %v3172
      %v3724 = vunpack.c.h.b16 %v3172
      %v3725 = vunpack.c.l.b16 %v3173
      %v3726 = vunpack.c.h.b16 %v3173
      %v3727 = vunpack.c.l.b16 %v3174
      %v3728 = vunpack.c.h.b16 %v3174
      %v3729 = vunpack.c.l.b16 %v3175
      %v3730 = vunpack.c.h.b16 %v3175
      %v3731 = vunpack.c.l.b16 %v3176
      %v3732 = vunpack.c.h.b16 %v3176
      %v3733 = vunpack.c.l.b16 %v3177
      %v3734 = vunpack.c.h.b16 %v3177
      %v3735 = vunpack.c.l.b16 %v3178
      %v3736 = vunpack.c.h.b16 %v3178
      %v3737 = vunpack.c.l.b16 %v3179
      %v3738 = vunpack.c.h.b16 %v3179
      %v3739 = vunpack.c.l.b16 %v3180
      %v3740 = vunpack.c.h.b16 %v3180
      %v3741 = vunpack.c.l.b16 %v3181
      %v3742 = vunpack.c.h.b16 %v3181
      %v3743 = vunpack.c.l.b16 %v3182
      %v3744 = vunpack.c.h.b16 %v3182
      %v3745 = vunpack.c.l.b16 %v3183
      %v3746 = vunpack.c.h.b16 %v3183
      %v3747 = vunpack.c.l.b16 %v3184
      %v3748 = vunpack.c.h.b16 %v3184
      %v3749 = vunpack.c.l.b16 %v3185
      %v3750 = vunpack.c.h.b16 %v3185
      %v3751 = vunpack.c.l.b16 %v3186
      %v3752 = vunpack.c.h.b16 %v3186
      %v3753 = vunpack.c.l.b16 %v3187
      %v3754 = vunpack.c.h.b16 %v3187
      %v3755 = vunpack.c.l.b16 %v3188
      %v3756 = vunpack.c.h.b16 %v3188
      %v3757 = vunpack.c.l.b16 %v3189
      %v3758 = vunpack.c.h.b16 %v3189
      %v3759 = vunpack.c.l.b16 %v3190
      %v3760 = vunpack.c.h.b16 %v3190
      %v3761 = vunpack.c.l.b16 %v3191
      %v3762 = vunpack.c.h.b16 %v3191
      %v3763 = vunpack.c.l.b16 %v3192
      %v3764 = vunpack.c.h.b16 %v3192
      %v3765 = vunpack.c.l.b16 %v3193
      %v3766 = vunpack.c.h.b16 %v3193
      %v3767 = vunpack.c.l.b16 %v3194
      %v3768 = vunpack.c.h.b16 %v3194
      %v3769 = vunpack.c.l.b16 %v3195
      %v3770 = vunpack.c.h.b16 %v3195
      %v3771 = vunpack.c.l.b16 %v3196
      %v3772 = vunpack.c.h.b16 %v3196
      %v3773 = vunpack.c.l.b16 %v3197
      %v3774 = vunpack.c.h.b16 %v3197
      %v3775 = vunpack.c.l.b16 %v3198
      %v3776 = vunpack.c.h.b16 %v3198
      %v3777 = vunpack.c.l.b16 %v3199
      %v3778 = vunpack.c.h.b16 %v3199
      %v3779 = vunpack.c.l.b16 %v3200
      %v3780 = vunpack.c.h.b16 %v3200
      %v3781 = vunpack.c.l.b16 %v3201
      %v3782 = vunpack.c.h.b16 %v3201
      %v3783 = vunpack.c.l.b16 %v3202
      %v3784 = vunpack.c.h.b16 %v3202
      %v3785 = vunpack.c.l.b16 %v3203
      %v3786 = vunpack.c.h.b16 %v3203
      %v3787 = vunpack.c.l.b16 %v3204
      %v3788 = vunpack.c.h.b16 %v3204
      %v3789 = vunpack.c.l.b16 %v3205
      %v3790 = vunpack.c.h.b16 %v3205
      %v3791 = vunpack.c.l.b16 %v3206
      %v3792 = vunpack.c.h.b16 %v3206
      %v3793 = vpack.c.b16 %v3493, %v3473
      %v3794 = vpack.c.b16 %v3494, %v3474
      %v3795 = vpack.c.b16 %v3495, %v3475
      %v3796 = vpack.c.b16 %v3496, %v3476
      %v3797 = vpack.c.b16 %v3497, %v3477
      %v3798 = vpack.c.b16 %v3498, %v3478
      %v3799 = vpack.c.b16 %v3499, %v3479
      %v3800 = vpack.c.b16 %v3500, %v3480
      %v3801 = vpack.c.b16 %v3501, %v3481
      %v3802 = vpack.c.b16 %v3502, %v3482
      %v3803 = vpack.c.b16 %v3503, %v3483
      %v3804 = vpack.c.b16 %v3504, %v3484
      %v3805 = vpack.c.b16 %v3505, %v3485
      %v3806 = vpack.c.b16 %v3506, %v3486
      %v3807 = vpack.c.b16 %v3507, %v3487
      %v3808 = vpack.c.b16 %v3508, %v3488
      %v3809 = vpack.c.b16 %v3509, %v3489
      %v3810 = vpack.c.b16 %v3510, %v3490
      %v3811 = vpack.c.b16 %v3511, %v3491
      %v3812 = vpack.c.b16 %v3512, %v3492
      %v3813 = vpack.c.b16 %v3533, %v3513
      %v3814 = vpack.c.b16 %v3534, %v3514
      %v3815 = vpack.c.b16 %v3535, %v3515
      %v3816 = vpack.c.b16 %v3536, %v3516
      %v3817 = vpack.c.b16 %v3537, %v3517
      %v3818 = vpack.c.b16 %v3538, %v3518
      %v3819 = vpack.c.b16 %v3539, %v3519
      %v3820 = vpack.c.b16 %v3540, %v3520
      %v3821 = vpack.c.b16 %v3541, %v3521
      %v3822 = vpack.c.b16 %v3542, %v3522
      %v3823 = vpack.c.b16 %v3543, %v3523
      %v3824 = vpack.c.b16 %v3544, %v3524
      %v3825 = vpack.c.b16 %v3545, %v3525
      %v3826 = vpack.c.b16 %v3546, %v3526
      %v3827 = vpack.c.b16 %v3547, %v3527
      %v3828 = vpack.c.b16 %v3548, %v3528
      %v3829 = vpack.c.b16 %v3549, %v3529
      %v3830 = vpack.c.b16 %v3550, %v3530
      %v3831 = vpack.c.b16 %v3551, %v3531
      %v3832 = vpack.c.b16 %v3552, %v3532
      %v3833 = vpack.c.b16 %v3573, %v3553
      %v3834 = vpack.c.b16 %v3574, %v3554
      %v3835 = vpack.c.b16 %v3575, %v3555
      %v3836 = vpack.c.b16 %v3576, %v3556
      %v3837 = vpack.c.b16 %v3577, %v3557
      %v3838 = vpack.c.b16 %v3578, %v3558
      %v3839 = vpack.c.b16 %v3579, %v3559
      %v3840 = vpack.c.b16 %v3580, %v3560
      %v3841 = vpack.c.b16 %v3581, %v3561
      %v3842 = vpack.c.b16 %v3582, %v3562
      %v3843 = vpack.c.b16 %v3583, %v3563
      %v3844 = vpack.c.b16 %v3584, %v3564
      %v3845 = vpack.c.b16 %v3585, %v3565
      %v3846 = vpack.c.b16 %v3586, %v3566
      %v3847 = vpack.c.b16 %v3587, %v3567
      %v3848 = vpack.c.b16 %v3588, %v3568
      %v3849 = vpack.c.b16 %v3589, %v3569
      %v3850 = vpack.c.b16 %v3590, %v3570
      %v3851 = vpack.c.b16 %v3591, %v3571
      %v3852 = vpack.c.b16 %v3592, %v3572
      %v3853 = vpack.c.b16 %v3613, %v3593
      %v3854 = vpack.c.b16 %v3614, %v3594
      %v3855 = vpack.c.b16 %v3615, %v3595
      %v3856 = vpack.c.b16 %v3616, %v3596
      %v3857 = vpack.c.b16 %v3617, %v3597
      %v3858 = vpack.c.b16 %v3618, %v3598
      %v3859 = vpack.c.b16 %v3619, %v3599
      %v3860 = vpack.c.b16 %v3620, %v3600
      %v3861 = vpack.c.b16 %v3621, %v3601
      %v3862 = vpack.c.b16 %v3622, %v3602
      %v3863 = vpack.c.b16 %v3623, %v3603
      %v3864 = vpack.c.b16 %v3624, %v3604
      %v3865 = vpack.c.b16 %v3625, %v3605
      %v3866 = vpack.c.b16 %v3626, %v3606
      %v3867 = vpack.c.b16 %v3627, %v3607
      %v3868 = vpack.c.b16 %v3628, %v3608
      %v3869 = vpack.c.b16 %v3629, %v3609
      %v3870 = vpack.c.b16 %v3630, %v3610
      %v3871 = vpack.c.b16 %v3631, %v3611
      %v3872 = vpack.c.b16 %v3632, %v3612
      %v3873 = vpack.c.b16 %v3653, %v3633
      %v3874 = vpack.c.b16 %v3654, %v3634
      %v3875 = vpack.c.b16 %v3655, %v3635
      %v3876 = vpack.c.b16 %v3656, %v3636
      %v3877 = vpack.c.b16 %v3657, %v3637
      %v3878 = vpack.c.b16 %v3658, %v3638
      %v3879 = vpack.c.b16 %v3659, %v3639
      %v3880 = vpack.c.b16 %v3660, %v3640
      %v3881 = vpack.c.b16 %v3661, %v3641
      %v3882 = vpack.c.b16 %v3662, %v3642
      %v3883 = vpack.c.b16 %v3663, %v3643
      %v3884 = vpack.c.b16 %v3664, %v3644
      %v3885 = vpack.c.b16 %v3665, %v3645
      %v3886 = vpack.c.b16 %v3666, %v3646
      %v3887 = vpack.c.b16 %v3667, %v3647
      %v3888 = vpack.c.b16 %v3668, %v3648
      %v3889 = vpack.c.b16 %v3669, %v3649
      %v3890 = vpack.c.b16 %v3670, %v3650
      %v3891 = vpack.c.b16 %v3671, %v3651
      %v3892 = vpack.c.b16 %v3672, %v3652
      %v3893 = vpack.c.b16 %v3693, %v3673
      %v3894 = vpack.c.b16 %v3694, %v3674
      %v3895 = vpack.c.b16 %v3695, %v3675
      %v3896 = vpack.c.b16 %v3696, %v3676
      %v3897 = vpack.c.b16 %v3697, %v3677
      %v3898 = vpack.c.b16 %v3698, %v3678
      %v3899 = vpack.c.b16 %v3699, %v3679
      %v3900 = vpack.c.b16 %v3700, %v3680
      %v3901 = vpack.c.b16 %v3701, %v3681
      %v3902 = vpack.c.b16 %v3702, %v3682
      %v3903 = vpack.c.b16 %v3703, %v3683
      %v3904 = vpack.c.b16 %v3704, %v3684
      %v3905 = vpack.c.b16 %v3705, %v3685
      %v3906 = vpack.c.b16 %v3706, %v3686
      %v3907 = vpack.c.b16 %v3707, %v3687
      %v3908 = vpack.c.b16 %v3708, %v3688
      %v3909 = vpack.c.b16 %v3709, %v3689
      %v3910 = vpack.c.b16 %v3710, %v3690
      %v3911 = vpack.c.b16 %v3711, %v3691
      %v3912 = vpack.c.b16 %v3712, %v3692
      %v3913 = vpack.c.b16 %v3733, %v3713
      %v3914 = vpack.c.b16 %v3734, %v3714
      %v3915 = vpack.c.b16 %v3735, %v3715
      %v3916 = vpack.c.b16 %v3736, %v3716
      %v3917 = vpack.c.b16 %v3737, %v3717
      %v3918 = vpack.c.b16 %v3738, %v3718
      %v3919 = vpack.c.b16 %v3739, %v3719
      %v3920 = vpack.c.b16 %v3740, %v3720
      %v3921 = vpack.c.b16 %v3741, %v3721
      %v3922 = vpack.c.b16 %v3742, %v3722
      %v3923 = vpack.c.b16 %v3743, %v3723
      %v3924 = vpack.c.b16 %v3744, %v3724
      %v3925 = vpack.c.b16 %v3745, %v3725
      %v3926 = vpack.c.b16 %v3746, %v3726
      %v3927 = vpack.c.b16 %v3747, %v3727
      %v3928 = vpack.c.b16 %v3748, %v3728
      %v3929 = vpack.c.b16 %v3749, %v3729
      %v3930 = vpack.c.b16 %v3750, %v3730
      %v3931 = vpack.c.b16 %v3751, %v3731
      %v3932 = vpack.c.b16 %v3752, %v3732
      %v3933 = vpack.c.b16 %v3773, %v3753
      %v3934 = vpack.c.b16 %v3774, %v3754
      %v3935 = vpack.c.b16 %v3775, %v3755
      %v3936 = vpack.c.b16 %v3776, %v3756
      %v3937 = vpack.c.b16 %v3777, %v3757
      %v3938 = vpack.c.b16 %v3778, %v3758
      %v3939 = vpack.c.b16 %v3779, %v3759
      %v3940 = vpack.c.b16 %v3780, %v3760
      %v3941 = vpack.c.b16 %v3781, %v3761
      %v3942 = vpack.c.b16 %v3782, %v3762
      %v3943 = vpack.c.b16 %v3783, %v3763
      %v3944 = vpack.c.b16 %v3784, %v3764
      %v3945 = vpack.c.b16 %v3785, %v3765
      %v3946 = vpack.c.b16 %v3786, %v3766
      %v3947 = vpack.c.b16 %v3787, %v3767
      %v3948 = vpack.c.b16 %v3788, %v3768
      %v3949 = vpack.c.b16 %v3789, %v3769
      %v3950 = vpack.c.b16 %v3790, %v3770
      %v3951 = vpack.c.b16 %v3791, %v3771
      %v3952 = vpack.c.b16 %v3792, %v3772
      %4113 = vmatprep.subr.bf16.mxu0 %v3794
      %4114 = vmatpush1.bf16.msra.mxu0 %v3793
      %4115 = vmatprep.subr.bf16.mxu0 %v3814
      %4116 = vmatpush1.bf16.msra.mxu0 %v3813
      %4117 = vmatprep.subr.bf16.mxu0 %v3834
      %4118 = vmatpush1.bf16.msra.mxu0 %v3833
      %4119 = vmatprep.subr.bf16.mxu0 %v3854
      %4120 = vmatpush1.bf16.msra.mxu0 %v3853
      %4121 = vmatprep.subr.bf16.mxu0 %v3874
      %4122 = vmatpush1.bf16.msra.mxu0 %v3873
      %4123 = vmatprep.subr.bf16.mxu0 %v3894
      %4124 = vmatpush1.bf16.msra.mxu0 %v3893
      %4125 = vmatprep.subr.bf16.mxu0 %v3914
      %4126 = vmatpush1.bf16.msra.mxu0 %v3913
      %4127 = vmatprep.subr.bf16.mxu0 %v3934
      %4128 = vmatpush1.bf16.msra.mxu0 %v3933
      %4129 = vmatprep.subr.bf16.mxu0 0
      %4130 = vmatpush1.bf16.msra.mxu0 0
      %4131 = vmatprep.subr.bf16.mxu0 0
      %4132 = vmatpush1.bf16.msra.mxu0 0
      %4133 = vmatprep.subr.bf16.mxu0 0
      %4134 = vmatpush1.bf16.msra.mxu0 0
      %4135 = vmatprep.subr.bf16.mxu0 0
      %4136 = vmatpush1.bf16.msra.mxu0 0
      %4137 = vmatprep.subr.bf16.mxu0 0
      %4138 = vmatpush1.bf16.msra.mxu0 0
      %4139 = vmatprep.subr.bf16.mxu0 0
      %4140 = vmatpush1.bf16.msra.mxu0 0
      %4141 = vmatprep.subr.bf16.mxu0 0
      %4142 = vmatpush1.bf16.msra.mxu0 0
      %4143 = vmatprep.subr.bf16.mxu0 0
      %4144 = vmatpush1.bf16.msra.mxu0 0
      %4145 = vmatprep.mubr.bf16.mxu0 0
      %4146 = vmatmul.mubr.bf16.gmra.mrb[0].mxu0 %v3039
      %v4147 = vpop.f32.mrb[0].mxu0
      %v4148 = vadd.f32 %v3216, %v4147
      %v4149 = vpop.f32.mrb[0].mxu0
      %v4150 = vadd.f32 %v3220, %v4149
      %v4151 = vpop.f32.mrb[0].mxu0
      %v4152 = vadd.f32 %v3216, %v4151
      %v4153 = vpop.f32.mrb[0].mxu0
      %v4154 = vadd.f32 %v3220, %v4153
      %4155 = vmatprep.mubr.bf16.mxu0 0
      %4156 = vmatmul.mubr.bf16.gmra.mrb[0].mxu0 %v3040
      %v4157 = vpop.f32.mrb[0].mxu0
      %v4158 = vadd.f32 %v3216, %v4157
      %v4159 = vpop.f32.mrb[0].mxu0
      %v4160 = vadd.f32 %v3220, %v4159
      %v4161 = vpop.f32.mrb[0].mxu0
      %v4162 = vadd.f32 %v3216, %v4161
      %v4163 = vpop.f32.mrb[0].mxu0
      %v4164 = vadd.f32 %v3220, %v4163
      %4165 = vmatprep.mubr.bf16.mxu0 0
      %4166 = vmatmul.mubr.bf16.gmra.mrb[0].mxu0 %v3041
      %v4167 = vpop.f32.mrb[0].mxu0
      %v4168 = vadd.f32 %v3216, %v4167
      %v4169 = vpop.f32.mrb[0].mxu0
      %v4170 = vadd.f32 %v3220, %v4169
      %v4171 = vpop.f32.mrb[0].mxu0
      %v4172 = vadd.f32 %v3216, %v4171
      %v4173 = vpop.f32.mrb[0].mxu0
      %v4174 = vadd.f32 %v3220, %v4173
      %4175 = vmatprep.mubr.bf16.mxu0 0
      %4176 = vmatmul.mubr.bf16.gmra.mrb[0].mxu0 %v3042
      %v4177 = vpop.f32.mrb[0].mxu0
      %v4178 = vadd.f32 %v3216, %v4177
      %v4179 = vpop.f32.mrb[0].mxu0
      %v4180 = vadd.f32 %v3220, %v4179
      %v4181 = vpop.f32.mrb[0].mxu0
      %v4182 = vadd.f32 %v3216, %v4181
      %v4183 = vpop.f32.mrb[0].mxu0
      %v4184 = vadd.f32 %v3220, %v4183
      %4185 = vmatprep.mubr.bf16.mxu0 0
      %4186 = vmatmul.mubr.bf16.gmra.mrb[0].mxu0 %v3043
      %v4187 = vpop.f32.mrb[0].mxu0
      %v4188 = vadd.f32 %v3216, %v4187
      %v4189 = vpop.f32.mrb[0].mxu0
      %v4190 = vadd.f32 %v3220, %v4189
      %v4191 = vpop.f32.mrb[0].mxu0
      %v4192 = vadd.f32 %v3216, %v4191
      %v4193 = vpop.f32.mrb[0].mxu0
      %v4194 = vadd.f32 %v3220, %v4193
      %4195 = vmatprep.mubr.bf16.mxu0 0
      %4196 = vmatmul.mubr.bf16.gmra.mrb[0].mxu0 %v3044
      %v4197 = vpop.f32.mrb[0].mxu0
      %v4198 = vadd.f32 %v3216, %v4197
      %v4199 = vpop.f32.mrb[0].mxu0
      %v4200 = vadd.f32 %v3220, %v4199
      %v4201 = vpop.f32.mrb[0].mxu0
      %v4202 = vadd.f32 %v3216, %v4201
      %v4203 = vpop.f32.mrb[0].mxu0
      %v4204 = vadd.f32 %v3220, %v4203
      %4205 = vmatprep.mubr.bf16.mxu0 0
      %4206 = vmatmul.mubr.bf16.gmra.mrb[0].mxu0 %v3045
      %v4207 = vpop.f32.mrb[0].mxu0
      %v4208 = vadd.f32 %v3216, %v4207
      %v4209 = vpop.f32.mrb[0].mxu0
      %v4210 = vadd.f32 %v3220, %v4209
      %v4211 = vpop.f32.mrb[0].mxu0
      %v4212 = vadd.f32 %v3216, %v4211
      %v4213 = vpop.f32.mrb[0].mxu0
      %v4214 = vadd.f32 %v3220, %v4213
      %4215 = vmatprep.mubr.bf16.mxu0 0
      %4216 = vmatmul.mubr.bf16.gmra.mrb[0].mxu0 %v3046
      %v4217 = vpop.f32.mrb[0].mxu0
      %v4218 = vadd.f32 %v3216, %v4217
      %v4219 = vpop.f32.mrb[0].mxu0
      %v4220 = vadd.f32 %v3220, %v4219
      %v4221 = vpop.f32.mrb[0].mxu0
      %v4222 = vadd.f32 %v3216, %v4221
      %v4223 = vpop.f32.mrb[0].mxu0
      %v4224 = vadd.f32 %v3220, %v4223
      %4225 = vdwg.mxu0
      %4226 = vmatprep.subr.bf16.mxu0 %v3796
      %4227 = vmatpush1.bf16.msra.mxu0 %v3795
      %4228 = vmatprep.subr.bf16.mxu0 %v3816
      %4229 = vmatpush1.bf16.msra.mxu0 %v3815
      %4230 = vmatprep.subr.bf16.mxu0 %v3836
      %4231 = vmatpush1.bf16.msra.mxu0 %v3835
      %4232 = vmatprep.subr.bf16.mxu0 %v3856
      %4233 = vmatpush1.bf16.msra.mxu0 %v3855
      %4234 = vmatprep.subr.bf16.mxu0 %v3876
      %4235 = vmatpush1.bf16.msra.mxu0 %v3875
      %4236 = vmatprep.subr.bf16.mxu0 %v3896
      %4237 = vmatpush1.bf16.msra.mxu0 %v3895
      %4238 = vmatprep.subr.bf16.mxu0 %v3916
      %4239 = vmatpush1.bf16.msra.mxu0 %v3915
      %4240 = vmatprep.subr.bf16.mxu0 %v3936
      %4241 = vmatpush1.bf16.msra.mxu0 %v3935
      %4242 = vmatprep.subr.bf16.mxu0 0
      %4243 = vmatpush1.bf16.msra.mxu0 0
      %4244 = vmatprep.subr.bf16.mxu0 0
      %4245 = vmatpush1.bf16.msra.mxu0 0
      %4246 = vmatprep.subr.bf16.mxu0 0
      %4247 = vmatpush1.bf16.msra.mxu0 0
      %4248 = vmatprep.subr.bf16.mxu0 0
      %4249 = vmatpush1.bf16.msra.mxu0 0
      %4250 = vmatprep.subr.bf16.mxu0 0
      %4251 = vmatpush1.bf16.msra.mxu0 0
      %4252 = vmatprep.subr.bf16.mxu0 0
      %4253 = vmatpush1.bf16.msra.mxu0 0
      %4254 = vmatprep.subr.bf16.mxu0 0
      %4255 = vmatpush1.bf16.msra.mxu0 0
      %4256 = vmatprep.subr.bf16.mxu0 0
      %4257 = vmatpush1.bf16.msra.mxu0 0
      %4258 = vmatprep.mubr.bf16.mxu0 0
      %4259 = vmatmul.mubr.bf16.gmra.mrb[0].mxu0 %v3039
      %v4260 = vpop.f32.mrb[0].mxu0
      %v4261 = vadd.f32 %v3224, %v4260
      %v4262 = vpop.f32.mrb[0].mxu0
      %v4263 = vadd.f32 %v3228, %v4262
      %v4264 = vpop.f32.mrb[0].mxu0
      %v4265 = vadd.f32 %v3224, %v4264
      %v4266 = vpop.f32.mrb[0].mxu0
      %v4267 = vadd.f32 %v3228, %v4266
      %4268 = vmatprep.mubr.bf16.mxu0 0
      %4269 = vmatmul.mubr.bf16.gmra.mrb[0].mxu0 %v3040
      %v4270 = vpop.f32.mrb[0].mxu0
      %v4271 = vadd.f32 %v3224, %v4270
      %v4272 = vpop.f32.mrb[0].mxu0
      %v4273 = vadd.f32 %v3228, %v4272
      %v4274 = vpop.f32.mrb[0].mxu0
      %v4275 = vadd.f32 %v3224, %v4274
      %v4276 = vpop.f32.mrb[0].mxu0
      %v4277 = vadd.f32 %v3228, %v4276
      %4278 = vmatprep.mubr.bf16.mxu0 0
      %4279 = vmatmul.mubr.bf16.gmra.mrb[0].mxu0 %v3041
      %v4280 = vpop.f32.mrb[0].mxu0
      %v4281 = vadd.f32 %v3224, %v4280
      %v4282 = vpop.f32.mrb[0].mxu0
      %v4283 = vadd.f32 %v3228, %v4282
      %v4284 = vpop.f32.mrb[0].mxu0
      %v4285 = vadd.f32 %v3224, %v4284
      %v4286 = vpop.f32.mrb[0].mxu0
      %v4287 = vadd.f32 %v3228, %v4286
      %4288 = vmatprep.mubr.bf16.mxu0 0
      %4289 = vmatmul.mubr.bf16.gmra.mrb[0].mxu0 %v3042
      %v4290 = vpop.f32.mrb[0].mxu0
      %v4291 = vadd.f32 %v3224, %v4290
      %v4292 = vpop.f32.mrb[0].mxu0
      %v4293 = vadd.f32 %v3228, %v4292
      %v4294 = vpop.f32.mrb[0].mxu0
      %v4295 = vadd.f32 %v3224, %v4294
      %v4296 = vpop.f32.mrb[0].mxu0
      %v4297 = vadd.f32 %v3228, %v4296
      %4298 = vmatprep.mubr.bf16.mxu0 0
      %4299 = vmatmul.mubr.bf16.gmra.mrb[0].mxu0 %v3043
      %v4300 = vpop.f32.mrb[0].mxu0
      %v4301 = vadd.f32 %v3224, %v4300
      %v4302 = vpop.f32.mrb[0].mxu0
      %v4303 = vadd.f32 %v3228, %v4302
      %v4304 = vpop.f32.mrb[0].mxu0
      %v4305 = vadd.f32 %v3224, %v4304
      %v4306 = vpop.f32.mrb[0].mxu0
      %v4307 = vadd.f32 %v3228, %v4306
      %4308 = vmatprep.mubr.bf16.mxu0 0
      %4309 = vmatmul.mubr.bf16.gmra.mrb[0].mxu0 %v3044
      %v4310 = vpop.f32.mrb[0].mxu0
      %v4311 = vadd.f32 %v3224, %v4310
      %v4312 = vpop.f32.mrb[0].mxu0
      %v4313 = vadd.f32 %v3228, %v4312
      %v4314 = vpop.f32.mrb[0].mxu0
      %v4315 = vadd.f32 %v3224, %v4314
      %v4316 = vpop.f32.mrb[0].mxu0
      %v4317 = vadd.f32 %v3228, %v4316
      %4318 = vmatprep.mubr.bf16.mxu0 0
      %4319 = vmatmul.mubr.bf16.gmra.mrb[0].mxu0 %v3045
      %v4320 = vpop.f32.mrb[0].mxu0
      %v4321 = vadd.f32 %v3224, %v4320
      %v4322 = vpop.f32.mrb[0].mxu0
      %v4323 = vadd.f32 %v3228, %v4322
      %v4324 = vpop.f32.mrb[0].mxu0
      %v4325 = vadd.f32 %v3224, %v4324
      %v4326 = vpop.f32.mrb[0].mxu0
      %v4327 = vadd.f32 %v3228, %v4326
      %4328 = vmatprep.mubr.bf16.mxu0 0
      %4329 = vmatmul.mubr.bf16.gmra.mrb[0].mxu0 %v3046
      %v4330 = vpop.f32.mrb[0].mxu0
      %v4331 = vadd.f32 %v3224, %v4330
      %v4332 = vpop.f32.mrb[0].mxu0
      %v4333 = vadd.f32 %v3228, %v4332
      %v4334 = vpop.f32.mrb[0].mxu0
      %v4335 = vadd.f32 %v3224, %v4334
      %v4336 = vpop.f32.mrb[0].mxu0
      %v4337 = vadd.f32 %v3228, %v4336
      %4338 = vdwg.mxu0
      %4339 = vmatprep.subr.bf16.mxu0 %v3798
      %4340 = vmatpush1.bf16.msra.mxu0 %v3797
      %4341 = vmatprep.subr.bf16.mxu0 %v3818
      %4342 = vmatpush1.bf16.msra.mxu0 %v3817
      %4343 = vmatprep.subr.bf16.mxu0 %v3838
      %4344 = vmatpush1.bf16.msra.mxu0 %v3837
      %4345 = vmatprep.subr.bf16.mxu0 %v3858
      %4346 = vmatpush1.bf16.msra.mxu0 %v3857
      %4347 = vmatprep.subr.bf16.mxu0 %v3878
      %4348 = vmatpush1.bf16.msra.mxu0 %v3877
      %4349 = vmatprep.subr.bf16.mxu0 %v3898
      %4350 = vmatpush1.bf16.msra.mxu0 %v3897
      %4351 = vmatprep.subr.bf16.mxu0 %v3918
      %4352 = vmatpush1.bf16.msra.mxu0 %v3917
      %4353 = vmatprep.subr.bf16.mxu0 %v3938
      %4354 = vmatpush1.bf16.msra.mxu0 %v3937
      %4355 = vmatprep.subr.bf16.mxu0 0
      %4356 = vmatpush1.bf16.msra.mxu0 0
      %4357 = vmatprep.subr.bf16.mxu0 0
      %4358 = vmatpush1.bf16.msra.mxu0 0
      %4359 = vmatprep.subr.bf16.mxu0 0
      %4360 = vmatpush1.bf16.msra.mxu0 0
      %4361 = vmatprep.subr.bf16.mxu0 0
      %4362 = vmatpush1.bf16.msra.mxu0 0
      %4363 = vmatprep.subr.bf16.mxu0 0
      %4364 = vmatpush1.bf16.msra.mxu0 0
      %4365 = vmatprep.subr.bf16.mxu0 0
      %4366 = vmatpush1.bf16.msra.mxu0 0
      %4367 = vmatprep.subr.bf16.mxu0 0
      %4368 = vmatpush1.bf16.msra.mxu0 0
      %4369 = vmatprep.subr.bf16.mxu0 0
      %4370 = vmatpush1.bf16.msra.mxu0 0
      %4371 = vmatprep.mubr.bf16.mxu0 0
      %4372 = vmatmul.mubr.bf16.gmra.mrb[0].mxu0 %v3039
      %v4373 = vpop.f32.mrb[0].mxu0
      %v4374 = vadd.f32 %v3232, %v4373
      %v4375 = vpop.f32.mrb[0].mxu0
      %v4376 = vadd.f32 %v3236, %v4375
      %v4377 = vpop.f32.mrb[0].mxu0
      %v4378 = vadd.f32 %v3232, %v4377
      %v4379 = vpop.f32.mrb[0].mxu0
      %v4380 = vadd.f32 %v3236, %v4379
      %4381 = vmatprep.mubr.bf16.mxu0 0
      %4382 = vmatmul.mubr.bf16.gmra.mrb[0].mxu0 %v3040
      %v4383 = vpop.f32.mrb[0].mxu0
      %v4384 = vadd.f32 %v3232, %v4383
      %v4385 = vpop.f32.mrb[0].mxu0
      %v4386 = vadd.f32 %v3236, %v4385
      %v4387 = vpop.f32.mrb[0].mxu0
      %v4388 = vadd.f32 %v3232, %v4387
      %v4389 = vpop.f32.mrb[0].mxu0
      %v4390 = vadd.f32 %v3236, %v4389
      %4391 = vmatprep.mubr.bf16.mxu0 0
      %4392 = vmatmul.mubr.bf16.gmra.mrb[0].mxu0 %v3041
      %v4393 = vpop.f32.mrb[0].mxu0
      %v4394 = vadd.f32 %v3232, %v4393
      %v4395 = vpop.f32.mrb[0].mxu0
      %v4396 = vadd.f32 %v3236, %v4395
      %v4397 = vpop.f32.mrb[0].mxu0
      %v4398 = vadd.f32 %v3232, %v4397
      %v4399 = vpop.f32.mrb[0].mxu0
      %v4400 = vadd.f32 %v3236, %v4399
      %4401 = vmatprep.mubr.bf16.mxu0 0
      %4402 = vmatmul.mubr.bf16.gmra.mrb[0].mxu0 %v3042
      %v4403 = vpop.f32.mrb[0].mxu0
      %v4404 = vadd.f32 %v3232, %v4403
      %v4405 = vpop.f32.mrb[0].mxu0
      %v4406 = vadd.f32 %v3236, %v4405
      %v4407 = vpop.f32.mrb[0].mxu0
      %v4408 = vadd.f32 %v3232, %v4407
      %v4409 = vpop.f32.mrb[0].mxu0
      %v4410 = vadd.f32 %v3236, %v4409
      %4411 = vmatprep.mubr.bf16.mxu0 0
      %4412 = vmatmul.mubr.bf16.gmra.mrb[0].mxu0 %v3043
      %v4413 = vpop.f32.mrb[0].mxu0
      %v4414 = vadd.f32 %v3232, %v4413
      %v4415 = vpop.f32.mrb[0].mxu0
      %v4416 = vadd.f32 %v3236, %v4415
      %v4417 = vpop.f32.mrb[0].mxu0
      %v4418 = vadd.f32 %v3232, %v4417
      %v4419 = vpop.f32.mrb[0].mxu0
      %v4420 = vadd.f32 %v3236, %v4419
      %4421 = vmatprep.mubr.bf16.mxu0 0
      %4422 = vmatmul.mubr.bf16.gmra.mrb[0].mxu0 %v3044
      %v4423 = vpop.f32.mrb[0].mxu0
      %v4424 = vadd.f32 %v3232, %v4423
      %v4425 = vpop.f32.mrb[0].mxu0
      %v4426 = vadd.f32 %v3236, %v4425
      %v4427 = vpop.f32.mrb[0].mxu0
      %v4428 = vadd.f32 %v3232, %v4427
      %v4429 = vpop.f32.mrb[0].mxu0
      %v4430 = vadd.f32 %v3236, %v4429
      %4431 = vmatprep.mubr.bf16.mxu0 0
      %4432 = vmatmul.mubr.bf16.gmra.mrb[0].mxu0 %v3045
      %v4433 = vpop.f32.mrb[0].mxu0
      %v4434 = vadd.f32 %v3232, %v4433
      %v4435 = vpop.f32.mrb[0].mxu0
      %v4436 = vadd.f32 %v3236, %v4435
      %v4437 = vpop.f32.mrb[0].mxu0
      %v4438 = vadd.f32 %v3232, %v4437
      %v4439 = vpop.f32.mrb[0].mxu0
      %v4440 = vadd.f32 %v3236, %v4439
      %4441 = vmatprep.mubr.bf16.mxu0 0
      %4442 = vmatmul.mubr.bf16.gmra.mrb[0].mxu0 %v3046
      %v4443 = vpop.f32.mrb[0].mxu0
      %v4444 = vadd.f32 %v3232, %v4443
      %v4445 = vpop.f32.mrb[0].mxu0
      %v4446 = vadd.f32 %v3236, %v4445
      %v4447 = vpop.f32.mrb[0].mxu0
      %v4448 = vadd.f32 %v3232, %v4447
      %v4449 = vpop.f32.mrb[0].mxu0
      %v4450 = vadd.f32 %v3236, %v4449
      %4451 = vdwg.mxu0
      %4452 = vmatprep.subr.bf16.mxu0 %v3800
      %4453 = vmatpush1.bf16.msra.mxu0 %v3799
      %4454 = vmatprep.subr.bf16.mxu0 %v3820
      %4455 = vmatpush1.bf16.msra.mxu0 %v3819
      %4456 = vmatprep.subr.bf16.mxu0 %v3840
      %4457 = vmatpush1.bf16.msra.mxu0 %v3839
      %4458 = vmatprep.subr.bf16.mxu0 %v3860
      %4459 = vmatpush1.bf16.msra.mxu0 %v3859
      %4460 = vmatprep.subr.bf16.mxu0 %v3880
      %4461 = vmatpush1.bf16.msra.mxu0 %v3879
      %4462 = vmatprep.subr.bf16.mxu0 %v3900
      %4463 = vmatpush1.bf16.msra.mxu0 %v3899
      %4464 = vmatprep.subr.bf16.mxu0 %v3920
      %4465 = vmatpush1.bf16.msra.mxu0 %v3919
      %4466 = vmatprep.subr.bf16.mxu0 %v3940
      %4467 = vmatpush1.bf16.msra.mxu0 %v3939
      %4468 = vmatprep.subr.bf16.mxu0 0
      %4469 = vmatpush1.bf16.msra.mxu0 0
      %4470 = vmatprep.subr.bf16.mxu0 0
      %4471 = vmatpush1.bf16.msra.mxu0 0
      %4472 = vmatprep.subr.bf16.mxu0 0
      %4473 = vmatpush1.bf16.msra.mxu0 0
      %4474 = vmatprep.subr.bf16.mxu0 0
      %4475 = vmatpush1.bf16.msra.mxu0 0
      %4476 = vmatprep.subr.bf16.mxu0 0
      %4477 = vmatpush1.bf16.msra.mxu0 0
      %4478 = vmatprep.subr.bf16.mxu0 0
      %4479 = vmatpush1.bf16.msra.mxu0 0
      %4480 = vmatprep.subr.bf16.mxu0 0
      %4481 = vmatpush1.bf16.msra.mxu0 0
      %4482 = vmatprep.subr.bf16.mxu0 0
      %4483 = vmatpush1.bf16.msra.mxu0 0
      %4484 = vmatprep.mubr.bf16.mxu0 0
      %4485 = vmatmul.mubr.bf16.gmra.mrb[0].mxu0 %v3039
      %v4486 = vpop.f32.mrb[0].mxu0
      %v4487 = vadd.f32 %v3240, %v4486
      %v4488 = vpop.f32.mrb[0].mxu0
      %v4489 = vadd.f32 %v3244, %v4488
      %v4490 = vpop.f32.mrb[0].mxu0
      %v4491 = vadd.f32 %v3240, %v4490
      %v4492 = vpop.f32.mrb[0].mxu0
      %v4493 = vadd.f32 %v3244, %v4492
      %4494 = vmatprep.mubr.bf16.mxu0 0
      %4495 = vmatmul.mubr.bf16.gmra.mrb[0].mxu0 %v3040
      %v4496 = vpop.f32.mrb[0].mxu0
      %v4497 = vadd.f32 %v3240, %v4496
      %v4498 = vpop.f32.mrb[0].mxu0
      %v4499 = vadd.f32 %v3244, %v4498
      %v4500 = vpop.f32.mrb[0].mxu0
      %v4501 = vadd.f32 %v3240, %v4500
      %v4502 = vpop.f32.mrb[0].mxu0
      %v4503 = vadd.f32 %v3244, %v4502
      %4504 = vmatprep.mubr.bf16.mxu0 0
      %4505 = vmatmul.mubr.bf16.gmra.mrb[0].mxu0 %v3041
      %v4506 = vpop.f32.mrb[0].mxu0
      %v4507 = vadd.f32 %v3240, %v4506
      %v4508 = vpop.f32.mrb[0].mxu0
      %v4509 = vadd.f32 %v3244, %v4508
      %v4510 = vpop.f32.mrb[0].mxu0
      %v4511 = vadd.f32 %v3240, %v4510
      %v4512 = vpop.f32.mrb[0].mxu0
      %v4513 = vadd.f32 %v3244, %v4512
      %4514 = vmatprep.mubr.bf16.mxu0 0
      %4515 = vmatmul.mubr.bf16.gmra.mrb[0].mxu0 %v3042
      %v4516 = vpop.f32.mrb[0].mxu0
      %v4517 = vadd.f32 %v3240, %v4516
      %v4518 = vpop.f32.mrb[0].mxu0
      %v4519 = vadd.f32 %v3244, %v4518
      %v4520 = vpop.f32.mrb[0].mxu0
      %v4521 = vadd.f32 %v3240, %v4520
      %v4522 = vpop.f32.mrb[0].mxu0
      %v4523 = vadd.f32 %v3244, %v4522
      %4524 = vmatprep.mubr.bf16.mxu0 0
      %4525 = vmatmul.mubr.bf16.gmra.mrb[0].mxu0 %v3043
      %v4526 = vpop.f32.mrb[0].mxu0
      %v4527 = vadd.f32 %v3240, %v4526
      %v4528 = vpop.f32.mrb[0].mxu0
      %v4529 = vadd.f32 %v3244, %v4528
      %v4530 = vpop.f32.mrb[0].mxu0
      %v4531 = vadd.f32 %v3240, %v4530
      %v4532 = vpop.f32.mrb[0].mxu0
      %v4533 = vadd.f32 %v3244, %v4532
      %4534 = vmatprep.mubr.bf16.mxu0 0
      %4535 = vmatmul.mubr.bf16.gmra.mrb[0].mxu0 %v3044
      %v4536 = vpop.f32.mrb[0].mxu0
      %v4537 = vadd.f32 %v3240, %v4536
      %v4538 = vpop.f32.mrb[0].mxu0
      %v4539 = vadd.f32 %v3244, %v4538
      %v4540 = vpop.f32.mrb[0].mxu0
      %v4541 = vadd.f32 %v3240, %v4540
      %v4542 = vpop.f32.mrb[0].mxu0
      %v4543 = vadd.f32 %v3244, %v4542
      %4544 = vmatprep.mubr.bf16.mxu0 0
      %4545 = vmatmul.mubr.bf16.gmra.mrb[0].mxu0 %v3045
      %v4546 = vpop.f32.mrb[0].mxu0
      %v4547 = vadd.f32 %v3240, %v4546
      %v4548 = vpop.f32.mrb[0].mxu0
      %v4549 = vadd.f32 %v3244, %v4548
      %v4550 = vpop.f32.mrb[0].mxu0
      %v4551 = vadd.f32 %v3240, %v4550
      %v4552 = vpop.f32.mrb[0].mxu0
      %v4553 = vadd.f32 %v3244, %v4552
      %4554 = vmatprep.mubr.bf16.mxu0 0
      %4555 = vmatmul.mubr.bf16.gmra.mrb[0].mxu0 %v3046
      %v4556 = vpop.f32.mrb[0].mxu0
      %v4557 = vadd.f32 %v3240, %v4556
      %v4558 = vpop.f32.mrb[0].mxu0
      %v4559 = vadd.f32 %v3244, %v4558
      %v4560 = vpop.f32.mrb[0].mxu0
      %v4561 = vadd.f32 %v3240, %v4560
      %v4562 = vpop.f32.mrb[0].mxu0
      %v4563 = vadd.f32 %v3244, %v4562
      %4564 = vdwg.mxu0
      %4565 = vmatprep.subr.bf16.mxu0 %v3802
      %4566 = vmatpush1.bf16.msra.mxu0 %v3801
      %4567 = vmatprep.subr.bf16.mxu0 %v3822
      %4568 = vmatpush1.bf16.msra.mxu0 %v3821
      %4569 = vmatprep.subr.bf16.mxu0 %v3842
      %4570 = vmatpush1.bf16.msra.mxu0 %v3841
      %4571 = vmatprep.subr.bf16.mxu0 %v3862
      %4572 = vmatpush1.bf16.msra.mxu0 %v3861
      %4573 = vmatprep.subr.bf16.mxu0 %v3882
      %4574 = vmatpush1.bf16.msra.mxu0 %v3881
      %4575 = vmatprep.subr.bf16.mxu0 %v3902
      %4576 = vmatpush1.bf16.msra.mxu0 %v3901
      %4577 = vmatprep.subr.bf16.mxu0 %v3922
      %4578 = vmatpush1.bf16.msra.mxu0 %v3921
      %4579 = vmatprep.subr.bf16.mxu0 %v3942
      %4580 = vmatpush1.bf16.msra.mxu0 %v3941
      %4581 = vmatprep.subr.bf16.mxu0 0
      %4582 = vmatpush1.bf16.msra.mxu0 0
      %4583 = vmatprep.subr.bf16.mxu0 0
      %4584 = vmatpush1.bf16.msra.mxu0 0
      %4585 = vmatprep.subr.bf16.mxu0 0
      %4586 = vmatpush1.bf16.msra.mxu0 0
      %4587 = vmatprep.subr.bf16.mxu0 0
      %4588 = vmatpush1.bf16.msra.mxu0 0
      %4589 = vmatprep.subr.bf16.mxu0 0
      %4590 = vmatpush1.bf16.msra.mxu0 0
      %4591 = vmatprep.subr.bf16.mxu0 0
      %4592 = vmatpush1.bf16.msra.mxu0 0
      %4593 = vmatprep.subr.bf16.mxu0 0
      %4594 = vmatpush1.bf16.msra.mxu0 0
      %4595 = vmatprep.subr.bf16.mxu0 0
      %4596 = vmatpush1.bf16.msra.mxu0 0
      %4597 = vmatprep.mubr.bf16.mxu0 0
      %4598 = vmatmul.mubr.bf16.gmra.mrb[0].mxu0 %v3039
      %v4599 = vpop.f32.mrb[0].mxu0
      %v4600 = vadd.f32 %v3248, %v4599
      %v4601 = vpop.f32.mrb[0].mxu0
      %v4602 = vadd.f32 %v3252, %v4601
      %v4603 = vpop.f32.mrb[0].mxu0
      %v4604 = vadd.f32 %v3248, %v4603
      %v4605 = vpop.f32.mrb[0].mxu0
      %v4606 = vadd.f32 %v3252, %v4605
      %4607 = vmatprep.mubr.bf16.mxu0 0
      %4608 = vmatmul.mubr.bf16.gmra.mrb[0].mxu0 %v3040
      %v4609 = vpop.f32.mrb[0].mxu0
      %v4610 = vadd.f32 %v3248, %v4609
      %v4611 = vpop.f32.mrb[0].mxu0
      %v4612 = vadd.f32 %v3252, %v4611
      %v4613 = vpop.f32.mrb[0].mxu0
      %v4614 = vadd.f32 %v3248, %v4613
      %v4615 = vpop.f32.mrb[0].mxu0
      %v4616 = vadd.f32 %v3252, %v4615
      %4617 = vmatprep.mubr.bf16.mxu0 0
      %4618 = vmatmul.mubr.bf16.gmra.mrb[0].mxu0 %v3041
      %v4619 = vpop.f32.mrb[0].mxu0
      %v4620 = vadd.f32 %v3248, %v4619
      %v4621 = vpop.f32.mrb[0].mxu0
      %v4622 = vadd.f32 %v3252, %v4621
      %v4623 = vpop.f32.mrb[0].mxu0
      %v4624 = vadd.f32 %v3248, %v4623
      %v4625 = vpop.f32.mrb[0].mxu0
      %v4626 = vadd.f32 %v3252, %v4625
      %4627 = vmatprep.mubr.bf16.mxu0 0
      %4628 = vmatmul.mubr.bf16.gmra.mrb[0].mxu0 %v3042
      %v4629 = vpop.f32.mrb[0].mxu0
      %v4630 = vadd.f32 %v3248, %v4629
      %v4631 = vpop.f32.mrb[0].mxu0
      %v4632 = vadd.f32 %v3252, %v4631
      %v4633 = vpop.f32.mrb[0].mxu0
      %v4634 = vadd.f32 %v3248, %v4633
      %v4635 = vpop.f32.mrb[0].mxu0
      %v4636 = vadd.f32 %v3252, %v4635
      %4637 = vmatprep.mubr.bf16.mxu0 0
      %4638 = vmatmul.mubr.bf16.gmra.mrb[0].mxu0 %v3043
      %v4639 = vpop.f32.mrb[0].mxu0
      %v4640 = vadd.f32 %v3248, %v4639
      %v4641 = vpop.f32.mrb[0].mxu0
      %v4642 = vadd.f32 %v3252, %v4641
      %v4643 = vpop.f32.mrb[0].mxu0
      %v4644 = vadd.f32 %v3248, %v4643
      %v4645 = vpop.f32.mrb[0].mxu0
      %v4646 = vadd.f32 %v3252, %v4645
      %4647 = vmatprep.mubr.bf16.mxu0 0
      %4648 = vmatmul.mubr.bf16.gmra.mrb[0].mxu0 %v3044
      %v4649 = vpop.f32.mrb[0].mxu0
      %v4650 = vadd.f32 %v3248, %v4649
      %v4651 = vpop.f32.mrb[0].mxu0
      %v4652 = vadd.f32 %v3252, %v4651
      %v4653 = vpop.f32.mrb[0].mxu0
      %v4654 = vadd.f32 %v3248, %v4653
      %v4655 = vpop.f32.mrb[0].mxu0
      %v4656 = vadd.f32 %v3252, %v4655
      %4657 = vmatprep.mubr.bf16.mxu0 0
      %4658 = vmatmul.mubr.bf16.gmra.mrb[0].mxu0 %v3045
      %v4659 = vpop.f32.mrb[0].mxu0
      %v4660 = vadd.f32 %v3248, %v4659
      %v4661 = vpop.f32.mrb[0].mxu0
      %v4662 = vadd.f32 %v3252, %v4661
      %v4663 = vpop.f32.mrb[0].mxu0
      %v4664 = vadd.f32 %v3248, %v4663
      %v4665 = vpop.f32.mrb[0].mxu0
      %v4666 = vadd.f32 %v3252, %v4665
      %4667 = vmatprep.mubr.bf16.mxu0 0
      %4668 = vmatmul.mubr.bf16.gmra.mrb[0].mxu0 %v3046
      %v4669 = vpop.f32.mrb[0].mxu0
      %v4670 = vadd.f32 %v3248, %v4669
      %v4671 = vpop.f32.mrb[0].mxu0
      %v4672 = vadd.f32 %v3252, %v4671
      %v4673 = vpop.f32.mrb[0].mxu0
      %v4674 = vadd.f32 %v3248, %v4673
      %v4675 = vpop.f32.mrb[0].mxu0
      %v4676 = vadd.f32 %v3252, %v4675
      %4677 = vdwg.mxu0
      %4678 = vmatprep.subr.bf16.mxu0 %v3804
      %4679 = vmatpush1.bf16.msra.mxu0 %v3803
      %4680 = vmatprep.subr.bf16.mxu0 %v3824
      %4681 = vmatpush1.bf16.msra.mxu0 %v3823
      %4682 = vmatprep.subr.bf16.mxu0 %v3844
      %4683 = vmatpush1.bf16.msra.mxu0 %v3843
      %4684 = vmatprep.subr.bf16.mxu0 %v3864
      %4685 = vmatpush1.bf16.msra.mxu0 %v3863
      %4686 = vmatprep.subr.bf16.mxu0 %v3884
      %4687 = vmatpush1.bf16.msra.mxu0 %v3883
      %4688 = vmatprep.subr.bf16.mxu0 %v3904
      %4689 = vmatpush1.bf16.msra.mxu0 %v3903
      %4690 = vmatprep.subr.bf16.mxu0 %v3924
      %4691 = vmatpush1.bf16.msra.mxu0 %v3923
      %4692 = vmatprep.subr.bf16.mxu0 %v3944
      %4693 = vmatpush1.bf16.msra.mxu0 %v3943
      %4694 = vmatprep.subr.bf16.mxu0 0
      %4695 = vmatpush1.bf16.msra.mxu0 0
      %4696 = vmatprep.subr.bf16.mxu0 0
      %4697 = vmatpush1.bf16.msra.mxu0 0
      %4698 = vmatprep.subr.bf16.mxu0 0
      %4699 = vmatpush1.bf16.msra.mxu0 0
      %4700 = vmatprep.subr.bf16.mxu0 0
      %4701 = vmatpush1.bf16.msra.mxu0 0
      %4702 = vmatprep.subr.bf16.mxu0 0
      %4703 = vmatpush1.bf16.msra.mxu0 0
      %4704 = vmatprep.subr.bf16.mxu0 0
      %4705 = vmatpush1.bf16.msra.mxu0 0
      %4706 = vmatprep.subr.bf16.mxu0 0
      %4707 = vmatpush1.bf16.msra.mxu0 0
      %4708 = vmatprep.subr.bf16.mxu0 0
      %4709 = vmatpush1.bf16.msra.mxu0 0
      %4710 = vmatprep.mubr.bf16.mxu0 0
      %4711 = vmatmul.mubr.bf16.gmra.mrb[0].mxu0 %v3039
      %v4712 = vpop.f32.mrb[0].mxu0
      %v4713 = vadd.f32 %v3256, %v4712
      %v4714 = vpop.f32.mrb[0].mxu0
      %v4715 = vadd.f32 %v3260, %v4714
      %v4716 = vpop.f32.mrb[0].mxu0
      %v4717 = vadd.f32 %v3256, %v4716
      %v4718 = vpop.f32.mrb[0].mxu0
      %v4719 = vadd.f32 %v3260, %v4718
      %4720 = vmatprep.mubr.bf16.mxu0 0
      %4721 = vmatmul.mubr.bf16.gmra.mrb[0].mxu0 %v3040
      %v4722 = vpop.f32.mrb[0].mxu0
      %v4723 = vadd.f32 %v3256, %v4722
      %v4724 = vpop.f32.mrb[0].mxu0
      %v4725 = vadd.f32 %v3260, %v4724
      %v4726 = vpop.f32.mrb[0].mxu0
      %v4727 = vadd.f32 %v3256, %v4726
      %v4728 = vpop.f32.mrb[0].mxu0
      %v4729 = vadd.f32 %v3260, %v4728
      %4730 = vmatprep.mubr.bf16.mxu0 0
      %4731 = vmatmul.mubr.bf16.gmra.mrb[0].mxu0 %v3041
      %v4732 = vpop.f32.mrb[0].mxu0
      %v4733 = vadd.f32 %v3256, %v4732
      %v4734 = vpop.f32.mrb[0].mxu0
      %v4735 = vadd.f32 %v3260, %v4734
      %v4736 = vpop.f32.mrb[0].mxu0
      %v4737 = vadd.f32 %v3256, %v4736
      %v4738 = vpop.f32.mrb[0].mxu0
      %v4739 = vadd.f32 %v3260, %v4738
      %4740 = vmatprep.mubr.bf16.mxu0 0
      %4741 = vmatmul.mubr.bf16.gmra.mrb[0].mxu0 %v3042
      %v4742 = vpop.f32.mrb[0].mxu0
      %v4743 = vadd.f32 %v3256, %v4742
      %v4744 = vpop.f32.mrb[0].mxu0
      %v4745 = vadd.f32 %v3260, %v4744
      %v4746 = vpop.f32.mrb[0].mxu0
      %v4747 = vadd.f32 %v3256, %v4746
      %v4748 = vpop.f32.mrb[0].mxu0
      %v4749 = vadd.f32 %v3260, %v4748
      %4750 = vmatprep.mubr.bf16.mxu0 0
      %4751 = vmatmul.mubr.bf16.gmra.mrb[0].mxu0 %v3043
      %v4752 = vpop.f32.mrb[0].mxu0
      %v4753 = vadd.f32 %v3256, %v4752
      %v4754 = vpop.f32.mrb[0].mxu0
      %v4755 = vadd.f32 %v3260, %v4754
      %v4756 = vpop.f32.mrb[0].mxu0
      %v4757 = vadd.f32 %v3256, %v4756
      %v4758 = vpop.f32.mrb[0].mxu0
      %v4759 = vadd.f32 %v3260, %v4758
      %4760 = vmatprep.mubr.bf16.mxu0 0
      %4761 = vmatmul.mubr.bf16.gmra.mrb[0].mxu0 %v3044
      %v4762 = vpop.f32.mrb[0].mxu0
      %v4763 = vadd.f32 %v3256, %v4762
      %v4764 = vpop.f32.mrb[0].mxu0
      %v4765 = vadd.f32 %v3260, %v4764
      %v4766 = vpop.f32.mrb[0].mxu0
      %v4767 = vadd.f32 %v3256, %v4766
      %v4768 = vpop.f32.mrb[0].mxu0
      %v4769 = vadd.f32 %v3260, %v4768
      %4770 = vmatprep.mubr.bf16.mxu0 0
      %4771 = vmatmul.mubr.bf16.gmra.mrb[0].mxu0 %v3045
      %v4772 = vpop.f32.mrb[0].mxu0
      %v4773 = vadd.f32 %v3256, %v4772
      %v4774 = vpop.f32.mrb[0].mxu0
      %v4775 = vadd.f32 %v3260, %v4774
      %v4776 = vpop.f32.mrb[0].mxu0
      %v4777 = vadd.f32 %v3256, %v4776
      %v4778 = vpop.f32.mrb[0].mxu0
      %v4779 = vadd.f32 %v3260, %v4778
      %4780 = vmatprep.mubr.bf16.mxu0 0
      %4781 = vmatmul.mubr.bf16.gmra.mrb[0].mxu0 %v3046
      %v4782 = vpop.f32.mrb[0].mxu0
      %v4783 = vadd.f32 %v3256, %v4782
      %v4784 = vpop.f32.mrb[0].mxu0
      %v4785 = vadd.f32 %v3260, %v4784
      %v4786 = vpop.f32.mrb[0].mxu0
      %v4787 = vadd.f32 %v3256, %v4786
      %v4788 = vpop.f32.mrb[0].mxu0
      %v4789 = vadd.f32 %v3260, %v4788
      %4790 = vdwg.mxu0
      %4791 = vmatprep.subr.bf16.mxu0 %v3806
      %4792 = vmatpush1.bf16.msra.mxu0 %v3805
      %4793 = vmatprep.subr.bf16.mxu0 %v3826
      %4794 = vmatpush1.bf16.msra.mxu0 %v3825
      %4795 = vmatprep.subr.bf16.mxu0 %v3846
      %4796 = vmatpush1.bf16.msra.mxu0 %v3845
      %4797 = vmatprep.subr.bf16.mxu0 %v3866
      %4798 = vmatpush1.bf16.msra.mxu0 %v3865
      %4799 = vmatprep.subr.bf16.mxu0 %v3886
      %4800 = vmatpush1.bf16.msra.mxu0 %v3885
      %4801 = vmatprep.subr.bf16.mxu0 %v3906
      %4802 = vmatpush1.bf16.msra.mxu0 %v3905
      %4803 = vmatprep.subr.bf16.mxu0 %v3926
      %4804 = vmatpush1.bf16.msra.mxu0 %v3925
      %4805 = vmatprep.subr.bf16.mxu0 %v3946
      %4806 = vmatpush1.bf16.msra.mxu0 %v3945
      %4807 = vmatprep.subr.bf16.mxu0 0
      %4808 = vmatpush1.bf16.msra.mxu0 0
      %4809 = vmatprep.subr.bf16.mxu0 0
      %4810 = vmatpush1.bf16.msra.mxu0 0
      %4811 = vmatprep.subr.bf16.mxu0 0
      %4812 = vmatpush1.bf16.msra.mxu0 0
      %4813 = vmatprep.subr.bf16.mxu0 0
      %4814 = vmatpush1.bf16.msra.mxu0 0
      %4815 = vmatprep.subr.bf16.mxu0 0
      %4816 = vmatpush1.bf16.msra.mxu0 0
      %4817 = vmatprep.subr.bf16.mxu0 0
      %4818 = vmatpush1.bf16.msra.mxu0 0
      %4819 = vmatprep.subr.bf16.mxu0 0
      %4820 = vmatpush1.bf16.msra.mxu0 0
      %4821 = vmatprep.subr.bf16.mxu0 0
      %4822 = vmatpush1.bf16.msra.mxu0 0
      %4823 = vmatprep.mubr.bf16.mxu0 0
      %4824 = vmatmul.mubr.bf16.gmra.mrb[0].mxu0 %v3039
      %v4825 = vpop.f32.mrb[0].mxu0
      %v4826 = vadd.f32 %v3264, %v4825
      %v4827 = vpop.f32.mrb[0].mxu0
      %v4828 = vadd.f32 %v3268, %v4827
      %v4829 = vpop.f32.mrb[0].mxu0
      %v4830 = vadd.f32 %v3264, %v4829
      %v4831 = vpop.f32.mrb[0].mxu0
      %v4832 = vadd.f32 %v3268, %v4831
      %4833 = vmatprep.mubr.bf16.mxu0 0
      %4834 = vmatmul.mubr.bf16.gmra.mrb[0].mxu0 %v3040
      %v4835 = vpop.f32.mrb[0].mxu0
      %v4836 = vadd.f32 %v3264, %v4835
      %v4837 = vpop.f32.mrb[0].mxu0
      %v4838 = vadd.f32 %v3268, %v4837
      %v4839 = vpop.f32.mrb[0].mxu0
      %v4840 = vadd.f32 %v3264, %v4839
      %v4841 = vpop.f32.mrb[0].mxu0
      %v4842 = vadd.f32 %v3268, %v4841
      %4843 = vmatprep.mubr.bf16.mxu0 0
      %4844 = vmatmul.mubr.bf16.gmra.mrb[0].mxu0 %v3041
      %v4845 = vpop.f32.mrb[0].mxu0
      %v4846 = vadd.f32 %v3264, %v4845
      %v4847 = vpop.f32.mrb[0].mxu0
      %v4848 = vadd.f32 %v3268, %v4847
      %v4849 = vpop.f32.mrb[0].mxu0
      %v4850 = vadd.f32 %v3264, %v4849
      %v4851 = vpop.f32.mrb[0].mxu0
      %v4852 = vadd.f32 %v3268, %v4851
      %4853 = vmatprep.mubr.bf16.mxu0 0
      %4854 = vmatmul.mubr.bf16.gmra.mrb[0].mxu0 %v3042
      %v4855 = vpop.f32.mrb[0].mxu0
      %v4856 = vadd.f32 %v3264, %v4855
      %v4857 = vpop.f32.mrb[0].mxu0
      %v4858 = vadd.f32 %v3268, %v4857
      %v4859 = vpop.f32.mrb[0].mxu0
      %v4860 = vadd.f32 %v3264, %v4859
      %v4861 = vpop.f32.mrb[0].mxu0
      %v4862 = vadd.f32 %v3268, %v4861
      %4863 = vmatprep.mubr.bf16.mxu0 0
      %4864 = vmatmul.mubr.bf16.gmra.mrb[0].mxu0 %v3043
      %v4865 = vpop.f32.mrb[0].mxu0
      %v4866 = vadd.f32 %v3264, %v4865
      %v4867 = vpop.f32.mrb[0].mxu0
      %v4868 = vadd.f32 %v3268, %v4867
      %v4869 = vpop.f32.mrb[0].mxu0
      %v4870 = vadd.f32 %v3264, %v4869
      %v4871 = vpop.f32.mrb[0].mxu0
      %v4872 = vadd.f32 %v3268, %v4871
      %4873 = vmatprep.mubr.bf16.mxu0 0
      %4874 = vmatmul.mubr.bf16.gmra.mrb[0].mxu0 %v3044
      %v4875 = vpop.f32.mrb[0].mxu0
      %v4876 = vadd.f32 %v3264, %v4875
      %v4877 = vpop.f32.mrb[0].mxu0
      %v4878 = vadd.f32 %v3268, %v4877
      %v4879 = vpop.f32.mrb[0].mxu0
      %v4880 = vadd.f32 %v3264, %v4879
      %v4881 = vpop.f32.mrb[0].mxu0
      %v4882 = vadd.f32 %v3268, %v4881
      %4883 = vmatprep.mubr.bf16.mxu0 0
      %4884 = vmatmul.mubr.bf16.gmra.mrb[0].mxu0 %v3045
      %v4885 = vpop.f32.mrb[0].mxu0
      %v4886 = vadd.f32 %v3264, %v4885
      %v4887 = vpop.f32.mrb[0].mxu0
      %v4888 = vadd.f32 %v3268, %v4887
      %v4889 = vpop.f32.mrb[0].mxu0
      %v4890 = vadd.f32 %v3264, %v4889
      %v4891 = vpop.f32.mrb[0].mxu0
      %v4892 = vadd.f32 %v3268, %v4891
      %4893 = vmatprep.mubr.bf16.mxu0 0
      %4894 = vmatmul.mubr.bf16.gmra.mrb[0].mxu0 %v3046
      %v4895 = vpop.f32.mrb[0].mxu0
      %v4896 = vadd.f32 %v3264, %v4895
      %v4897 = vpop.f32.mrb[0].mxu0
      %v4898 = vadd.f32 %v3268, %v4897
      %v4899 = vpop.f32.mrb[0].mxu0
      %v4900 = vadd.f32 %v3264, %v4899
      %v4901 = vpop.f32.mrb[0].mxu0
      %v4902 = vadd.f32 %v3268, %v4901
      %4903 = vdwg.mxu0
      %4904 = vmatprep.subr.bf16.mxu0 %v3808
      %4905 = vmatpush1.bf16.msra.mxu0 %v3807
      %4906 = vmatprep.subr.bf16.mxu0 %v3828
      %4907 = vmatpush1.bf16.msra.mxu0 %v3827
      %4908 = vmatprep.subr.bf16.mxu0 %v3848
      %4909 = vmatpush1.bf16.msra.mxu0 %v3847
      %4910 = vmatprep.subr.bf16.mxu0 %v3868
      %4911 = vmatpush1.bf16.msra.mxu0 %v3867
      %4912 = vmatprep.subr.bf16.mxu0 %v3888
      %4913 = vmatpush1.bf16.msra.mxu0 %v3887
      %4914 = vmatprep.subr.bf16.mxu0 %v3908
      %4915 = vmatpush1.bf16.msra.mxu0 %v3907
      %4916 = vmatprep.subr.bf16.mxu0 %v3928
      %4917 = vmatpush1.bf16.msra.mxu0 %v3927
      %4918 = vmatprep.subr.bf16.mxu0 %v3948
      %4919 = vmatpush1.bf16.msra.mxu0 %v3947
      %4920 = vmatprep.subr.bf16.mxu0 0
      %4921 = vmatpush1.bf16.msra.mxu0 0
      %4922 = vmatprep.subr.bf16.mxu0 0
      %4923 = vmatpush1.bf16.msra.mxu0 0
      %4924 = vmatprep.subr.bf16.mxu0 0
      %4925 = vmatpush1.bf16.msra.mxu0 0
      %4926 = vmatprep.subr.bf16.mxu0 0
      %4927 = vmatpush1.bf16.msra.mxu0 0
      %4928 = vmatprep.subr.bf16.mxu0 0
      %4929 = vmatpush1.bf16.msra.mxu0 0
      %4930 = vmatprep.subr.bf16.mxu0 0
      %4931 = vmatpush1.bf16.msra.mxu0 0
      %4932 = vmatprep.subr.bf16.mxu0 0
      %4933 = vmatpush1.bf16.msra.mxu0 0
      %4934 = vmatprep.subr.bf16.mxu0 0
      %4935 = vmatpush1.bf16.msra.mxu0 0
      %4936 = vmatprep.mubr.bf16.mxu0 0
      %4937 = vmatmul.mubr.bf16.gmra.mrb[0].mxu0 %v3039
      %v4938 = vpop.f32.mrb[0].mxu0
      %v4939 = vadd.f32 %v3272, %v4938
      %v4940 = vpop.f32.mrb[0].mxu0
      %v4941 = vadd.f32 %v3276, %v4940
      %v4942 = vpop.f32.mrb[0].mxu0
      %v4943 = vadd.f32 %v3272, %v4942
      %v4944 = vpop.f32.mrb[0].mxu0
      %v4945 = vadd.f32 %v3276, %v4944
      %4946 = vmatprep.mubr.bf16.mxu0 0
      %4947 = vmatmul.mubr.bf16.gmra.mrb[0].mxu0 %v3040
      %v4948 = vpop.f32.mrb[0].mxu0
      %v4949 = vadd.f32 %v3272, %v4948
      %v4950 = vpop.f32.mrb[0].mxu0
      %v4951 = vadd.f32 %v3276, %v4950
      %v4952 = vpop.f32.mrb[0].mxu0
      %v4953 = vadd.f32 %v3272, %v4952
      %v4954 = vpop.f32.mrb[0].mxu0
      %v4955 = vadd.f32 %v3276, %v4954
      %4956 = vmatprep.mubr.bf16.mxu0 0
      %4957 = vmatmul.mubr.bf16.gmra.mrb[0].mxu0 %v3041
      %v4958 = vpop.f32.mrb[0].mxu0
      %v4959 = vadd.f32 %v3272, %v4958
      %v4960 = vpop.f32.mrb[0].mxu0
      %v4961 = vadd.f32 %v3276, %v4960
      %v4962 = vpop.f32.mrb[0].mxu0
      %v4963 = vadd.f32 %v3272, %v4962
      %v4964 = vpop.f32.mrb[0].mxu0
      %v4965 = vadd.f32 %v3276, %v4964
      %4966 = vmatprep.mubr.bf16.mxu0 0
      %4967 = vmatmul.mubr.bf16.gmra.mrb[0].mxu0 %v3042
      %v4968 = vpop.f32.mrb[0].mxu0
      %v4969 = vadd.f32 %v3272, %v4968
      %v4970 = vpop.f32.mrb[0].mxu0
      %v4971 = vadd.f32 %v3276, %v4970
      %v4972 = vpop.f32.mrb[0].mxu0
      %v4973 = vadd.f32 %v3272, %v4972
      %v4974 = vpop.f32.mrb[0].mxu0
      %v4975 = vadd.f32 %v3276, %v4974
      %4976 = vmatprep.mubr.bf16.mxu0 0
      %4977 = vmatmul.mubr.bf16.gmra.mrb[0].mxu0 %v3043
      %v4978 = vpop.f32.mrb[0].mxu0
      %v4979 = vadd.f32 %v3272, %v4978
      %v4980 = vpop.f32.mrb[0].mxu0
      %v4981 = vadd.f32 %v3276, %v4980
      %v4982 = vpop.f32.mrb[0].mxu0
      %v4983 = vadd.f32 %v3272, %v4982
      %v4984 = vpop.f32.mrb[0].mxu0
      %v4985 = vadd.f32 %v3276, %v4984
      %4986 = vmatprep.mubr.bf16.mxu0 0
      %4987 = vmatmul.mubr.bf16.gmra.mrb[0].mxu0 %v3044
      %v4988 = vpop.f32.mrb[0].mxu0
      %v4989 = vadd.f32 %v3272, %v4988
      %v4990 = vpop.f32.mrb[0].mxu0
      %v4991 = vadd.f32 %v3276, %v4990
      %v4992 = vpop.f32.mrb[0].mxu0
      %v4993 = vadd.f32 %v3272, %v4992
      %v4994 = vpop.f32.mrb[0].mxu0
      %v4995 = vadd.f32 %v3276, %v4994
      %4996 = vmatprep.mubr.bf16.mxu0 0
      %4997 = vmatmul.mubr.bf16.gmra.mrb[0].mxu0 %v3045
      %v4998 = vpop.f32.mrb[0].mxu0
      %v4999 = vadd.f32 %v3272, %v4998
      %v5000 = vpop.f32.mrb[0].mxu0
      %v5001 = vadd.f32 %v3276, %v5000
      %v5002 = vpop.f32.mrb[0].mxu0
      %v5003 = vadd.f32 %v3272, %v5002
      %v5004 = vpop.f32.mrb[0].mxu0
      %v5005 = vadd.f32 %v3276, %v5004
      %5006 = vmatprep.mubr.bf16.mxu0 0
      %5007 = vmatmul.mubr.bf16.gmra.mrb[0].mxu0 %v3046
      %v5008 = vpop.f32.mrb[0].mxu0
      %v5009 = vadd.f32 %v3272, %v5008
      %v5010 = vpop.f32.mrb[0].mxu0
      %v5011 = vadd.f32 %v3276, %v5010
      %v5012 = vpop.f32.mrb[0].mxu0
      %v5013 = vadd.f32 %v3272, %v5012
      %v5014 = vpop.f32.mrb[0].mxu0
      %v5015 = vadd.f32 %v3276, %v5014
      %5016 = vdwg.mxu0
      %5017 = vmatprep.subr.bf16.mxu0 %v3810
      %5018 = vmatpush1.bf16.msra.mxu0 %v3809
      %5019 = vmatprep.subr.bf16.mxu0 %v3830
      %5020 = vmatpush1.bf16.msra.mxu0 %v3829
      %5021 = vmatprep.subr.bf16.mxu0 %v3850
      %5022 = vmatpush1.bf16.msra.mxu0 %v3849
      %5023 = vmatprep.subr.bf16.mxu0 %v3870
      %5024 = vmatpush1.bf16.msra.mxu0 %v3869
      %5025 = vmatprep.subr.bf16.mxu0 %v3890
      %5026 = vmatpush1.bf16.msra.mxu0 %v3889
      %5027 = vmatprep.subr.bf16.mxu0 %v3910
      %5028 = vmatpush1.bf16.msra.mxu0 %v3909
      %5029 = vmatprep.subr.bf16.mxu0 %v3930
      %5030 = vmatpush1.bf16.msra.mxu0 %v3929
      %5031 = vmatprep.subr.bf16.mxu0 %v3950
      %5032 = vmatpush1.bf16.msra.mxu0 %v3949
      %5033 = vmatprep.subr.bf16.mxu0 0
      %5034 = vmatpush1.bf16.msra.mxu0 0
      %5035 = vmatprep.subr.bf16.mxu0 0
      %5036 = vmatpush1.bf16.msra.mxu0 0
      %5037 = vmatprep.subr.bf16.mxu0 0
      %5038 = vmatpush1.bf16.msra.mxu0 0
      %5039 = vmatprep.subr.bf16.mxu0 0
      %5040 = vmatpush1.bf16.msra.mxu0 0
      %5041 = vmatprep.subr.bf16.mxu0 0
      %5042 = vmatpush1.bf16.msra.mxu0 0
      %5043 = vmatprep.subr.bf16.mxu0 0
      %5044 = vmatpush1.bf16.msra.mxu0 0
      %5045 = vmatprep.subr.bf16.mxu0 0
      %5046 = vmatpush1.bf16.msra.mxu0 0
      %5047 = vmatprep.subr.bf16.mxu0 0
      %5048 = vmatpush1.bf16.msra.mxu0 0
      %5049 = vmatprep.mubr.bf16.mxu0 0
      %5050 = vmatmul.mubr.bf16.gmra.mrb[0].mxu0 %v3039
      %v5051 = vpop.f32.mrb[0].mxu0
      %v5052 = vadd.f32 %v3280, %v5051
      %v5053 = vpop.f32.mrb[0].mxu0
      %v5054 = vadd.f32 %v3284, %v5053
      %v5055 = vpop.f32.mrb[0].mxu0
      %v5056 = vadd.f32 %v3280, %v5055
      %v5057 = vpop.f32.mrb[0].mxu0
      %v5058 = vadd.f32 %v3284, %v5057
      %5059 = vmatprep.mubr.bf16.mxu0 0
      %5060 = vmatmul.mubr.bf16.gmra.mrb[0].mxu0 %v3040
      %v5061 = vpop.f32.mrb[0].mxu0
      %v5062 = vadd.f32 %v3280, %v5061
      %v5063 = vpop.f32.mrb[0].mxu0
      %v5064 = vadd.f32 %v3284, %v5063
      %v5065 = vpop.f32.mrb[0].mxu0
      %v5066 = vadd.f32 %v3280, %v5065
      %v5067 = vpop.f32.mrb[0].mxu0
      %v5068 = vadd.f32 %v3284, %v5067
      %5069 = vmatprep.mubr.bf16.mxu0 0
      %5070 = vmatmul.mubr.bf16.gmra.mrb[0].mxu0 %v3041
      %v5071 = vpop.f32.mrb[0].mxu0
      %v5072 = vadd.f32 %v3280, %v5071
      %v5073 = vpop.f32.mrb[0].mxu0
      %v5074 = vadd.f32 %v3284, %v5073
      %v5075 = vpop.f32.mrb[0].mxu0
      %v5076 = vadd.f32 %v3280, %v5075
      %v5077 = vpop.f32.mrb[0].mxu0
      %v5078 = vadd.f32 %v3284, %v5077
      %5079 = vmatprep.mubr.bf16.mxu0 0
      %5080 = vmatmul.mubr.bf16.gmra.mrb[0].mxu0 %v3042
      %v5081 = vpop.f32.mrb[0].mxu0
      %v5082 = vadd.f32 %v3280, %v5081
      %v5083 = vpop.f32.mrb[0].mxu0
      %v5084 = vadd.f32 %v3284, %v5083
      %v5085 = vpop.f32.mrb[0].mxu0
      %v5086 = vadd.f32 %v3280, %v5085
      %v5087 = vpop.f32.mrb[0].mxu0
      %v5088 = vadd.f32 %v3284, %v5087
      %5089 = vmatprep.mubr.bf16.mxu0 0
      %5090 = vmatmul.mubr.bf16.gmra.mrb[0].mxu0 %v3043
      %v5091 = vpop.f32.mrb[0].mxu0
      %v5092 = vadd.f32 %v3280, %v5091
      %v5093 = vpop.f32.mrb[0].mxu0
      %v5094 = vadd.f32 %v3284, %v5093
      %v5095 = vpop.f32.mrb[0].mxu0
      %v5096 = vadd.f32 %v3280, %v5095
      %v5097 = vpop.f32.mrb[0].mxu0
      %v5098 = vadd.f32 %v3284, %v5097
      %5099 = vmatprep.mubr.bf16.mxu0 0
      %5100 = vmatmul.mubr.bf16.gmra.mrb[0].mxu0 %v3044
      %v5101 = vpop.f32.mrb[0].mxu0
      %v5102 = vadd.f32 %v3280, %v5101
      %v5103 = vpop.f32.mrb[0].mxu0
      %v5104 = vadd.f32 %v3284, %v5103
      %v5105 = vpop.f32.mrb[0].mxu0
      %v5106 = vadd.f32 %v3280, %v5105
      %v5107 = vpop.f32.mrb[0].mxu0
      %v5108 = vadd.f32 %v3284, %v5107
      %5109 = vmatprep.mubr.bf16.mxu0 0
      %5110 = vmatmul.mubr.bf16.gmra.mrb[0].mxu0 %v3045
      %v5111 = vpop.f32.mrb[0].mxu0
      %v5112 = vadd.f32 %v3280, %v5111
      %v5113 = vpop.f32.mrb[0].mxu0
      %v5114 = vadd.f32 %v3284, %v5113
      %v5115 = vpop.f32.mrb[0].mxu0
      %v5116 = vadd.f32 %v3280, %v5115
      %v5117 = vpop.f32.mrb[0].mxu0
      %v5118 = vadd.f32 %v3284, %v5117
      %5119 = vmatprep.mubr.bf16.mxu0 0
      %5120 = vmatmul.mubr.bf16.gmra.mrb[0].mxu0 %v3046
      %v5121 = vpop.f32.mrb[0].mxu0
      %v5122 = vadd.f32 %v3280, %v5121
      %v5123 = vpop.f32.mrb[0].mxu0
      %v5124 = vadd.f32 %v3284, %v5123
      %v5125 = vpop.f32.mrb[0].mxu0
      %v5126 = vadd.f32 %v3280, %v5125
      %v5127 = vpop.f32.mrb[0].mxu0
      %v5128 = vadd.f32 %v3284, %v5127
      %5129 = vdwg.mxu0
      %5130 = vmatprep.subr.bf16.mxu0 %v3812
      %5131 = vmatpush1.bf16.msra.mxu0 %v3811
      %5132 = vmatprep.subr.bf16.mxu0 %v3832
      %5133 = vmatpush1.bf16.msra.mxu0 %v3831
      %5134 = vmatprep.subr.bf16.mxu0 %v3852
      %5135 = vmatpush1.bf16.msra.mxu0 %v3851
      %5136 = vmatprep.subr.bf16.mxu0 %v3872
      %5137 = vmatpush1.bf16.msra.mxu0 %v3871
      %5138 = vmatprep.subr.bf16.mxu0 %v3892
      %5139 = vmatpush1.bf16.msra.mxu0 %v3891
      %5140 = vmatprep.subr.bf16.mxu0 %v3912
      %5141 = vmatpush1.bf16.msra.mxu0 %v3911
      %5142 = vmatprep.subr.bf16.mxu0 %v3932
      %5143 = vmatpush1.bf16.msra.mxu0 %v3931
      %5144 = vmatprep.subr.bf16.mxu0 %v3952
      %5145 = vmatpush1.bf16.msra.mxu0 %v3951
      %5146 = vmatprep.subr.bf16.mxu0 0
      %5147 = vmatpush1.bf16.msra.mxu0 0
      %5148 = vmatprep.subr.bf16.mxu0 0
      %5149 = vmatpush1.bf16.msra.mxu0 0
      %5150 = vmatprep.subr.bf16.mxu0 0
      %5151 = vmatpush1.bf16.msra.mxu0 0
      %5152 = vmatprep.subr.bf16.mxu0 0
      %5153 = vmatpush1.bf16.msra.mxu0 0
      %5154 = vmatprep.subr.bf16.mxu0 0
      %5155 = vmatpush1.bf16.msra.mxu0 0
      %5156 = vmatprep.subr.bf16.mxu0 0
      %5157 = vmatpush1.bf16.msra.mxu0 0
      %5158 = vmatprep.subr.bf16.mxu0 0
      %5159 = vmatpush1.bf16.msra.mxu0 0
      %5160 = vmatprep.subr.bf16.mxu0 0
      %5161 = vmatpush1.bf16.msra.mxu0 0
      %5162 = vmatprep.mubr.bf16.mxu0 0
      %5163 = vmatmul.mubr.bf16.gmra.mrb[0].mxu0 %v3039
      %v5164 = vpop.f32.mrb[0].mxu0
      %v5165 = vadd.f32 %v3288, %v5164
      %v5166 = vpop.f32.mrb[0].mxu0
      %v5167 = vadd.f32 %v3292, %v5166
      %v5168 = vpop.f32.mrb[0].mxu0
      %v5169 = vadd.f32 %v3288, %v5168
      %v5170 = vpop.f32.mrb[0].mxu0
      %v5171 = vadd.f32 %v3292, %v5170
      %5172 = vmatprep.mubr.bf16.mxu0 0
      %5173 = vmatmul.mubr.bf16.gmra.mrb[0].mxu0 %v3040
      %v5174 = vpop.f32.mrb[0].mxu0
      %v5175 = vadd.f32 %v3288, %v5174
      %v5176 = vpop.f32.mrb[0].mxu0
      %v5177 = vadd.f32 %v3292, %v5176
      %v5178 = vpop.f32.mrb[0].mxu0
      %v5179 = vadd.f32 %v3288, %v5178
      %v5180 = vpop.f32.mrb[0].mxu0
      %v5181 = vadd.f32 %v3292, %v5180
      %5182 = vmatprep.mubr.bf16.mxu0 0
      %5183 = vmatmul.mubr.bf16.gmra.mrb[0].mxu0 %v3041
      %v5184 = vpop.f32.mrb[0].mxu0
      %v5185 = vadd.f32 %v3288, %v5184
      %v5186 = vpop.f32.mrb[0].mxu0
      %v5187 = vadd.f32 %v3292, %v5186
      %v5188 = vpop.f32.mrb[0].mxu0
      %v5189 = vadd.f32 %v3288, %v5188
      %v5190 = vpop.f32.mrb[0].mxu0
      %v5191 = vadd.f32 %v3292, %v5190
      %5192 = vmatprep.mubr.bf16.mxu0 0
      %5193 = vmatmul.mubr.bf16.gmra.mrb[0].mxu0 %v3042
      %v5194 = vpop.f32.mrb[0].mxu0
      %v5195 = vadd.f32 %v3288, %v5194
      %v5196 = vpop.f32.mrb[0].mxu0
      %v5197 = vadd.f32 %v3292, %v5196
      %v5198 = vpop.f32.mrb[0].mxu0
      %v5199 = vadd.f32 %v3288, %v5198
      %v5200 = vpop.f32.mrb[0].mxu0
      %v5201 = vadd.f32 %v3292, %v5200
      %5202 = vmatprep.mubr.bf16.mxu0 0
      %5203 = vmatmul.mubr.bf16.gmra.mrb[0].mxu0 %v3043
      %v5204 = vpop.f32.mrb[0].mxu0
      %v5205 = vadd.f32 %v3288, %v5204
      %v5206 = vpop.f32.mrb[0].mxu0
      %v5207 = vadd.f32 %v3292, %v5206
      %v5208 = vpop.f32.mrb[0].mxu0
      %v5209 = vadd.f32 %v3288, %v5208
      %v5210 = vpop.f32.mrb[0].mxu0
      %v5211 = vadd.f32 %v3292, %v5210
      %5212 = vmatprep.mubr.bf16.mxu0 0
      %5213 = vmatmul.mubr.bf16.gmra.mrb[0].mxu0 %v3044
      %v5214 = vpop.f32.mrb[0].mxu0
      %v5215 = vadd.f32 %v3288, %v5214
      %v5216 = vpop.f32.mrb[0].mxu0
      %v5217 = vadd.f32 %v3292, %v5216
      %v5218 = vpop.f32.mrb[0].mxu0
      %v5219 = vadd.f32 %v3288, %v5218
      %v5220 = vpop.f32.mrb[0].mxu0
      %v5221 = vadd.f32 %v3292, %v5220
      %5222 = vmatprep.mubr.bf16.mxu0 0
      %5223 = vmatmul.mubr.bf16.gmra.mrb[0].mxu0 %v3045
      %v5224 = vpop.f32.mrb[0].mxu0
      %v5225 = vadd.f32 %v3288, %v5224
      %v5226 = vpop.f32.mrb[0].mxu0
      %v5227 = vadd.f32 %v3292, %v5226
      %v5228 = vpop.f32.mrb[0].mxu0
      %v5229 = vadd.f32 %v3288, %v5228
      %v5230 = vpop.f32.mrb[0].mxu0
      %v5231 = vadd.f32 %v3292, %v5230
      %5232 = vmatprep.mubr.bf16.mxu0 0
      %5233 = vmatmul.mubr.bf16.gmra.mrb[0].mxu0 %v3046
      %v5234 = vpop.f32.mrb[0].mxu0
      %v5235 = vadd.f32 %v3288, %v5234
      %v5236 = vpop.f32.mrb[0].mxu0
      %v5237 = vadd.f32 %v3292, %v5236
      %v5238 = vpop.f32.mrb[0].mxu0
      %v5239 = vadd.f32 %v3288, %v5238
      %v5240 = vpop.f32.mrb[0].mxu0
      %v5241 = vadd.f32 %v3292, %v5240
      %5242 = vdwg.mxu0
      %v5243 = vmax.f32 %v4148, 0.0
      %v5244 = vmax.f32 %v4150, 0.0
      %v5245 = vmax.f32 %v4261, 0.0
      %v5246 = vmax.f32 %v4263, 0.0
      %v5247 = vmax.f32 %v4374, 0.0
      %v5248 = vmax.f32 %v4376, 0.0
      %v5249 = vmax.f32 %v4487, 0.0
      %v5250 = vmax.f32 %v4489, 0.0
      %v5251 = vmax.f32 %v4600, 0.0
      %v5252 = vmax.f32 %v4602, 0.0
      %v5253 = vmax.f32 %v4713, 0.0
      %v5254 = vmax.f32 %v4715, 0.0
      %v5255 = vmax.f32 %v4826, 0.0
      %v5256 = vmax.f32 %v4828, 0.0
      %v5257 = vmax.f32 %v4939, 0.0
      %v5258 = vmax.f32 %v4941, 0.0
      %v5259 = vmax.f32 %v5052, 0.0
      %v5260 = vmax.f32 %v5054, 0.0
      %v5261 = vmax.f32 %v5165, 0.0
      %v5262 = vmax.f32 %v5167, 0.0
      %v5263 = vmax.f32 %v4152, 0.0
      %v5264 = vmax.f32 %v4154, 0.0
      %v5265 = vmax.f32 %v4265, 0.0
      %v5266 = vmax.f32 %v4267, 0.0
      %v5267 = vmax.f32 %v4378, 0.0
      %v5268 = vmax.f32 %v4380, 0.0
      %v5269 = vmax.f32 %v4491, 0.0
      %v5270 = vmax.f32 %v4493, 0.0
      %v5271 = vmax.f32 %v4604, 0.0
      %v5272 = vmax.f32 %v4606, 0.0
      %v5273 = vmax.f32 %v4717, 0.0
      %v5274 = vmax.f32 %v4719, 0.0
      %v5275 = vmax.f32 %v4830, 0.0
      %v5276 = vmax.f32 %v4832, 0.0
      %v5277 = vmax.f32 %v4943, 0.0
      %v5278 = vmax.f32 %v4945, 0.0
      %v5279 = vmax.f32 %v5056, 0.0
      %v5280 = vmax.f32 %v5058, 0.0
      %v5281 = vmax.f32 %v5169, 0.0
      %v5282 = vmax.f32 %v5171, 0.0
      %v5283 = vmax.f32 %v4158, 0.0
      %v5284 = vmax.f32 %v4160, 0.0
      %v5285 = vmax.f32 %v4271, 0.0
      %v5286 = vmax.f32 %v4273, 0.0
      %v5287 = vmax.f32 %v4384, 0.0
      %v5288 = vmax.f32 %v4386, 0.0
      %v5289 = vmax.f32 %v4497, 0.0
      %v5290 = vmax.f32 %v4499, 0.0
      %v5291 = vmax.f32 %v4610, 0.0
      %v5292 = vmax.f32 %v4612, 0.0
      %v5293 = vmax.f32 %v4723, 0.0
      %v5294 = vmax.f32 %v4725, 0.0
      %v5295 = vmax.f32 %v4836, 0.0
      %v5296 = vmax.f32 %v4838, 0.0
      %v5297 = vmax.f32 %v4949, 0.0
      %v5298 = vmax.f32 %v4951, 0.0
      %v5299 = vmax.f32 %v5062, 0.0
      %v5300 = vmax.f32 %v5064, 0.0
      %v5301 = vmax.f32 %v5175, 0.0
      %v5302 = vmax.f32 %v5177, 0.0
      %v5303 = vmax.f32 %v4162, 0.0
      %v5304 = vmax.f32 %v4164, 0.0
      %v5305 = vmax.f32 %v4275, 0.0
      %v5306 = vmax.f32 %v4277, 0.0
      %v5307 = vmax.f32 %v4388, 0.0
      %v5308 = vmax.f32 %v4390, 0.0
      %v5309 = vmax.f32 %v4501, 0.0
      %v5310 = vmax.f32 %v4503, 0.0
      %v5311 = vmax.f32 %v4614, 0.0
      %v5312 = vmax.f32 %v4616, 0.0
      %v5313 = vmax.f32 %v4727, 0.0
      %v5314 = vmax.f32 %v4729, 0.0
      %v5315 = vmax.f32 %v4840, 0.0
      %v5316 = vmax.f32 %v4842, 0.0
      %v5317 = vmax.f32 %v4953, 0.0
      %v5318 = vmax.f32 %v4955, 0.0
      %v5319 = vmax.f32 %v5066, 0.0
      %v5320 = vmax.f32 %v5068, 0.0
      %v5321 = vmax.f32 %v5179, 0.0
      %v5322 = vmax.f32 %v5181, 0.0
      %v5323 = vmax.f32 %v4168, 0.0
      %v5324 = vmax.f32 %v4170, 0.0
      %v5325 = vmax.f32 %v4281, 0.0
      %v5326 = vmax.f32 %v4283, 0.0
      %v5327 = vmax.f32 %v4394, 0.0
      %v5328 = vmax.f32 %v4396, 0.0
      %v5329 = vmax.f32 %v4507, 0.0
      %v5330 = vmax.f32 %v4509, 0.0
      %v5331 = vmax.f32 %v4620, 0.0
      %v5332 = vmax.f32 %v4622, 0.0
      %v5333 = vmax.f32 %v4733, 0.0
      %v5334 = vmax.f32 %v4735, 0.0
      %v5335 = vmax.f32 %v4846, 0.0
      %v5336 = vmax.f32 %v4848, 0.0
      %v5337 = vmax.f32 %v4959, 0.0
      %v5338 = vmax.f32 %v4961, 0.0
      %v5339 = vmax.f32 %v5072, 0.0
      %v5340 = vmax.f32 %v5074, 0.0
      %v5341 = vmax.f32 %v5185, 0.0
      %v5342 = vmax.f32 %v5187, 0.0
      %v5343 = vmax.f32 %v4172, 0.0
      %v5344 = vmax.f32 %v4174, 0.0
      %v5345 = vmax.f32 %v4285, 0.0
      %v5346 = vmax.f32 %v4287, 0.0
      %v5347 = vmax.f32 %v4398, 0.0
      %v5348 = vmax.f32 %v4400, 0.0
      %v5349 = vmax.f32 %v4511, 0.0
      %v5350 = vmax.f32 %v4513, 0.0
      %v5351 = vmax.f32 %v4624, 0.0
      %v5352 = vmax.f32 %v4626, 0.0
      %v5353 = vmax.f32 %v4737, 0.0
      %v5354 = vmax.f32 %v4739, 0.0
      %v5355 = vmax.f32 %v4850, 0.0
      %v5356 = vmax.f32 %v4852, 0.0
      %v5357 = vmax.f32 %v4963, 0.0
      %v5358 = vmax.f32 %v4965, 0.0
      %v5359 = vmax.f32 %v5076, 0.0
      %v5360 = vmax.f32 %v5078, 0.0
      %v5361 = vmax.f32 %v5189, 0.0
      %v5362 = vmax.f32 %v5191, 0.0
      %v5363 = vmax.f32 %v4178, 0.0
      %v5364 = vmax.f32 %v4180, 0.0
      %v5365 = vmax.f32 %v4291, 0.0
      %v5366 = vmax.f32 %v4293, 0.0
      %v5367 = vmax.f32 %v4404, 0.0
      %v5368 = vmax.f32 %v4406, 0.0
      %v5369 = vmax.f32 %v4517, 0.0
      %v5370 = vmax.f32 %v4519, 0.0
      %v5371 = vmax.f32 %v4630, 0.0
      %v5372 = vmax.f32 %v4632, 0.0
      %v5373 = vmax.f32 %v4743, 0.0
      %v5374 = vmax.f32 %v4745, 0.0
      %v5375 = vmax.f32 %v4856, 0.0
      %v5376 = vmax.f32 %v4858, 0.0
      %v5377 = vmax.f32 %v4969, 0.0
      %v5378 = vmax.f32 %v4971, 0.0
      %v5379 = vmax.f32 %v5082, 0.0
      %v5380 = vmax.f32 %v5084, 0.0
      %v5381 = vmax.f32 %v5195, 0.0
      %v5382 = vmax.f32 %v5197, 0.0
      %v5383 = vmax.f32 %v4182, 0.0
      %v5384 = vmax.f32 %v4184, 0.0
      %v5385 = vmax.f32 %v4295, 0.0
      %v5386 = vmax.f32 %v4297, 0.0
      %v5387 = vmax.f32 %v4408, 0.0
      %v5388 = vmax.f32 %v4410, 0.0
      %v5389 = vmax.f32 %v4521, 0.0
      %v5390 = vmax.f32 %v4523, 0.0
      %v5391 = vmax.f32 %v4634, 0.0
      %v5392 = vmax.f32 %v4636, 0.0
      %v5393 = vmax.f32 %v4747, 0.0
      %v5394 = vmax.f32 %v4749, 0.0
      %v5395 = vmax.f32 %v4860, 0.0
      %v5396 = vmax.f32 %v4862, 0.0
      %v5397 = vmax.f32 %v4973, 0.0
      %v5398 = vmax.f32 %v4975, 0.0
      %v5399 = vmax.f32 %v5086, 0.0
      %v5400 = vmax.f32 %v5088, 0.0
      %v5401 = vmax.f32 %v5199, 0.0
      %v5402 = vmax.f32 %v5201, 0.0
      %v5403 = vmax.f32 %v4188, 0.0
      %v5404 = vmax.f32 %v4190, 0.0
      %v5405 = vmax.f32 %v4301, 0.0
      %v5406 = vmax.f32 %v4303, 0.0
      %v5407 = vmax.f32 %v4414, 0.0
      %v5408 = vmax.f32 %v4416, 0.0
      %v5409 = vmax.f32 %v4527, 0.0
      %v5410 = vmax.f32 %v4529, 0.0
      %v5411 = vmax.f32 %v4640, 0.0
      %v5412 = vmax.f32 %v4642, 0.0
      %v5413 = vmax.f32 %v4753, 0.0
      %v5414 = vmax.f32 %v4755, 0.0
      %v5415 = vmax.f32 %v4866, 0.0
      %v5416 = vmax.f32 %v4868, 0.0
      %v5417 = vmax.f32 %v4979, 0.0
      %v5418 = vmax.f32 %v4981, 0.0
      %v5419 = vmax.f32 %v5092, 0.0
      %v5420 = vmax.f32 %v5094, 0.0
      %v5421 = vmax.f32 %v5205, 0.0
      %v5422 = vmax.f32 %v5207, 0.0
      %v5423 = vmax.f32 %v4192, 0.0
      %v5424 = vmax.f32 %v4194, 0.0
      %v5425 = vmax.f32 %v4305, 0.0
      %v5426 = vmax.f32 %v4307, 0.0
      %v5427 = vmax.f32 %v4418, 0.0
      %v5428 = vmax.f32 %v4420, 0.0
      %v5429 = vmax.f32 %v4531, 0.0
      %v5430 = vmax.f32 %v4533, 0.0
      %v5431 = vmax.f32 %v4644, 0.0
      %v5432 = vmax.f32 %v4646, 0.0
      %v5433 = vmax.f32 %v4757, 0.0
      %v5434 = vmax.f32 %v4759, 0.0
      %v5435 = vmax.f32 %v4870, 0.0
      %v5436 = vmax.f32 %v4872, 0.0
      %v5437 = vmax.f32 %v4983, 0.0
      %v5438 = vmax.f32 %v4985, 0.0
      %v5439 = vmax.f32 %v5096, 0.0
      %v5440 = vmax.f32 %v5098, 0.0
      %v5441 = vmax.f32 %v5209, 0.0
      %v5442 = vmax.f32 %v5211, 0.0
      %v5443 = vmax.f32 %v4198, 0.0
      %v5444 = vmax.f32 %v4200, 0.0
      %v5445 = vmax.f32 %v4311, 0.0
      %v5446 = vmax.f32 %v4313, 0.0
      %v5447 = vmax.f32 %v4424, 0.0
      %v5448 = vmax.f32 %v4426, 0.0
      %v5449 = vmax.f32 %v4537, 0.0
      %v5450 = vmax.f32 %v4539, 0.0
      %v5451 = vmax.f32 %v4650, 0.0
      %v5452 = vmax.f32 %v4652, 0.0
      %v5453 = vmax.f32 %v4763, 0.0
      %v5454 = vmax.f32 %v4765, 0.0
      %v5455 = vmax.f32 %v4876, 0.0
      %v5456 = vmax.f32 %v4878, 0.0
      %v5457 = vmax.f32 %v4989, 0.0
      %v5458 = vmax.f32 %v4991, 0.0
      %v5459 = vmax.f32 %v5102, 0.0
      %v5460 = vmax.f32 %v5104, 0.0
      %v5461 = vmax.f32 %v5215, 0.0
      %v5462 = vmax.f32 %v5217, 0.0
      %v5463 = vmax.f32 %v4202, 0.0
      %v5464 = vmax.f32 %v4204, 0.0
      %v5465 = vmax.f32 %v4315, 0.0
      %v5466 = vmax.f32 %v4317, 0.0
      %v5467 = vmax.f32 %v4428, 0.0
      %v5468 = vmax.f32 %v4430, 0.0
      %v5469 = vmax.f32 %v4541, 0.0
      %v5470 = vmax.f32 %v4543, 0.0
      %v5471 = vmax.f32 %v4654, 0.0
      %v5472 = vmax.f32 %v4656, 0.0
      %v5473 = vmax.f32 %v4767, 0.0
      %v5474 = vmax.f32 %v4769, 0.0
      %v5475 = vmax.f32 %v4880, 0.0
      %v5476 = vmax.f32 %v4882, 0.0
      %v5477 = vmax.f32 %v4993, 0.0
      %v5478 = vmax.f32 %v4995, 0.0
      %v5479 = vmax.f32 %v5106, 0.0
      %v5480 = vmax.f32 %v5108, 0.0
      %v5481 = vmax.f32 %v5219, 0.0
      %v5482 = vmax.f32 %v5221, 0.0
      %v5483 = vmax.f32 %v4208, 0.0
      %v5484 = vmax.f32 %v4210, 0.0
      %v5485 = vmax.f32 %v4321, 0.0
      %v5486 = vmax.f32 %v4323, 0.0
      %v5487 = vmax.f32 %v4434, 0.0
      %v5488 = vmax.f32 %v4436, 0.0
      %v5489 = vmax.f32 %v4547, 0.0
      %v5490 = vmax.f32 %v4549, 0.0
      %v5491 = vmax.f32 %v4660, 0.0
      %v5492 = vmax.f32 %v4662, 0.0
      %v5493 = vmax.f32 %v4773, 0.0
      %v5494 = vmax.f32 %v4775, 0.0
      %v5495 = vmax.f32 %v4886, 0.0
      %v5496 = vmax.f32 %v4888, 0.0
      %v5497 = vmax.f32 %v4999, 0.0
      %v5498 = vmax.f32 %v5001, 0.0
      %v5499 = vmax.f32 %v5112, 0.0
      %v5500 = vmax.f32 %v5114, 0.0
      %v5501 = vmax.f32 %v5225, 0.0
      %v5502 = vmax.f32 %v5227, 0.0
      %v5503 = vmax.f32 %v4212, 0.0
      %v5504 = vmax.f32 %v4214, 0.0
      %v5505 = vmax.f32 %v4325, 0.0
      %v5506 = vmax.f32 %v4327, 0.0
      %v5507 = vmax.f32 %v4438, 0.0
      %v5508 = vmax.f32 %v4440, 0.0
      %v5509 = vmax.f32 %v4551, 0.0
      %v5510 = vmax.f32 %v4553, 0.0
      %v5511 = vmax.f32 %v4664, 0.0
      %v5512 = vmax.f32 %v4666, 0.0
      %v5513 = vmax.f32 %v4777, 0.0
      %v5514 = vmax.f32 %v4779, 0.0
      %v5515 = vmax.f32 %v4890, 0.0
      %v5516 = vmax.f32 %v4892, 0.0
      %v5517 = vmax.f32 %v5003, 0.0
      %v5518 = vmax.f32 %v5005, 0.0
      %v5519 = vmax.f32 %v5116, 0.0
      %v5520 = vmax.f32 %v5118, 0.0
      %v5521 = vmax.f32 %v5229, 0.0
      %v5522 = vmax.f32 %v5231, 0.0
      %v5523 = vmax.f32 %v4218, 0.0
      %v5524 = vmax.f32 %v4220, 0.0
      %v5525 = vmax.f32 %v4331, 0.0
      %v5526 = vmax.f32 %v4333, 0.0
      %v5527 = vmax.f32 %v4444, 0.0
      %v5528 = vmax.f32 %v4446, 0.0
      %v5529 = vmax.f32 %v4557, 0.0
      %v5530 = vmax.f32 %v4559, 0.0
      %v5531 = vmax.f32 %v4670, 0.0
      %v5532 = vmax.f32 %v4672, 0.0
      %v5533 = vmax.f32 %v4783, 0.0
      %v5534 = vmax.f32 %v4785, 0.0
      %v5535 = vmax.f32 %v4896, 0.0
      %v5536 = vmax.f32 %v4898, 0.0
      %v5537 = vmax.f32 %v5009, 0.0
      %v5538 = vmax.f32 %v5011, 0.0
      %v5539 = vmax.f32 %v5122, 0.0
      %v5540 = vmax.f32 %v5124, 0.0
      %v5541 = vmax.f32 %v5235, 0.0
      %v5542 = vmax.f32 %v5237, 0.0
      %v5543 = vmax.f32 %v4222, 0.0
      %v5544 = vmax.f32 %v4224, 0.0
      %v5545 = vmax.f32 %v4335, 0.0
      %v5546 = vmax.f32 %v4337, 0.0
      %v5547 = vmax.f32 %v4448, 0.0
      %v5548 = vmax.f32 %v4450, 0.0
      %v5549 = vmax.f32 %v4561, 0.0
      %v5550 = vmax.f32 %v4563, 0.0
      %v5551 = vmax.f32 %v4674, 0.0
      %v5552 = vmax.f32 %v4676, 0.0
      %v5553 = vmax.f32 %v4787, 0.0
      %v5554 = vmax.f32 %v4789, 0.0
      %v5555 = vmax.f32 %v4900, 0.0
      %v5556 = vmax.f32 %v4902, 0.0
      %v5557 = vmax.f32 %v5013, 0.0
      %v5558 = vmax.f32 %v5015, 0.0
      %v5559 = vmax.f32 %v5126, 0.0
      %v5560 = vmax.f32 %v5128, 0.0
      %v5561 = vmax.f32 %v5239, 0.0
      %v5562 = vmax.f32 %v5241, 0.0
      %v5563 = vpack.c.bf16 %v5263, %v5243
      %v5564 = vpack.c.bf16 %v5264, %v5244
      %v5565 = vpack.c.bf16 %v5265, %v5245
      %v5566 = vpack.c.bf16 %v5266, %v5246
      %v5567 = vpack.c.bf16 %v5267, %v5247
      %v5568 = vpack.c.bf16 %v5268, %v5248
      %v5569 = vpack.c.bf16 %v5269, %v5249
      %v5570 = vpack.c.bf16 %v5270, %v5250
      %v5571 = vpack.c.bf16 %v5271, %v5251
      %v5572 = vpack.c.bf16 %v5272, %v5252
      %v5573 = vpack.c.bf16 %v5273, %v5253
      %v5574 = vpack.c.bf16 %v5274, %v5254
      %v5575 = vpack.c.bf16 %v5275, %v5255
      %v5576 = vpack.c.bf16 %v5276, %v5256
      %v5577 = vpack.c.bf16 %v5277, %v5257
      %v5578 = vpack.c.bf16 %v5278, %v5258
      %v5579 = vpack.c.bf16 %v5279, %v5259
      %v5580 = vpack.c.bf16 %v5280, %v5260
      %v5581 = vpack.c.bf16 %v5281, %v5261
      %v5582 = vpack.c.bf16 %v5282, %v5262
      %v5583 = vpack.c.bf16 %v5303, %v5283
      %v5584 = vpack.c.bf16 %v5304, %v5284
      %v5585 = vpack.c.bf16 %v5305, %v5285
      %v5586 = vpack.c.bf16 %v5306, %v5286
      %v5587 = vpack.c.bf16 %v5307, %v5287
      %v5588 = vpack.c.bf16 %v5308, %v5288
      %v5589 = vpack.c.bf16 %v5309, %v5289
      %v5590 = vpack.c.bf16 %v5310, %v5290
      %v5591 = vpack.c.bf16 %v5311, %v5291
      %v5592 = vpack.c.bf16 %v5312, %v5292
      %v5593 = vpack.c.bf16 %v5313, %v5293
      %v5594 = vpack.c.bf16 %v5314, %v5294
      %v5595 = vpack.c.bf16 %v5315, %v5295
      %v5596 = vpack.c.bf16 %v5316, %v5296
      %v5597 = vpack.c.bf16 %v5317, %v5297
      %v5598 = vpack.c.bf16 %v5318, %v5298
      %v5599 = vpack.c.bf16 %v5319, %v5299
      %v5600 = vpack.c.bf16 %v5320, %v5300
      %v5601 = vpack.c.bf16 %v5321, %v5301
      %v5602 = vpack.c.bf16 %v5322, %v5302
      %v5603 = vpack.c.bf16 %v5343, %v5323
      %v5604 = vpack.c.bf16 %v5344, %v5324
      %v5605 = vpack.c.bf16 %v5345, %v5325
      %v5606 = vpack.c.bf16 %v5346, %v5326
      %v5607 = vpack.c.bf16 %v5347, %v5327
      %v5608 = vpack.c.bf16 %v5348, %v5328
      %v5609 = vpack.c.bf16 %v5349, %v5329
      %v5610 = vpack.c.bf16 %v5350, %v5330
      %v5611 = vpack.c.bf16 %v5351, %v5331
      %v5612 = vpack.c.bf16 %v5352, %v5332
      %v5613 = vpack.c.bf16 %v5353, %v5333
      %v5614 = vpack.c.bf16 %v5354, %v5334
      %v5615 = vpack.c.bf16 %v5355, %v5335
      %v5616 = vpack.c.bf16 %v5356, %v5336
      %v5617 = vpack.c.bf16 %v5357, %v5337
      %v5618 = vpack.c.bf16 %v5358, %v5338
      %v5619 = vpack.c.bf16 %v5359, %v5339
      %v5620 = vpack.c.bf16 %v5360, %v5340
      %v5621 = vpack.c.bf16 %v5361, %v5341
      %v5622 = vpack.c.bf16 %v5362, %v5342
      %v5623 = vpack.c.bf16 %v5383, %v5363
      %v5624 = vpack.c.bf16 %v5384, %v5364
      %v5625 = vpack.c.bf16 %v5385, %v5365
      %v5626 = vpack.c.bf16 %v5386, %v5366
      %v5627 = vpack.c.bf16 %v5387, %v5367
      %v5628 = vpack.c.bf16 %v5388, %v5368
      %v5629 = vpack.c.bf16 %v5389, %v5369
      %v5630 = vpack.c.bf16 %v5390, %v5370
      %v5631 = vpack.c.bf16 %v5391, %v5371
      %v5632 = vpack.c.bf16 %v5392, %v5372
      %v5633 = vpack.c.bf16 %v5393, %v5373
      %v5634 = vpack.c.bf16 %v5394, %v5374
      %v5635 = vpack.c.bf16 %v5395, %v5375
      %v5636 = vpack.c.bf16 %v5396, %v5376
      %v5637 = vpack.c.bf16 %v5397, %v5377
      %v5638 = vpack.c.bf16 %v5398, %v5378
      %v5639 = vpack.c.bf16 %v5399, %v5379
      %v5640 = vpack.c.bf16 %v5400, %v5380
      %v5641 = vpack.c.bf16 %v5401, %v5381
      %v5642 = vpack.c.bf16 %v5402, %v5382
      %v5643 = vpack.c.bf16 %v5423, %v5403
      %v5644 = vpack.c.bf16 %v5424, %v5404
      %v5645 = vpack.c.bf16 %v5425, %v5405
      %v5646 = vpack.c.bf16 %v5426, %v5406
      %v5647 = vpack.c.bf16 %v5427, %v5407
      %v5648 = vpack.c.bf16 %v5428, %v5408
      %v5649 = vpack.c.bf16 %v5429, %v5409
      %v5650 = vpack.c.bf16 %v5430, %v5410
      %v5651 = vpack.c.bf16 %v5431, %v5411
      %v5652 = vpack.c.bf16 %v5432, %v5412
      %v5653 = vpack.c.bf16 %v5433, %v5413
      %v5654 = vpack.c.bf16 %v5434, %v5414
      %v5655 = vpack.c.bf16 %v5435, %v5415
      %v5656 = vpack.c.bf16 %v5436, %v5416
      %v5657 = vpack.c.bf16 %v5437, %v5417
      %v5658 = vpack.c.bf16 %v5438, %v5418
      %v5659 = vpack.c.bf16 %v5439, %v5419
      %v5660 = vpack.c.bf16 %v5440, %v5420
      %v5661 = vpack.c.bf16 %v5441, %v5421
      %v5662 = vpack.c.bf16 %v5442, %v5422
      %v5663 = vpack.c.bf16 %v5463, %v5443
      %v5664 = vpack.c.bf16 %v5464, %v5444
      %v5665 = vpack.c.bf16 %v5465, %v5445
      %v5666 = vpack.c.bf16 %v5466, %v5446
      %v5667 = vpack.c.bf16 %v5467, %v5447
      %v5668 = vpack.c.bf16 %v5468, %v5448
      %v5669 = vpack.c.bf16 %v5469, %v5449
      %v5670 = vpack.c.bf16 %v5470, %v5450
      %v5671 = vpack.c.bf16 %v5471, %v5451
      %v5672 = vpack.c.bf16 %v5472, %v5452
      %v5673 = vpack.c.bf16 %v5473, %v5453
      %v5674 = vpack.c.bf16 %v5474, %v5454
      %v5675 = vpack.c.bf16 %v5475, %v5455
      %v5676 = vpack.c.bf16 %v5476, %v5456
      %v5677 = vpack.c.bf16 %v5477, %v5457
      %v5678 = vpack.c.bf16 %v5478, %v5458
      %v5679 = vpack.c.bf16 %v5479, %v5459
      %v5680 = vpack.c.bf16 %v5480, %v5460
      %v5681 = vpack.c.bf16 %v5481, %v5461
      %v5682 = vpack.c.bf16 %v5482, %v5462
      %v5683 = vpack.c.bf16 %v5503, %v5483
      %v5684 = vpack.c.bf16 %v5504, %v5484
      %v5685 = vpack.c.bf16 %v5505, %v5485
      %v5686 = vpack.c.bf16 %v5506, %v5486
      %v5687 = vpack.c.bf16 %v5507, %v5487
      %v5688 = vpack.c.bf16 %v5508, %v5488
      %v5689 = vpack.c.bf16 %v5509, %v5489
      %v5690 = vpack.c.bf16 %v5510, %v5490
      %v5691 = vpack.c.bf16 %v5511, %v5491
      %v5692 = vpack.c.bf16 %v5512, %v5492
      %v5693 = vpack.c.bf16 %v5513, %v5493
      %v5694 = vpack.c.bf16 %v5514, %v5494
      %v5695 = vpack.c.bf16 %v5515, %v5495
      %v5696 = vpack.c.bf16 %v5516, %v5496
      %v5697 = vpack.c.bf16 %v5517, %v5497
      %v5698 = vpack.c.bf16 %v5518, %v5498
      %v5699 = vpack.c.bf16 %v5519, %v5499
      %v5700 = vpack.c.bf16 %v5520, %v5500
      %v5701 = vpack.c.bf16 %v5521, %v5501
      %v5702 = vpack.c.bf16 %v5522, %v5502
      %v5703 = vpack.c.bf16 %v5543, %v5523
      %v5704 = vpack.c.bf16 %v5544, %v5524
      %v5705 = vpack.c.bf16 %v5545, %v5525
      %v5706 = vpack.c.bf16 %v5546, %v5526
      %v5707 = vpack.c.bf16 %v5547, %v5527
      %v5708 = vpack.c.bf16 %v5548, %v5528
      %v5709 = vpack.c.bf16 %v5549, %v5529
      %v5710 = vpack.c.bf16 %v5550, %v5530
      %v5711 = vpack.c.bf16 %v5551, %v5531
      %v5712 = vpack.c.bf16 %v5552, %v5532
      %v5713 = vpack.c.bf16 %v5553, %v5533
      %v5714 = vpack.c.bf16 %v5554, %v5534
      %v5715 = vpack.c.bf16 %v5555, %v5535
      %v5716 = vpack.c.bf16 %v5556, %v5536
      %v5717 = vpack.c.bf16 %v5557, %v5537
      %v5718 = vpack.c.bf16 %v5558, %v5538
      %v5719 = vpack.c.bf16 %v5559, %v5539
      %v5720 = vpack.c.bf16 %v5560, %v5540
      %v5721 = vpack.c.bf16 %v5561, %v5541
      %v5722 = vpack.c.bf16 %v5562, %v5542
      %v5723 = vld [vmem:[%s5] sm:$0xf]
      %v5724 = vld [vmem:[%s5 + $0x4] sm:$0xf]
      %v5725 = vld [vmem:[%s5 + $0x8] sm:$0xf]
      %v5726 = vld [vmem:[%s5 + $0xc] sm:$0xf]
      %v5727 = vld [vmem:[%s5 + $0x10] sm:$0xf]
      %v5728 = vld [vmem:[%s5 + $0x14] sm:$0xf]
      %v5729 = vld [vmem:[%s5 + $0x18] sm:$0xf]
      %v5730 = vld [vmem:[%s5 + $0x1c] sm:$0xf]
      %v5731 = vld [vmem:[%s5 + $0x20] sm:$0xf]
      %v5732 = vld [vmem:[%s5 + $0x24] sm:$0xf]
      %v5733 = vld [vmem:[%s5 + $0x28] sm:$0xf]
      %v5734 = vld [vmem:[%s5 + $0x2c] sm:$0xf]
      %v5735 = vld [vmem:[%s5 + $0x30] sm:$0xf]
      %v5736 = vld [vmem:[%s5 + $0x34] sm:$0xf]
      %v5737 = vld [vmem:[%s5 + $0x38] sm:$0xf]
      %v5738 = vld [vmem:[%s5 + $0x3c] sm:$0xf]
      %v5739 = vld [vmem:[%s5 + $0x40] sm:$0xf]
      %v5740 = vld [vmem:[%s5 + $0x44] sm:$0xf]
      %v5741 = vld [vmem:[%s5 + $0x48] sm:$0xf]
      %v5742 = vld [vmem:[%s5 + $0x4c] sm:$0xf]
      %v5743 = vld [vmem:[%s5 + $0x50] sm:$0xf]
      %v5744 = vld [vmem:[%s5 + $0x54] sm:$0xf]
      %v5745 = vld [vmem:[%s5 + $0x58] sm:$0xf]
      %v5746 = vld [vmem:[%s5 + $0x5c] sm:$0xf]
      %v5747 = vld [vmem:[%s5 + $0x60] sm:$0xf]
      %v5748 = vld [vmem:[%s5 + $0x64] sm:$0xf]
      %v5749 = vld [vmem:[%s5 + $0x68] sm:$0xf]
      %v5750 = vld [vmem:[%s5 + $0x6c] sm:$0xf]
      %v5751 = vld [vmem:[%s5 + $0x70] sm:$0xf]
      %v5752 = vld [vmem:[%s5 + $0x74] sm:$0xf]
      %v5753 = vld [vmem:[%s5 + $0x78] sm:$0xf]
      %v5754 = vld [vmem:[%s5 + $0x7c] sm:$0xf]
      %v5755 = vld [vmem:[%s5 + $0x80] sm:$0xf]
      %v5756 = vld [vmem:[%s5 + $0x84] sm:$0xf]
      %v5757 = vld [vmem:[%s5 + $0x88] sm:$0xf]
      %v5758 = vld [vmem:[%s5 + $0x8c] sm:$0xf]
      %v5759 = vld [vmem:[%s5 + $0x90] sm:$0xf]
      %v5760 = vld [vmem:[%s5 + $0x94] sm:$0xf]
      %v5761 = vld [vmem:[%s5 + $0x98] sm:$0xf]
      %v5762 = vld [vmem:[%s5 + $0x9c] sm:$0xf]
      %v5763 = vld [vmem:[%s5 + $0xa0] sm:$0xf]
      %v5764 = vld [vmem:[%s5 + $0xa4] sm:$0xf]
      %v5765 = vld [vmem:[%s5 + $0xa8] sm:$0xf]
      %v5766 = vld [vmem:[%s5 + $0xac] sm:$0xf]
      %v5767 = vld [vmem:[%s5 + $0xb0] sm:$0xf]
      %v5768 = vld [vmem:[%s5 + $0xb4] sm:$0xf]
      %v5769 = vld [vmem:[%s5 + $0xb8] sm:$0xf]
      %v5770 = vld [vmem:[%s5 + $0xbc] sm:$0xf]
      %v5771 = vld [vmem:[%s5 + $0xc0] sm:$0xf]
      %v5772 = vld [vmem:[%s5 + $0xc4] sm:$0xf]
      %v5773 = vld [vmem:[%s5 + $0xc8] sm:$0xf]
      %v5774 = vld [vmem:[%s5 + $0xcc] sm:$0xf]
      %v5775 = vld [vmem:[%s5 + $0xd0] sm:$0xf]
      %v5776 = vld [vmem:[%s5 + $0xd4] sm:$0xf]
      %v5777 = vld [vmem:[%s5 + $0xd8] sm:$0xf]
      %v5778 = vld [vmem:[%s5 + $0xdc] sm:$0xf]
      %v5779 = vld [vmem:[%s5 + $0xe0] sm:$0xf]
      %v5780 = vld [vmem:[%s5 + $0xe4] sm:$0xf]
      %v5781 = vld [vmem:[%s5 + $0xe8] sm:$0xf]
      %v5782 = vld [vmem:[%s5 + $0xec] sm:$0xf]
      %v5783 = vld [vmem:[%s5 + $0xf0] sm:$0xf]
      %v5784 = vld [vmem:[%s5 + $0xf4] sm:$0xf]
      %v5785 = vld [vmem:[%s5 + $0xf8] sm:$0xf]
      %v5786 = vld [vmem:[%s5 + $0xfc] sm:$0xf]
      %v5787 = vld [vmem:[%s5 + $0x100] sm:$0xf]
      %v5788 = vld [vmem:[%s5 + $0x104] sm:$0xf]
      %v5789 = vld [vmem:[%s5 + $0x108] sm:$0xf]
      %v5790 = vld [vmem:[%s5 + $0x10c] sm:$0xf]
      %v5791 = vld [vmem:[%s5 + $0x110] sm:$0xf]
      %v5792 = vld [vmem:[%s5 + $0x114] sm:$0xf]
      %v5793 = vld [vmem:[%s5 + $0x118] sm:$0xf]
      %v5794 = vld [vmem:[%s5 + $0x11c] sm:$0xf]
      %v5795 = vld [vmem:[%s5 + $0x120] sm:$0xf]
      %v5796 = vld [vmem:[%s5 + $0x124] sm:$0xf]
      %v5797 = vld [vmem:[%s5 + $0x128] sm:$0xf]
      %v5798 = vld [vmem:[%s5 + $0x12c] sm:$0xf]
      %v5799 = vld [vmem:[%s5 + $0x130] sm:$0xf]
      %v5800 = vld [vmem:[%s5 + $0x134] sm:$0xf]
      %v5801 = vld [vmem:[%s5 + $0x138] sm:$0xf]
      %v5802 = vld [vmem:[%s5 + $0x13c] sm:$0xf]
      %v5803 = vld [vmem:[%s5 + $0x140] sm:$0xf]
      %v5804 = vld [vmem:[%s5 + $0x144] sm:$0xf]
      %v5805 = vld [vmem:[%s5 + $0x148] sm:$0xf]
      %v5806 = vld [vmem:[%s5 + $0x14c] sm:$0xf]
      %v5807 = vld [vmem:[%s5 + $0x150] sm:$0xf]
      %v5808 = vld [vmem:[%s5 + $0x154] sm:$0xf]
      %v5809 = vld [vmem:[%s5 + $0x158] sm:$0xf]
      %v5810 = vld [vmem:[%s5 + $0x15c] sm:$0xf]
      %v5811 = vld [vmem:[%s5 + $0x160] sm:$0xf]
      %v5812 = vld [vmem:[%s5 + $0x164] sm:$0xf]
      %v5813 = vld [vmem:[%s5 + $0x168] sm:$0xf]
      %v5814 = vld [vmem:[%s5 + $0x16c] sm:$0xf]
      %v5815 = vld [vmem:[%s5 + $0x170] sm:$0xf]
      %v5816 = vld [vmem:[%s5 + $0x174] sm:$0xf]
      %v5817 = vld [vmem:[%s5 + $0x178] sm:$0xf]
      %v5818 = vld [vmem:[%s5 + $0x17c] sm:$0xf]
      %v5819 = vld [vmem:[%s5 + $0x180] sm:$0xf]
      %v5820 = vld [vmem:[%s5 + $0x184] sm:$0xf]
      %v5821 = vld [vmem:[%s5 + $0x188] sm:$0xf]
      %v5822 = vld [vmem:[%s5 + $0x18c] sm:$0xf]
      %v5823 = vld [vmem:[%s5 + $0x190] sm:$0xf]
      %v5824 = vld [vmem:[%s5 + $0x194] sm:$0xf]
      %v5825 = vld [vmem:[%s5 + $0x198] sm:$0xf]
      %v5826 = vld [vmem:[%s5 + $0x19c] sm:$0xf]
      %v5827 = vld [vmem:[%s5 + $0x1a0] sm:$0xf]
      %v5828 = vld [vmem:[%s5 + $0x1a4] sm:$0xf]
      %v5829 = vld [vmem:[%s5 + $0x1a8] sm:$0xf]
      %v5830 = vld [vmem:[%s5 + $0x1ac] sm:$0xf]
      %v5831 = vld [vmem:[%s5 + $0x1b0] sm:$0xf]
      %v5832 = vld [vmem:[%s5 + $0x1b4] sm:$0xf]
      %v5833 = vld [vmem:[%s5 + $0x1b8] sm:$0xf]
      %v5834 = vld [vmem:[%s5 + $0x1bc] sm:$0xf]
      %v5835 = vld [vmem:[%s5 + $0x1c0] sm:$0xf]
      %v5836 = vld [vmem:[%s5 + $0x1c4] sm:$0xf]
      %v5837 = vld [vmem:[%s5 + $0x1c8] sm:$0xf]
      %v5838 = vld [vmem:[%s5 + $0x1cc] sm:$0xf]
      %v5839 = vld [vmem:[%s5 + $0x1d0] sm:$0xf]
      %v5840 = vld [vmem:[%s5 + $0x1d4] sm:$0xf]
      %v5841 = vld [vmem:[%s5 + $0x1d8] sm:$0xf]
      %v5842 = vld [vmem:[%s5 + $0x1dc] sm:$0xf]
      %v5843 = vld [vmem:[%s5 + $0x1e0] sm:$0xf]
      %v5844 = vld [vmem:[%s5 + $0x1e4] sm:$0xf]
      %v5845 = vld [vmem:[%s5 + $0x1e8] sm:$0xf]
      %v5846 = vld [vmem:[%s5 + $0x1ec] sm:$0xf]
      %v5847 = vld [vmem:[%s5 + $0x1f0] sm:$0xf]
      %v5848 = vld [vmem:[%s5 + $0x1f4] sm:$0xf]
      %v5849 = vld [vmem:[%s5 + $0x1f8] sm:$0xf]
      %v5850 = vld [vmem:[%s5 + $0x1fc] sm:$0xf]
      %v5851 = vld [vmem:[%s5 + $0x200] sm:$0xf]
      %v5852 = vld [vmem:[%s5 + $0x204] sm:$0xf]
      %v5853 = vld [vmem:[%s5 + $0x208] sm:$0xf]
      %v5854 = vld [vmem:[%s5 + $0x20c] sm:$0xf]
      %v5855 = vld [vmem:[%s5 + $0x210] sm:$0xf]
      %v5856 = vld [vmem:[%s5 + $0x214] sm:$0xf]
      %v5857 = vld [vmem:[%s5 + $0x218] sm:$0xf]
      %v5858 = vld [vmem:[%s5 + $0x21c] sm:$0xf]
      %v5859 = vld [vmem:[%s5 + $0x220] sm:$0xf]
      %v5860 = vld [vmem:[%s5 + $0x224] sm:$0xf]
      %v5861 = vld [vmem:[%s5 + $0x228] sm:$0xf]
      %v5862 = vld [vmem:[%s5 + $0x22c] sm:$0xf]
      %v5863 = vld [vmem:[%s5 + $0x230] sm:$0xf]
      %v5864 = vld [vmem:[%s5 + $0x234] sm:$0xf]
      %v5865 = vld [vmem:[%s5 + $0x238] sm:$0xf]
      %v5866 = vld [vmem:[%s5 + $0x23c] sm:$0xf]
      %v5867 = vld [vmem:[%s5 + $0x240] sm:$0xf]
      %v5868 = vld [vmem:[%s5 + $0x244] sm:$0xf]
      %v5869 = vld [vmem:[%s5 + $0x248] sm:$0xf]
      %v5870 = vld [vmem:[%s5 + $0x24c] sm:$0xf]
      %v5871 = vld [vmem:[%s5 + $0x250] sm:$0xf]
      %v5872 = vld [vmem:[%s5 + $0x254] sm:$0xf]
      %v5873 = vld [vmem:[%s5 + $0x258] sm:$0xf]
      %v5874 = vld [vmem:[%s5 + $0x25c] sm:$0xf]
      %v5875 = vld [vmem:[%s5 + $0x260] sm:$0xf]
      %v5876 = vld [vmem:[%s5 + $0x264] sm:$0xf]
      %v5877 = vld [vmem:[%s5 + $0x268] sm:$0xf]
      %v5878 = vld [vmem:[%s5 + $0x26c] sm:$0xf]
      %v5879 = vld [vmem:[%s5 + $0x270] sm:$0xf]
      %v5880 = vld [vmem:[%s5 + $0x274] sm:$0xf]
      %v5881 = vld [vmem:[%s5 + $0x278] sm:$0xf]
      %v5882 = vld [vmem:[%s5 + $0x27c] sm:$0xf]
      %v5883 = vld [vmem:[%s5 + $0x280] sm:$0xf]
      %v5884 = vld [vmem:[%s5 + $0x284] sm:$0xf]
      %v5885 = vld [vmem:[%s5 + $0x288] sm:$0xf]
      %v5886 = vld [vmem:[%s5 + $0x28c] sm:$0xf]
      %v5887 = vld [vmem:[%s5 + $0x290] sm:$0xf]
      %v5888 = vld [vmem:[%s5 + $0x294] sm:$0xf]
      %v5889 = vld [vmem:[%s5 + $0x298] sm:$0xf]
      %v5890 = vld [vmem:[%s5 + $0x29c] sm:$0xf]
      %v5891 = vld [vmem:[%s5 + $0x2a0] sm:$0xf]
      %v5892 = vld [vmem:[%s5 + $0x2a4] sm:$0xf]
      %v5893 = vld [vmem:[%s5 + $0x2a8] sm:$0xf]
      %v5894 = vld [vmem:[%s5 + $0x2ac] sm:$0xf]
      %v5895 = vld [vmem:[%s5 + $0x2b0] sm:$0xf]
      %v5896 = vld [vmem:[%s5 + $0x2b4] sm:$0xf]
      %v5897 = vld [vmem:[%s5 + $0x2b8] sm:$0xf]
      %v5898 = vld [vmem:[%s5 + $0x2bc] sm:$0xf]
      %v5899 = vld [vmem:[%s5 + $0x2c0] sm:$0xf]
      %v5900 = vld [vmem:[%s5 + $0x2c4] sm:$0xf]
      %v5901 = vld [vmem:[%s5 + $0x2c8] sm:$0xf]
      %v5902 = vld [vmem:[%s5 + $0x2cc] sm:$0xf]
      %v5903 = vld [vmem:[%s5 + $0x2d0] sm:$0xf]
      %v5904 = vld [vmem:[%s5 + $0x2d4] sm:$0xf]
      %v5905 = vld [vmem:[%s5 + $0x2d8] sm:$0xf]
      %v5906 = vld [vmem:[%s5 + $0x2dc] sm:$0xf]
      %v5907 = vld [vmem:[%s5 + $0x2e0] sm:$0xf]
      %v5908 = vld [vmem:[%s5 + $0x2e4] sm:$0xf]
      %v5909 = vld [vmem:[%s5 + $0x2e8] sm:$0xf]
      %v5910 = vld [vmem:[%s5 + $0x2ec] sm:$0xf]
      %v5911 = vld [vmem:[%s5 + $0x2f0] sm:$0xf]
      %v5912 = vld [vmem:[%s5 + $0x2f4] sm:$0xf]
      %v5913 = vld [vmem:[%s5 + $0x2f8] sm:$0xf]
      %v5914 = vld [vmem:[%s5 + $0x2fc] sm:$0xf]
      %v5915 = vld [vmem:[%s5 + $0x300] sm:$0xf]
      %v5916 = vld [vmem:[%s5 + $0x304] sm:$0xf]
      %v5917 = vld [vmem:[%s5 + $0x308] sm:$0xf]
      %v5918 = vld [vmem:[%s5 + $0x30c] sm:$0xf]
      %v5919 = vld [vmem:[%s5 + $0x310] sm:$0xf]
      %v5920 = vld [vmem:[%s5 + $0x314] sm:$0xf]
      %v5921 = vld [vmem:[%s5 + $0x318] sm:$0xf]
      %v5922 = vld [vmem:[%s5 + $0x31c] sm:$0xf]
      %v5923 = vld [vmem:[%s5 + $0x320] sm:$0xf]
      %v5924 = vld [vmem:[%s5 + $0x324] sm:$0xf]
      %v5925 = vld [vmem:[%s5 + $0x328] sm:$0xf]
      %v5926 = vld [vmem:[%s5 + $0x32c] sm:$0xf]
      %v5927 = vld [vmem:[%s5 + $0x330] sm:$0xf]
      %v5928 = vld [vmem:[%s5 + $0x334] sm:$0xf]
      %v5929 = vld [vmem:[%s5 + $0x338] sm:$0xf]
      %v5930 = vld [vmem:[%s5 + $0x33c] sm:$0xf]
      %v5931 = vld [vmem:[%s5 + $0x340] sm:$0xf]
      %v5932 = vld [vmem:[%s5 + $0x344] sm:$0xf]
      %v5933 = vld [vmem:[%s5 + $0x348] sm:$0xf]
      %v5934 = vld [vmem:[%s5 + $0x34c] sm:$0xf]
      %v5935 = vld [vmem:[%s5 + $0x350] sm:$0xf]
      %v5936 = vld [vmem:[%s5 + $0x354] sm:$0xf]
      %v5937 = vld [vmem:[%s5 + $0x358] sm:$0xf]
      %v5938 = vld [vmem:[%s5 + $0x35c] sm:$0xf]
      %v5939 = vld [vmem:[%s5 + $0x360] sm:$0xf]
      %v5940 = vld [vmem:[%s5 + $0x364] sm:$0xf]
      %v5941 = vld [vmem:[%s5 + $0x368] sm:$0xf]
      %v5942 = vld [vmem:[%s5 + $0x36c] sm:$0xf]
      %v5943 = vld [vmem:[%s5 + $0x370] sm:$0xf]
      %v5944 = vld [vmem:[%s5 + $0x374] sm:$0xf]
      %v5945 = vld [vmem:[%s5 + $0x378] sm:$0xf]
      %v5946 = vld [vmem:[%s5 + $0x37c] sm:$0xf]
      %v5947 = vld [vmem:[%s5 + $0x380] sm:$0xf]
      %v5948 = vld [vmem:[%s5 + $0x384] sm:$0xf]
      %v5949 = vld [vmem:[%s5 + $0x388] sm:$0xf]
      %v5950 = vld [vmem:[%s5 + $0x38c] sm:$0xf]
      %v5951 = vld [vmem:[%s5 + $0x390] sm:$0xf]
      %v5952 = vld [vmem:[%s5 + $0x394] sm:$0xf]
      %v5953 = vld [vmem:[%s5 + $0x398] sm:$0xf]
      %v5954 = vld [vmem:[%s5 + $0x39c] sm:$0xf]
      %v5955 = vld [vmem:[%s5 + $0x3a0] sm:$0xf]
      %v5956 = vld [vmem:[%s5 + $0x3a4] sm:$0xf]
      %v5957 = vld [vmem:[%s5 + $0x3a8] sm:$0xf]
      %v5958 = vld [vmem:[%s5 + $0x3ac] sm:$0xf]
      %v5959 = vld [vmem:[%s5 + $0x3b0] sm:$0xf]
      %v5960 = vld [vmem:[%s5 + $0x3b4] sm:$0xf]
      %v5961 = vld [vmem:[%s5 + $0x3b8] sm:$0xf]
      %v5962 = vld [vmem:[%s5 + $0x3bc] sm:$0xf]
      %v5963 = vld [vmem:[%s5 + $0x3c0] sm:$0xf]
      %v5964 = vld [vmem:[%s5 + $0x3c4] sm:$0xf]
      %v5965 = vld [vmem:[%s5 + $0x3c8] sm:$0xf]
      %v5966 = vld [vmem:[%s5 + $0x3cc] sm:$0xf]
      %v5967 = vld [vmem:[%s5 + $0x3d0] sm:$0xf]
      %v5968 = vld [vmem:[%s5 + $0x3d4] sm:$0xf]
      %v5969 = vld [vmem:[%s5 + $0x3d8] sm:$0xf]
      %v5970 = vld [vmem:[%s5 + $0x3dc] sm:$0xf]
      %v5971 = vld [vmem:[%s5 + $0x3e0] sm:$0xf]
      %v5972 = vld [vmem:[%s5 + $0x3e4] sm:$0xf]
      %v5973 = vld [vmem:[%s5 + $0x3e8] sm:$0xf]
      %v5974 = vld [vmem:[%s5 + $0x3ec] sm:$0xf]
      %v5975 = vld [vmem:[%s5 + $0x3f0] sm:$0xf]
      %v5976 = vld [vmem:[%s5 + $0x3f4] sm:$0xf]
      %v5977 = vld [vmem:[%s5 + $0x3f8] sm:$0xf]
      %v5978 = vld [vmem:[%s5 + $0x3fc] sm:$0xf]
      %v5979 = vld [vmem:[%s5 + $0x400] sm:$0xf]
      %v5980 = vld [vmem:[%s5 + $0x404] sm:$0xf]
      %v5981 = vld [vmem:[%s5 + $0x408] sm:$0xf]
      %v5982 = vld [vmem:[%s5 + $0x40c] sm:$0xf]
      %v5983 = vld [vmem:[%s5 + $0x410] sm:$0xf]
      %v5984 = vld [vmem:[%s5 + $0x414] sm:$0xf]
      %v5985 = vld [vmem:[%s5 + $0x418] sm:$0xf]
      %v5986 = vld [vmem:[%s5 + $0x41c] sm:$0xf]
      %v5987 = vld [vmem:[%s5 + $0x420] sm:$0xf]
      %v5988 = vld [vmem:[%s5 + $0x424] sm:$0xf]
      %v5989 = vld [vmem:[%s5 + $0x428] sm:$0xf]
      %v5990 = vld [vmem:[%s5 + $0x42c] sm:$0xf]
      %v5991 = vld [vmem:[%s5 + $0x430] sm:$0xf]
      %v5992 = vld [vmem:[%s5 + $0x434] sm:$0xf]
      %v5993 = vld [vmem:[%s5 + $0x438] sm:$0xf]
      %v5994 = vld [vmem:[%s5 + $0x43c] sm:$0xf]
      %v5995 = vld [vmem:[%s5 + $0x440] sm:$0xf]
      %v5996 = vld [vmem:[%s5 + $0x444] sm:$0xf]
      %v5997 = vld [vmem:[%s5 + $0x448] sm:$0xf]
      %v5998 = vld [vmem:[%s5 + $0x44c] sm:$0xf]
      %v5999 = vld [vmem:[%s5 + $0x450] sm:$0xf]
      %v6000 = vld [vmem:[%s5 + $0x454] sm:$0xf]
      %v6001 = vld [vmem:[%s5 + $0x458] sm:$0xf]
      %v6002 = vld [vmem:[%s5 + $0x45c] sm:$0xf]
      %v6003 = vld [vmem:[%s5 + $0x460] sm:$0xf]
      %v6004 = vld [vmem:[%s5 + $0x464] sm:$0xf]
      %v6005 = vld [vmem:[%s5 + $0x468] sm:$0xf]
      %v6006 = vld [vmem:[%s5 + $0x46c] sm:$0xf]
      %v6007 = vld [vmem:[%s5 + $0x470] sm:$0xf]
      %v6008 = vld [vmem:[%s5 + $0x474] sm:$0xf]
      %v6009 = vld [vmem:[%s5 + $0x478] sm:$0xf]
      %v6010 = vld [vmem:[%s5 + $0x47c] sm:$0xf]
      %v6011 = vld [vmem:[%s5 + $0x480] sm:$0xf]
      %v6012 = vld [vmem:[%s5 + $0x484] sm:$0xf]
      %v6013 = vld [vmem:[%s5 + $0x488] sm:$0xf]
      %v6014 = vld [vmem:[%s5 + $0x48c] sm:$0xf]
      %v6015 = vld [vmem:[%s5 + $0x490] sm:$0xf]
      %v6016 = vld [vmem:[%s5 + $0x494] sm:$0xf]
      %v6017 = vld [vmem:[%s5 + $0x498] sm:$0xf]
      %v6018 = vld [vmem:[%s5 + $0x49c] sm:$0xf]
      %v6019 = vld [vmem:[%s5 + $0x4a0] sm:$0xf]
      %v6020 = vld [vmem:[%s5 + $0x4a4] sm:$0xf]
      %v6021 = vld [vmem:[%s5 + $0x4a8] sm:$0xf]
      %v6022 = vld [vmem:[%s5 + $0x4ac] sm:$0xf]
      %v6023 = vld [vmem:[%s5 + $0x4b0] sm:$0xf]
      %v6024 = vld [vmem:[%s5 + $0x4b4] sm:$0xf]
      %v6025 = vld [vmem:[%s5 + $0x4b8] sm:$0xf]
      %v6026 = vld [vmem:[%s5 + $0x4bc] sm:$0xf]
      %v6027 = vld [vmem:[%s5 + $0x4c0] sm:$0xf]
      %v6028 = vld [vmem:[%s5 + $0x4c4] sm:$0xf]
      %v6029 = vld [vmem:[%s5 + $0x4c8] sm:$0xf]
      %v6030 = vld [vmem:[%s5 + $0x4cc] sm:$0xf]
      %v6031 = vld [vmem:[%s5 + $0x4d0] sm:$0xf]
      %v6032 = vld [vmem:[%s5 + $0x4d4] sm:$0xf]
      %v6033 = vld [vmem:[%s5 + $0x4d8] sm:$0xf]
      %v6034 = vld [vmem:[%s5 + $0x4dc] sm:$0xf]
      %v6035 = vld [vmem:[%s5 + $0x4e0] sm:$0xf]
      %v6036 = vld [vmem:[%s5 + $0x4e4] sm:$0xf]
      %v6037 = vld [vmem:[%s5 + $0x4e8] sm:$0xf]
      %v6038 = vld [vmem:[%s5 + $0x4ec] sm:$0xf]
      %v6039 = vld [vmem:[%s5 + $0x4f0] sm:$0xf]
      %v6040 = vld [vmem:[%s5 + $0x4f4] sm:$0xf]
      %v6041 = vld [vmem:[%s5 + $0x4f8] sm:$0xf]
      %v6042 = vld [vmem:[%s5 + $0x4fc] sm:$0xf]
      %v6043 = vld [vmem:[%s6] sm:$0x1]
      %v6045 = vlaneseq
      %v6046 = vshrl.u32 %v6045, 7
      %v6047 = vsub.s32 0, %v6046
      %v6048 = vrot.slane %v6043, %v6047
      %v6370 = vunpack.c.l.b16 %v5723
      %v6371 = vunpack.c.l.b16 %v5724
      %v6372 = vunpack.c.l.b16 %v5725
      %v6373 = vunpack.c.l.b16 %v5726
      %v6374 = vunpack.c.l.b16 %v5727
      %v6375 = vunpack.c.l.b16 %v5728
      %v6376 = vunpack.c.l.b16 %v5729
      %v6377 = vunpack.c.l.b16 %v5730
      %v6378 = vunpack.c.l.b16 %v5731
      %v6379 = vunpack.c.l.b16 %v5732
      %v6380 = vunpack.c.l.b16 %v5733
      %v6381 = vunpack.c.l.b16 %v5734
      %v6382 = vunpack.c.l.b16 %v5735
      %v6383 = vunpack.c.l.b16 %v5736
      %v6384 = vunpack.c.l.b16 %v5737
      %v6385 = vunpack.c.l.b16 %v5738
      %v6386 = vunpack.c.l.b16 %v5739
      %v6387 = vunpack.c.l.b16 %v5740
      %v6388 = vunpack.c.l.b16 %v5741
      %v6389 = vunpack.c.l.b16 %v5742
      %v6390 = vunpack.c.l.b16 %v5743
      %v6391 = vunpack.c.l.b16 %v5744
      %v6392 = vunpack.c.l.b16 %v5745
      %v6393 = vunpack.c.l.b16 %v5746
      %v6394 = vunpack.c.l.b16 %v5747
      %v6395 = vunpack.c.l.b16 %v5748
      %v6396 = vunpack.c.l.b16 %v5749
      %v6397 = vunpack.c.l.b16 %v5750
      %v6398 = vunpack.c.l.b16 %v5751
      %v6399 = vunpack.c.l.b16 %v5752
      %v6400 = vunpack.c.l.b16 %v5753
      %v6401 = vunpack.c.l.b16 %v5754
      %v6402 = vunpack.c.l.b16 %v5755
      %v6403 = vunpack.c.l.b16 %v5756
      %v6404 = vunpack.c.l.b16 %v5757
      %v6405 = vunpack.c.l.b16 %v5758
      %v6406 = vunpack.c.l.b16 %v5759
      %v6407 = vunpack.c.l.b16 %v5760
      %v6408 = vunpack.c.l.b16 %v5761
      %v6409 = vunpack.c.l.b16 %v5762
      %v6410 = vunpack.c.l.b16 %v5763
      %v6411 = vunpack.c.l.b16 %v5764
      %v6412 = vunpack.c.l.b16 %v5765
      %v6413 = vunpack.c.l.b16 %v5766
      %v6414 = vunpack.c.l.b16 %v5767
      %v6415 = vunpack.c.l.b16 %v5768
      %v6416 = vunpack.c.l.b16 %v5769
      %v6417 = vunpack.c.l.b16 %v5770
      %v6418 = vunpack.c.l.b16 %v5771
      %v6419 = vunpack.c.l.b16 %v5772
      %v6420 = vunpack.c.l.b16 %v5773
      %v6421 = vunpack.c.l.b16 %v5774
      %v6422 = vunpack.c.l.b16 %v5775
      %v6423 = vunpack.c.l.b16 %v5776
      %v6424 = vunpack.c.l.b16 %v5777
      %v6425 = vunpack.c.l.b16 %v5778
      %v6426 = vunpack.c.l.b16 %v5779
      %v6427 = vunpack.c.l.b16 %v5780
      %v6428 = vunpack.c.l.b16 %v5781
      %v6429 = vunpack.c.l.b16 %v5782
      %v6430 = vunpack.c.l.b16 %v5783
      %v6431 = vunpack.c.l.b16 %v5784
      %v6432 = vunpack.c.l.b16 %v5785
      %v6433 = vunpack.c.l.b16 %v5786
      %v6434 = vunpack.c.l.b16 %v5787
      %v6435 = vunpack.c.l.b16 %v5788
      %v6436 = vunpack.c.l.b16 %v5789
      %v6437 = vunpack.c.l.b16 %v5790
      %v6438 = vunpack.c.l.b16 %v5791
      %v6439 = vunpack.c.l.b16 %v5792
      %v6440 = vunpack.c.l.b16 %v5793
      %v6441 = vunpack.c.l.b16 %v5794
      %v6442 = vunpack.c.l.b16 %v5795
      %v6443 = vunpack.c.l.b16 %v5796
      %v6444 = vunpack.c.l.b16 %v5797
      %v6445 = vunpack.c.l.b16 %v5798
      %v6446 = vunpack.c.l.b16 %v5799
      %v6447 = vunpack.c.l.b16 %v5800
      %v6448 = vunpack.c.l.b16 %v5801
      %v6449 = vunpack.c.l.b16 %v5802
      %v6450 = vunpack.c.l.b16 %v5803
      %v6451 = vunpack.c.l.b16 %v5804
      %v6452 = vunpack.c.l.b16 %v5805
      %v6453 = vunpack.c.l.b16 %v5806
      %v6454 = vunpack.c.l.b16 %v5807
      %v6455 = vunpack.c.l.b16 %v5808
      %v6456 = vunpack.c.l.b16 %v5809
      %v6457 = vunpack.c.l.b16 %v5810
      %v6458 = vunpack.c.l.b16 %v5811
      %v6459 = vunpack.c.l.b16 %v5812
      %v6460 = vunpack.c.l.b16 %v5813
      %v6461 = vunpack.c.l.b16 %v5814
      %v6462 = vunpack.c.l.b16 %v5815
      %v6463 = vunpack.c.l.b16 %v5816
      %v6464 = vunpack.c.l.b16 %v5817
      %v6465 = vunpack.c.l.b16 %v5818
      %v6466 = vunpack.c.l.b16 %v5819
      %v6467 = vunpack.c.l.b16 %v5820
      %v6468 = vunpack.c.l.b16 %v5821
      %v6469 = vunpack.c.l.b16 %v5822
      %v6470 = vunpack.c.l.b16 %v5823
      %v6471 = vunpack.c.l.b16 %v5824
      %v6472 = vunpack.c.l.b16 %v5825
      %v6473 = vunpack.c.l.b16 %v5826
      %v6474 = vunpack.c.l.b16 %v5827
      %v6475 = vunpack.c.l.b16 %v5828
      %v6476 = vunpack.c.l.b16 %v5829
      %v6477 = vunpack.c.l.b16 %v5830
      %v6478 = vunpack.c.l.b16 %v5831
      %v6479 = vunpack.c.l.b16 %v5832
      %v6480 = vunpack.c.l.b16 %v5833
      %v6481 = vunpack.c.l.b16 %v5834
      %v6482 = vunpack.c.l.b16 %v5835
      %v6483 = vunpack.c.l.b16 %v5836
      %v6484 = vunpack.c.l.b16 %v5837
      %v6485 = vunpack.c.l.b16 %v5838
      %v6486 = vunpack.c.l.b16 %v5839
      %v6487 = vunpack.c.l.b16 %v5840
      %v6488 = vunpack.c.l.b16 %v5841
      %v6489 = vunpack.c.l.b16 %v5842
      %v6490 = vunpack.c.l.b16 %v5843
      %v6491 = vunpack.c.l.b16 %v5844
      %v6492 = vunpack.c.l.b16 %v5845
      %v6493 = vunpack.c.l.b16 %v5846
      %v6494 = vunpack.c.l.b16 %v5847
      %v6495 = vunpack.c.l.b16 %v5848
      %v6496 = vunpack.c.l.b16 %v5849
      %v6497 = vunpack.c.l.b16 %v5850
      %v6498 = vunpack.c.l.b16 %v5851
      %v6499 = vunpack.c.l.b16 %v5852
      %v6500 = vunpack.c.l.b16 %v5853
      %v6501 = vunpack.c.l.b16 %v5854
      %v6502 = vunpack.c.l.b16 %v5855
      %v6503 = vunpack.c.l.b16 %v5856
      %v6504 = vunpack.c.l.b16 %v5857
      %v6505 = vunpack.c.l.b16 %v5858
      %v6506 = vunpack.c.l.b16 %v5859
      %v6507 = vunpack.c.l.b16 %v5860
      %v6508 = vunpack.c.l.b16 %v5861
      %v6509 = vunpack.c.l.b16 %v5862
      %v6510 = vunpack.c.l.b16 %v5863
      %v6511 = vunpack.c.l.b16 %v5864
      %v6512 = vunpack.c.l.b16 %v5865
      %v6513 = vunpack.c.l.b16 %v5866
      %v6514 = vunpack.c.l.b16 %v5867
      %v6515 = vunpack.c.l.b16 %v5868
      %v6516 = vunpack.c.l.b16 %v5869
      %v6517 = vunpack.c.l.b16 %v5870
      %v6518 = vunpack.c.l.b16 %v5871
      %v6519 = vunpack.c.l.b16 %v5872
      %v6520 = vunpack.c.l.b16 %v5873
      %v6521 = vunpack.c.l.b16 %v5874
      %v6522 = vunpack.c.l.b16 %v5875
      %v6523 = vunpack.c.l.b16 %v5876
      %v6524 = vunpack.c.l.b16 %v5877
      %v6525 = vunpack.c.l.b16 %v5878
      %v6526 = vunpack.c.l.b16 %v5879
      %v6527 = vunpack.c.l.b16 %v5880
      %v6528 = vunpack.c.l.b16 %v5881
      %v6529 = vunpack.c.l.b16 %v5882
      %v6530 = vunpack.c.l.b16 %v5883
      %v6531 = vunpack.c.l.b16 %v5884
      %v6532 = vunpack.c.l.b16 %v5885
      %v6533 = vunpack.c.l.b16 %v5886
      %v6534 = vunpack.c.l.b16 %v5887
      %v6535 = vunpack.c.l.b16 %v5888
      %v6536 = vunpack.c.l.b16 %v5889
      %v6537 = vunpack.c.l.b16 %v5890
      %v6538 = vunpack.c.l.b16 %v5891
      %v6539 = vunpack.c.l.b16 %v5892
      %v6540 = vunpack.c.l.b16 %v5893
      %v6541 = vunpack.c.l.b16 %v5894
      %v6542 = vunpack.c.l.b16 %v5895
      %v6543 = vunpack.c.l.b16 %v5896
      %v6544 = vunpack.c.l.b16 %v5897
      %v6545 = vunpack.c.l.b16 %v5898
      %v6546 = vunpack.c.l.b16 %v5899
      %v6547 = vunpack.c.l.b16 %v5900
      %v6548 = vunpack.c.l.b16 %v5901
      %v6549 = vunpack.c.l.b16 %v5902
      %v6550 = vunpack.c.l.b16 %v5903
      %v6551 = vunpack.c.l.b16 %v5904
      %v6552 = vunpack.c.l.b16 %v5905
      %v6553 = vunpack.c.l.b16 %v5906
      %v6554 = vunpack.c.l.b16 %v5907
      %v6555 = vunpack.c.l.b16 %v5908
      %v6556 = vunpack.c.l.b16 %v5909
      %v6557 = vunpack.c.l.b16 %v5910
      %v6558 = vunpack.c.l.b16 %v5911
      %v6559 = vunpack.c.l.b16 %v5912
      %v6560 = vunpack.c.l.b16 %v5913
      %v6561 = vunpack.c.l.b16 %v5914
      %v6562 = vunpack.c.l.b16 %v5915
      %v6563 = vunpack.c.l.b16 %v5916
      %v6564 = vunpack.c.l.b16 %v5917
      %v6565 = vunpack.c.l.b16 %v5918
      %v6566 = vunpack.c.l.b16 %v5919
      %v6567 = vunpack.c.l.b16 %v5920
      %v6568 = vunpack.c.l.b16 %v5921
      %v6569 = vunpack.c.l.b16 %v5922
      %v6570 = vunpack.c.l.b16 %v5923
      %v6571 = vunpack.c.l.b16 %v5924
      %v6572 = vunpack.c.l.b16 %v5925
      %v6573 = vunpack.c.l.b16 %v5926
      %v6574 = vunpack.c.l.b16 %v5927
      %v6575 = vunpack.c.l.b16 %v5928
      %v6576 = vunpack.c.l.b16 %v5929
      %v6577 = vunpack.c.l.b16 %v5930
      %v6578 = vunpack.c.l.b16 %v5931
      %v6579 = vunpack.c.l.b16 %v5932
      %v6580 = vunpack.c.l.b16 %v5933
      %v6581 = vunpack.c.l.b16 %v5934
      %v6582 = vunpack.c.l.b16 %v5935
      %v6583 = vunpack.c.l.b16 %v5936
      %v6584 = vunpack.c.l.b16 %v5937
      %v6585 = vunpack.c.l.b16 %v5938
      %v6586 = vunpack.c.l.b16 %v5939
      %v6587 = vunpack.c.l.b16 %v5940
      %v6588 = vunpack.c.l.b16 %v5941
      %v6589 = vunpack.c.l.b16 %v5942
      %v6590 = vunpack.c.l.b16 %v5943
      %v6591 = vunpack.c.l.b16 %v5944
      %v6592 = vunpack.c.l.b16 %v5945
      %v6593 = vunpack.c.l.b16 %v5946
      %v6594 = vunpack.c.l.b16 %v5947
      %v6595 = vunpack.c.l.b16 %v5948
      %v6596 = vunpack.c.l.b16 %v5949
      %v6597 = vunpack.c.l.b16 %v5950
      %v6598 = vunpack.c.l.b16 %v5951
      %v6599 = vunpack.c.l.b16 %v5952
      %v6600 = vunpack.c.l.b16 %v5953
      %v6601 = vunpack.c.l.b16 %v5954
      %v6602 = vunpack.c.l.b16 %v5955
      %v6603 = vunpack.c.l.b16 %v5956
      %v6604 = vunpack.c.l.b16 %v5957
      %v6605 = vunpack.c.l.b16 %v5958
      %v6606 = vunpack.c.l.b16 %v5959
      %v6607 = vunpack.c.l.b16 %v5960
      %v6608 = vunpack.c.l.b16 %v5961
      %v6609 = vunpack.c.l.b16 %v5962
      %v6610 = vunpack.c.l.b16 %v5963
      %v6611 = vunpack.c.l.b16 %v5964
      %v6612 = vunpack.c.l.b16 %v5965
      %v6613 = vunpack.c.l.b16 %v5966
      %v6614 = vunpack.c.l.b16 %v5967
      %v6615 = vunpack.c.l.b16 %v5968
      %v6616 = vunpack.c.l.b16 %v5969
      %v6617 = vunpack.c.l.b16 %v5970
      %v6618 = vunpack.c.l.b16 %v5971
      %v6619 = vunpack.c.l.b16 %v5972
      %v6620 = vunpack.c.l.b16 %v5973
      %v6621 = vunpack.c.l.b16 %v5974
      %v6622 = vunpack.c.l.b16 %v5975
      %v6623 = vunpack.c.l.b16 %v5976
      %v6624 = vunpack.c.l.b16 %v5977
      %v6625 = vunpack.c.l.b16 %v5978
      %v6626 = vunpack.c.l.b16 %v5979
      %v6627 = vunpack.c.l.b16 %v5980
      %v6628 = vunpack.c.l.b16 %v5981
      %v6629 = vunpack.c.l.b16 %v5982
      %v6630 = vunpack.c.l.b16 %v5983
      %v6631 = vunpack.c.l.b16 %v5984
      %v6632 = vunpack.c.l.b16 %v5985
      %v6633 = vunpack.c.l.b16 %v5986
      %v6634 = vunpack.c.l.b16 %v5987
      %v6635 = vunpack.c.l.b16 %v5988
      %v6636 = vunpack.c.l.b16 %v5989
      %v6637 = vunpack.c.l.b16 %v5990
      %v6638 = vunpack.c.l.b16 %v5991
      %v6639 = vunpack.c.l.b16 %v5992
      %v6640 = vunpack.c.l.b16 %v5993
      %v6641 = vunpack.c.l.b16 %v5994
      %v6642 = vunpack.c.l.b16 %v5995
      %v6643 = vunpack.c.l.b16 %v5996
      %v6644 = vunpack.c.l.b16 %v5997
      %v6645 = vunpack.c.l.b16 %v5998
      %v6646 = vunpack.c.l.b16 %v5999
      %v6647 = vunpack.c.l.b16 %v6000
      %v6648 = vunpack.c.l.b16 %v6001
      %v6649 = vunpack.c.l.b16 %v6002
      %v6650 = vunpack.c.l.b16 %v6003
      %v6651 = vunpack.c.l.b16 %v6004
      %v6652 = vunpack.c.l.b16 %v6005
      %v6653 = vunpack.c.l.b16 %v6006
      %v6654 = vunpack.c.l.b16 %v6007
      %v6655 = vunpack.c.l.b16 %v6008
      %v6656 = vunpack.c.l.b16 %v6009
      %v6657 = vunpack.c.l.b16 %v6010
      %v6658 = vunpack.c.l.b16 %v6011
      %v6659 = vunpack.c.l.b16 %v6012
      %v6660 = vunpack.c.l.b16 %v6013
      %v6661 = vunpack.c.l.b16 %v6014
      %v6662 = vunpack.c.l.b16 %v6015
      %v6663 = vunpack.c.l.b16 %v6016
      %v6664 = vunpack.c.l.b16 %v6017
      %v6665 = vunpack.c.l.b16 %v6018
      %v6666 = vunpack.c.l.b16 %v6019
      %v6667 = vunpack.c.l.b16 %v6020
      %v6668 = vunpack.c.l.b16 %v6021
      %v6669 = vunpack.c.l.b16 %v6022
      %v6670 = vunpack.c.l.b16 %v6023
      %v6671 = vunpack.c.l.b16 %v6024
      %v6672 = vunpack.c.l.b16 %v6025
      %v6673 = vunpack.c.l.b16 %v6026
      %v6674 = vunpack.c.l.b16 %v6027
      %v6675 = vunpack.c.l.b16 %v6028
      %v6676 = vunpack.c.l.b16 %v6029
      %v6677 = vunpack.c.l.b16 %v6030
      %v6678 = vunpack.c.l.b16 %v6031
      %v6679 = vunpack.c.l.b16 %v6032
      %v6680 = vunpack.c.l.b16 %v6033
      %v6681 = vunpack.c.l.b16 %v6034
      %v6682 = vunpack.c.l.b16 %v6035
      %v6683 = vunpack.c.l.b16 %v6036
      %v6684 = vunpack.c.l.b16 %v6037
      %v6685 = vunpack.c.l.b16 %v6038
      %v6686 = vunpack.c.l.b16 %v6039
      %v6687 = vunpack.c.l.b16 %v6040
      %v6688 = vunpack.c.l.b16 %v6041
      %v6689 = vunpack.c.l.b16 %v6042
      %v6690 = vpack.c.b16 %v6371, %v6370
      %v6691 = vpack.c.b16 %v6373, %v6372
      %v6692 = vpack.c.b16 %v6375, %v6374
      %v6693 = vpack.c.b16 %v6377, %v6376
      %v6694 = vpack.c.b16 %v6379, %v6378
      %v6695 = vpack.c.b16 %v6381, %v6380
      %v6696 = vpack.c.b16 %v6383, %v6382
      %v6697 = vpack.c.b16 %v6385, %v6384
      %v6698 = vpack.c.b16 %v6387, %v6386
      %v6699 = vpack.c.b16 %v6389, %v6388
      %v6700 = vpack.c.b16 %v6391, %v6390
      %v6701 = vpack.c.b16 %v6393, %v6392
      %v6702 = vpack.c.b16 %v6395, %v6394
      %v6703 = vpack.c.b16 %v6397, %v6396
      %v6704 = vpack.c.b16 %v6399, %v6398
      %v6705 = vpack.c.b16 %v6401, %v6400
      %v6706 = vpack.c.b16 %v6403, %v6402
      %v6707 = vpack.c.b16 %v6405, %v6404
      %v6708 = vpack.c.b16 %v6407, %v6406
      %v6709 = vpack.c.b16 %v6409, %v6408
      %v6710 = vpack.c.b16 %v6411, %v6410
      %v6711 = vpack.c.b16 %v6413, %v6412
      %v6712 = vpack.c.b16 %v6415, %v6414
      %v6713 = vpack.c.b16 %v6417, %v6416
      %v6714 = vpack.c.b16 %v6419, %v6418
      %v6715 = vpack.c.b16 %v6421, %v6420
      %v6716 = vpack.c.b16 %v6423, %v6422
      %v6717 = vpack.c.b16 %v6425, %v6424
      %v6718 = vpack.c.b16 %v6427, %v6426
      %v6719 = vpack.c.b16 %v6429, %v6428
      %v6720 = vpack.c.b16 %v6431, %v6430
      %v6721 = vpack.c.b16 %v6433, %v6432
      %v6722 = vpack.c.b16 %v6435, %v6434
      %v6723 = vpack.c.b16 %v6437, %v6436
      %v6724 = vpack.c.b16 %v6439, %v6438
      %v6725 = vpack.c.b16 %v6441, %v6440
      %v6726 = vpack.c.b16 %v6443, %v6442
      %v6727 = vpack.c.b16 %v6445, %v6444
      %v6728 = vpack.c.b16 %v6447, %v6446
      %v6729 = vpack.c.b16 %v6449, %v6448
      %v6730 = vpack.c.b16 %v6451, %v6450
      %v6731 = vpack.c.b16 %v6453, %v6452
      %v6732 = vpack.c.b16 %v6455, %v6454
      %v6733 = vpack.c.b16 %v6457, %v6456
      %v6734 = vpack.c.b16 %v6459, %v6458
      %v6735 = vpack.c.b16 %v6461, %v6460
      %v6736 = vpack.c.b16 %v6463, %v6462
      %v6737 = vpack.c.b16 %v6465, %v6464
      %v6738 = vpack.c.b16 %v6467, %v6466
      %v6739 = vpack.c.b16 %v6469, %v6468
      %v6740 = vpack.c.b16 %v6471, %v6470
      %v6741 = vpack.c.b16 %v6473, %v6472
      %v6742 = vpack.c.b16 %v6475, %v6474
      %v6743 = vpack.c.b16 %v6477, %v6476
      %v6744 = vpack.c.b16 %v6479, %v6478
      %v6745 = vpack.c.b16 %v6481, %v6480
      %v6746 = vpack.c.b16 %v6483, %v6482
      %v6747 = vpack.c.b16 %v6485, %v6484
      %v6748 = vpack.c.b16 %v6487, %v6486
      %v6749 = vpack.c.b16 %v6489, %v6488
      %v6750 = vpack.c.b16 %v6491, %v6490
      %v6751 = vpack.c.b16 %v6493, %v6492
      %v6752 = vpack.c.b16 %v6495, %v6494
      %v6753 = vpack.c.b16 %v6497, %v6496
      %v6754 = vpack.c.b16 %v6499, %v6498
      %v6755 = vpack.c.b16 %v6501, %v6500
      %v6756 = vpack.c.b16 %v6503, %v6502
      %v6757 = vpack.c.b16 %v6505, %v6504
      %v6758 = vpack.c.b16 %v6507, %v6506
      %v6759 = vpack.c.b16 %v6509, %v6508
      %v6760 = vpack.c.b16 %v6511, %v6510
      %v6761 = vpack.c.b16 %v6513, %v6512
      %v6762 = vpack.c.b16 %v6515, %v6514
      %v6763 = vpack.c.b16 %v6517, %v6516
      %v6764 = vpack.c.b16 %v6519, %v6518
      %v6765 = vpack.c.b16 %v6521, %v6520
      %v6766 = vpack.c.b16 %v6523, %v6522
      %v6767 = vpack.c.b16 %v6525, %v6524
      %v6768 = vpack.c.b16 %v6527, %v6526
      %v6769 = vpack.c.b16 %v6529, %v6528
      %v6770 = vpack.c.b16 %v6531, %v6530
      %v6771 = vpack.c.b16 %v6533, %v6532
      %v6772 = vpack.c.b16 %v6535, %v6534
      %v6773 = vpack.c.b16 %v6537, %v6536
      %v6774 = vpack.c.b16 %v6539, %v6538
      %v6775 = vpack.c.b16 %v6541, %v6540
      %v6776 = vpack.c.b16 %v6543, %v6542
      %v6777 = vpack.c.b16 %v6545, %v6544
      %v6778 = vpack.c.b16 %v6547, %v6546
      %v6779 = vpack.c.b16 %v6549, %v6548
      %v6780 = vpack.c.b16 %v6551, %v6550
      %v6781 = vpack.c.b16 %v6553, %v6552
      %v6782 = vpack.c.b16 %v6555, %v6554
      %v6783 = vpack.c.b16 %v6557, %v6556
      %v6784 = vpack.c.b16 %v6559, %v6558
      %v6785 = vpack.c.b16 %v6561, %v6560
      %v6786 = vpack.c.b16 %v6563, %v6562
      %v6787 = vpack.c.b16 %v6565, %v6564
      %v6788 = vpack.c.b16 %v6567, %v6566
      %v6789 = vpack.c.b16 %v6569, %v6568
      %v6790 = vpack.c.b16 %v6571, %v6570
      %v6791 = vpack.c.b16 %v6573, %v6572
      %v6792 = vpack.c.b16 %v6575, %v6574
      %v6793 = vpack.c.b16 %v6577, %v6576
      %v6794 = vpack.c.b16 %v6579, %v6578
      %v6795 = vpack.c.b16 %v6581, %v6580
      %v6796 = vpack.c.b16 %v6583, %v6582
      %v6797 = vpack.c.b16 %v6585, %v6584
      %v6798 = vpack.c.b16 %v6587, %v6586
      %v6799 = vpack.c.b16 %v6589, %v6588
      %v6800 = vpack.c.b16 %v6591, %v6590
      %v6801 = vpack.c.b16 %v6593, %v6592
      %v6802 = vpack.c.b16 %v6595, %v6594
      %v6803 = vpack.c.b16 %v6597, %v6596
      %v6804 = vpack.c.b16 %v6599, %v6598
      %v6805 = vpack.c.b16 %v6601, %v6600
      %v6806 = vpack.c.b16 %v6603, %v6602
      %v6807 = vpack.c.b16 %v6605, %v6604
      %v6808 = vpack.c.b16 %v6607, %v6606
      %v6809 = vpack.c.b16 %v6609, %v6608
      %v6810 = vpack.c.b16 %v6611, %v6610
      %v6811 = vpack.c.b16 %v6613, %v6612
      %v6812 = vpack.c.b16 %v6615, %v6614
      %v6813 = vpack.c.b16 %v6617, %v6616
      %v6814 = vpack.c.b16 %v6619, %v6618
      %v6815 = vpack.c.b16 %v6621, %v6620
      %v6816 = vpack.c.b16 %v6623, %v6622
      %v6817 = vpack.c.b16 %v6625, %v6624
      %v6818 = vpack.c.b16 %v6627, %v6626
      %v6819 = vpack.c.b16 %v6629, %v6628
      %v6820 = vpack.c.b16 %v6631, %v6630
      %v6821 = vpack.c.b16 %v6633, %v6632
      %v6822 = vpack.c.b16 %v6635, %v6634
      %v6823 = vpack.c.b16 %v6637, %v6636
      %v6824 = vpack.c.b16 %v6639, %v6638
      %v6825 = vpack.c.b16 %v6641, %v6640
      %v6826 = vpack.c.b16 %v6643, %v6642
      %v6827 = vpack.c.b16 %v6645, %v6644
      %v6828 = vpack.c.b16 %v6647, %v6646
      %v6829 = vpack.c.b16 %v6649, %v6648
      %v6830 = vpack.c.b16 %v6651, %v6650
      %v6831 = vpack.c.b16 %v6653, %v6652
      %v6832 = vpack.c.b16 %v6655, %v6654
      %v6833 = vpack.c.b16 %v6657, %v6656
      %v6834 = vpack.c.b16 %v6659, %v6658
      %v6835 = vpack.c.b16 %v6661, %v6660
      %v6836 = vpack.c.b16 %v6663, %v6662
      %v6837 = vpack.c.b16 %v6665, %v6664
      %v6838 = vpack.c.b16 %v6667, %v6666
      %v6839 = vpack.c.b16 %v6669, %v6668
      %v6840 = vpack.c.b16 %v6671, %v6670
      %v6841 = vpack.c.b16 %v6673, %v6672
      %v6842 = vpack.c.b16 %v6675, %v6674
      %v6843 = vpack.c.b16 %v6677, %v6676
      %v6844 = vpack.c.b16 %v6679, %v6678
      %v6845 = vpack.c.b16 %v6681, %v6680
      %v6846 = vpack.c.b16 %v6683, %v6682
      %v6847 = vpack.c.b16 %v6685, %v6684
      %v6848 = vpack.c.b16 %v6687, %v6686
      %v6849 = vpack.c.b16 %v6689, %v6688
      %7010 = vmatprep.subr.bf16.mxu0 0
      %7011 = vmatpush1.bf16.msra.mxu0 %v6690
      %7012 = vmatprep.subr.bf16.mxu0 0
      %7013 = vmatpush1.bf16.msra.mxu0 %v6691
      %7014 = vmatprep.subr.bf16.mxu0 0
      %7015 = vmatpush1.bf16.msra.mxu0 %v6692
      %7016 = vmatprep.subr.bf16.mxu0 0
      %7017 = vmatpush1.bf16.msra.mxu0 %v6693
      %7018 = vmatprep.subr.bf16.mxu0 0
      %7019 = vmatpush1.bf16.msra.mxu0 %v6694
      %7020 = vmatprep.subr.bf16.mxu0 0
      %7021 = vmatpush1.bf16.msra.mxu0 %v6695
      %7022 = vmatprep.subr.bf16.mxu0 0
      %7023 = vmatpush1.bf16.msra.mxu0 %v6696
      %7024 = vmatprep.subr.bf16.mxu0 0
      %7025 = vmatpush1.bf16.msra.mxu0 %v6697
      %7026 = vmatprep.subr.bf16.mxu0 0
      %7027 = vmatpush1.bf16.msra.mxu0 %v6698
      %7028 = vmatprep.subr.bf16.mxu0 0
      %7029 = vmatpush1.bf16.msra.mxu0 %v6699
      %7030 = vmatprep.subr.bf16.mxu0 0
      %7031 = vmatpush1.bf16.msra.mxu0 %v6700
      %7032 = vmatprep.subr.bf16.mxu0 0
      %7033 = vmatpush1.bf16.msra.mxu0 %v6701
      %7034 = vmatprep.subr.bf16.mxu0 0
      %7035 = vmatpush1.bf16.msra.mxu0 %v6702
      %7036 = vmatprep.subr.bf16.mxu0 0
      %7037 = vmatpush1.bf16.msra.mxu0 %v6703
      %7038 = vmatprep.subr.bf16.mxu0 0
      %7039 = vmatpush1.bf16.msra.mxu0 %v6704
      %7040 = vmatprep.subr.bf16.mxu0 0
      %7041 = vmatpush1.bf16.msra.mxu0 %v6705
      %7042 = vmatprep.mubr.bf16.mxu0 %v5564
      %7043 = vmatmul.mubr.bf16.gmra.mrb[0].mxu0 %v5563
      %v7044 = vpop.f32.mrb[0].mxu0
      %v7045 = vadd.f32 %v6048, %v7044
      %v7046 = vpop.f32.mrb[0].mxu0
      %v7047 = vpop.f32.mrb[0].mxu0
      %v7048 = vadd.f32 %v6048, %v7047
      %v7049 = vpop.f32.mrb[0].mxu0
      %7050 = vmatprep.mubr.bf16.mxu0 %v5584
      %7051 = vmatmul.mubr.bf16.gmra.mrb[0].mxu0 %v5583
      %v7052 = vpop.f32.mrb[0].mxu0
      %v7053 = vadd.f32 %v6048, %v7052
      %v7054 = vpop.f32.mrb[0].mxu0
      %v7055 = vpop.f32.mrb[0].mxu0
      %v7056 = vadd.f32 %v6048, %v7055
      %v7057 = vpop.f32.mrb[0].mxu0
      %7058 = vmatprep.mubr.bf16.mxu0 %v5604
      %7059 = vmatmul.mubr.bf16.gmra.mrb[0].mxu0 %v5603
      %v7060 = vpop.f32.mrb[0].mxu0
      %v7061 = vadd.f32 %v6048, %v7060
      %v7062 = vpop.f32.mrb[0].mxu0
      %v7063 = vpop.f32.mrb[0].mxu0
      %v7064 = vadd.f32 %v6048, %v7063
      %v7065 = vpop.f32.mrb[0].mxu0
      %7066 = vmatprep.mubr.bf16.mxu0 %v5624
      %7067 = vmatmul.mubr.bf16.gmra.mrb[0].mxu0 %v5623
      %v7068 = vpop.f32.mrb[0].mxu0
      %v7069 = vadd.f32 %v6048, %v7068
      %v7070 = vpop.f32.mrb[0].mxu0
      %v7071 = vpop.f32.mrb[0].mxu0
      %v7072 = vadd.f32 %v6048, %v7071
      %v7073 = vpop.f32.mrb[0].mxu0
      %7074 = vmatprep.mubr.bf16.mxu0 %v5644
      %7075 = vmatmul.mubr.bf16.gmra.mrb[0].mxu0 %v5643
      %v7076 = vpop.f32.mrb[0].mxu0
      %v7077 = vadd.f32 %v6048, %v7076
      %v7078 = vpop.f32.mrb[0].mxu0
      %v7079 = vpop.f32.mrb[0].mxu0
      %v7080 = vadd.f32 %v6048, %v7079
      %v7081 = vpop.f32.mrb[0].mxu0
      %7082 = vmatprep.mubr.bf16.mxu0 %v5664
      %7083 = vmatmul.mubr.bf16.gmra.mrb[0].mxu0 %v5663
      %v7084 = vpop.f32.mrb[0].mxu0
      %v7085 = vadd.f32 %v6048, %v7084
      %v7086 = vpop.f32.mrb[0].mxu0
      %v7087 = vpop.f32.mrb[0].mxu0
      %v7088 = vadd.f32 %v6048, %v7087
      %v7089 = vpop.f32.mrb[0].mxu0
      %7090 = vmatprep.mubr.bf16.mxu0 %v5684
      %7091 = vmatmul.mubr.bf16.gmra.mrb[0].mxu0 %v5683
      %v7092 = vpop.f32.mrb[0].mxu0
      %v7093 = vadd.f32 %v6048, %v7092
      %v7094 = vpop.f32.mrb[0].mxu0
      %v7095 = vpop.f32.mrb[0].mxu0
      %v7096 = vadd.f32 %v6048, %v7095
      %v7097 = vpop.f32.mrb[0].mxu0
      %7098 = vmatprep.mubr.bf16.mxu0 %v5704
      %7099 = vmatmul.mubr.bf16.gmra.mrb[0].mxu0 %v5703
      %v7100 = vpop.f32.mrb[0].mxu0
      %v7101 = vadd.f32 %v6048, %v7100
      %v7102 = vpop.f32.mrb[0].mxu0
      %v7103 = vpop.f32.mrb[0].mxu0
      %v7104 = vadd.f32 %v6048, %v7103
      %v7105 = vpop.f32.mrb[0].mxu0
      %7106 = vdwg.mxu0
      %7107 = vmatprep.subr.bf16.mxu0 0
      %7108 = vmatpush1.bf16.msra.mxu0 %v6706
      %7109 = vmatprep.subr.bf16.mxu0 0
      %7110 = vmatpush1.bf16.msra.mxu0 %v6707
      %7111 = vmatprep.subr.bf16.mxu0 0
      %7112 = vmatpush1.bf16.msra.mxu0 %v6708
      %7113 = vmatprep.subr.bf16.mxu0 0
      %7114 = vmatpush1.bf16.msra.mxu0 %v6709
      %7115 = vmatprep.subr.bf16.mxu0 0
      %7116 = vmatpush1.bf16.msra.mxu0 %v6710
      %7117 = vmatprep.subr.bf16.mxu0 0
      %7118 = vmatpush1.bf16.msra.mxu0 %v6711
      %7119 = vmatprep.subr.bf16.mxu0 0
      %7120 = vmatpush1.bf16.msra.mxu0 %v6712
      %7121 = vmatprep.subr.bf16.mxu0 0
      %7122 = vmatpush1.bf16.msra.mxu0 %v6713
      %7123 = vmatprep.subr.bf16.mxu0 0
      %7124 = vmatpush1.bf16.msra.mxu0 %v6714
      %7125 = vmatprep.subr.bf16.mxu0 0
      %7126 = vmatpush1.bf16.msra.mxu0 %v6715
      %7127 = vmatprep.subr.bf16.mxu0 0
      %7128 = vmatpush1.bf16.msra.mxu0 %v6716
      %7129 = vmatprep.subr.bf16.mxu0 0
      %7130 = vmatpush1.bf16.msra.mxu0 %v6717
      %7131 = vmatprep.subr.bf16.mxu0 0
      %7132 = vmatpush1.bf16.msra.mxu0 %v6718
      %7133 = vmatprep.subr.bf16.mxu0 0
      %7134 = vmatpush1.bf16.msra.mxu0 %v6719
      %7135 = vmatprep.subr.bf16.mxu0 0
      %7136 = vmatpush1.bf16.msra.mxu0 %v6720
      %7137 = vmatprep.subr.bf16.mxu0 0
      %7138 = vmatpush1.bf16.msra.mxu0 %v6721
      %7139 = vmatprep.mubr.bf16.mxu0 %v5566
      %7140 = vmatmul.mubr.bf16.gmra.mrb[0].mxu0 %v5565
      %v7141 = vpop.f32.mrb[0].mxu0
      %v7142 = vadd.f32 %v7045, %v7141
      %v7143 = vpop.f32.mrb[0].mxu0
      %v7144 = vpop.f32.mrb[0].mxu0
      %v7145 = vadd.f32 %v7048, %v7144
      %v7146 = vpop.f32.mrb[0].mxu0
      %7147 = vmatprep.mubr.bf16.mxu0 %v5586
      %7148 = vmatmul.mubr.bf16.gmra.mrb[0].mxu0 %v5585
      %v7149 = vpop.f32.mrb[0].mxu0
      %v7150 = vadd.f32 %v7053, %v7149
      %v7151 = vpop.f32.mrb[0].mxu0
      %v7152 = vpop.f32.mrb[0].mxu0
      %v7153 = vadd.f32 %v7056, %v7152
      %v7154 = vpop.f32.mrb[0].mxu0
      %7155 = vmatprep.mubr.bf16.mxu0 %v5606
      %7156 = vmatmul.mubr.bf16.gmra.mrb[0].mxu0 %v5605
      %v7157 = vpop.f32.mrb[0].mxu0
      %v7158 = vadd.f32 %v7061, %v7157
      %v7159 = vpop.f32.mrb[0].mxu0
      %v7160 = vpop.f32.mrb[0].mxu0
      %v7161 = vadd.f32 %v7064, %v7160
      %v7162 = vpop.f32.mrb[0].mxu0
      %7163 = vmatprep.mubr.bf16.mxu0 %v5626
      %7164 = vmatmul.mubr.bf16.gmra.mrb[0].mxu0 %v5625
      %v7165 = vpop.f32.mrb[0].mxu0
      %v7166 = vadd.f32 %v7069, %v7165
      %v7167 = vpop.f32.mrb[0].mxu0
      %v7168 = vpop.f32.mrb[0].mxu0
      %v7169 = vadd.f32 %v7072, %v7168
      %v7170 = vpop.f32.mrb[0].mxu0
      %7171 = vmatprep.mubr.bf16.mxu0 %v5646
      %7172 = vmatmul.mubr.bf16.gmra.mrb[0].mxu0 %v5645
      %v7173 = vpop.f32.mrb[0].mxu0
      %v7174 = vadd.f32 %v7077, %v7173
      %v7175 = vpop.f32.mrb[0].mxu0
      %v7176 = vpop.f32.mrb[0].mxu0
      %v7177 = vadd.f32 %v7080, %v7176
      %v7178 = vpop.f32.mrb[0].mxu0
      %7179 = vmatprep.mubr.bf16.mxu0 %v5666
      %7180 = vmatmul.mubr.bf16.gmra.mrb[0].mxu0 %v5665
      %v7181 = vpop.f32.mrb[0].mxu0
      %v7182 = vadd.f32 %v7085, %v7181
      %v7183 = vpop.f32.mrb[0].mxu0
      %v7184 = vpop.f32.mrb[0].mxu0
      %v7185 = vadd.f32 %v7088, %v7184
      %v7186 = vpop.f32.mrb[0].mxu0
      %7187 = vmatprep.mubr.bf16.mxu0 %v5686
      %7188 = vmatmul.mubr.bf16.gmra.mrb[0].mxu0 %v5685
      %v7189 = vpop.f32.mrb[0].mxu0
      %v7190 = vadd.f32 %v7093, %v7189
      %v7191 = vpop.f32.mrb[0].mxu0
      %v7192 = vpop.f32.mrb[0].mxu0
      %v7193 = vadd.f32 %v7096, %v7192
      %v7194 = vpop.f32.mrb[0].mxu0
      %7195 = vmatprep.mubr.bf16.mxu0 %v5706
      %7196 = vmatmul.mubr.bf16.gmra.mrb[0].mxu0 %v5705
      %v7197 = vpop.f32.mrb[0].mxu0
      %v7198 = vadd.f32 %v7101, %v7197
      %v7199 = vpop.f32.mrb[0].mxu0
      %v7200 = vpop.f32.mrb[0].mxu0
      %v7201 = vadd.f32 %v7104, %v7200
      %v7202 = vpop.f32.mrb[0].mxu0
      %7203 = vdwg.mxu0
      %7204 = vmatprep.subr.bf16.mxu0 0
      %7205 = vmatpush1.bf16.msra.mxu0 %v6722
      %7206 = vmatprep.subr.bf16.mxu0 0
      %7207 = vmatpush1.bf16.msra.mxu0 %v6723
      %7208 = vmatprep.subr.bf16.mxu0 0
      %7209 = vmatpush1.bf16.msra.mxu0 %v6724
      %7210 = vmatprep.subr.bf16.mxu0 0
      %7211 = vmatpush1.bf16.msra.mxu0 %v6725
      %7212 = vmatprep.subr.bf16.mxu0 0
      %7213 = vmatpush1.bf16.msra.mxu0 %v6726
      %7214 = vmatprep.subr.bf16.mxu0 0
      %7215 = vmatpush1.bf16.msra.mxu0 %v6727
      %7216 = vmatprep.subr.bf16.mxu0 0
      %7217 = vmatpush1.bf16.msra.mxu0 %v6728
      %7218 = vmatprep.subr.bf16.mxu0 0
      %7219 = vmatpush1.bf16.msra.mxu0 %v6729
      %7220 = vmatprep.subr.bf16.mxu0 0
      %7221 = vmatpush1.bf16.msra.mxu0 %v6730
      %7222 = vmatprep.subr.bf16.mxu0 0
      %7223 = vmatpush1.bf16.msra.mxu0 %v6731
      %7224 = vmatprep.subr.bf16.mxu0 0
      %7225 = vmatpush1.bf16.msra.mxu0 %v6732
      %7226 = vmatprep.subr.bf16.mxu0 0
      %7227 = vmatpush1.bf16.msra.mxu0 %v6733
      %7228 = vmatprep.subr.bf16.mxu0 0
      %7229 = vmatpush1.bf16.msra.mxu0 %v6734
      %7230 = vmatprep.subr.bf16.mxu0 0
      %7231 = vmatpush1.bf16.msra.mxu0 %v6735
      %7232 = vmatprep.subr.bf16.mxu0 0
      %7233 = vmatpush1.bf16.msra.mxu0 %v6736
      %7234 = vmatprep.subr.bf16.mxu0 0
      %7235 = vmatpush1.bf16.msra.mxu0 %v6737
      %7236 = vmatprep.mubr.bf16.mxu0 %v5568
      %7237 = vmatmul.mubr.bf16.gmra.mrb[0].mxu0 %v5567
      %v7238 = vpop.f32.mrb[0].mxu0
      %v7239 = vadd.f32 %v7142, %v7238
      %v7240 = vpop.f32.mrb[0].mxu0
      %v7241 = vpop.f32.mrb[0].mxu0
      %v7242 = vadd.f32 %v7145, %v7241
      %v7243 = vpop.f32.mrb[0].mxu0
      %7244 = vmatprep.mubr.bf16.mxu0 %v5588
      %7245 = vmatmul.mubr.bf16.gmra.mrb[0].mxu0 %v5587
      %v7246 = vpop.f32.mrb[0].mxu0
      %v7247 = vadd.f32 %v7150, %v7246
      %v7248 = vpop.f32.mrb[0].mxu0
      %v7249 = vpop.f32.mrb[0].mxu0
      %v7250 = vadd.f32 %v7153, %v7249
      %v7251 = vpop.f32.mrb[0].mxu0
      %7252 = vmatprep.mubr.bf16.mxu0 %v5608
      %7253 = vmatmul.mubr.bf16.gmra.mrb[0].mxu0 %v5607
      %v7254 = vpop.f32.mrb[0].mxu0
      %v7255 = vadd.f32 %v7158, %v7254
      %v7256 = vpop.f32.mrb[0].mxu0
      %v7257 = vpop.f32.mrb[0].mxu0
      %v7258 = vadd.f32 %v7161, %v7257
      %v7259 = vpop.f32.mrb[0].mxu0
      %7260 = vmatprep.mubr.bf16.mxu0 %v5628
      %7261 = vmatmul.mubr.bf16.gmra.mrb[0].mxu0 %v5627
      %v7262 = vpop.f32.mrb[0].mxu0
      %v7263 = vadd.f32 %v7166, %v7262
      %v7264 = vpop.f32.mrb[0].mxu0
      %v7265 = vpop.f32.mrb[0].mxu0
      %v7266 = vadd.f32 %v7169, %v7265
      %v7267 = vpop.f32.mrb[0].mxu0
      %7268 = vmatprep.mubr.bf16.mxu0 %v5648
      %7269 = vmatmul.mubr.bf16.gmra.mrb[0].mxu0 %v5647
      %v7270 = vpop.f32.mrb[0].mxu0
      %v7271 = vadd.f32 %v7174, %v7270
      %v7272 = vpop.f32.mrb[0].mxu0
      %v7273 = vpop.f32.mrb[0].mxu0
      %v7274 = vadd.f32 %v7177, %v7273
      %v7275 = vpop.f32.mrb[0].mxu0
      %7276 = vmatprep.mubr.bf16.mxu0 %v5668
      %7277 = vmatmul.mubr.bf16.gmra.mrb[0].mxu0 %v5667
      %v7278 = vpop.f32.mrb[0].mxu0
      %v7279 = vadd.f32 %v7182, %v7278
      %v7280 = vpop.f32.mrb[0].mxu0
      %v7281 = vpop.f32.mrb[0].mxu0
      %v7282 = vadd.f32 %v7185, %v7281
      %v7283 = vpop.f32.mrb[0].mxu0
      %7284 = vmatprep.mubr.bf16.mxu0 %v5688
      %7285 = vmatmul.mubr.bf16.gmra.mrb[0].mxu0 %v5687
      %v7286 = vpop.f32.mrb[0].mxu0
      %v7287 = vadd.f32 %v7190, %v7286
      %v7288 = vpop.f32.mrb[0].mxu0
      %v7289 = vpop.f32.mrb[0].mxu0
      %v7290 = vadd.f32 %v7193, %v7289
      %v7291 = vpop.f32.mrb[0].mxu0
      %7292 = vmatprep.mubr.bf16.mxu0 %v5708
      %7293 = vmatmul.mubr.bf16.gmra.mrb[0].mxu0 %v5707
      %v7294 = vpop.f32.mrb[0].mxu0
      %v7295 = vadd.f32 %v7198, %v7294
      %v7296 = vpop.f32.mrb[0].mxu0
      %v7297 = vpop.f32.mrb[0].mxu0
      %v7298 = vadd.f32 %v7201, %v7297
      %v7299 = vpop.f32.mrb[0].mxu0
      %7300 = vdwg.mxu0
      %7301 = vmatprep.subr.bf16.mxu0 0
      %7302 = vmatpush1.bf16.msra.mxu0 %v6738
      %7303 = vmatprep.subr.bf16.mxu0 0
      %7304 = vmatpush1.bf16.msra.mxu0 %v6739
      %7305 = vmatprep.subr.bf16.mxu0 0
      %7306 = vmatpush1.bf16.msra.mxu0 %v6740
      %7307 = vmatprep.subr.bf16.mxu0 0
      %7308 = vmatpush1.bf16.msra.mxu0 %v6741
      %7309 = vmatprep.subr.bf16.mxu0 0
      %7310 = vmatpush1.bf16.msra.mxu0 %v6742
      %7311 = vmatprep.subr.bf16.mxu0 0
      %7312 = vmatpush1.bf16.msra.mxu0 %v6743
      %7313 = vmatprep.subr.bf16.mxu0 0
      %7314 = vmatpush1.bf16.msra.mxu0 %v6744
      %7315 = vmatprep.subr.bf16.mxu0 0
      %7316 = vmatpush1.bf16.msra.mxu0 %v6745
      %7317 = vmatprep.subr.bf16.mxu0 0
      %7318 = vmatpush1.bf16.msra.mxu0 %v6746
      %7319 = vmatprep.subr.bf16.mxu0 0
      %7320 = vmatpush1.bf16.msra.mxu0 %v6747
      %7321 = vmatprep.subr.bf16.mxu0 0
      %7322 = vmatpush1.bf16.msra.mxu0 %v6748
      %7323 = vmatprep.subr.bf16.mxu0 0
      %7324 = vmatpush1.bf16.msra.mxu0 %v6749
      %7325 = vmatprep.subr.bf16.mxu0 0
      %7326 = vmatpush1.bf16.msra.mxu0 %v6750
      %7327 = vmatprep.subr.bf16.mxu0 0
      %7328 = vmatpush1.bf16.msra.mxu0 %v6751
      %7329 = vmatprep.subr.bf16.mxu0 0
      %7330 = vmatpush1.bf16.msra.mxu0 %v6752
      %7331 = vmatprep.subr.bf16.mxu0 0
      %7332 = vmatpush1.bf16.msra.mxu0 %v6753
      %7333 = vmatprep.mubr.bf16.mxu0 %v5570
      %7334 = vmatmul.mubr.bf16.gmra.mrb[0].mxu0 %v5569
      %v7335 = vpop.f32.mrb[0].mxu0
      %v7336 = vadd.f32 %v7239, %v7335
      %v7337 = vpop.f32.mrb[0].mxu0
      %v7338 = vpop.f32.mrb[0].mxu0
      %v7339 = vadd.f32 %v7242, %v7338
      %v7340 = vpop.f32.mrb[0].mxu0
      %7341 = vmatprep.mubr.bf16.mxu0 %v5590
      %7342 = vmatmul.mubr.bf16.gmra.mrb[0].mxu0 %v5589
      %v7343 = vpop.f32.mrb[0].mxu0
      %v7344 = vadd.f32 %v7247, %v7343
      %v7345 = vpop.f32.mrb[0].mxu0
      %v7346 = vpop.f32.mrb[0].mxu0
      %v7347 = vadd.f32 %v7250, %v7346
      %v7348 = vpop.f32.mrb[0].mxu0
      %7349 = vmatprep.mubr.bf16.mxu0 %v5610
      %7350 = vmatmul.mubr.bf16.gmra.mrb[0].mxu0 %v5609
      %v7351 = vpop.f32.mrb[0].mxu0
      %v7352 = vadd.f32 %v7255, %v7351
      %v7353 = vpop.f32.mrb[0].mxu0
      %v7354 = vpop.f32.mrb[0].mxu0
      %v7355 = vadd.f32 %v7258, %v7354
      %v7356 = vpop.f32.mrb[0].mxu0
      %7357 = vmatprep.mubr.bf16.mxu0 %v5630
      %7358 = vmatmul.mubr.bf16.gmra.mrb[0].mxu0 %v5629
      %v7359 = vpop.f32.mrb[0].mxu0
      %v7360 = vadd.f32 %v7263, %v7359
      %v7361 = vpop.f32.mrb[0].mxu0
      %v7362 = vpop.f32.mrb[0].mxu0
      %v7363 = vadd.f32 %v7266, %v7362
      %v7364 = vpop.f32.mrb[0].mxu0
      %7365 = vmatprep.mubr.bf16.mxu0 %v5650
      %7366 = vmatmul.mubr.bf16.gmra.mrb[0].mxu0 %v5649
      %v7367 = vpop.f32.mrb[0].mxu0
      %v7368 = vadd.f32 %v7271, %v7367
      %v7369 = vpop.f32.mrb[0].mxu0
      %v7370 = vpop.f32.mrb[0].mxu0
      %v7371 = vadd.f32 %v7274, %v7370
      %v7372 = vpop.f32.mrb[0].mxu0
      %7373 = vmatprep.mubr.bf16.mxu0 %v5670
      %7374 = vmatmul.mubr.bf16.gmra.mrb[0].mxu0 %v5669
      %v7375 = vpop.f32.mrb[0].mxu0
      %v7376 = vadd.f32 %v7279, %v7375
      %v7377 = vpop.f32.mrb[0].mxu0
      %v7378 = vpop.f32.mrb[0].mxu0
      %v7379 = vadd.f32 %v7282, %v7378
      %v7380 = vpop.f32.mrb[0].mxu0
      %7381 = vmatprep.mubr.bf16.mxu0 %v5690
      %7382 = vmatmul.mubr.bf16.gmra.mrb[0].mxu0 %v5689
      %v7383 = vpop.f32.mrb[0].mxu0
      %v7384 = vadd.f32 %v7287, %v7383
      %v7385 = vpop.f32.mrb[0].mxu0
      %v7386 = vpop.f32.mrb[0].mxu0
      %v7387 = vadd.f32 %v7290, %v7386
      %v7388 = vpop.f32.mrb[0].mxu0
      %7389 = vmatprep.mubr.bf16.mxu0 %v5710
      %7390 = vmatmul.mubr.bf16.gmra.mrb[0].mxu0 %v5709
      %v7391 = vpop.f32.mrb[0].mxu0
      %v7392 = vadd.f32 %v7295, %v7391
      %v7393 = vpop.f32.mrb[0].mxu0
      %v7394 = vpop.f32.mrb[0].mxu0
      %v7395 = vadd.f32 %v7298, %v7394
      %v7396 = vpop.f32.mrb[0].mxu0
      %7397 = vdwg.mxu0
      %7398 = vmatprep.subr.bf16.mxu0 0
      %7399 = vmatpush1.bf16.msra.mxu0 %v6754
      %7400 = vmatprep.subr.bf16.mxu0 0
      %7401 = vmatpush1.bf16.msra.mxu0 %v6755
      %7402 = vmatprep.subr.bf16.mxu0 0
      %7403 = vmatpush1.bf16.msra.mxu0 %v6756
      %7404 = vmatprep.subr.bf16.mxu0 0
      %7405 = vmatpush1.bf16.msra.mxu0 %v6757
      %7406 = vmatprep.subr.bf16.mxu0 0
      %7407 = vmatpush1.bf16.msra.mxu0 %v6758
      %7408 = vmatprep.subr.bf16.mxu0 0
      %7409 = vmatpush1.bf16.msra.mxu0 %v6759
      %7410 = vmatprep.subr.bf16.mxu0 0
      %7411 = vmatpush1.bf16.msra.mxu0 %v6760
      %7412 = vmatprep.subr.bf16.mxu0 0
      %7413 = vmatpush1.bf16.msra.mxu0 %v6761
      %7414 = vmatprep.subr.bf16.mxu0 0
      %7415 = vmatpush1.bf16.msra.mxu0 %v6762
      %7416 = vmatprep.subr.bf16.mxu0 0
      %7417 = vmatpush1.bf16.msra.mxu0 %v6763
      %7418 = vmatprep.subr.bf16.mxu0 0
      %7419 = vmatpush1.bf16.msra.mxu0 %v6764
      %7420 = vmatprep.subr.bf16.mxu0 0
      %7421 = vmatpush1.bf16.msra.mxu0 %v6765
      %7422 = vmatprep.subr.bf16.mxu0 0
      %7423 = vmatpush1.bf16.msra.mxu0 %v6766
      %7424 = vmatprep.subr.bf16.mxu0 0
      %7425 = vmatpush1.bf16.msra.mxu0 %v6767
      %7426 = vmatprep.subr.bf16.mxu0 0
      %7427 = vmatpush1.bf16.msra.mxu0 %v6768
      %7428 = vmatprep.subr.bf16.mxu0 0
      %7429 = vmatpush1.bf16.msra.mxu0 %v6769
      %7430 = vmatprep.mubr.bf16.mxu0 %v5572
      %7431 = vmatmul.mubr.bf16.gmra.mrb[0].mxu0 %v5571
      %v7432 = vpop.f32.mrb[0].mxu0
      %v7433 = vadd.f32 %v7336, %v7432
      %v7434 = vpop.f32.mrb[0].mxu0
      %v7435 = vpop.f32.mrb[0].mxu0
      %v7436 = vadd.f32 %v7339, %v7435
      %v7437 = vpop.f32.mrb[0].mxu0
      %7438 = vmatprep.mubr.bf16.mxu0 %v5592
      %7439 = vmatmul.mubr.bf16.gmra.mrb[0].mxu0 %v5591
      %v7440 = vpop.f32.mrb[0].mxu0
      %v7441 = vadd.f32 %v7344, %v7440
      %v7442 = vpop.f32.mrb[0].mxu0
      %v7443 = vpop.f32.mrb[0].mxu0
      %v7444 = vadd.f32 %v7347, %v7443
      %v7445 = vpop.f32.mrb[0].mxu0
      %7446 = vmatprep.mubr.bf16.mxu0 %v5612
      %7447 = vmatmul.mubr.bf16.gmra.mrb[0].mxu0 %v5611
      %v7448 = vpop.f32.mrb[0].mxu0
      %v7449 = vadd.f32 %v7352, %v7448
      %v7450 = vpop.f32.mrb[0].mxu0
      %v7451 = vpop.f32.mrb[0].mxu0
      %v7452 = vadd.f32 %v7355, %v7451
      %v7453 = vpop.f32.mrb[0].mxu0
      %7454 = vmatprep.mubr.bf16.mxu0 %v5632
      %7455 = vmatmul.mubr.bf16.gmra.mrb[0].mxu0 %v5631
      %v7456 = vpop.f32.mrb[0].mxu0
      %v7457 = vadd.f32 %v7360, %v7456
      %v7458 = vpop.f32.mrb[0].mxu0
      %v7459 = vpop.f32.mrb[0].mxu0
      %v7460 = vadd.f32 %v7363, %v7459
      %v7461 = vpop.f32.mrb[0].mxu0
      %7462 = vmatprep.mubr.bf16.mxu0 %v5652
      %7463 = vmatmul.mubr.bf16.gmra.mrb[0].mxu0 %v5651
      %v7464 = vpop.f32.mrb[0].mxu0
      %v7465 = vadd.f32 %v7368, %v7464
      %v7466 = vpop.f32.mrb[0].mxu0
      %v7467 = vpop.f32.mrb[0].mxu0
      %v7468 = vadd.f32 %v7371, %v7467
      %v7469 = vpop.f32.mrb[0].mxu0
      %7470 = vmatprep.mubr.bf16.mxu0 %v5672
      %7471 = vmatmul.mubr.bf16.gmra.mrb[0].mxu0 %v5671
      %v7472 = vpop.f32.mrb[0].mxu0
      %v7473 = vadd.f32 %v7376, %v7472
      %v7474 = vpop.f32.mrb[0].mxu0
      %v7475 = vpop.f32.mrb[0].mxu0
      %v7476 = vadd.f32 %v7379, %v7475
      %v7477 = vpop.f32.mrb[0].mxu0
      %7478 = vmatprep.mubr.bf16.mxu0 %v5692
      %7479 = vmatmul.mubr.bf16.gmra.mrb[0].mxu0 %v5691
      %v7480 = vpop.f32.mrb[0].mxu0
      %v7481 = vadd.f32 %v7384, %v7480
      %v7482 = vpop.f32.mrb[0].mxu0
      %v7483 = vpop.f32.mrb[0].mxu0
      %v7484 = vadd.f32 %v7387, %v7483
      %v7485 = vpop.f32.mrb[0].mxu0
      %7486 = vmatprep.mubr.bf16.mxu0 %v5712
      %7487 = vmatmul.mubr.bf16.gmra.mrb[0].mxu0 %v5711
      %v7488 = vpop.f32.mrb[0].mxu0
      %v7489 = vadd.f32 %v7392, %v7488
      %v7490 = vpop.f32.mrb[0].mxu0
      %v7491 = vpop.f32.mrb[0].mxu0
      %v7492 = vadd.f32 %v7395, %v7491
      %v7493 = vpop.f32.mrb[0].mxu0
      %7494 = vdwg.mxu0
      %7495 = vmatprep.subr.bf16.mxu0 0
      %7496 = vmatpush1.bf16.msra.mxu0 %v6770
      %7497 = vmatprep.subr.bf16.mxu0 0
      %7498 = vmatpush1.bf16.msra.mxu0 %v6771
      %7499 = vmatprep.subr.bf16.mxu0 0
      %7500 = vmatpush1.bf16.msra.mxu0 %v6772
      %7501 = vmatprep.subr.bf16.mxu0 0
      %7502 = vmatpush1.bf16.msra.mxu0 %v6773
      %7503 = vmatprep.subr.bf16.mxu0 0
      %7504 = vmatpush1.bf16.msra.mxu0 %v6774
      %7505 = vmatprep.subr.bf16.mxu0 0
      %7506 = vmatpush1.bf16.msra.mxu0 %v6775
      %7507 = vmatprep.subr.bf16.mxu0 0
      %7508 = vmatpush1.bf16.msra.mxu0 %v6776
      %7509 = vmatprep.subr.bf16.mxu0 0
      %7510 = vmatpush1.bf16.msra.mxu0 %v6777
      %7511 = vmatprep.subr.bf16.mxu0 0
      %7512 = vmatpush1.bf16.msra.mxu0 %v6778
      %7513 = vmatprep.subr.bf16.mxu0 0
      %7514 = vmatpush1.bf16.msra.mxu0 %v6779
      %7515 = vmatprep.subr.bf16.mxu0 0
      %7516 = vmatpush1.bf16.msra.mxu0 %v6780
      %7517 = vmatprep.subr.bf16.mxu0 0
      %7518 = vmatpush1.bf16.msra.mxu0 %v6781
      %7519 = vmatprep.subr.bf16.mxu0 0
      %7520 = vmatpush1.bf16.msra.mxu0 %v6782
      %7521 = vmatprep.subr.bf16.mxu0 0
      %7522 = vmatpush1.bf16.msra.mxu0 %v6783
      %7523 = vmatprep.subr.bf16.mxu0 0
      %7524 = vmatpush1.bf16.msra.mxu0 %v6784
      %7525 = vmatprep.subr.bf16.mxu0 0
      %7526 = vmatpush1.bf16.msra.mxu0 %v6785
      %7527 = vmatprep.mubr.bf16.mxu0 %v5574
      %7528 = vmatmul.mubr.bf16.gmra.mrb[0].mxu0 %v5573
      %v7529 = vpop.f32.mrb[0].mxu0
      %v7530 = vadd.f32 %v7433, %v7529
      %v7531 = vpop.f32.mrb[0].mxu0
      %v7532 = vpop.f32.mrb[0].mxu0
      %v7533 = vadd.f32 %v7436, %v7532
      %v7534 = vpop.f32.mrb[0].mxu0
      %7535 = vmatprep.mubr.bf16.mxu0 %v5594
      %7536 = vmatmul.mubr.bf16.gmra.mrb[0].mxu0 %v5593
      %v7537 = vpop.f32.mrb[0].mxu0
      %v7538 = vadd.f32 %v7441, %v7537
      %v7539 = vpop.f32.mrb[0].mxu0
      %v7540 = vpop.f32.mrb[0].mxu0
      %v7541 = vadd.f32 %v7444, %v7540
      %v7542 = vpop.f32.mrb[0].mxu0
      %7543 = vmatprep.mubr.bf16.mxu0 %v5614
      %7544 = vmatmul.mubr.bf16.gmra.mrb[0].mxu0 %v5613
      %v7545 = vpop.f32.mrb[0].mxu0
      %v7546 = vadd.f32 %v7449, %v7545
      %v7547 = vpop.f32.mrb[0].mxu0
      %v7548 = vpop.f32.mrb[0].mxu0
      %v7549 = vadd.f32 %v7452, %v7548
      %v7550 = vpop.f32.mrb[0].mxu0
      %7551 = vmatprep.mubr.bf16.mxu0 %v5634
      %7552 = vmatmul.mubr.bf16.gmra.mrb[0].mxu0 %v5633
      %v7553 = vpop.f32.mrb[0].mxu0
      %v7554 = vadd.f32 %v7457, %v7553
      %v7555 = vpop.f32.mrb[0].mxu0
      %v7556 = vpop.f32.mrb[0].mxu0
      %v7557 = vadd.f32 %v7460, %v7556
      %v7558 = vpop.f32.mrb[0].mxu0
      %7559 = vmatprep.mubr.bf16.mxu0 %v5654
      %7560 = vmatmul.mubr.bf16.gmra.mrb[0].mxu0 %v5653
      %v7561 = vpop.f32.mrb[0].mxu0
      %v7562 = vadd.f32 %v7465, %v7561
      %v7563 = vpop.f32.mrb[0].mxu0
      %v7564 = vpop.f32.mrb[0].mxu0
      %v7565 = vadd.f32 %v7468, %v7564
      %v7566 = vpop.f32.mrb[0].mxu0
      %7567 = vmatprep.mubr.bf16.mxu0 %v5674
      %7568 = vmatmul.mubr.bf16.gmra.mrb[0].mxu0 %v5673
      %v7569 = vpop.f32.mrb[0].mxu0
      %v7570 = vadd.f32 %v7473, %v7569
      %v7571 = vpop.f32.mrb[0].mxu0
      %v7572 = vpop.f32.mrb[0].mxu0
      %v7573 = vadd.f32 %v7476, %v7572
      %v7574 = vpop.f32.mrb[0].mxu0
      %7575 = vmatprep.mubr.bf16.mxu0 %v5694
      %7576 = vmatmul.mubr.bf16.gmra.mrb[0].mxu0 %v5693
      %v7577 = vpop.f32.mrb[0].mxu0
      %v7578 = vadd.f32 %v7481, %v7577
      %v7579 = vpop.f32.mrb[0].mxu0
      %v7580 = vpop.f32.mrb[0].mxu0
      %v7581 = vadd.f32 %v7484, %v7580
      %v7582 = vpop.f32.mrb[0].mxu0
      %7583 = vmatprep.mubr.bf16.mxu0 %v5714
      %7584 = vmatmul.mubr.bf16.gmra.mrb[0].mxu0 %v5713
      %v7585 = vpop.f32.mrb[0].mxu0
      %v7586 = vadd.f32 %v7489, %v7585
      %v7587 = vpop.f32.mrb[0].mxu0
      %v7588 = vpop.f32.mrb[0].mxu0
      %v7589 = vadd.f32 %v7492, %v7588
      %v7590 = vpop.f32.mrb[0].mxu0
      %7591 = vdwg.mxu0
      %7592 = vmatprep.subr.bf16.mxu0 0
      %7593 = vmatpush1.bf16.msra.mxu0 %v6786
      %7594 = vmatprep.subr.bf16.mxu0 0
      %7595 = vmatpush1.bf16.msra.mxu0 %v6787
      %7596 = vmatprep.subr.bf16.mxu0 0
      %7597 = vmatpush1.bf16.msra.mxu0 %v6788
      %7598 = vmatprep.subr.bf16.mxu0 0
      %7599 = vmatpush1.bf16.msra.mxu0 %v6789
      %7600 = vmatprep.subr.bf16.mxu0 0
      %7601 = vmatpush1.bf16.msra.mxu0 %v6790
      %7602 = vmatprep.subr.bf16.mxu0 0
      %7603 = vmatpush1.bf16.msra.mxu0 %v6791
      %7604 = vmatprep.subr.bf16.mxu0 0
      %7605 = vmatpush1.bf16.msra.mxu0 %v6792
      %7606 = vmatprep.subr.bf16.mxu0 0
      %7607 = vmatpush1.bf16.msra.mxu0 %v6793
      %7608 = vmatprep.subr.bf16.mxu0 0
      %7609 = vmatpush1.bf16.msra.mxu0 %v6794
      %7610 = vmatprep.subr.bf16.mxu0 0
      %7611 = vmatpush1.bf16.msra.mxu0 %v6795
      %7612 = vmatprep.subr.bf16.mxu0 0
      %7613 = vmatpush1.bf16.msra.mxu0 %v6796
      %7614 = vmatprep.subr.bf16.mxu0 0
      %7615 = vmatpush1.bf16.msra.mxu0 %v6797
      %7616 = vmatprep.subr.bf16.mxu0 0
      %7617 = vmatpush1.bf16.msra.mxu0 %v6798
      %7618 = vmatprep.subr.bf16.mxu0 0
      %7619 = vmatpush1.bf16.msra.mxu0 %v6799
      %7620 = vmatprep.subr.bf16.mxu0 0
      %7621 = vmatpush1.bf16.msra.mxu0 %v6800
      %7622 = vmatprep.subr.bf16.mxu0 0
      %7623 = vmatpush1.bf16.msra.mxu0 %v6801
      %7624 = vmatprep.mubr.bf16.mxu0 %v5576
      %7625 = vmatmul.mubr.bf16.gmra.mrb[0].mxu0 %v5575
      %v7626 = vpop.f32.mrb[0].mxu0
      %v7627 = vadd.f32 %v7530, %v7626
      %v7628 = vpop.f32.mrb[0].mxu0
      %v7629 = vpop.f32.mrb[0].mxu0
      %v7630 = vadd.f32 %v7533, %v7629
      %v7631 = vpop.f32.mrb[0].mxu0
      %7632 = vmatprep.mubr.bf16.mxu0 %v5596
      %7633 = vmatmul.mubr.bf16.gmra.mrb[0].mxu0 %v5595
      %v7634 = vpop.f32.mrb[0].mxu0
      %v7635 = vadd.f32 %v7538, %v7634
      %v7636 = vpop.f32.mrb[0].mxu0
      %v7637 = vpop.f32.mrb[0].mxu0
      %v7638 = vadd.f32 %v7541, %v7637
      %v7639 = vpop.f32.mrb[0].mxu0
      %7640 = vmatprep.mubr.bf16.mxu0 %v5616
      %7641 = vmatmul.mubr.bf16.gmra.mrb[0].mxu0 %v5615
      %v7642 = vpop.f32.mrb[0].mxu0
      %v7643 = vadd.f32 %v7546, %v7642
      %v7644 = vpop.f32.mrb[0].mxu0
      %v7645 = vpop.f32.mrb[0].mxu0
      %v7646 = vadd.f32 %v7549, %v7645
      %v7647 = vpop.f32.mrb[0].mxu0
      %7648 = vmatprep.mubr.bf16.mxu0 %v5636
      %7649 = vmatmul.mubr.bf16.gmra.mrb[0].mxu0 %v5635
      %v7650 = vpop.f32.mrb[0].mxu0
      %v7651 = vadd.f32 %v7554, %v7650
      %v7652 = vpop.f32.mrb[0].mxu0
      %v7653 = vpop.f32.mrb[0].mxu0
      %v7654 = vadd.f32 %v7557, %v7653
      %v7655 = vpop.f32.mrb[0].mxu0
      %7656 = vmatprep.mubr.bf16.mxu0 %v5656
      %7657 = vmatmul.mubr.bf16.gmra.mrb[0].mxu0 %v5655
      %v7658 = vpop.f32.mrb[0].mxu0
      %v7659 = vadd.f32 %v7562, %v7658
      %v7660 = vpop.f32.mrb[0].mxu0
      %v7661 = vpop.f32.mrb[0].mxu0
      %v7662 = vadd.f32 %v7565, %v7661
      %v7663 = vpop.f32.mrb[0].mxu0
      %7664 = vmatprep.mubr.bf16.mxu0 %v5676
      %7665 = vmatmul.mubr.bf16.gmra.mrb[0].mxu0 %v5675
      %v7666 = vpop.f32.mrb[0].mxu0
      %v7667 = vadd.f32 %v7570, %v7666
      %v7668 = vpop.f32.mrb[0].mxu0
      %v7669 = vpop.f32.mrb[0].mxu0
      %v7670 = vadd.f32 %v7573, %v7669
      %v7671 = vpop.f32.mrb[0].mxu0
      %7672 = vmatprep.mubr.bf16.mxu0 %v5696
      %7673 = vmatmul.mubr.bf16.gmra.mrb[0].mxu0 %v5695
      %v7674 = vpop.f32.mrb[0].mxu0
      %v7675 = vadd.f32 %v7578, %v7674
      %v7676 = vpop.f32.mrb[0].mxu0
      %v7677 = vpop.f32.mrb[0].mxu0
      %v7678 = vadd.f32 %v7581, %v7677
      %v7679 = vpop.f32.mrb[0].mxu0
      %7680 = vmatprep.mubr.bf16.mxu0 %v5716
      %7681 = vmatmul.mubr.bf16.gmra.mrb[0].mxu0 %v5715
      %v7682 = vpop.f32.mrb[0].mxu0
      %v7683 = vadd.f32 %v7586, %v7682
      %v7684 = vpop.f32.mrb[0].mxu0
      %v7685 = vpop.f32.mrb[0].mxu0
      %v7686 = vadd.f32 %v7589, %v7685
      %v7687 = vpop.f32.mrb[0].mxu0
      %7688 = vdwg.mxu0
      %7689 = vmatprep.subr.bf16.mxu0 0
      %7690 = vmatpush1.bf16.msra.mxu0 %v6802
      %7691 = vmatprep.subr.bf16.mxu0 0
      %7692 = vmatpush1.bf16.msra.mxu0 %v6803
      %7693 = vmatprep.subr.bf16.mxu0 0
      %7694 = vmatpush1.bf16.msra.mxu0 %v6804
      %7695 = vmatprep.subr.bf16.mxu0 0
      %7696 = vmatpush1.bf16.msra.mxu0 %v6805
      %7697 = vmatprep.subr.bf16.mxu0 0
      %7698 = vmatpush1.bf16.msra.mxu0 %v6806
      %7699 = vmatprep.subr.bf16.mxu0 0
      %7700 = vmatpush1.bf16.msra.mxu0 %v6807
      %7701 = vmatprep.subr.bf16.mxu0 0
      %7702 = vmatpush1.bf16.msra.mxu0 %v6808
      %7703 = vmatprep.subr.bf16.mxu0 0
      %7704 = vmatpush1.bf16.msra.mxu0 %v6809
      %7705 = vmatprep.subr.bf16.mxu0 0
      %7706 = vmatpush1.bf16.msra.mxu0 %v6810
      %7707 = vmatprep.subr.bf16.mxu0 0
      %7708 = vmatpush1.bf16.msra.mxu0 %v6811
      %7709 = vmatprep.subr.bf16.mxu0 0
      %7710 = vmatpush1.bf16.msra.mxu0 %v6812
      %7711 = vmatprep.subr.bf16.mxu0 0
      %7712 = vmatpush1.bf16.msra.mxu0 %v6813
      %7713 = vmatprep.subr.bf16.mxu0 0
      %7714 = vmatpush1.bf16.msra.mxu0 %v6814
      %7715 = vmatprep.subr.bf16.mxu0 0
      %7716 = vmatpush1.bf16.msra.mxu0 %v6815
      %7717 = vmatprep.subr.bf16.mxu0 0
      %7718 = vmatpush1.bf16.msra.mxu0 %v6816
      %7719 = vmatprep.subr.bf16.mxu0 0
      %7720 = vmatpush1.bf16.msra.mxu0 %v6817
      %7721 = vmatprep.mubr.bf16.mxu0 %v5578
      %7722 = vmatmul.mubr.bf16.gmra.mrb[0].mxu0 %v5577
      %v7723 = vpop.f32.mrb[0].mxu0
      %v7724 = vadd.f32 %v7627, %v7723
      %v7725 = vpop.f32.mrb[0].mxu0
      %v7726 = vpop.f32.mrb[0].mxu0
      %v7727 = vadd.f32 %v7630, %v7726
      %v7728 = vpop.f32.mrb[0].mxu0
      %7729 = vmatprep.mubr.bf16.mxu0 %v5598
      %7730 = vmatmul.mubr.bf16.gmra.mrb[0].mxu0 %v5597
      %v7731 = vpop.f32.mrb[0].mxu0
      %v7732 = vadd.f32 %v7635, %v7731
      %v7733 = vpop.f32.mrb[0].mxu0
      %v7734 = vpop.f32.mrb[0].mxu0
      %v7735 = vadd.f32 %v7638, %v7734
      %v7736 = vpop.f32.mrb[0].mxu0
      %7737 = vmatprep.mubr.bf16.mxu0 %v5618
      %7738 = vmatmul.mubr.bf16.gmra.mrb[0].mxu0 %v5617
      %v7739 = vpop.f32.mrb[0].mxu0
      %v7740 = vadd.f32 %v7643, %v7739
      %v7741 = vpop.f32.mrb[0].mxu0
      %v7742 = vpop.f32.mrb[0].mxu0
      %v7743 = vadd.f32 %v7646, %v7742
      %v7744 = vpop.f32.mrb[0].mxu0
      %7745 = vmatprep.mubr.bf16.mxu0 %v5638
      %7746 = vmatmul.mubr.bf16.gmra.mrb[0].mxu0 %v5637
      %v7747 = vpop.f32.mrb[0].mxu0
      %v7748 = vadd.f32 %v7651, %v7747
      %v7749 = vpop.f32.mrb[0].mxu0
      %v7750 = vpop.f32.mrb[0].mxu0
      %v7751 = vadd.f32 %v7654, %v7750
      %v7752 = vpop.f32.mrb[0].mxu0
      %7753 = vmatprep.mubr.bf16.mxu0 %v5658
      %7754 = vmatmul.mubr.bf16.gmra.mrb[0].mxu0 %v5657
      %v7755 = vpop.f32.mrb[0].mxu0
      %v7756 = vadd.f32 %v7659, %v7755
      %v7757 = vpop.f32.mrb[0].mxu0
      %v7758 = vpop.f32.mrb[0].mxu0
      %v7759 = vadd.f32 %v7662, %v7758
      %v7760 = vpop.f32.mrb[0].mxu0
      %7761 = vmatprep.mubr.bf16.mxu0 %v5678
      %7762 = vmatmul.mubr.bf16.gmra.mrb[0].mxu0 %v5677
      %v7763 = vpop.f32.mrb[0].mxu0
      %v7764 = vadd.f32 %v7667, %v7763
      %v7765 = vpop.f32.mrb[0].mxu0
      %v7766 = vpop.f32.mrb[0].mxu0
      %v7767 = vadd.f32 %v7670, %v7766
      %v7768 = vpop.f32.mrb[0].mxu0
      %7769 = vmatprep.mubr.bf16.mxu0 %v5698
      %7770 = vmatmul.mubr.bf16.gmra.mrb[0].mxu0 %v5697
      %v7771 = vpop.f32.mrb[0].mxu0
      %v7772 = vadd.f32 %v7675, %v7771
      %v7773 = vpop.f32.mrb[0].mxu0
      %v7774 = vpop.f32.mrb[0].mxu0
      %v7775 = vadd.f32 %v7678, %v7774
      %v7776 = vpop.f32.mrb[0].mxu0
      %7777 = vmatprep.mubr.bf16.mxu0 %v5718
      %7778 = vmatmul.mubr.bf16.gmra.mrb[0].mxu0 %v5717
      %v7779 = vpop.f32.mrb[0].mxu0
      %v7780 = vadd.f32 %v7683, %v7779
      %v7781 = vpop.f32.mrb[0].mxu0
      %v7782 = vpop.f32.mrb[0].mxu0
      %v7783 = vadd.f32 %v7686, %v7782
      %v7784 = vpop.f32.mrb[0].mxu0
      %7785 = vdwg.mxu0
      %7786 = vmatprep.subr.bf16.mxu0 0
      %7787 = vmatpush1.bf16.msra.mxu0 %v6818
      %7788 = vmatprep.subr.bf16.mxu0 0
      %7789 = vmatpush1.bf16.msra.mxu0 %v6819
      %7790 = vmatprep.subr.bf16.mxu0 0
      %7791 = vmatpush1.bf16.msra.mxu0 %v6820
      %7792 = vmatprep.subr.bf16.mxu0 0
      %7793 = vmatpush1.bf16.msra.mxu0 %v6821
      %7794 = vmatprep.subr.bf16.mxu0 0
      %7795 = vmatpush1.bf16.msra.mxu0 %v6822
      %7796 = vmatprep.subr.bf16.mxu0 0
      %7797 = vmatpush1.bf16.msra.mxu0 %v6823
      %7798 = vmatprep.subr.bf16.mxu0 0
      %7799 = vmatpush1.bf16.msra.mxu0 %v6824
      %7800 = vmatprep.subr.bf16.mxu0 0
      %7801 = vmatpush1.bf16.msra.mxu0 %v6825
      %7802 = vmatprep.subr.bf16.mxu0 0
      %7803 = vmatpush1.bf16.msra.mxu0 %v6826
      %7804 = vmatprep.subr.bf16.mxu0 0
      %7805 = vmatpush1.bf16.msra.mxu0 %v6827
      %7806 = vmatprep.subr.bf16.mxu0 0
      %7807 = vmatpush1.bf16.msra.mxu0 %v6828
      %7808 = vmatprep.subr.bf16.mxu0 0
      %7809 = vmatpush1.bf16.msra.mxu0 %v6829
      %7810 = vmatprep.subr.bf16.mxu0 0
      %7811 = vmatpush1.bf16.msra.mxu0 %v6830
      %7812 = vmatprep.subr.bf16.mxu0 0
      %7813 = vmatpush1.bf16.msra.mxu0 %v6831
      %7814 = vmatprep.subr.bf16.mxu0 0
      %7815 = vmatpush1.bf16.msra.mxu0 %v6832
      %7816 = vmatprep.subr.bf16.mxu0 0
      %7817 = vmatpush1.bf16.msra.mxu0 %v6833
      %7818 = vmatprep.mubr.bf16.mxu0 %v5580
      %7819 = vmatmul.mubr.bf16.gmra.mrb[0].mxu0 %v5579
      %v7820 = vpop.f32.mrb[0].mxu0
      %v7821 = vadd.f32 %v7724, %v7820
      %v7822 = vpop.f32.mrb[0].mxu0
      %v7823 = vpop.f32.mrb[0].mxu0
      %v7824 = vadd.f32 %v7727, %v7823
      %v7825 = vpop.f32.mrb[0].mxu0
      %7826 = vmatprep.mubr.bf16.mxu0 %v5600
      %7827 = vmatmul.mubr.bf16.gmra.mrb[0].mxu0 %v5599
      %v7828 = vpop.f32.mrb[0].mxu0
      %v7829 = vadd.f32 %v7732, %v7828
      %v7830 = vpop.f32.mrb[0].mxu0
      %v7831 = vpop.f32.mrb[0].mxu0
      %v7832 = vadd.f32 %v7735, %v7831
      %v7833 = vpop.f32.mrb[0].mxu0
      %7834 = vmatprep.mubr.bf16.mxu0 %v5620
      %7835 = vmatmul.mubr.bf16.gmra.mrb[0].mxu0 %v5619
      %v7836 = vpop.f32.mrb[0].mxu0
      %v7837 = vadd.f32 %v7740, %v7836
      %v7838 = vpop.f32.mrb[0].mxu0
      %v7839 = vpop.f32.mrb[0].mxu0
      %v7840 = vadd.f32 %v7743, %v7839
      %v7841 = vpop.f32.mrb[0].mxu0
      %7842 = vmatprep.mubr.bf16.mxu0 %v5640
      %7843 = vmatmul.mubr.bf16.gmra.mrb[0].mxu0 %v5639
      %v7844 = vpop.f32.mrb[0].mxu0
      %v7845 = vadd.f32 %v7748, %v7844
      %v7846 = vpop.f32.mrb[0].mxu0
      %v7847 = vpop.f32.mrb[0].mxu0
      %v7848 = vadd.f32 %v7751, %v7847
      %v7849 = vpop.f32.mrb[0].mxu0
      %7850 = vmatprep.mubr.bf16.mxu0 %v5660
      %7851 = vmatmul.mubr.bf16.gmra.mrb[0].mxu0 %v5659
      %v7852 = vpop.f32.mrb[0].mxu0
      %v7853 = vadd.f32 %v7756, %v7852
      %v7854 = vpop.f32.mrb[0].mxu0
      %v7855 = vpop.f32.mrb[0].mxu0
      %v7856 = vadd.f32 %v7759, %v7855
      %v7857 = vpop.f32.mrb[0].mxu0
      %7858 = vmatprep.mubr.bf16.mxu0 %v5680
      %7859 = vmatmul.mubr.bf16.gmra.mrb[0].mxu0 %v5679
      %v7860 = vpop.f32.mrb[0].mxu0
      %v7861 = vadd.f32 %v7764, %v7860
      %v7862 = vpop.f32.mrb[0].mxu0
      %v7863 = vpop.f32.mrb[0].mxu0
      %v7864 = vadd.f32 %v7767, %v7863
      %v7865 = vpop.f32.mrb[0].mxu0
      %7866 = vmatprep.mubr.bf16.mxu0 %v5700
      %7867 = vmatmul.mubr.bf16.gmra.mrb[0].mxu0 %v5699
      %v7868 = vpop.f32.mrb[0].mxu0
      %v7869 = vadd.f32 %v7772, %v7868
      %v7870 = vpop.f32.mrb[0].mxu0
      %v7871 = vpop.f32.mrb[0].mxu0
      %v7872 = vadd.f32 %v7775, %v7871
      %v7873 = vpop.f32.mrb[0].mxu0
      %7874 = vmatprep.mubr.bf16.mxu0 %v5720
      %7875 = vmatmul.mubr.bf16.gmra.mrb[0].mxu0 %v5719
      %v7876 = vpop.f32.mrb[0].mxu0
      %v7877 = vadd.f32 %v7780, %v7876
      %v7878 = vpop.f32.mrb[0].mxu0
      %v7879 = vpop.f32.mrb[0].mxu0
      %v7880 = vadd.f32 %v7783, %v7879
      %v7881 = vpop.f32.mrb[0].mxu0
      %7882 = vdwg.mxu0
      %7883 = vmatprep.subr.bf16.mxu0 0
      %7884 = vmatpush1.bf16.msra.mxu0 %v6834
      %7885 = vmatprep.subr.bf16.mxu0 0
      %7886 = vmatpush1.bf16.msra.mxu0 %v6835
      %7887 = vmatprep.subr.bf16.mxu0 0
      %7888 = vmatpush1.bf16.msra.mxu0 %v6836
      %7889 = vmatprep.subr.bf16.mxu0 0
      %7890 = vmatpush1.bf16.msra.mxu0 %v6837
      %7891 = vmatprep.subr.bf16.mxu0 0
      %7892 = vmatpush1.bf16.msra.mxu0 %v6838
      %7893 = vmatprep.subr.bf16.mxu0 0
      %7894 = vmatpush1.bf16.msra.mxu0 %v6839
      %7895 = vmatprep.subr.bf16.mxu0 0
      %7896 = vmatpush1.bf16.msra.mxu0 %v6840
      %7897 = vmatprep.subr.bf16.mxu0 0
      %7898 = vmatpush1.bf16.msra.mxu0 %v6841
      %7899 = vmatprep.subr.bf16.mxu0 0
      %7900 = vmatpush1.bf16.msra.mxu0 %v6842
      %7901 = vmatprep.subr.bf16.mxu0 0
      %7902 = vmatpush1.bf16.msra.mxu0 %v6843
      %7903 = vmatprep.subr.bf16.mxu0 0
      %7904 = vmatpush1.bf16.msra.mxu0 %v6844
      %7905 = vmatprep.subr.bf16.mxu0 0
      %7906 = vmatpush1.bf16.msra.mxu0 %v6845
      %7907 = vmatprep.subr.bf16.mxu0 0
      %7908 = vmatpush1.bf16.msra.mxu0 %v6846
      %7909 = vmatprep.subr.bf16.mxu0 0
      %7910 = vmatpush1.bf16.msra.mxu0 %v6847
      %7911 = vmatprep.subr.bf16.mxu0 0
      %7912 = vmatpush1.bf16.msra.mxu0 %v6848
      %7913 = vmatprep.subr.bf16.mxu0 0
      %7914 = vmatpush1.bf16.msra.mxu0 %v6849
      %7915 = vmatprep.mubr.bf16.mxu0 %v5582
      %7916 = vmatmul.mubr.bf16.gmra.mrb[0].mxu0 %v5581
      %v7917 = vpop.f32.mrb[0].mxu0
      %v7918 = vadd.f32 %v7821, %v7917
      %v7919 = vpop.f32.mrb[0].mxu0
      %v7920 = vpop.f32.mrb[0].mxu0
      %v7921 = vadd.f32 %v7824, %v7920
      %v7922 = vpop.f32.mrb[0].mxu0
      %7923 = vmatprep.mubr.bf16.mxu0 %v5602
      %7924 = vmatmul.mubr.bf16.gmra.mrb[0].mxu0 %v5601
      %v7925 = vpop.f32.mrb[0].mxu0
      %v7926 = vadd.f32 %v7829, %v7925
      %v7927 = vpop.f32.mrb[0].mxu0
      %v7928 = vpop.f32.mrb[0].mxu0
      %v7929 = vadd.f32 %v7832, %v7928
      %v7930 = vpop.f32.mrb[0].mxu0
      %7931 = vmatprep.mubr.bf16.mxu0 %v5622
      %7932 = vmatmul.mubr.bf16.gmra.mrb[0].mxu0 %v5621
      %v7933 = vpop.f32.mrb[0].mxu0
      %v7934 = vadd.f32 %v7837, %v7933
      %v7935 = vpop.f32.mrb[0].mxu0
      %v7936 = vpop.f32.mrb[0].mxu0
      %v7937 = vadd.f32 %v7840, %v7936
      %v7938 = vpop.f32.mrb[0].mxu0
      %7939 = vmatprep.mubr.bf16.mxu0 %v5642
      %7940 = vmatmul.mubr.bf16.gmra.mrb[0].mxu0 %v5641
      %v7941 = vpop.f32.mrb[0].mxu0
      %v7942 = vadd.f32 %v7845, %v7941
      %v7943 = vpop.f32.mrb[0].mxu0
      %v7944 = vpop.f32.mrb[0].mxu0
      %v7945 = vadd.f32 %v7848, %v7944
      %v7946 = vpop.f32.mrb[0].mxu0
      %7947 = vmatprep.mubr.bf16.mxu0 %v5662
      %7948 = vmatmul.mubr.bf16.gmra.mrb[0].mxu0 %v5661
      %v7949 = vpop.f32.mrb[0].mxu0
      %v7950 = vadd.f32 %v7853, %v7949
      %v7951 = vpop.f32.mrb[0].mxu0
      %v7952 = vpop.f32.mrb[0].mxu0
      %v7953 = vadd.f32 %v7856, %v7952
      %v7954 = vpop.f32.mrb[0].mxu0
      %7955 = vmatprep.mubr.bf16.mxu0 %v5682
      %7956 = vmatmul.mubr.bf16.gmra.mrb[0].mxu0 %v5681
      %v7957 = vpop.f32.mrb[0].mxu0
      %v7958 = vadd.f32 %v7861, %v7957
      %v7959 = vpop.f32.mrb[0].mxu0
      %v7960 = vpop.f32.mrb[0].mxu0
      %v7961 = vadd.f32 %v7864, %v7960
      %v7962 = vpop.f32.mrb[0].mxu0
      %7963 = vmatprep.mubr.bf16.mxu0 %v5702
      %7964 = vmatmul.mubr.bf16.gmra.mrb[0].mxu0 %v5701
      %v7965 = vpop.f32.mrb[0].mxu0
      %v7966 = vadd.f32 %v7869, %v7965
      %v7967 = vpop.f32.mrb[0].mxu0
      %v7968 = vpop.f32.mrb[0].mxu0
      %v7969 = vadd.f32 %v7872, %v7968
      %v7970 = vpop.f32.mrb[0].mxu0
      %7971 = vmatprep.mubr.bf16.mxu0 %v5722
      %7972 = vmatmul.mubr.bf16.gmra.mrb[0].mxu0 %v5721
      %v7973 = vpop.f32.mrb[0].mxu0
      %v7974 = vadd.f32 %v7877, %v7973
      %v7975 = vpop.f32.mrb[0].mxu0
      %v7976 = vpop.f32.mrb[0].mxu0
      %v7977 = vadd.f32 %v7880, %v7976
      %v7978 = vpop.f32.mrb[0].mxu0
      %7979 = vdwg.mxu0
      %7980 = vst [vmem:[%s283] sm:$0xff] %v7918
      %7981 = vst [vmem:[%s283 + $0x8] sm:$0xff] %v7921
      %7982 = vst [vmem:[%s283 + $0x10] sm:$0xff] %v7926
      %7983 = vst [vmem:[%s283 + $0x18] sm:$0xff] %v7929
      %7984 = vst [vmem:[%s283 + $0x20] sm:$0xff] %v7934
      %7985 = vst [vmem:[%s283 + $0x28] sm:$0xff] %v7937
      %7986 = vst [vmem:[%s283 + $0x30] sm:$0xff] %v7942
      %7987 = vst [vmem:[%s283 + $0x38] sm:$0xff] %v7945
      %7988 = vst [vmem:[%s283 + $0x40] sm:$0xff] %v7950
      %7989 = vst [vmem:[%s283 + $0x48] sm:$0xff] %v7953
      %7990 = vst [vmem:[%s283 + $0x50] sm:$0xff] %v7958
      %7991 = vst [vmem:[%s283 + $0x58] sm:$0xff] %v7961
      %7992 = vst [vmem:[%s283 + $0x60] sm:$0xff] %v7966
      %7993 = vst [vmem:[%s283 + $0x68] sm:$0xff] %v7969
      %7994 = vst [vmem:[%s283 + $0x70] sm:$0xff] %v7974
      %7995 = vst [vmem:[%s283 + $0x78] sm:$0xff] %v7977
      %s7996 = smul.u32 16, %s18
      %p7997 = scmp.lt.s32.totalorder %s7996, 31
      %s7998 = scalar_select %p7997, %s7996, 31
      %s7999 = smul.addr %s7998, 8
      %s8000 = scalar_lea.vmem %s7, %s7999
      // Predicated region
      $region49: #{baseline_adapter_forward.1} parent=47 // pred_check
        %p8001 = pneg %p188
      $region50: #{baseline_adapter_forward.1} parent=47 // pred_check_branch
        %8003 = sbr.rel (%p8001) target = $region52
      $region51: #{baseline_adapter_forward.1} parent=47 // pred_region
        %s8004 = smul.u32 16, %s18
      $region52: #{baseline_adapter_forward.1} parent=47 // pred_fallthru
        _
    $region48: #{baseline_adapter_forward.1} parent=5 // pred_fallthru
      _
    %p8005 = scmp.le.s32.totalorder 2, %s13
    // Predicated region
    $region53: #{baseline_adapter_forward.1} parent=5 // pred_check
      %p8006 = pneg %p8005
    $region54: #{baseline_adapter_forward.1} parent=5 // pred_check_branch
      %8008 = sbr.rel (%p8006) target = $region56
    $region55: #{baseline_adapter_forward.1} parent=5 // pred_region
      %s8009 = ssub.s32 %s13, 2
      // Predicated region
      $region57: #{baseline_adapter_forward.1} parent=55 // pred_check
        %p8010 = pneg %p194
      $region58: #{baseline_adapter_forward.1} parent=55 // pred_check_branch
        %8012 = sbr.rel (%p8010) target = $region60
      $region59: #{baseline_adapter_forward.1} parent=55 // pred_region
        %s8013 = smul.u32 16, %s19
        %p8014 = scmp.lt.s32.totalorder %s8013, 31
        %s8015 = scalar_select %p8014, %s8013, 31
        %s8016 = smul.addr %s8015, 8
        %s8017 = scalar_lea.vmem %s7, %s8016
      $region60: #{baseline_adapter_forward.1} parent=55 // pred_fallthru
        _
    $region56: #{baseline_adapter_forward.1} parent=5 // pred_fallthru
      _
  $region6: #{baseline_adapter_forward.1} parent=0 // loop_footer
    %s17 = sadd.s32 1, %s13
  $region7: #{baseline_adapter_forward.1} parent=0 // loop_footer_branch
    %12 = sbr.rel target = $region3
  $region8: #{baseline_adapter_forward.1} parent=0 // loop_exit
    _

</llo_original>
